<compile_context>
chip_gen: v7x
topology: tpu7x:2x2x1
jax: 0.10.0
libtpu: 0.0.40
codegen_flags: <defaults>
</compile_context>

<pallas_src>
import jax
import jax.numpy as jnp
from jax import lax
from jax.experimental import pallas as pl
from jax.experimental.pallas import tpu as pltpu


_LANE = 128
_SUBLANE = 8

# None = not probed yet; set to True/False after the first call.
_IN_KERNEL_GATHER_OK = None


def _round_up(x, m):
    return ((x + m - 1) // m) * m


def _vmem_capacity_bytes():
    """Best-effort VMEM capacity query; conservative (v7x-sized) default."""
    try:
        cap = getattr(pltpu.get_tpu_info(), "vmem_capacity_bytes", None)
        if cap:
            return int(cap)
    except Exception:
        pass
    return 64 * 1024 * 1024


def _choose_tiling(B, W, S, Hp, Vp, resident):
    """Pick label tile TB (multiple of 128), block count and vmem limit, chip-aware."""
    vmem_cap = _vmem_capacity_bytes()
    vmem_limit = int(vmem_cap * 0.70)          # ~90 MiB on v5e/v6e, ~45 MiB on v7x
    budget = int(vmem_limit * 0.60)            # headroom for compiler scratch/spills
    # Per-label VMEM bytes: S sememe rows + s + ~2 sem-sized elementwise temps,
    # double-buffered output row, id columns.
    per_label = 4 * Hp * (3 * S + 6) + 8 * W * (S + 1)
    fixed = 0
    if resident:
        fixed = 2 * 4 * Vp * Hp                # double-buffered VMEM-resident table
    else:
        per_label += 2 * 4 * Hp * W * (S + 1)  # double-buffered pre-gathered inputs
    tb = (budget - fixed) // max(per_label, 1)
    tb = max(_LANE, min(1024, (tb // _LANE) * _LANE))
    tb = min(tb, _round_up(B, _LANE))          # never bigger than the padded batch
    # ~64 MiB VMEM => v7x-class part with 2 TensorCores: aim for >= 2 blocks per
    # core (keeps double-buffering per core).  Single-TC parts keep the largest tile
    # (fewer grid steps, larger DMAs).
    cores = 2 if vmem_cap <= 80 * 1024 * 1024 else 1
    if cores == 2 and B >= 4 * _LANE:
        tb = min(tb, max(_LANE, _round_up(pl.cdiv(B, 4), _LANE)))
    n_blocks = max(1, pl.cdiv(B, tb))
    if cores == 2 and n_blocks > 1 and n_blocks % 2 == 1:
        # Odd block counts leave one v7x TensorCore idle for a block; rebalance.
        tb2 = max(_LANE, _round_up(pl.cdiv(B, n_blocks + 1), _LANE))
        if pl.cdiv(B, tb2) % 2 == 0:
            tb, n_blocks = tb2, pl.cdiv(B, tb2)
    return tb, n_blocks, vmem_limit


def _word_span(s, sem_list):
    """s: (TB, Hp) f32; sem_list: list of S arrays (TB, Hp) f32.
    Returns 0.5 * (mean of the 3 farthest sememes + s), shape (TB, Hp)."""
    S = len(sem_list)
    # Rank key = sememe-dependent part of ||s - sem + 1e-6||^2 (sqrt and the
    # sememe-independent terms dropped; both are rank-preserving).  The epsilon is
    # folded into the small (TB, Hp) operand so no sem-sized epsilon pass is run.
    t = 2.0 * s + 2e-6                                                # (TB, Hp)
    scores = [jnp.sum(sm * (sm - t), axis=-1, keepdims=True)          # (TB, 1)
              for sm in sem_list]
    # Top-3 LARGEST scores (ties -> smallest index, matching torch.sort descending).
    sel = [jnp.zeros_like(scores[0]) for _ in range(S)]
    cur = list(scores)
    for _ in range(3):
        mx = cur[0]
        for j in range(1, S):
            mx = jnp.maximum(mx, cur[j])
        taken = jnp.zeros_like(mx, dtype=jnp.bool_)
        nxt = []
        for j in range(S):
            hit = jnp.logical_and(cur[j] == mx, jnp.logical_not(taken))
            sel[j] = sel[j] + hit.astype(jnp.float32)
            nxt.append(jnp.where(hit, -jnp.inf, cur[j]))
            taken = jnp.logical_or(taken, hit)
        cur = nxt
    # Hoisted reduction: single masked sum of the 3 selected sememe vectors.
    top3 = sel[0] * sem_list[0]
    for j in range(1, S):
        top3 = top3 + sel[j] * sem_list[j]
    return 0.5 * (top3 * (1.0 / 3.0) + s)


def _knn_kernel_vmem_table(wid_ref, sid_ref, tab_ref, out_ref):
    # wid_ref: (W, TB) i32, sid_ref: (W, S, TB) i32, tab_ref: (Vp, Hp) f32 resident.
    W = wid_ref.shape[0]
    S = sid_ref.shape[1]
    tab = tab_ref[...]
    acc = None
    for w in range(W):                                    # W is small & static
        s = jnp.take(tab, wid_ref[w], axis=0)             # (TB, Hp) row gather
        sem_list = [jnp.take(tab, sid_ref[w, j], axis=0) for j in range(S)]
        span = _word_span(s, sem_list)
        acc = span if acc is None else acc + span
    out_ref[...] = acc * (1.0 / W)


def _knn_kernel_pregathered(s_ref, sem_ref, out_ref):
    # s_ref: (W, TB, Hp) f32, sem_ref: (W, S, TB, Hp) f32 (gathered by XLA).
    W = s_ref.shape[0]
    S = sem_ref.shape[1]
    acc = None
    for w in range(W):
        span = _word_span(s_ref[w], [sem_ref[w, j] for j in range(S)])
        acc = span if acc is None else acc + span
    out_ref[...] = acc * (1.0 / W)


def sememe_embedding_knn(emb_table, word_ids, sememe_ids, *, label_block=None):
    """emb_table: [V, H] float, word_ids: [B, W] int32, sememe_ids: [B, W, S] int32."""
    global _IN_KERNEL_GATHER_OK
    B, W = word_ids.shape
    S = sememe_ids.shape[-1]
    V, H = emb_table.shape
    assert S >= 3, "KNN path selects the 3 farthest sememes; need S >= 3"

    Hp = _round_up(H, _LANE)        # lane-dense H: full vregs, unmasked stores
    Vp = _round_up(V, _SUBLANE)
    vmem_cap = _vmem_capacity_bytes()
    # VMEM-resident table path only when the (double-buffered) padded table is small.
    resident_ok = (2 * 4 * Vp * Hp) <= min(8 * 1024 * 1024, vmem_cap // 8)

    # Zero padding is neutral: padded H contributes 0 to the score and 0 to the
    # output (sliced off); padded vocab/label slots index row 0 and are discarded.
    tab_p = jnp.pad(emb_table.astype(jnp.float32), ((0, Vp - V), (0, Hp - H)))
    wid_t_full = word_ids.astype(jnp.int32).T                              # (W, B)
    sid_t_full = jnp.transpose(sememe_ids.astype(jnp.int32), (1, 2, 0))    # (W, S, B)

    def run(resident):
        tb, n_blocks, vmem_limit = _choose_tiling(B, W, S, Hp, Vp, resident)
        if label_block is not None:
            tb = _round_up(int(label_block), _LANE)
            n_blocks = max(1, pl.cdiv(B, tb))
        b_pad = n_blocks * tb
        wid_t = jnp.pad(wid_t_full, ((0, 0), (0, b_pad - B)))
        sid_t = jnp.pad(sid_t_full, ((0, 0), (0, 0), (0, b_pad - B)))
        params = pltpu.CompilerParams(dimension_semantics=("parallel",),
                                      vmem_limit_bytes=vmem_limit)
        if resident:
            cost = pl.CostEstimate(
                flops=6 * W * S * b_pad * Hp, transcendentals=0,
                bytes_accessed=4 * (Vp * Hp + b_pad * W * (S + 1) + b_pad * Hp))
            out = pl.pallas_call(
                _knn_kernel_vmem_table,
                out_shape=jax.ShapeDtypeStruct((b_pad, Hp), jnp.float32),
                grid=(n_blocks,),
                in_specs=[
                    pl.BlockSpec((W, tb), lambda i: (0, i)),
                    pl.BlockSpec((W, S, tb), lambda i: (0, 0, i)),
                    pl.BlockSpec((Vp, Hp), lambda i: (0, 0)),   # resident table
                ],
                out_specs=pl.BlockSpec((tb, Hp), lambda i: (i, 0)),
                compiler_params=params,
                cost_estimate=cost,
            )(wid_t, sid_t, tab_p)
        else:
            # Fallback: XLA gathers the rows (materializes (W,S,B,Hp) in HBM);
            # the kernel then reads dense, lane-aligned tiles.
            s_r = jnp.take(tab_p, wid_t, axis=0)         # (W, b_pad, Hp)
            sem_r = jnp.take(tab_p, sid_t, axis=0)       # (W, S, b_pad, Hp)
            cost = pl.CostEstimate(
                flops=6 * W * S * b_pad * Hp, transcendentals=0,
                bytes_accessed=4 * (b_pad * W * (S + 1) * Hp + b_pad * Hp))
            out = pl.pallas_call(
                _knn_kernel_pregathered,
                out_shape=jax.ShapeDtypeStruct((b_pad, Hp), jnp.float32),
                grid=(n_blocks,),
                in_specs=[
                    pl.BlockSpec((W, tb, Hp), lambda i: (0, i, 0)),
                    pl.BlockSpec((W, S, tb, Hp), lambda i: (0, 0, i, 0)),
                ],
                out_specs=pl.BlockSpec((tb, Hp), lambda i: (i, 0)),
                compiler_params=params,
                cost_estimate=cost,
            )(s_r, sem_r)
        return out[:B, :H]

    if resident_ok and _IN_KERNEL_GATHER_OK is not False:
        try:
            out_r = run(resident=True)
            if _IN_KERNEL_GATHER_OK is None:
                # One-time self-check of the in-kernel gather vs. the XLA-gather
                # path (identical downstream arithmetic); also surfaces any
                # deferred runtime error inside this try block.
                out_f = run(resident=False)
                err = float(jnp.max(jnp.abs(out_r - out_f)))
                scale = 1.0 + float(jnp.max(jnp.abs(out_f)))
                _IN_KERNEL_GATHER_OK = bool(err <= 1e-5 * scale)
                if not _IN_KERNEL_GATHER_OK:
                    return out_f
            return out_r
        except Exception:
            # TODO(synk): in-kernel jnp.take row-gather not supported by this
            # jax/Mosaic build; falling back to the XLA-gather + Pallas path.
            _IN_KERNEL_GATHER_OK = False
    return run(resident=False)


def _reference(emb_table, word_ids, sememe_ids):
    s = emb_table[word_ids]                                 # (B, W, H)
    sem = emb_table[sememe_ids]                             # (B, W, S, H)
    diff = s[:, :, None, :] - sem + 1e-6
    d = jnp.sqrt(jnp.sum(diff * diff, axis=-1))             # (B, W, S)
    _, top_idx = lax.top_k(d, 3)                            # largest distances
    top3 = jnp.take_along_axis(sem, top_idx[..., None], axis=2).mean(axis=2)
    span = 0.5 * (top3 + s)
    return span.mean(axis=1)


if __name__ == "__main__":
    key = jax.random.PRNGKey(0)
    k_emb, k_words, k_sem = jax.random.split(key, 3)

    VOCAB, H = 50, 32
    B, W, S = 2, 3, 5   # labels, words per label, sememes per word

    # deterministic "parameters": the embedding table
    emb_table = jax.random.normal(k_emb, (VOCAB, H), dtype=jnp.float32)

    word_ids = jax.random.randint(k_words, (B, W), 0, VOCAB, dtype=jnp.int32)
    sememe_ids = jax.random.randint(k_sem, (B, W, S), 0, VOCAB, dtype=jnp.int32)

    out = sememe_embedding_knn(emb_table, word_ids, sememe_ids)
    out = jax.block_until_ready(out)

    ref = _reference(emb_table, word_ids, sememe_ids)
    assert out.shape == (B, H)
    assert jnp.allclose(out, ref, atol=1e-5, rtol=1e-5), float(jnp.max(jnp.abs(out - ref)))

    print("KERNEL_OK")
</pallas_src>

<mosaic_0001>
module attributes {stable_mosaic.version = 11 : i64} {
  func.func @_knn_kernel_pregathered(%arg0: i32, %arg1: memref<3x128x128xf32, #tpu.memory_space<vmem>>, %arg2: memref<3x5x128x128xf32, #tpu.memory_space<vmem>>, %arg3: memref<128x128xf32, #tpu.memory_space<vmem>>) attributes {dimension_semantics = [#tpu.dimension_semantics<parallel>], iteration_bounds = array<i64: 1>, scalar_prefetch = 0 : i64, scratch_operands = 0 : i64, tpu.core_type = #tpu.core_type<tc>, window_params = [{transform_indices = @transform_0, window_bounds = array<i64: 3, 128, 128>}, {transform_indices = @transform_1, window_bounds = array<i64: 3, 5, 128, 128>}, {transform_indices = @transform_2, window_bounds = array<i64: 128, 128>}]} {
    %c0 = arith.constant 0 : index
    %c0_0 = arith.constant 0 : index
    %c0_1 = arith.constant 0 : index
    %0 = vector.load %arg1[%c0, %c0_0, %c0_1] : memref<3x128x128xf32, #tpu.memory_space<vmem>>, vector<1x128x128xf32>
    %1 = vector.shape_cast %0 : vector<1x128x128xf32> to vector<128x128xf32>
    %c0_2 = arith.constant 0 : index
    %c0_3 = arith.constant 0 : index
    %c0_4 = arith.constant 0 : index
    %c0_5 = arith.constant 0 : index
    %2 = vector.load %arg2[%c0_2, %c0_3, %c0_4, %c0_5] : memref<3x5x128x128xf32, #tpu.memory_space<vmem>>, vector<1x1x128x128xf32>
    %3 = vector.shape_cast %2 : vector<1x1x128x128xf32> to vector<128x128xf32>
    %c0_6 = arith.constant 0 : index
    %c1 = arith.constant 1 : index
    %c0_7 = arith.constant 0 : index
    %c0_8 = arith.constant 0 : index
    %4 = vector.load %arg2[%c0_6, %c1, %c0_7, %c0_8] : memref<3x5x128x128xf32, #tpu.memory_space<vmem>>, vector<1x1x128x128xf32>
    %5 = vector.shape_cast %4 : vector<1x1x128x128xf32> to vector<128x128xf32>
    %c0_9 = arith.constant 0 : index
    %c2 = arith.constant 2 : index
    %c0_10 = arith.constant 0 : index
    %c0_11 = arith.constant 0 : index
    %6 = vector.load %arg2[%c0_9, %c2, %c0_10, %c0_11] : memref<3x5x128x128xf32, #tpu.memory_space<vmem>>, vector<1x1x128x128xf32>
    %7 = vector.shape_cast %6 : vector<1x1x128x128xf32> to vector<128x128xf32>
    %c0_12 = arith.constant 0 : index
    %c3 = arith.constant 3 : index
    %c0_13 = arith.constant 0 : index
    %c0_14 = arith.constant 0 : index
    %8 = vector.load %arg2[%c0_12, %c3, %c0_13, %c0_14] : memref<3x5x128x128xf32, #tpu.memory_space<vmem>>, vector<1x1x128x128xf32>
    %9 = vector.shape_cast %8 : vector<1x1x128x128xf32> to vector<128x128xf32>
    %c0_15 = arith.constant 0 : index
    %c4 = arith.constant 4 : index
    %c0_16 = arith.constant 0 : index
    %c0_17 = arith.constant 0 : index
    %10 = vector.load %arg2[%c0_15, %c4, %c0_16, %c0_17] : memref<3x5x128x128xf32, #tpu.memory_space<vmem>>, vector<1x1x128x128xf32>
    %11 = vector.shape_cast %10 : vector<1x1x128x128xf32> to vector<128x128xf32>
    %cst = arith.constant 2.000000e+00 : f32
    %12 = vector.broadcast %cst : f32 to vector<128x128xf32>
    %13 = arith.mulf %12, %1 : vector<128x128xf32>
    %cst_18 = arith.constant 2.000000e-06 : f32
    %14 = vector.broadcast %cst_18 : f32 to vector<128x128xf32>
    %15 = arith.addf %13, %14 : vector<128x128xf32>
    %16 = arith.subf %3, %15 : vector<128x128xf32>
    %17 = arith.mulf %3, %16 : vector<128x128xf32>
    %cst_19 = arith.constant dense<0.000000e+00> : vector<128xf32>
    %18 = vector.multi_reduction <add>, %17, %cst_19 [1] : vector<128x128xf32> to vector<128xf32>
    %19 = vector.shape_cast %18 : vector<128xf32> to vector<128x1xf32>
    %20 = arith.subf %5, %15 : vector<128x128xf32>
    %21 = arith.mulf %5, %20 : vector<128x128xf32>
    %cst_20 = arith.constant dense<0.000000e+00> : vector<128xf32>
    %22 = vector.multi_reduction <add>, %21, %cst_20 [1] : vector<128x128xf32> to vector<128xf32>
    %23 = vector.shape_cast %22 : vector<128xf32> to vector<128x1xf32>
    %24 = arith.subf %7, %15 : vector<128x128xf32>
    %25 = arith.mulf %7, %24 : vector<128x128xf32>
    %cst_21 = arith.constant dense<0.000000e+00> : vector<128xf32>
    %26 = vector.multi_reduction <add>, %25, %cst_21 [1] : vector<128x128xf32> to vector<128xf32>
    %27 = vector.shape_cast %26 : vector<128xf32> to vector<128x1xf32>
    %28 = arith.subf %9, %15 : vector<128x128xf32>
    %29 = arith.mulf %9, %28 : vector<128x128xf32>
    %cst_22 = arith.constant dense<0.000000e+00> : vector<128xf32>
    %30 = vector.multi_reduction <add>, %29, %cst_22 [1] : vector<128x128xf32> to vector<128xf32>
    %31 = vector.shape_cast %30 : vector<128xf32> to vector<128x1xf32>
    %32 = arith.subf %11, %15 : vector<128x128xf32>
    %33 = arith.mulf %11, %32 : vector<128x128xf32>
    %cst_23 = arith.constant dense<0.000000e+00> : vector<128xf32>
    %34 = vector.multi_reduction <add>, %33, %cst_23 [1] : vector<128x128xf32> to vector<128xf32>
    %35 = vector.shape_cast %34 : vector<128xf32> to vector<128x1xf32>
    %cst_24 = arith.constant 0.000000e+00 : f32
    %36 = vector.broadcast %cst_24 : f32 to vector<128x1xf32>
    %cst_25 = arith.constant 0.000000e+00 : f32
    %37 = vector.broadcast %cst_25 : f32 to vector<128x1xf32>
    %cst_26 = arith.constant 0.000000e+00 : f32
    %38 = vector.broadcast %cst_26 : f32 to vector<128x1xf32>
    %cst_27 = arith.constant 0.000000e+00 : f32
    %39 = vector.broadcast %cst_27 : f32 to vector<128x1xf32>
    %cst_28 = arith.constant 0.000000e+00 : f32
    %40 = vector.broadcast %cst_28 : f32 to vector<128x1xf32>
    %41 = arith.maximumf %19, %23 : vector<128x1xf32>
    %42 = arith.maximumf %41, %27 : vector<128x1xf32>
    %43 = arith.maximumf %42, %31 : vector<128x1xf32>
    %44 = arith.maximumf %43, %35 : vector<128x1xf32>
    %false = arith.constant false
    %45 = vector.broadcast %false : i1 to vector<128x1xi1>
    %46 = arith.cmpf oeq, %19, %44 : vector<128x1xf32>
    %cst_29 = arith.constant dense<true> : vector<128x1xi1>
    %47 = arith.xori %45, %cst_29 : vector<128x1xi1>
    %48 = arith.andi %46, %47 : vector<128x1xi1>
    %49 = arith.extui %48 : vector<128x1xi1> to vector<128x1xi32>
    %50 = arith.sitofp %49 : vector<128x1xi32> to vector<128x1xf32>
    %51 = arith.addf %36, %50 : vector<128x1xf32>
    %cst_30 = arith.constant 0xFF800000 : f32
    %52 = vector.broadcast %cst_30 : f32 to vector<128x1xf32>
    %53 = arith.select %48, %52, %19 : vector<128x1xi1>, vector<128x1xf32>
    %54 = arith.ori %45, %48 : vector<128x1xi1>
    %55 = arith.cmpf oeq, %23, %44 : vector<128x1xf32>
    %cst_31 = arith.constant dense<true> : vector<128x1xi1>
    %56 = arith.xori %54, %cst_31 : vector<128x1xi1>
    %57 = arith.andi %55, %56 : vector<128x1xi1>
    %58 = arith.extui %57 : vector<128x1xi1> to vector<128x1xi32>
    %59 = arith.sitofp %58 : vector<128x1xi32> to vector<128x1xf32>
    %60 = arith.addf %37, %59 : vector<128x1xf32>
    %cst_32 = arith.constant 0xFF800000 : f32
    %61 = vector.broadcast %cst_32 : f32 to vector<128x1xf32>
    %62 = arith.select %57, %61, %23 : vector<128x1xi1>, vector<128x1xf32>
    %63 = arith.ori %54, %57 : vector<128x1xi1>
    %64 = arith.cmpf oeq, %27, %44 : vector<128x1xf32>
    %cst_33 = arith.constant dense<true> : vector<128x1xi1>
    %65 = arith.xori %63, %cst_33 : vector<128x1xi1>
    %66 = arith.andi %64, %65 : vector<128x1xi1>
    %67 = arith.extui %66 : vector<128x1xi1> to vector<128x1xi32>
    %68 = arith.sitofp %67 : vector<128x1xi32> to vector<128x1xf32>
    %69 = arith.addf %38, %68 : vector<128x1xf32>
    %cst_34 = arith.constant 0xFF800000 : f32
    %70 = vector.broadcast %cst_34 : f32 to vector<128x1xf32>
    %71 = arith.select %66, %70, %27 : vector<128x1xi1>, vector<128x1xf32>
    %72 = arith.ori %63, %66 : vector<128x1xi1>
    %73 = arith.cmpf oeq, %31, %44 : vector<128x1xf32>
    %cst_35 = arith.constant dense<true> : vector<128x1xi1>
    %74 = arith.xori %72, %cst_35 : vector<128x1xi1>
    %75 = arith.andi %73, %74 : vector<128x1xi1>
    %76 = arith.extui %75 : vector<128x1xi1> to vector<128x1xi32>
    %77 = arith.sitofp %76 : vector<128x1xi32> to vector<128x1xf32>
    %78 = arith.addf %39, %77 : vector<128x1xf32>
    %cst_36 = arith.constant 0xFF800000 : f32
    %79 = vector.broadcast %cst_36 : f32 to vector<128x1xf32>
    %80 = arith.select %75, %79, %31 : vector<128x1xi1>, vector<128x1xf32>
    %81 = arith.ori %72, %75 : vector<128x1xi1>
    %82 = arith.cmpf oeq, %35, %44 : vector<128x1xf32>
    %cst_37 = arith.constant dense<true> : vector<128x1xi1>
    %83 = arith.xori %81, %cst_37 : vector<128x1xi1>
    %84 = arith.andi %82, %83 : vector<128x1xi1>
    %85 = arith.extui %84 : vector<128x1xi1> to vector<128x1xi32>
    %86 = arith.sitofp %85 : vector<128x1xi32> to vector<128x1xf32>
    %87 = arith.addf %40, %86 : vector<128x1xf32>
    %cst_38 = arith.constant 0xFF800000 : f32
    %88 = vector.broadcast %cst_38 : f32 to vector<128x1xf32>
    %89 = arith.select %84, %88, %35 : vector<128x1xi1>, vector<128x1xf32>
    %90 = arith.maximumf %53, %62 : vector<128x1xf32>
    %91 = arith.maximumf %90, %71 : vector<128x1xf32>
    %92 = arith.maximumf %91, %80 : vector<128x1xf32>
    %93 = arith.maximumf %92, %89 : vector<128x1xf32>
    %false_39 = arith.constant false
    %94 = vector.broadcast %false_39 : i1 to vector<128x1xi1>
    %95 = arith.cmpf oeq, %53, %93 : vector<128x1xf32>
    %cst_40 = arith.constant dense<true> : vector<128x1xi1>
    %96 = arith.xori %94, %cst_40 : vector<128x1xi1>
    %97 = arith.andi %95, %96 : vector<128x1xi1>
    %98 = arith.extui %97 : vector<128x1xi1> to vector<128x1xi32>
    %99 = arith.sitofp %98 : vector<128x1xi32> to vector<128x1xf32>
    %100 = arith.addf %51, %99 : vector<128x1xf32>
    %cst_41 = arith.constant 0xFF800000 : f32
    %101 = vector.broadcast %cst_41 : f32 to vector<128x1xf32>
    %102 = arith.select %97, %101, %53 : vector<128x1xi1>, vector<128x1xf32>
    %103 = arith.ori %94, %97 : vector<128x1xi1>
    %104 = arith.cmpf oeq, %62, %93 : vector<128x1xf32>
    %cst_42 = arith.constant dense<true> : vector<128x1xi1>
    %105 = arith.xori %103, %cst_42 : vector<128x1xi1>
    %106 = arith.andi %104, %105 : vector<128x1xi1>
    %107 = arith.extui %106 : vector<128x1xi1> to vector<128x1xi32>
    %108 = arith.sitofp %107 : vector<128x1xi32> to vector<128x1xf32>
    %109 = arith.addf %60, %108 : vector<128x1xf32>
    %cst_43 = arith.constant 0xFF800000 : f32
    %110 = vector.broadcast %cst_43 : f32 to vector<128x1xf32>
    %111 = arith.select %106, %110, %62 : vector<128x1xi1>, vector<128x1xf32>
    %112 = arith.ori %103, %106 : vector<128x1xi1>
    %113 = arith.cmpf oeq, %71, %93 : vector<128x1xf32>
    %cst_44 = arith.constant dense<true> : vector<128x1xi1>
    %114 = arith.xori %112, %cst_44 : vector<128x1xi1>
    %115 = arith.andi %113, %114 : vector<128x1xi1>
    %116 = arith.extui %115 : vector<128x1xi1> to vector<128x1xi32>
    %117 = arith.sitofp %116 : vector<128x1xi32> to vector<128x1xf32>
    %118 = arith.addf %69, %117 : vector<128x1xf32>
    %cst_45 = arith.constant 0xFF800000 : f32
    %119 = vector.broadcast %cst_45 : f32 to vector<128x1xf32>
    %120 = arith.select %115, %119, %71 : vector<128x1xi1>, vector<128x1xf32>
    %121 = arith.ori %112, %115 : vector<128x1xi1>
    %122 = arith.cmpf oeq, %80, %93 : vector<128x1xf32>
    %cst_46 = arith.constant dense<true> : vector<128x1xi1>
    %123 = arith.xori %121, %cst_46 : vector<128x1xi1>
    %124 = arith.andi %122, %123 : vector<128x1xi1>
    %125 = arith.extui %124 : vector<128x1xi1> to vector<128x1xi32>
    %126 = arith.sitofp %125 : vector<128x1xi32> to vector<128x1xf32>
    %127 = arith.addf %78, %126 : vector<128x1xf32>
    %cst_47 = arith.constant 0xFF800000 : f32
    %128 = vector.broadcast %cst_47 : f32 to vector<128x1xf32>
    %129 = arith.select %124, %128, %80 : vector<128x1xi1>, vector<128x1xf32>
    %130 = arith.ori %121, %124 : vector<128x1xi1>
    %131 = arith.cmpf oeq, %89, %93 : vector<128x1xf32>
    %cst_48 = arith.constant dense<true> : vector<128x1xi1>
    %132 = arith.xori %130, %cst_48 : vector<128x1xi1>
    %133 = arith.andi %131, %132 : vector<128x1xi1>
    %134 = arith.extui %133 : vector<128x1xi1> to vector<128x1xi32>
    %135 = arith.sitofp %134 : vector<128x1xi32> to vector<128x1xf32>
    %136 = arith.addf %87, %135 : vector<128x1xf32>
    %cst_49 = arith.constant 0xFF800000 : f32
    %137 = vector.broadcast %cst_49 : f32 to vector<128x1xf32>
    %138 = arith.select %133, %137, %89 : vector<128x1xi1>, vector<128x1xf32>
    %139 = arith.maximumf %102, %111 : vector<128x1xf32>
    %140 = arith.maximumf %139, %120 : vector<128x1xf32>
    %141 = arith.maximumf %140, %129 : vector<128x1xf32>
    %142 = arith.maximumf %141, %138 : vector<128x1xf32>
    %false_50 = arith.constant false
    %143 = vector.broadcast %false_50 : i1 to vector<128x1xi1>
    %144 = arith.cmpf oeq, %102, %142 : vector<128x1xf32>
    %cst_51 = arith.constant dense<true> : vector<128x1xi1>
    %145 = arith.xori %143, %cst_51 : vector<128x1xi1>
    %146 = arith.andi %144, %145 : vector<128x1xi1>
    %147 = arith.extui %146 : vector<128x1xi1> to vector<128x1xi32>
    %148 = arith.sitofp %147 : vector<128x1xi32> to vector<128x1xf32>
    %149 = arith.addf %100, %148 : vector<128x1xf32>
    %150 = arith.ori %143, %146 : vector<128x1xi1>
    %151 = arith.cmpf oeq, %111, %142 : vector<128x1xf32>
    %cst_52 = arith.constant dense<true> : vector<128x1xi1>
    %152 = arith.xori %150, %cst_52 : vector<128x1xi1>
    %153 = arith.andi %151, %152 : vector<128x1xi1>
    %154 = arith.extui %153 : vector<128x1xi1> to vector<128x1xi32>
    %155 = arith.sitofp %154 : vector<128x1xi32> to vector<128x1xf32>
    %156 = arith.addf %109, %155 : vector<128x1xf32>
    %157 = arith.ori %150, %153 : vector<128x1xi1>
    %158 = arith.cmpf oeq, %120, %142 : vector<128x1xf32>
    %cst_53 = arith.constant dense<true> : vector<128x1xi1>
    %159 = arith.xori %157, %cst_53 : vector<128x1xi1>
    %160 = arith.andi %158, %159 : vector<128x1xi1>
    %161 = arith.extui %160 : vector<128x1xi1> to vector<128x1xi32>
    %162 = arith.sitofp %161 : vector<128x1xi32> to vector<128x1xf32>
    %163 = arith.addf %118, %162 : vector<128x1xf32>
    %164 = arith.ori %157, %160 : vector<128x1xi1>
    %165 = arith.cmpf oeq, %129, %142 : vector<128x1xf32>
    %cst_54 = arith.constant dense<true> : vector<128x1xi1>
    %166 = arith.xori %164, %cst_54 : vector<128x1xi1>
    %167 = arith.andi %165, %166 : vector<128x1xi1>
    %168 = arith.extui %167 : vector<128x1xi1> to vector<128x1xi32>
    %169 = arith.sitofp %168 : vector<128x1xi32> to vector<128x1xf32>
    %170 = arith.addf %127, %169 : vector<128x1xf32>
    %171 = arith.ori %164, %167 : vector<128x1xi1>
    %172 = arith.cmpf oeq, %138, %142 : vector<128x1xf32>
    %cst_55 = arith.constant dense<true> : vector<128x1xi1>
    %173 = arith.xori %171, %cst_55 : vector<128x1xi1>
    %174 = arith.andi %172, %173 : vector<128x1xi1>
    %175 = arith.extui %174 : vector<128x1xi1> to vector<128x1xi32>
    %176 = arith.sitofp %175 : vector<128x1xi32> to vector<128x1xf32>
    %177 = arith.addf %136, %176 : vector<128x1xf32>
    %178 = vector.broadcast %149 : vector<128x1xf32> to vector<128x128xf32>
    %179 = arith.mulf %178, %3 : vector<128x128xf32>
    %180 = vector.broadcast %156 : vector<128x1xf32> to vector<128x128xf32>
    %181 = arith.mulf %180, %5 : vector<128x128xf32>
    %182 = arith.addf %179, %181 : vector<128x128xf32>
    %183 = vector.broadcast %163 : vector<128x1xf32> to vector<128x128xf32>
    %184 = arith.mulf %183, %7 : vector<128x128xf32>
    %185 = arith.addf %182, %184 : vector<128x128xf32>
    %186 = vector.broadcast %170 : vector<128x1xf32> to vector<128x128xf32>
    %187 = arith.mulf %186, %9 : vector<128x128xf32>
    %188 = arith.addf %185, %187 : vector<128x128xf32>
    %189 = vector.broadcast %177 : vector<128x1xf32> to vector<128x128xf32>
    %190 = arith.mulf %189, %11 : vector<128x128xf32>
    %191 = arith.addf %188, %190 : vector<128x128xf32>
    %cst_56 = arith.constant 0.333333343 : f32
    %192 = vector.broadcast %cst_56 : f32 to vector<128x128xf32>
    %193 = arith.mulf %191, %192 : vector<128x128xf32>
    %194 = arith.addf %193, %1 : vector<128x128xf32>
    %cst_57 = arith.constant 5.000000e-01 : f32
    %195 = vector.broadcast %cst_57 : f32 to vector<128x128xf32>
    %196 = arith.mulf %195, %194 : vector<128x128xf32>
    %c1_58 = arith.constant 1 : index
    %c0_59 = arith.constant 0 : index
    %c0_60 = arith.constant 0 : index
    %197 = vector.load %arg1[%c1_58, %c0_59, %c0_60] : memref<3x128x128xf32, #tpu.memory_space<vmem>>, vector<1x128x128xf32>
    %198 = vector.shape_cast %197 : vector<1x128x128xf32> to vector<128x128xf32>
    %c1_61 = arith.constant 1 : index
    %c0_62 = arith.constant 0 : index
    %c0_63 = arith.constant 0 : index
    %c0_64 = arith.constant 0 : index
    %199 = vector.load %arg2[%c1_61, %c0_62, %c0_63, %c0_64] : memref<3x5x128x128xf32, #tpu.memory_space<vmem>>, vector<1x1x128x128xf32>
    %200 = vector.shape_cast %199 : vector<1x1x128x128xf32> to vector<128x128xf32>
    %c1_65 = arith.constant 1 : index
    %c1_66 = arith.constant 1 : index
    %c0_67 = arith.constant 0 : index
    %c0_68 = arith.constant 0 : index
    %201 = vector.load %arg2[%c1_65, %c1_66, %c0_67, %c0_68] : memref<3x5x128x128xf32, #tpu.memory_space<vmem>>, vector<1x1x128x128xf32>
    %202 = vector.shape_cast %201 : vector<1x1x128x128xf32> to vector<128x128xf32>
    %c1_69 = arith.constant 1 : index
    %c2_70 = arith.constant 2 : index
    %c0_71 = arith.constant 0 : index
    %c0_72 = arith.constant 0 : index
    %203 = vector.load %arg2[%c1_69, %c2_70, %c0_71, %c0_72] : memref<3x5x128x128xf32, #tpu.memory_space<vmem>>, vector<1x1x128x128xf32>
    %204 = vector.shape_cast %203 : vector<1x1x128x128xf32> to vector<128x128xf32>
    %c1_73 = arith.constant 1 : index
    %c3_74 = arith.constant 3 : index
    %c0_75 = arith.constant 0 : index
    %c0_76 = arith.constant 0 : index
    %205 = vector.load %arg2[%c1_73, %c3_74, %c0_75, %c0_76] : memref<3x5x128x128xf32, #tpu.memory_space<vmem>>, vector<1x1x128x128xf32>
    %206 = vector.shape_cast %205 : vector<1x1x128x128xf32> to vector<128x128xf32>
    %c1_77 = arith.constant 1 : index
    %c4_78 = arith.constant 4 : index
    %c0_79 = arith.constant 0 : index
    %c0_80 = arith.constant 0 : index
    %207 = vector.load %arg2[%c1_77, %c4_78, %c0_79, %c0_80] : memref<3x5x128x128xf32, #tpu.memory_space<vmem>>, vector<1x1x128x128xf32>
    %208 = vector.shape_cast %207 : vector<1x1x128x128xf32> to vector<128x128xf32>
    %cst_81 = arith.constant 2.000000e+00 : f32
    %209 = vector.broadcast %cst_81 : f32 to vector<128x128xf32>
    %210 = arith.mulf %209, %198 : vector<128x128xf32>
    %cst_82 = arith.constant 2.000000e-06 : f32
    %211 = vector.broadcast %cst_82 : f32 to vector<128x128xf32>
    %212 = arith.addf %210, %211 : vector<128x128xf32>
    %213 = arith.subf %200, %212 : vector<128x128xf32>
    %214 = arith.mulf %200, %213 : vector<128x128xf32>
    %cst_83 = arith.constant dense<0.000000e+00> : vector<128xf32>
    %215 = vector.multi_reduction <add>, %214, %cst_83 [1] : vector<128x128xf32> to vector<128xf32>
    %216 = vector.shape_cast %215 : vector<128xf32> to vector<128x1xf32>
    %217 = arith.subf %202, %212 : vector<128x128xf32>
    %218 = arith.mulf %202, %217 : vector<128x128xf32>
    %cst_84 = arith.constant dense<0.000000e+00> : vector<128xf32>
    %219 = vector.multi_reduction <add>, %218, %cst_84 [1] : vector<128x128xf32> to vector<128xf32>
    %220 = vector.shape_cast %219 : vector<128xf32> to vector<128x1xf32>
    %221 = arith.subf %204, %212 : vector<128x128xf32>
    %222 = arith.mulf %204, %221 : vector<128x128xf32>
    %cst_85 = arith.constant dense<0.000000e+00> : vector<128xf32>
    %223 = vector.multi_reduction <add>, %222, %cst_85 [1] : vector<128x128xf32> to vector<128xf32>
    %224 = vector.shape_cast %223 : vector<128xf32> to vector<128x1xf32>
    %225 = arith.subf %206, %212 : vector<128x128xf32>
    %226 = arith.mulf %206, %225 : vector<128x128xf32>
    %cst_86 = arith.constant dense<0.000000e+00> : vector<128xf32>
    %227 = vector.multi_reduction <add>, %226, %cst_86 [1] : vector<128x128xf32> to vector<128xf32>
    %228 = vector.shape_cast %227 : vector<128xf32> to vector<128x1xf32>
    %229 = arith.subf %208, %212 : vector<128x128xf32>
    %230 = arith.mulf %208, %229 : vector<128x128xf32>
    %cst_87 = arith.constant dense<0.000000e+00> : vector<128xf32>
    %231 = vector.multi_reduction <add>, %230, %cst_87 [1] : vector<128x128xf32> to vector<128xf32>
    %232 = vector.shape_cast %231 : vector<128xf32> to vector<128x1xf32>
    %cst_88 = arith.constant 0.000000e+00 : f32
    %233 = vector.broadcast %cst_88 : f32 to vector<128x1xf32>
    %cst_89 = arith.constant 0.000000e+00 : f32
    %234 = vector.broadcast %cst_89 : f32 to vector<128x1xf32>
    %cst_90 = arith.constant 0.000000e+00 : f32
    %235 = vector.broadcast %cst_90 : f32 to vector<128x1xf32>
    %cst_91 = arith.constant 0.000000e+00 : f32
    %236 = vector.broadcast %cst_91 : f32 to vector<128x1xf32>
    %cst_92 = arith.constant 0.000000e+00 : f32
    %237 = vector.broadcast %cst_92 : f32 to vector<128x1xf32>
    %238 = arith.maximumf %216, %220 : vector<128x1xf32>
    %239 = arith.maximumf %238, %224 : vector<128x1xf32>
    %240 = arith.maximumf %239, %228 : vector<128x1xf32>
    %241 = arith.maximumf %240, %232 : vector<128x1xf32>
    %false_93 = arith.constant false
    %242 = vector.broadcast %false_93 : i1 to vector<128x1xi1>
    %243 = arith.cmpf oeq, %216, %241 : vector<128x1xf32>
    %cst_94 = arith.constant dense<true> : vector<128x1xi1>
    %244 = arith.xori %242, %cst_94 : vector<128x1xi1>
    %245 = arith.andi %243, %244 : vector<128x1xi1>
    %246 = arith.extui %245 : vector<128x1xi1> to vector<128x1xi32>
    %247 = arith.sitofp %246 : vector<128x1xi32> to vector<128x1xf32>
    %248 = arith.addf %233, %247 : vector<128x1xf32>
    %cst_95 = arith.constant 0xFF800000 : f32
    %249 = vector.broadcast %cst_95 : f32 to vector<128x1xf32>
    %250 = arith.select %245, %249, %216 : vector<128x1xi1>, vector<128x1xf32>
    %251 = arith.ori %242, %245 : vector<128x1xi1>
    %252 = arith.cmpf oeq, %220, %241 : vector<128x1xf32>
    %cst_96 = arith.constant dense<true> : vector<128x1xi1>
    %253 = arith.xori %251, %cst_96 : vector<128x1xi1>
    %254 = arith.andi %252, %253 : vector<128x1xi1>
    %255 = arith.extui %254 : vector<128x1xi1> to vector<128x1xi32>
    %256 = arith.sitofp %255 : vector<128x1xi32> to vector<128x1xf32>
    %257 = arith.addf %234, %256 : vector<128x1xf32>
    %cst_97 = arith.constant 0xFF800000 : f32
    %258 = vector.broadcast %cst_97 : f32 to vector<128x1xf32>
    %259 = arith.select %254, %258, %220 : vector<128x1xi1>, vector<128x1xf32>
    %260 = arith.ori %251, %254 : vector<128x1xi1>
    %261 = arith.cmpf oeq, %224, %241 : vector<128x1xf32>
    %cst_98 = arith.constant dense<true> : vector<128x1xi1>
    %262 = arith.xori %260, %cst_98 : vector<128x1xi1>
    %263 = arith.andi %261, %262 : vector<128x1xi1>
    %264 = arith.extui %263 : vector<128x1xi1> to vector<128x1xi32>
    %265 = arith.sitofp %264 : vector<128x1xi32> to vector<128x1xf32>
    %266 = arith.addf %235, %265 : vector<128x1xf32>
    %cst_99 = arith.constant 0xFF800000 : f32
    %267 = vector.broadcast %cst_99 : f32 to vector<128x1xf32>
    %268 = arith.select %263, %267, %224 : vector<128x1xi1>, vector<128x1xf32>
    %269 = arith.ori %260, %263 : vector<128x1xi1>
    %270 = arith.cmpf oeq, %228, %241 : vector<128x1xf32>
    %cst_100 = arith.constant dense<true> : vector<128x1xi1>
    %271 = arith.xori %269, %cst_100 : vector<128x1xi1>
    %272 = arith.andi %270, %271 : vector<128x1xi1>
    %273 = arith.extui %272 : vector<128x1xi1> to vector<128x1xi32>
    %274 = arith.sitofp %273 : vector<128x1xi32> to vector<128x1xf32>
    %275 = arith.addf %236, %274 : vector<128x1xf32>
    %cst_101 = arith.constant 0xFF800000 : f32
    %276 = vector.broadcast %cst_101 : f32 to vector<128x1xf32>
    %277 = arith.select %272, %276, %228 : vector<128x1xi1>, vector<128x1xf32>
    %278 = arith.ori %269, %272 : vector<128x1xi1>
    %279 = arith.cmpf oeq, %232, %241 : vector<128x1xf32>
    %cst_102 = arith.constant dense<true> : vector<128x1xi1>
    %280 = arith.xori %278, %cst_102 : vector<128x1xi1>
    %281 = arith.andi %279, %280 : vector<128x1xi1>
    %282 = arith.extui %281 : vector<128x1xi1> to vector<128x1xi32>
    %283 = arith.sitofp %282 : vector<128x1xi32> to vector<128x1xf32>
    %284 = arith.addf %237, %283 : vector<128x1xf32>
    %cst_103 = arith.constant 0xFF800000 : f32
    %285 = vector.broadcast %cst_103 : f32 to vector<128x1xf32>
    %286 = arith.select %281, %285, %232 : vector<128x1xi1>, vector<128x1xf32>
    %287 = arith.maximumf %250, %259 : vector<128x1xf32>
    %288 = arith.maximumf %287, %268 : vector<128x1xf32>
    %289 = arith.maximumf %288, %277 : vector<128x1xf32>
    %290 = arith.maximumf %289, %286 : vector<128x1xf32>
    %false_104 = arith.constant false
    %291 = vector.broadcast %false_104 : i1 to vector<128x1xi1>
    %292 = arith.cmpf oeq, %250, %290 : vector<128x1xf32>
    %cst_105 = arith.constant dense<true> : vector<128x1xi1>
    %293 = arith.xori %291, %cst_105 : vector<128x1xi1>
    %294 = arith.andi %292, %293 : vector<128x1xi1>
    %295 = arith.extui %294 : vector<128x1xi1> to vector<128x1xi32>
    %296 = arith.sitofp %295 : vector<128x1xi32> to vector<128x1xf32>
    %297 = arith.addf %248, %296 : vector<128x1xf32>
    %cst_106 = arith.constant 0xFF800000 : f32
    %298 = vector.broadcast %cst_106 : f32 to vector<128x1xf32>
    %299 = arith.select %294, %298, %250 : vector<128x1xi1>, vector<128x1xf32>
    %300 = arith.ori %291, %294 : vector<128x1xi1>
    %301 = arith.cmpf oeq, %259, %290 : vector<128x1xf32>
    %cst_107 = arith.constant dense<true> : vector<128x1xi1>
    %302 = arith.xori %300, %cst_107 : vector<128x1xi1>
    %303 = arith.andi %301, %302 : vector<128x1xi1>
    %304 = arith.extui %303 : vector<128x1xi1> to vector<128x1xi32>
    %305 = arith.sitofp %304 : vector<128x1xi32> to vector<128x1xf32>
    %306 = arith.addf %257, %305 : vector<128x1xf32>
    %cst_108 = arith.constant 0xFF800000 : f32
    %307 = vector.broadcast %cst_108 : f32 to vector<128x1xf32>
    %308 = arith.select %303, %307, %259 : vector<128x1xi1>, vector<128x1xf32>
    %309 = arith.ori %300, %303 : vector<128x1xi1>
    %310 = arith.cmpf oeq, %268, %290 : vector<128x1xf32>
    %cst_109 = arith.constant dense<true> : vector<128x1xi1>
    %311 = arith.xori %309, %cst_109 : vector<128x1xi1>
    %312 = arith.andi %310, %311 : vector<128x1xi1>
    %313 = arith.extui %312 : vector<128x1xi1> to vector<128x1xi32>
    %314 = arith.sitofp %313 : vector<128x1xi32> to vector<128x1xf32>
    %315 = arith.addf %266, %314 : vector<128x1xf32>
    %cst_110 = arith.constant 0xFF800000 : f32
    %316 = vector.broadcast %cst_110 : f32 to vector<128x1xf32>
    %317 = arith.select %312, %316, %268 : vector<128x1xi1>, vector<128x1xf32>
    %318 = arith.ori %309, %312 : vector<128x1xi1>
    %319 = arith.cmpf oeq, %277, %290 : vector<128x1xf32>
    %cst_111 = arith.constant dense<true> : vector<128x1xi1>
    %320 = arith.xori %318, %cst_111 : vector<128x1xi1>
    %321 = arith.andi %319, %320 : vector<128x1xi1>
    %322 = arith.extui %321 : vector<128x1xi1> to vector<128x1xi32>
    %323 = arith.sitofp %322 : vector<128x1xi32> to vector<128x1xf32>
    %324 = arith.addf %275, %323 : vector<128x1xf32>
    %cst_112 = arith.constant 0xFF800000 : f32
    %325 = vector.broadcast %cst_112 : f32 to vector<128x1xf32>
    %326 = arith.select %321, %325, %277 : vector<128x1xi1>, vector<128x1xf32>
    %327 = arith.ori %318, %321 : vector<128x1xi1>
    %328 = arith.cmpf oeq, %286, %290 : vector<128x1xf32>
    %cst_113 = arith.constant dense<true> : vector<128x1xi1>
    %329 = arith.xori %327, %cst_113 : vector<128x1xi1>
    %330 = arith.andi %328, %329 : vector<128x1xi1>
    %331 = arith.extui %330 : vector<128x1xi1> to vector<128x1xi32>
    %332 = arith.sitofp %331 : vector<128x1xi32> to vector<128x1xf32>
    %333 = arith.addf %284, %332 : vector<128x1xf32>
    %cst_114 = arith.constant 0xFF800000 : f32
    %334 = vector.broadcast %cst_114 : f32 to vector<128x1xf32>
    %335 = arith.select %330, %334, %286 : vector<128x1xi1>, vector<128x1xf32>
    %336 = arith.maximumf %299, %308 : vector<128x1xf32>
    %337 = arith.maximumf %336, %317 : vector<128x1xf32>
    %338 = arith.maximumf %337, %326 : vector<128x1xf32>
    %339 = arith.maximumf %338, %335 : vector<128x1xf32>
    %false_115 = arith.constant false
    %340 = vector.broadcast %false_115 : i1 to vector<128x1xi1>
    %341 = arith.cmpf oeq, %299, %339 : vector<128x1xf32>
    %cst_116 = arith.constant dense<true> : vector<128x1xi1>
    %342 = arith.xori %340, %cst_116 : vector<128x1xi1>
    %343 = arith.andi %341, %342 : vector<128x1xi1>
    %344 = arith.extui %343 : vector<128x1xi1> to vector<128x1xi32>
    %345 = arith.sitofp %344 : vector<128x1xi32> to vector<128x1xf32>
    %346 = arith.addf %297, %345 : vector<128x1xf32>
    %347 = arith.ori %340, %343 : vector<128x1xi1>
    %348 = arith.cmpf oeq, %308, %339 : vector<128x1xf32>
    %cst_117 = arith.constant dense<true> : vector<128x1xi1>
    %349 = arith.xori %347, %cst_117 : vector<128x1xi1>
    %350 = arith.andi %348, %349 : vector<128x1xi1>
    %351 = arith.extui %350 : vector<128x1xi1> to vector<128x1xi32>
    %352 = arith.sitofp %351 : vector<128x1xi32> to vector<128x1xf32>
    %353 = arith.addf %306, %352 : vector<128x1xf32>
    %354 = arith.ori %347, %350 : vector<128x1xi1>
    %355 = arith.cmpf oeq, %317, %339 : vector<128x1xf32>
    %cst_118 = arith.constant dense<true> : vector<128x1xi1>
    %356 = arith.xori %354, %cst_118 : vector<128x1xi1>
    %357 = arith.andi %355, %356 : vector<128x1xi1>
    %358 = arith.extui %357 : vector<128x1xi1> to vector<128x1xi32>
    %359 = arith.sitofp %358 : vector<128x1xi32> to vector<128x1xf32>
    %360 = arith.addf %315, %359 : vector<128x1xf32>
    %361 = arith.ori %354, %357 : vector<128x1xi1>
    %362 = arith.cmpf oeq, %326, %339 : vector<128x1xf32>
    %cst_119 = arith.constant dense<true> : vector<128x1xi1>
    %363 = arith.xori %361, %cst_119 : vector<128x1xi1>
    %364 = arith.andi %362, %363 : vector<128x1xi1>
    %365 = arith.extui %364 : vector<128x1xi1> to vector<128x1xi32>
    %366 = arith.sitofp %365 : vector<128x1xi32> to vector<128x1xf32>
    %367 = arith.addf %324, %366 : vector<128x1xf32>
    %368 = arith.ori %361, %364 : vector<128x1xi1>
    %369 = arith.cmpf oeq, %335, %339 : vector<128x1xf32>
    %cst_120 = arith.constant dense<true> : vector<128x1xi1>
    %370 = arith.xori %368, %cst_120 : vector<128x1xi1>
    %371 = arith.andi %369, %370 : vector<128x1xi1>
    %372 = arith.extui %371 : vector<128x1xi1> to vector<128x1xi32>
    %373 = arith.sitofp %372 : vector<128x1xi32> to vector<128x1xf32>
    %374 = arith.addf %333, %373 : vector<128x1xf32>
    %375 = vector.broadcast %346 : vector<128x1xf32> to vector<128x128xf32>
    %376 = arith.mulf %375, %200 : vector<128x128xf32>
    %377 = vector.broadcast %353 : vector<128x1xf32> to vector<128x128xf32>
    %378 = arith.mulf %377, %202 : vector<128x128xf32>
    %379 = arith.addf %376, %378 : vector<128x128xf32>
    %380 = vector.broadcast %360 : vector<128x1xf32> to vector<128x128xf32>
    %381 = arith.mulf %380, %204 : vector<128x128xf32>
    %382 = arith.addf %379, %381 : vector<128x128xf32>
    %383 = vector.broadcast %367 : vector<128x1xf32> to vector<128x128xf32>
    %384 = arith.mulf %383, %206 : vector<128x128xf32>
    %385 = arith.addf %382, %384 : vector<128x128xf32>
    %386 = vector.broadcast %374 : vector<128x1xf32> to vector<128x128xf32>
    %387 = arith.mulf %386, %208 : vector<128x128xf32>
    %388 = arith.addf %385, %387 : vector<128x128xf32>
    %cst_121 = arith.constant 0.333333343 : f32
    %389 = vector.broadcast %cst_121 : f32 to vector<128x128xf32>
    %390 = arith.mulf %388, %389 : vector<128x128xf32>
    %391 = arith.addf %390, %198 : vector<128x128xf32>
    %cst_122 = arith.constant 5.000000e-01 : f32
    %392 = vector.broadcast %cst_122 : f32 to vector<128x128xf32>
    %393 = arith.mulf %392, %391 : vector<128x128xf32>
    %394 = arith.addf %196, %393 : vector<128x128xf32>
    %c2_123 = arith.constant 2 : index
    %c0_124 = arith.constant 0 : index
    %c0_125 = arith.constant 0 : index
    %395 = vector.load %arg1[%c2_123, %c0_124, %c0_125] : memref<3x128x128xf32, #tpu.memory_space<vmem>>, vector<1x128x128xf32>
    %396 = vector.shape_cast %395 : vector<1x128x128xf32> to vector<128x128xf32>
    %c2_126 = arith.constant 2 : index
    %c0_127 = arith.constant 0 : index
    %c0_128 = arith.constant 0 : index
    %c0_129 = arith.constant 0 : index
    %397 = vector.load %arg2[%c2_126, %c0_127, %c0_128, %c0_129] : memref<3x5x128x128xf32, #tpu.memory_space<vmem>>, vector<1x1x128x128xf32>
    %398 = vector.shape_cast %397 : vector<1x1x128x128xf32> to vector<128x128xf32>
    %c2_130 = arith.constant 2 : index
    %c1_131 = arith.constant 1 : index
    %c0_132 = arith.constant 0 : index
    %c0_133 = arith.constant 0 : index
    %399 = vector.load %arg2[%c2_130, %c1_131, %c0_132, %c0_133] : memref<3x5x128x128xf32, #tpu.memory_space<vmem>>, vector<1x1x128x128xf32>
    %400 = vector.shape_cast %399 : vector<1x1x128x128xf32> to vector<128x128xf32>
    %c2_134 = arith.constant 2 : index
    %c2_135 = arith.constant 2 : index
    %c0_136 = arith.constant 0 : index
    %c0_137 = arith.constant 0 : index
    %401 = vector.load %arg2[%c2_134, %c2_135, %c0_136, %c0_137] : memref<3x5x128x128xf32, #tpu.memory_space<vmem>>, vector<1x1x128x128xf32>
    %402 = vector.shape_cast %401 : vector<1x1x128x128xf32> to vector<128x128xf32>
    %c2_138 = arith.constant 2 : index
    %c3_139 = arith.constant 3 : index
    %c0_140 = arith.constant 0 : index
    %c0_141 = arith.constant 0 : index
    %403 = vector.load %arg2[%c2_138, %c3_139, %c0_140, %c0_141] : memref<3x5x128x128xf32, #tpu.memory_space<vmem>>, vector<1x1x128x128xf32>
    %404 = vector.shape_cast %403 : vector<1x1x128x128xf32> to vector<128x128xf32>
    %c2_142 = arith.constant 2 : index
    %c4_143 = arith.constant 4 : index
    %c0_144 = arith.constant 0 : index
    %c0_145 = arith.constant 0 : index
    %405 = vector.load %arg2[%c2_142, %c4_143, %c0_144, %c0_145] : memref<3x5x128x128xf32, #tpu.memory_space<vmem>>, vector<1x1x128x128xf32>
    %406 = vector.shape_cast %405 : vector<1x1x128x128xf32> to vector<128x128xf32>
    %cst_146 = arith.constant 2.000000e+00 : f32
    %407 = vector.broadcast %cst_146 : f32 to vector<128x128xf32>
    %408 = arith.mulf %407, %396 : vector<128x128xf32>
    %cst_147 = arith.constant 2.000000e-06 : f32
    %409 = vector.broadcast %cst_147 : f32 to vector<128x128xf32>
    %410 = arith.addf %408, %409 : vector<128x128xf32>
    %411 = arith.subf %398, %410 : vector<128x128xf32>
    %412 = arith.mulf %398, %411 : vector<128x128xf32>
    %cst_148 = arith.constant dense<0.000000e+00> : vector<128xf32>
    %413 = vector.multi_reduction <add>, %412, %cst_148 [1] : vector<128x128xf32> to vector<128xf32>
    %414 = vector.shape_cast %413 : vector<128xf32> to vector<128x1xf32>
    %415 = arith.subf %400, %410 : vector<128x128xf32>
    %416 = arith.mulf %400, %415 : vector<128x128xf32>
    %cst_149 = arith.constant dense<0.000000e+00> : vector<128xf32>
    %417 = vector.multi_reduction <add>, %416, %cst_149 [1] : vector<128x128xf32> to vector<128xf32>
    %418 = vector.shape_cast %417 : vector<128xf32> to vector<128x1xf32>
    %419 = arith.subf %402, %410 : vector<128x128xf32>
    %420 = arith.mulf %402, %419 : vector<128x128xf32>
    %cst_150 = arith.constant dense<0.000000e+00> : vector<128xf32>
    %421 = vector.multi_reduction <add>, %420, %cst_150 [1] : vector<128x128xf32> to vector<128xf32>
    %422 = vector.shape_cast %421 : vector<128xf32> to vector<128x1xf32>
    %423 = arith.subf %404, %410 : vector<128x128xf32>
    %424 = arith.mulf %404, %423 : vector<128x128xf32>
    %cst_151 = arith.constant dense<0.000000e+00> : vector<128xf32>
    %425 = vector.multi_reduction <add>, %424, %cst_151 [1] : vector<128x128xf32> to vector<128xf32>
    %426 = vector.shape_cast %425 : vector<128xf32> to vector<128x1xf32>
    %427 = arith.subf %406, %410 : vector<128x128xf32>
    %428 = arith.mulf %406, %427 : vector<128x128xf32>
    %cst_152 = arith.constant dense<0.000000e+00> : vector<128xf32>
    %429 = vector.multi_reduction <add>, %428, %cst_152 [1] : vector<128x128xf32> to vector<128xf32>
    %430 = vector.shape_cast %429 : vector<128xf32> to vector<128x1xf32>
    %cst_153 = arith.constant 0.000000e+00 : f32
    %431 = vector.broadcast %cst_153 : f32 to vector<128x1xf32>
    %cst_154 = arith.constant 0.000000e+00 : f32
    %432 = vector.broadcast %cst_154 : f32 to vector<128x1xf32>
    %cst_155 = arith.constant 0.000000e+00 : f32
    %433 = vector.broadcast %cst_155 : f32 to vector<128x1xf32>
    %cst_156 = arith.constant 0.000000e+00 : f32
    %434 = vector.broadcast %cst_156 : f32 to vector<128x1xf32>
    %cst_157 = arith.constant 0.000000e+00 : f32
    %435 = vector.broadcast %cst_157 : f32 to vector<128x1xf32>
    %436 = arith.maximumf %414, %418 : vector<128x1xf32>
    %437 = arith.maximumf %436, %422 : vector<128x1xf32>
    %438 = arith.maximumf %437, %426 : vector<128x1xf32>
    %439 = arith.maximumf %438, %430 : vector<128x1xf32>
    %false_158 = arith.constant false
    %440 = vector.broadcast %false_158 : i1 to vector<128x1xi1>
    %441 = arith.cmpf oeq, %414, %439 : vector<128x1xf32>
    %cst_159 = arith.constant dense<true> : vector<128x1xi1>
    %442 = arith.xori %440, %cst_159 : vector<128x1xi1>
    %443 = arith.andi %441, %442 : vector<128x1xi1>
    %444 = arith.extui %443 : vector<128x1xi1> to vector<128x1xi32>
    %445 = arith.sitofp %444 : vector<128x1xi32> to vector<128x1xf32>
    %446 = arith.addf %431, %445 : vector<128x1xf32>
    %cst_160 = arith.constant 0xFF800000 : f32
    %447 = vector.broadcast %cst_160 : f32 to vector<128x1xf32>
    %448 = arith.select %443, %447, %414 : vector<128x1xi1>, vector<128x1xf32>
    %449 = arith.ori %440, %443 : vector<128x1xi1>
    %450 = arith.cmpf oeq, %418, %439 : vector<128x1xf32>
    %cst_161 = arith.constant dense<true> : vector<128x1xi1>
    %451 = arith.xori %449, %cst_161 : vector<128x1xi1>
    %452 = arith.andi %450, %451 : vector<128x1xi1>
    %453 = arith.extui %452 : vector<128x1xi1> to vector<128x1xi32>
    %454 = arith.sitofp %453 : vector<128x1xi32> to vector<128x1xf32>
    %455 = arith.addf %432, %454 : vector<128x1xf32>
    %cst_162 = arith.constant 0xFF800000 : f32
    %456 = vector.broadcast %cst_162 : f32 to vector<128x1xf32>
    %457 = arith.select %452, %456, %418 : vector<128x1xi1>, vector<128x1xf32>
    %458 = arith.ori %449, %452 : vector<128x1xi1>
    %459 = arith.cmpf oeq, %422, %439 : vector<128x1xf32>
    %cst_163 = arith.constant dense<true> : vector<128x1xi1>
    %460 = arith.xori %458, %cst_163 : vector<128x1xi1>
    %461 = arith.andi %459, %460 : vector<128x1xi1>
    %462 = arith.extui %461 : vector<128x1xi1> to vector<128x1xi32>
    %463 = arith.sitofp %462 : vector<128x1xi32> to vector<128x1xf32>
    %464 = arith.addf %433, %463 : vector<128x1xf32>
    %cst_164 = arith.constant 0xFF800000 : f32
    %465 = vector.broadcast %cst_164 : f32 to vector<128x1xf32>
    %466 = arith.select %461, %465, %422 : vector<128x1xi1>, vector<128x1xf32>
    %467 = arith.ori %458, %461 : vector<128x1xi1>
    %468 = arith.cmpf oeq, %426, %439 : vector<128x1xf32>
    %cst_165 = arith.constant dense<true> : vector<128x1xi1>
    %469 = arith.xori %467, %cst_165 : vector<128x1xi1>
    %470 = arith.andi %468, %469 : vector<128x1xi1>
    %471 = arith.extui %470 : vector<128x1xi1> to vector<128x1xi32>
    %472 = arith.sitofp %471 : vector<128x1xi32> to vector<128x1xf32>
    %473 = arith.addf %434, %472 : vector<128x1xf32>
    %cst_166 = arith.constant 0xFF800000 : f32
    %474 = vector.broadcast %cst_166 : f32 to vector<128x1xf32>
    %475 = arith.select %470, %474, %426 : vector<128x1xi1>, vector<128x1xf32>
    %476 = arith.ori %467, %470 : vector<128x1xi1>
    %477 = arith.cmpf oeq, %430, %439 : vector<128x1xf32>
    %cst_167 = arith.constant dense<true> : vector<128x1xi1>
    %478 = arith.xori %476, %cst_167 : vector<128x1xi1>
    %479 = arith.andi %477, %478 : vector<128x1xi1>
    %480 = arith.extui %479 : vector<128x1xi1> to vector<128x1xi32>
    %481 = arith.sitofp %480 : vector<128x1xi32> to vector<128x1xf32>
    %482 = arith.addf %435, %481 : vector<128x1xf32>
    %cst_168 = arith.constant 0xFF800000 : f32
    %483 = vector.broadcast %cst_168 : f32 to vector<128x1xf32>
    %484 = arith.select %479, %483, %430 : vector<128x1xi1>, vector<128x1xf32>
    %485 = arith.maximumf %448, %457 : vector<128x1xf32>
    %486 = arith.maximumf %485, %466 : vector<128x1xf32>
    %487 = arith.maximumf %486, %475 : vector<128x1xf32>
    %488 = arith.maximumf %487, %484 : vector<128x1xf32>
    %false_169 = arith.constant false
    %489 = vector.broadcast %false_169 : i1 to vector<128x1xi1>
    %490 = arith.cmpf oeq, %448, %488 : vector<128x1xf32>
    %cst_170 = arith.constant dense<true> : vector<128x1xi1>
    %491 = arith.xori %489, %cst_170 : vector<128x1xi1>
    %492 = arith.andi %490, %491 : vector<128x1xi1>
    %493 = arith.extui %492 : vector<128x1xi1> to vector<128x1xi32>
    %494 = arith.sitofp %493 : vector<128x1xi32> to vector<128x1xf32>
    %495 = arith.addf %446, %494 : vector<128x1xf32>
    %cst_171 = arith.constant 0xFF800000 : f32
    %496 = vector.broadcast %cst_171 : f32 to vector<128x1xf32>
    %497 = arith.select %492, %496, %448 : vector<128x1xi1>, vector<128x1xf32>
    %498 = arith.ori %489, %492 : vector<128x1xi1>
    %499 = arith.cmpf oeq, %457, %488 : vector<128x1xf32>
    %cst_172 = arith.constant dense<true> : vector<128x1xi1>
    %500 = arith.xori %498, %cst_172 : vector<128x1xi1>
    %501 = arith.andi %499, %500 : vector<128x1xi1>
    %502 = arith.extui %501 : vector<128x1xi1> to vector<128x1xi32>
    %503 = arith.sitofp %502 : vector<128x1xi32> to vector<128x1xf32>
    %504 = arith.addf %455, %503 : vector<128x1xf32>
    %cst_173 = arith.constant 0xFF800000 : f32
    %505 = vector.broadcast %cst_173 : f32 to vector<128x1xf32>
    %506 = arith.select %501, %505, %457 : vector<128x1xi1>, vector<128x1xf32>
    %507 = arith.ori %498, %501 : vector<128x1xi1>
    %508 = arith.cmpf oeq, %466, %488 : vector<128x1xf32>
    %cst_174 = arith.constant dense<true> : vector<128x1xi1>
    %509 = arith.xori %507, %cst_174 : vector<128x1xi1>
    %510 = arith.andi %508, %509 : vector<128x1xi1>
    %511 = arith.extui %510 : vector<128x1xi1> to vector<128x1xi32>
    %512 = arith.sitofp %511 : vector<128x1xi32> to vector<128x1xf32>
    %513 = arith.addf %464, %512 : vector<128x1xf32>
    %cst_175 = arith.constant 0xFF800000 : f32
    %514 = vector.broadcast %cst_175 : f32 to vector<128x1xf32>
    %515 = arith.select %510, %514, %466 : vector<128x1xi1>, vector<128x1xf32>
    %516 = arith.ori %507, %510 : vector<128x1xi1>
    %517 = arith.cmpf oeq, %475, %488 : vector<128x1xf32>
    %cst_176 = arith.constant dense<true> : vector<128x1xi1>
    %518 = arith.xori %516, %cst_176 : vector<128x1xi1>
    %519 = arith.andi %517, %518 : vector<128x1xi1>
    %520 = arith.extui %519 : vector<128x1xi1> to vector<128x1xi32>
    %521 = arith.sitofp %520 : vector<128x1xi32> to vector<128x1xf32>
    %522 = arith.addf %473, %521 : vector<128x1xf32>
    %cst_177 = arith.constant 0xFF800000 : f32
    %523 = vector.broadcast %cst_177 : f32 to vector<128x1xf32>
    %524 = arith.select %519, %523, %475 : vector<128x1xi1>, vector<128x1xf32>
    %525 = arith.ori %516, %519 : vector<128x1xi1>
    %526 = arith.cmpf oeq, %484, %488 : vector<128x1xf32>
    %cst_178 = arith.constant dense<true> : vector<128x1xi1>
    %527 = arith.xori %525, %cst_178 : vector<128x1xi1>
    %528 = arith.andi %526, %527 : vector<128x1xi1>
    %529 = arith.extui %528 : vector<128x1xi1> to vector<128x1xi32>
    %530 = arith.sitofp %529 : vector<128x1xi32> to vector<128x1xf32>
    %531 = arith.addf %482, %530 : vector<128x1xf32>
    %cst_179 = arith.constant 0xFF800000 : f32
    %532 = vector.broadcast %cst_179 : f32 to vector<128x1xf32>
    %533 = arith.select %528, %532, %484 : vector<128x1xi1>, vector<128x1xf32>
    %534 = arith.maximumf %497, %506 : vector<128x1xf32>
    %535 = arith.maximumf %534, %515 : vector<128x1xf32>
    %536 = arith.maximumf %535, %524 : vector<128x1xf32>
    %537 = arith.maximumf %536, %533 : vector<128x1xf32>
    %false_180 = arith.constant false
    %538 = vector.broadcast %false_180 : i1 to vector<128x1xi1>
    %539 = arith.cmpf oeq, %497, %537 : vector<128x1xf32>
    %cst_181 = arith.constant dense<true> : vector<128x1xi1>
    %540 = arith.xori %538, %cst_181 : vector<128x1xi1>
    %541 = arith.andi %539, %540 : vector<128x1xi1>
    %542 = arith.extui %541 : vector<128x1xi1> to vector<128x1xi32>
    %543 = arith.sitofp %542 : vector<128x1xi32> to vector<128x1xf32>
    %544 = arith.addf %495, %543 : vector<128x1xf32>
    %545 = arith.ori %538, %541 : vector<128x1xi1>
    %546 = arith.cmpf oeq, %506, %537 : vector<128x1xf32>
    %cst_182 = arith.constant dense<true> : vector<128x1xi1>
    %547 = arith.xori %545, %cst_182 : vector<128x1xi1>
    %548 = arith.andi %546, %547 : vector<128x1xi1>
    %549 = arith.extui %548 : vector<128x1xi1> to vector<128x1xi32>
    %550 = arith.sitofp %549 : vector<128x1xi32> to vector<128x1xf32>
    %551 = arith.addf %504, %550 : vector<128x1xf32>
    %552 = arith.ori %545, %548 : vector<128x1xi1>
    %553 = arith.cmpf oeq, %515, %537 : vector<128x1xf32>
    %cst_183 = arith.constant dense<true> : vector<128x1xi1>
    %554 = arith.xori %552, %cst_183 : vector<128x1xi1>
    %555 = arith.andi %553, %554 : vector<128x1xi1>
    %556 = arith.extui %555 : vector<128x1xi1> to vector<128x1xi32>
    %557 = arith.sitofp %556 : vector<128x1xi32> to vector<128x1xf32>
    %558 = arith.addf %513, %557 : vector<128x1xf32>
    %559 = arith.ori %552, %555 : vector<128x1xi1>
    %560 = arith.cmpf oeq, %524, %537 : vector<128x1xf32>
    %cst_184 = arith.constant dense<true> : vector<128x1xi1>
    %561 = arith.xori %559, %cst_184 : vector<128x1xi1>
    %562 = arith.andi %560, %561 : vector<128x1xi1>
    %563 = arith.extui %562 : vector<128x1xi1> to vector<128x1xi32>
    %564 = arith.sitofp %563 : vector<128x1xi32> to vector<128x1xf32>
    %565 = arith.addf %522, %564 : vector<128x1xf32>
    %566 = arith.ori %559, %562 : vector<128x1xi1>
    %567 = arith.cmpf oeq, %533, %537 : vector<128x1xf32>
    %cst_185 = arith.constant dense<true> : vector<128x1xi1>
    %568 = arith.xori %566, %cst_185 : vector<128x1xi1>
    %569 = arith.andi %567, %568 : vector<128x1xi1>
    %570 = arith.extui %569 : vector<128x1xi1> to vector<128x1xi32>
    %571 = arith.sitofp %570 : vector<128x1xi32> to vector<128x1xf32>
    %572 = arith.addf %531, %571 : vector<128x1xf32>
    %573 = vector.broadcast %544 : vector<128x1xf32> to vector<128x128xf32>
    %574 = arith.mulf %573, %398 : vector<128x128xf32>
    %575 = vector.broadcast %551 : vector<128x1xf32> to vector<128x128xf32>
    %576 = arith.mulf %575, %400 : vector<128x128xf32>
    %577 = arith.addf %574, %576 : vector<128x128xf32>
    %578 = vector.broadcast %558 : vector<128x1xf32> to vector<128x128xf32>
    %579 = arith.mulf %578, %402 : vector<128x128xf32>
    %580 = arith.addf %577, %579 : vector<128x128xf32>
    %581 = vector.broadcast %565 : vector<128x1xf32> to vector<128x128xf32>
    %582 = arith.mulf %581, %404 : vector<128x128xf32>
    %583 = arith.addf %580, %582 : vector<128x128xf32>
    %584 = vector.broadcast %572 : vector<128x1xf32> to vector<128x128xf32>
    %585 = arith.mulf %584, %406 : vector<128x128xf32>
    %586 = arith.addf %583, %585 : vector<128x128xf32>
    %cst_186 = arith.constant 0.333333343 : f32
    %587 = vector.broadcast %cst_186 : f32 to vector<128x128xf32>
    %588 = arith.mulf %586, %587 : vector<128x128xf32>
    %589 = arith.addf %588, %396 : vector<128x128xf32>
    %cst_187 = arith.constant 5.000000e-01 : f32
    %590 = vector.broadcast %cst_187 : f32 to vector<128x128xf32>
    %591 = arith.mulf %590, %589 : vector<128x128xf32>
    %592 = arith.addf %394, %591 : vector<128x128xf32>
    %cst_188 = arith.constant 0.333333343 : f32
    %593 = vector.broadcast %cst_188 : f32 to vector<128x128xf32>
    %594 = arith.mulf %592, %593 : vector<128x128xf32>
    %c0_189 = arith.constant 0 : index
    %c0_190 = arith.constant 0 : index
    %595 = vector.load %arg3[%c0_189, %c0_190] : memref<128x128xf32, #tpu.memory_space<vmem>>, vector<128x128xf32>
    tpu.vector_store %arg3[%c0_189, %c0_190], %594 {strides = array<i32>} : memref<128x128xf32, #tpu.memory_space<vmem>>, vector<128x128xf32>,
    return
  }
  func.func @transform_0(%arg0: i32) -> (i32, i32, i32) {
    %c0_i32 = arith.constant 0 : i32
    %c0_i32_0 = arith.constant 0 : i32
    %c0_i32_1 = arith.constant 0 : i32
    return %c0_i32, %arg0, %c0_i32_0 : i32, i32, i32
  }
  func.func @transform_1(%arg0: i32) -> (i32, i32, i32, i32) {
    %c0_i32 = arith.constant 0 : i32
    %c0_i32_0 = arith.constant 0 : i32
    %c0_i32_1 = arith.constant 0 : i32
    %c0_i32_2 = arith.constant 0 : i32
    return %c0_i32, %c0_i32_0, %arg0, %c0_i32_1 : i32, i32, i32, i32
  }
  func.func @transform_2(%arg0: i32) -> (i32, i32) {
    %c0_i32 = arith.constant 0 : i32
    %c0_i32_0 = arith.constant 0 : i32
    return %arg0, %c0_i32 : i32, i32
  }
}

</mosaic_0001>

<llo_original>
// kernel: tpu_custom_call.1
$region0: #{tpu_custom_call.1}
  #allocation0 [shape = 'u32[]', space=smem, size = 0x4, offset = 0x4, fixed_abs, tag = 'smem constant byte address 0x4 - core index']
  #allocation1 [shape = 'u32[144,128]{1,0:T(1,128)}', space=vmem, size = 0x12000, scoped, tag = 'internal scratch']
  %s0 = inlined_call_operand.hbm [shape: f32[3,128,128], index: 0, kind: input, shape index: {}]
  %s1 = inlined_call_operand.hbm [shape: f32[3,5,128,128], index: 1, kind: input, shape index: {}]
  %s2 = inlined_call_operand.hbm [shape: f32[128,128], index: 2, kind: output, shape index: {}]
  %s3 = sld [smem:[#allocation0]]
  $region26: #{tpu_custom_call.1} parent=0
    _
  %s5 = ssub.s32 1, %s3
  %s6 = scalar_select 0, %s5, %s3
  $region1: #{tpu_custom_call.1} parent=0
    #allocation2 [shape = 'u8[196608]{0}', space=vmem, size = 0x30000, scoped, tag = 'input window, operand 0, single buffered']
    #allocation3 [shape = 's32[1]{0}', space=sflag, size = 0x4, scoped, tag = 'scoped memory for tpu_custom_call.1']
    #allocation4 [shape = 's32[1]{0}', space=sflag, size = 0x4, scoped, tag = 'scoped memory for tpu_custom_call.1']
    #allocation5 [shape = 'u8[983040]{0}', space=vmem, size = 0xf0000, scoped, tag = 'input window, operand 1, single buffered']
    #allocation6 [shape = 's32[1]{0}', space=sflag, size = 0x4, scoped, tag = 'scoped memory for tpu_custom_call.1']
    #allocation7 [shape = 'u8[65536]{0}', space=vmem, size = 0x10000, scoped, tag = 'output window, operand 0, single buffered']
    %7 = vsyncpa [#allocation3], 0
    %8 = vsyncpa [#allocation6], 0
    %9 = vsyncpa [#allocation4], 0
    // Predicated region
    $region2: #{tpu_custom_call.1} parent=1 // pred_check
      _
    $region3: #{tpu_custom_call.1} parent=1 // pred_check_branch
      %11 = sbr.rel (0) target = $region5
    $region4: #{tpu_custom_call.1} parent=1 // pred_region
      %s13 = ssub.s32 6144, 6144
      %14 = vsyncadd [#allocation3], %s13
      %s15 = sshll.u32 [#allocation2], 4
      %s16 = int_to_ptr.vmem [resolvable:$true] %s15
      %21 = dma.hbm_to_vmem [thread:$0]  %s0, 6144, %s16, [#allocation3], 128, 128, 8
    $region5: #{tpu_custom_call.1} parent=1 // pred_fallthru
      _
    // Predicated region
    $region6: #{tpu_custom_call.1} parent=1 // pred_check
      _
    $region7: #{tpu_custom_call.1} parent=1 // pred_check_branch
      %23 = sbr.rel (0) target = $region9
    $region8: #{tpu_custom_call.1} parent=1 // pred_region
      %s25 = ssub.s32 30720, 30720
      %26 = vsyncadd [#allocation6], %s25
      %s27 = sshll.u32 [#allocation5], 4
      %s28 = int_to_ptr.vmem [resolvable:$true] %s27
      %33 = dma.hbm_to_vmem [thread:$0]  %s1, 30720, %s28, [#allocation6], 128, 128, 8
    $region9: #{tpu_custom_call.1} parent=1 // pred_fallthru
      _
    // Predicated region
    $region10: #{tpu_custom_call.1} parent=1 // pred_check
      _
    $region11: #{tpu_custom_call.1} parent=1 // pred_check_branch
      %35 = sbr.rel (0) target = $region13
    $region12: #{tpu_custom_call.1} parent=1 // pred_region
      %36 = dma.done [#allocation3], 6144
    $region13: #{tpu_custom_call.1} parent=1 // pred_fallthru
      _
    // Predicated region
    $region14: #{tpu_custom_call.1} parent=1 // pred_check
      _
    $region15: #{tpu_custom_call.1} parent=1 // pred_check_branch
      %38 = sbr.rel (0) target = $region17
    $region16: #{tpu_custom_call.1} parent=1 // pred_region
      %39 = dma.done [#allocation6], 30720
    $region17: #{tpu_custom_call.1} parent=1 // pred_fallthru
      _
    %v40 = vld [vmem:[#allocation2] sm:$0xff]
    %v41 = vld [vmem:[#allocation2 + $0x8] sm:$0xff]
    %v42 = vld [vmem:[#allocation2 + $0x10] sm:$0xff]
    %v43 = vld [vmem:[#allocation2 + $0x18] sm:$0xff]
    %v44 = vld [vmem:[#allocation2 + $0x20] sm:$0xff]
    %v45 = vld [vmem:[#allocation2 + $0x28] sm:$0xff]
    %v46 = vld [vmem:[#allocation2 + $0x30] sm:$0xff]
    %v47 = vld [vmem:[#allocation2 + $0x38] sm:$0xff]
    %v48 = vld [vmem:[#allocation2 + $0x40] sm:$0xff]
    %v49 = vld [vmem:[#allocation2 + $0x48] sm:$0xff]
    %v50 = vld [vmem:[#allocation2 + $0x50] sm:$0xff]
    %v51 = vld [vmem:[#allocation2 + $0x58] sm:$0xff]
    %v52 = vld [vmem:[#allocation2 + $0x60] sm:$0xff]
    %v53 = vld [vmem:[#allocation2 + $0x68] sm:$0xff]
    %v54 = vld [vmem:[#allocation2 + $0x70] sm:$0xff]
    %v55 = vld [vmem:[#allocation2 + $0x78] sm:$0xff]
    %v56 = vld [vmem:[#allocation5] sm:$0xff]
    %v57 = vld [vmem:[#allocation5 + $0x8] sm:$0xff]
    %v58 = vld [vmem:[#allocation5 + $0x10] sm:$0xff]
    %v59 = vld [vmem:[#allocation5 + $0x18] sm:$0xff]
    %v60 = vld [vmem:[#allocation5 + $0x20] sm:$0xff]
    %v61 = vld [vmem:[#allocation5 + $0x28] sm:$0xff]
    %v62 = vld [vmem:[#allocation5 + $0x30] sm:$0xff]
    %v63 = vld [vmem:[#allocation5 + $0x38] sm:$0xff]
    %v64 = vld [vmem:[#allocation5 + $0x40] sm:$0xff]
    %v65 = vld [vmem:[#allocation5 + $0x48] sm:$0xff]
    %v66 = vld [vmem:[#allocation5 + $0x50] sm:$0xff]
    %v67 = vld [vmem:[#allocation5 + $0x58] sm:$0xff]
    %v68 = vld [vmem:[#allocation5 + $0x60] sm:$0xff]
    %v69 = vld [vmem:[#allocation5 + $0x68] sm:$0xff]
    %v70 = vld [vmem:[#allocation5 + $0x70] sm:$0xff]
    %v71 = vld [vmem:[#allocation5 + $0x78] sm:$0xff]
    %s72 = scalar_lea.vmem [#allocation5], 128
    %v73 = vld [vmem:[%s72] sm:$0xff]
    %v74 = vld [vmem:[%s72 + $0x8] sm:$0xff]
    %v75 = vld [vmem:[%s72 + $0x10] sm:$0xff]
    %v76 = vld [vmem:[%s72 + $0x18] sm:$0xff]
    %v77 = vld [vmem:[%s72 + $0x20] sm:$0xff]
    %v78 = vld [vmem:[%s72 + $0x28] sm:$0xff]
    %v79 = vld [vmem:[%s72 + $0x30] sm:$0xff]
    %v80 = vld [vmem:[%s72 + $0x38] sm:$0xff]
    %v81 = vld [vmem:[%s72 + $0x40] sm:$0xff]
    %v82 = vld [vmem:[%s72 + $0x48] sm:$0xff]
    %v83 = vld [vmem:[%s72 + $0x50] sm:$0xff]
    %v84 = vld [vmem:[%s72 + $0x58] sm:$0xff]
    %v85 = vld [vmem:[%s72 + $0x60] sm:$0xff]
    %v86 = vld [vmem:[%s72 + $0x68] sm:$0xff]
    %v87 = vld [vmem:[%s72 + $0x70] sm:$0xff]
    %v88 = vld [vmem:[%s72 + $0x78] sm:$0xff]
    %s89 = scalar_lea.vmem [#allocation5], 256
    %v90 = vld [vmem:[%s89] sm:$0xff]
    %v91 = vld [vmem:[%s89 + $0x8] sm:$0xff]
    %v92 = vld [vmem:[%s89 + $0x10] sm:$0xff]
    %v93 = vld [vmem:[%s89 + $0x18] sm:$0xff]
    %v94 = vld [vmem:[%s89 + $0x20] sm:$0xff]
    %v95 = vld [vmem:[%s89 + $0x28] sm:$0xff]
    %v96 = vld [vmem:[%s89 + $0x30] sm:$0xff]
    %v97 = vld [vmem:[%s89 + $0x38] sm:$0xff]
    %v98 = vld [vmem:[%s89 + $0x40] sm:$0xff]
    %v99 = vld [vmem:[%s89 + $0x48] sm:$0xff]
    %v100 = vld [vmem:[%s89 + $0x50] sm:$0xff]
    %v101 = vld [vmem:[%s89 + $0x58] sm:$0xff]
    %v102 = vld [vmem:[%s89 + $0x60] sm:$0xff]
    %v103 = vld [vmem:[%s89 + $0x68] sm:$0xff]
    %v104 = vld [vmem:[%s89 + $0x70] sm:$0xff]
    %v105 = vld [vmem:[%s89 + $0x78] sm:$0xff]
    %s106 = scalar_lea.vmem [#allocation5], 384
    %v107 = vld [vmem:[%s106] sm:$0xff]
    %v108 = vld [vmem:[%s106 + $0x8] sm:$0xff]
    %v109 = vld [vmem:[%s106 + $0x10] sm:$0xff]
    %v110 = vld [vmem:[%s106 + $0x18] sm:$0xff]
    %v111 = vld [vmem:[%s106 + $0x20] sm:$0xff]
    %v112 = vld [vmem:[%s106 + $0x28] sm:$0xff]
    %v113 = vld [vmem:[%s106 + $0x30] sm:$0xff]
    %v114 = vld [vmem:[%s106 + $0x38] sm:$0xff]
    %v115 = vld [vmem:[%s106 + $0x40] sm:$0xff]
    %v116 = vld [vmem:[%s106 + $0x48] sm:$0xff]
    %v117 = vld [vmem:[%s106 + $0x50] sm:$0xff]
    %v118 = vld [vmem:[%s106 + $0x58] sm:$0xff]
    %v119 = vld [vmem:[%s106 + $0x60] sm:$0xff]
    %v120 = vld [vmem:[%s106 + $0x68] sm:$0xff]
    %v121 = vld [vmem:[%s106 + $0x70] sm:$0xff]
    %v122 = vld [vmem:[%s106 + $0x78] sm:$0xff]
    %s123 = scalar_lea.vmem [#allocation5], 512
    %v124 = vld [vmem:[%s123] sm:$0xff]
    %v125 = vld [vmem:[%s123 + $0x8] sm:$0xff]
    %v126 = vld [vmem:[%s123 + $0x10] sm:$0xff]
    %v127 = vld [vmem:[%s123 + $0x18] sm:$0xff]
    %v128 = vld [vmem:[%s123 + $0x20] sm:$0xff]
    %v129 = vld [vmem:[%s123 + $0x28] sm:$0xff]
    %v130 = vld [vmem:[%s123 + $0x30] sm:$0xff]
    %v131 = vld [vmem:[%s123 + $0x38] sm:$0xff]
    %v132 = vld [vmem:[%s123 + $0x40] sm:$0xff]
    %v133 = vld [vmem:[%s123 + $0x48] sm:$0xff]
    %v134 = vld [vmem:[%s123 + $0x50] sm:$0xff]
    %v135 = vld [vmem:[%s123 + $0x58] sm:$0xff]
    %v136 = vld [vmem:[%s123 + $0x60] sm:$0xff]
    %v137 = vld [vmem:[%s123 + $0x68] sm:$0xff]
    %v138 = vld [vmem:[%s123 + $0x70] sm:$0xff]
    %v139 = vld [vmem:[%s123 + $0x78] sm:$0xff]
    %v140 = vmul.f32 %v40, 2.0
    %v141 = vmul.f32 %v41, 2.0
    %v142 = vmul.f32 %v42, 2.0
    %v143 = vmul.f32 %v43, 2.0
    %v144 = vmul.f32 %v44, 2.0
    %v145 = vmul.f32 %v45, 2.0
    %v146 = vmul.f32 %v46, 2.0
    %v147 = vmul.f32 %v47, 2.0
    %v148 = vmul.f32 %v48, 2.0
    %v149 = vmul.f32 %v49, 2.0
    %v150 = vmul.f32 %v50, 2.0
    %v151 = vmul.f32 %v51, 2.0
    %v152 = vmul.f32 %v52, 2.0
    %v153 = vmul.f32 %v53, 2.0
    %v154 = vmul.f32 %v54, 2.0
    %v155 = vmul.f32 %v55, 2.0
    %v156 = vadd.f32 %v140, 2e-06
    %v157 = vadd.f32 %v141, 2e-06
    %v158 = vadd.f32 %v142, 2e-06
    %v159 = vadd.f32 %v143, 2e-06
    %v160 = vadd.f32 %v144, 2e-06
    %v161 = vadd.f32 %v145, 2e-06
    %v162 = vadd.f32 %v146, 2e-06
    %v163 = vadd.f32 %v147, 2e-06
    %v164 = vadd.f32 %v148, 2e-06
    %v165 = vadd.f32 %v149, 2e-06
    %v166 = vadd.f32 %v150, 2e-06
    %v167 = vadd.f32 %v151, 2e-06
    %v168 = vadd.f32 %v152, 2e-06
    %v169 = vadd.f32 %v153, 2e-06
    %v170 = vadd.f32 %v154, 2e-06
    %v171 = vadd.f32 %v155, 2e-06
    %v172 = vsub.f32 %v56, %v156
    %v173 = vsub.f32 %v57, %v157
    %v174 = vsub.f32 %v58, %v158
    %v175 = vsub.f32 %v59, %v159
    %v176 = vsub.f32 %v60, %v160
    %v177 = vsub.f32 %v61, %v161
    %v178 = vsub.f32 %v62, %v162
    %v179 = vsub.f32 %v63, %v163
    %v180 = vsub.f32 %v64, %v164
    %v181 = vsub.f32 %v65, %v165
    %v182 = vsub.f32 %v66, %v166
    %v183 = vsub.f32 %v67, %v167
    %v184 = vsub.f32 %v68, %v168
    %v185 = vsub.f32 %v69, %v169
    %v186 = vsub.f32 %v70, %v170
    %v187 = vsub.f32 %v71, %v171
    %v188 = vmul.f32 %v56, %v172
    %v189 = vmul.f32 %v57, %v173
    %v190 = vmul.f32 %v58, %v174
    %v191 = vmul.f32 %v59, %v175
    %v192 = vmul.f32 %v60, %v176
    %v193 = vmul.f32 %v61, %v177
    %v194 = vmul.f32 %v62, %v178
    %v195 = vmul.f32 %v63, %v179
    %v196 = vmul.f32 %v64, %v180
    %v197 = vmul.f32 %v65, %v181
    %v198 = vmul.f32 %v66, %v182
    %v199 = vmul.f32 %v67, %v183
    %v200 = vmul.f32 %v68, %v184
    %v201 = vmul.f32 %v69, %v185
    %v202 = vmul.f32 %v70, %v186
    %v203 = vmul.f32 %v71, %v187
    %204 = vadd.xlane.f32.xlu0 %v188
    %v205 = vpop.xlane.xlu0 %204
    %206 = vadd.xlane.f32.xlu0 %v189
    %v207 = vpop.xlane.xlu0 %206
    %208 = vadd.xlane.f32.xlu0 %v190
    %v209 = vpop.xlane.xlu0 %208
    %210 = vadd.xlane.f32.xlu0 %v191
    %v211 = vpop.xlane.xlu0 %210
    %212 = vadd.xlane.f32.xlu0 %v192
    %v213 = vpop.xlane.xlu0 %212
    %214 = vadd.xlane.f32.xlu0 %v193
    %v215 = vpop.xlane.xlu0 %214
    %216 = vadd.xlane.f32.xlu0 %v194
    %v217 = vpop.xlane.xlu0 %216
    %218 = vadd.xlane.f32.xlu0 %v195
    %v219 = vpop.xlane.xlu0 %218
    %220 = vadd.xlane.f32.xlu0 %v196
    %v221 = vpop.xlane.xlu0 %220
    %222 = vadd.xlane.f32.xlu0 %v197
    %v223 = vpop.xlane.xlu0 %222
    %224 = vadd.xlane.f32.xlu0 %v198
    %v225 = vpop.xlane.xlu0 %224
    %226 = vadd.xlane.f32.xlu0 %v199
    %v227 = vpop.xlane.xlu0 %226
    %228 = vadd.xlane.f32.xlu0 %v200
    %v229 = vpop.xlane.xlu0 %228
    %230 = vadd.xlane.f32.xlu0 %v201
    %v231 = vpop.xlane.xlu0 %230
    %232 = vadd.xlane.f32.xlu0 %v202
    %v233 = vpop.xlane.xlu0 %232
    %234 = vadd.xlane.f32.xlu0 %v203
    %v235 = vpop.xlane.xlu0 %234
    %v236 = vsub.f32 %v73, %v156
    %v237 = vsub.f32 %v74, %v157
    %v238 = vsub.f32 %v75, %v158
    %v239 = vsub.f32 %v76, %v159
    %v240 = vsub.f32 %v77, %v160
    %v241 = vsub.f32 %v78, %v161
    %v242 = vsub.f32 %v79, %v162
    %v243 = vsub.f32 %v80, %v163
    %v244 = vsub.f32 %v81, %v164
    %v245 = vsub.f32 %v82, %v165
    %v246 = vsub.f32 %v83, %v166
    %v247 = vsub.f32 %v84, %v167
    %v248 = vsub.f32 %v85, %v168
    %v249 = vsub.f32 %v86, %v169
    %v250 = vsub.f32 %v87, %v170
    %v251 = vsub.f32 %v88, %v171
    %v252 = vmul.f32 %v73, %v236
    %v253 = vmul.f32 %v74, %v237
    %v254 = vmul.f32 %v75, %v238
    %v255 = vmul.f32 %v76, %v239
    %v256 = vmul.f32 %v77, %v240
    %v257 = vmul.f32 %v78, %v241
    %v258 = vmul.f32 %v79, %v242
    %v259 = vmul.f32 %v80, %v243
    %v260 = vmul.f32 %v81, %v244
    %v261 = vmul.f32 %v82, %v245
    %v262 = vmul.f32 %v83, %v246
    %v263 = vmul.f32 %v84, %v247
    %v264 = vmul.f32 %v85, %v248
    %v265 = vmul.f32 %v86, %v249
    %v266 = vmul.f32 %v87, %v250
    %v267 = vmul.f32 %v88, %v251
    %268 = vadd.xlane.f32.xlu0 %v252
    %v269 = vpop.xlane.xlu0 %268
    %270 = vadd.xlane.f32.xlu0 %v253
    %v271 = vpop.xlane.xlu0 %270
    %272 = vadd.xlane.f32.xlu0 %v254
    %v273 = vpop.xlane.xlu0 %272
    %274 = vadd.xlane.f32.xlu0 %v255
    %v275 = vpop.xlane.xlu0 %274
    %276 = vadd.xlane.f32.xlu0 %v256
    %v277 = vpop.xlane.xlu0 %276
    %278 = vadd.xlane.f32.xlu0 %v257
    %v279 = vpop.xlane.xlu0 %278
    %280 = vadd.xlane.f32.xlu0 %v258
    %v281 = vpop.xlane.xlu0 %280
    %282 = vadd.xlane.f32.xlu0 %v259
    %v283 = vpop.xlane.xlu0 %282
    %284 = vadd.xlane.f32.xlu0 %v260
    %v285 = vpop.xlane.xlu0 %284
    %286 = vadd.xlane.f32.xlu0 %v261
    %v287 = vpop.xlane.xlu0 %286
    %288 = vadd.xlane.f32.xlu0 %v262
    %v289 = vpop.xlane.xlu0 %288
    %290 = vadd.xlane.f32.xlu0 %v263
    %v291 = vpop.xlane.xlu0 %290
    %292 = vadd.xlane.f32.xlu0 %v264
    %v293 = vpop.xlane.xlu0 %292
    %294 = vadd.xlane.f32.xlu0 %v265
    %v295 = vpop.xlane.xlu0 %294
    %296 = vadd.xlane.f32.xlu0 %v266
    %v297 = vpop.xlane.xlu0 %296
    %298 = vadd.xlane.f32.xlu0 %v267
    %v299 = vpop.xlane.xlu0 %298
    %v300 = vsub.f32 %v90, %v156
    %v301 = vsub.f32 %v91, %v157
    %v302 = vsub.f32 %v92, %v158
    %v303 = vsub.f32 %v93, %v159
    %v304 = vsub.f32 %v94, %v160
    %v305 = vsub.f32 %v95, %v161
    %v306 = vsub.f32 %v96, %v162
    %v307 = vsub.f32 %v97, %v163
    %v308 = vsub.f32 %v98, %v164
    %v309 = vsub.f32 %v99, %v165
    %v310 = vsub.f32 %v100, %v166
    %v311 = vsub.f32 %v101, %v167
    %v312 = vsub.f32 %v102, %v168
    %v313 = vsub.f32 %v103, %v169
    %v314 = vsub.f32 %v104, %v170
    %v315 = vsub.f32 %v105, %v171
    %v316 = vmul.f32 %v90, %v300
    %v317 = vmul.f32 %v91, %v301
    %v318 = vmul.f32 %v92, %v302
    %v319 = vmul.f32 %v93, %v303
    %v320 = vmul.f32 %v94, %v304
    %v321 = vmul.f32 %v95, %v305
    %v322 = vmul.f32 %v96, %v306
    %v323 = vmul.f32 %v97, %v307
    %v324 = vmul.f32 %v98, %v308
    %v325 = vmul.f32 %v99, %v309
    %v326 = vmul.f32 %v100, %v310
    %v327 = vmul.f32 %v101, %v311
    %v328 = vmul.f32 %v102, %v312
    %v329 = vmul.f32 %v103, %v313
    %v330 = vmul.f32 %v104, %v314
    %v331 = vmul.f32 %v105, %v315
    %332 = vadd.xlane.f32.xlu0 %v316
    %v333 = vpop.xlane.xlu0 %332
    %334 = vadd.xlane.f32.xlu0 %v317
    %v335 = vpop.xlane.xlu0 %334
    %336 = vadd.xlane.f32.xlu0 %v318
    %v337 = vpop.xlane.xlu0 %336
    %338 = vadd.xlane.f32.xlu0 %v319
    %v339 = vpop.xlane.xlu0 %338
    %340 = vadd.xlane.f32.xlu0 %v320
    %v341 = vpop.xlane.xlu0 %340
    %342 = vadd.xlane.f32.xlu0 %v321
    %v343 = vpop.xlane.xlu0 %342
    %344 = vadd.xlane.f32.xlu0 %v322
    %v345 = vpop.xlane.xlu0 %344
    %346 = vadd.xlane.f32.xlu0 %v323
    %v347 = vpop.xlane.xlu0 %346
    %348 = vadd.xlane.f32.xlu0 %v324
    %v349 = vpop.xlane.xlu0 %348
    %350 = vadd.xlane.f32.xlu0 %v325
    %v351 = vpop.xlane.xlu0 %350
    %352 = vadd.xlane.f32.xlu0 %v326
    %v353 = vpop.xlane.xlu0 %352
    %354 = vadd.xlane.f32.xlu0 %v327
    %v355 = vpop.xlane.xlu0 %354
    %356 = vadd.xlane.f32.xlu0 %v328
    %v357 = vpop.xlane.xlu0 %356
    %358 = vadd.xlane.f32.xlu0 %v329
    %v359 = vpop.xlane.xlu0 %358
    %360 = vadd.xlane.f32.xlu0 %v330
    %v361 = vpop.xlane.xlu0 %360
    %362 = vadd.xlane.f32.xlu0 %v331
    %v363 = vpop.xlane.xlu0 %362
    %v364 = vsub.f32 %v107, %v156
    %v365 = vsub.f32 %v108, %v157
    %v366 = vsub.f32 %v109, %v158
    %v367 = vsub.f32 %v110, %v159
    %v368 = vsub.f32 %v111, %v160
    %v369 = vsub.f32 %v112, %v161
    %v370 = vsub.f32 %v113, %v162
    %v371 = vsub.f32 %v114, %v163
    %v372 = vsub.f32 %v115, %v164
    %v373 = vsub.f32 %v116, %v165
    %v374 = vsub.f32 %v117, %v166
    %v375 = vsub.f32 %v118, %v167
    %v376 = vsub.f32 %v119, %v168
    %v377 = vsub.f32 %v120, %v169
    %v378 = vsub.f32 %v121, %v170
    %v379 = vsub.f32 %v122, %v171
    %v380 = vmul.f32 %v107, %v364
    %v381 = vmul.f32 %v108, %v365
    %v382 = vmul.f32 %v109, %v366
    %v383 = vmul.f32 %v110, %v367
    %v384 = vmul.f32 %v111, %v368
    %v385 = vmul.f32 %v112, %v369
    %v386 = vmul.f32 %v113, %v370
    %v387 = vmul.f32 %v114, %v371
    %v388 = vmul.f32 %v115, %v372
    %v389 = vmul.f32 %v116, %v373
    %v390 = vmul.f32 %v117, %v374
    %v391 = vmul.f32 %v118, %v375
    %v392 = vmul.f32 %v119, %v376
    %v393 = vmul.f32 %v120, %v377
    %v394 = vmul.f32 %v121, %v378
    %v395 = vmul.f32 %v122, %v379
    %396 = vadd.xlane.f32.xlu0 %v380
    %v397 = vpop.xlane.xlu0 %396
    %398 = vadd.xlane.f32.xlu0 %v381
    %v399 = vpop.xlane.xlu0 %398
    %400 = vadd.xlane.f32.xlu0 %v382
    %v401 = vpop.xlane.xlu0 %400
    %402 = vadd.xlane.f32.xlu0 %v383
    %v403 = vpop.xlane.xlu0 %402
    %404 = vadd.xlane.f32.xlu0 %v384
    %v405 = vpop.xlane.xlu0 %404
    %406 = vadd.xlane.f32.xlu0 %v385
    %v407 = vpop.xlane.xlu0 %406
    %408 = vadd.xlane.f32.xlu0 %v386
    %v409 = vpop.xlane.xlu0 %408
    %410 = vadd.xlane.f32.xlu0 %v387
    %v411 = vpop.xlane.xlu0 %410
    %412 = vadd.xlane.f32.xlu0 %v388
    %v413 = vpop.xlane.xlu0 %412
    %414 = vadd.xlane.f32.xlu0 %v389
    %v415 = vpop.xlane.xlu0 %414
    %416 = vadd.xlane.f32.xlu0 %v390
    %v417 = vpop.xlane.xlu0 %416
    %418 = vadd.xlane.f32.xlu0 %v391
    %v419 = vpop.xlane.xlu0 %418
    %420 = vadd.xlane.f32.xlu0 %v392
    %v421 = vpop.xlane.xlu0 %420
    %422 = vadd.xlane.f32.xlu0 %v393
    %v423 = vpop.xlane.xlu0 %422
    %424 = vadd.xlane.f32.xlu0 %v394
    %v425 = vpop.xlane.xlu0 %424
    %426 = vadd.xlane.f32.xlu0 %v395
    %v427 = vpop.xlane.xlu0 %426
    %v428 = vsub.f32 %v124, %v156
    %v429 = vsub.f32 %v125, %v157
    %v430 = vsub.f32 %v126, %v158
    %v431 = vsub.f32 %v127, %v159
    %v432 = vsub.f32 %v128, %v160
    %v433 = vsub.f32 %v129, %v161
    %v434 = vsub.f32 %v130, %v162
    %v435 = vsub.f32 %v131, %v163
    %v436 = vsub.f32 %v132, %v164
    %v437 = vsub.f32 %v133, %v165
    %v438 = vsub.f32 %v134, %v166
    %v439 = vsub.f32 %v135, %v167
    %v440 = vsub.f32 %v136, %v168
    %v441 = vsub.f32 %v137, %v169
    %v442 = vsub.f32 %v138, %v170
    %v443 = vsub.f32 %v139, %v171
    %v444 = vmul.f32 %v124, %v428
    %v445 = vmul.f32 %v125, %v429
    %v446 = vmul.f32 %v126, %v430
    %v447 = vmul.f32 %v127, %v431
    %v448 = vmul.f32 %v128, %v432
    %v449 = vmul.f32 %v129, %v433
    %v450 = vmul.f32 %v130, %v434
    %v451 = vmul.f32 %v131, %v435
    %v452 = vmul.f32 %v132, %v436
    %v453 = vmul.f32 %v133, %v437
    %v454 = vmul.f32 %v134, %v438
    %v455 = vmul.f32 %v135, %v439
    %v456 = vmul.f32 %v136, %v440
    %v457 = vmul.f32 %v137, %v441
    %v458 = vmul.f32 %v138, %v442
    %v459 = vmul.f32 %v139, %v443
    %460 = vadd.xlane.f32.xlu0 %v444
    %v461 = vpop.xlane.xlu0 %460
    %462 = vadd.xlane.f32.xlu0 %v445
    %v463 = vpop.xlane.xlu0 %462
    %464 = vadd.xlane.f32.xlu0 %v446
    %v465 = vpop.xlane.xlu0 %464
    %466 = vadd.xlane.f32.xlu0 %v447
    %v467 = vpop.xlane.xlu0 %466
    %468 = vadd.xlane.f32.xlu0 %v448
    %v469 = vpop.xlane.xlu0 %468
    %470 = vadd.xlane.f32.xlu0 %v449
    %v471 = vpop.xlane.xlu0 %470
    %472 = vadd.xlane.f32.xlu0 %v450
    %v473 = vpop.xlane.xlu0 %472
    %474 = vadd.xlane.f32.xlu0 %v451
    %v475 = vpop.xlane.xlu0 %474
    %476 = vadd.xlane.f32.xlu0 %v452
    %v477 = vpop.xlane.xlu0 %476
    %478 = vadd.xlane.f32.xlu0 %v453
    %v479 = vpop.xlane.xlu0 %478
    %480 = vadd.xlane.f32.xlu0 %v454
    %v481 = vpop.xlane.xlu0 %480
    %482 = vadd.xlane.f32.xlu0 %v455
    %v483 = vpop.xlane.xlu0 %482
    %484 = vadd.xlane.f32.xlu0 %v456
    %v485 = vpop.xlane.xlu0 %484
    %486 = vadd.xlane.f32.xlu0 %v457
    %v487 = vpop.xlane.xlu0 %486
    %488 = vadd.xlane.f32.xlu0 %v458
    %v489 = vpop.xlane.xlu0 %488
    %490 = vadd.xlane.f32.xlu0 %v459
    %v491 = vpop.xlane.xlu0 %490
    %v492 = vmax.f32 %v205, %v269
    %v493 = vmax.f32 %v207, %v271
    %v494 = vmax.f32 %v209, %v273
    %v495 = vmax.f32 %v211, %v275
    %v496 = vmax.f32 %v213, %v277
    %v497 = vmax.f32 %v215, %v279
    %v498 = vmax.f32 %v217, %v281
    %v499 = vmax.f32 %v219, %v283
    %v500 = vmax.f32 %v221, %v285
    %v501 = vmax.f32 %v223, %v287
    %v502 = vmax.f32 %v225, %v289
    %v503 = vmax.f32 %v227, %v291
    %v504 = vmax.f32 %v229, %v293
    %v505 = vmax.f32 %v231, %v295
    %v506 = vmax.f32 %v233, %v297
    %v507 = vmax.f32 %v235, %v299
    %v508 = vmax.f32 %v492, %v333
    %v509 = vmax.f32 %v493, %v335
    %v510 = vmax.f32 %v494, %v337
    %v511 = vmax.f32 %v495, %v339
    %v512 = vmax.f32 %v496, %v341
    %v513 = vmax.f32 %v497, %v343
    %v514 = vmax.f32 %v498, %v345
    %v515 = vmax.f32 %v499, %v347
    %v516 = vmax.f32 %v500, %v349
    %v517 = vmax.f32 %v501, %v351
    %v518 = vmax.f32 %v502, %v353
    %v519 = vmax.f32 %v503, %v355
    %v520 = vmax.f32 %v504, %v357
    %v521 = vmax.f32 %v505, %v359
    %v522 = vmax.f32 %v506, %v361
    %v523 = vmax.f32 %v507, %v363
    %v524 = vmax.f32 %v508, %v397
    %v525 = vmax.f32 %v509, %v399
    %v526 = vmax.f32 %v510, %v401
    %v527 = vmax.f32 %v511, %v403
    %v528 = vmax.f32 %v512, %v405
    %v529 = vmax.f32 %v513, %v407
    %v530 = vmax.f32 %v514, %v409
    %v531 = vmax.f32 %v515, %v411
    %v532 = vmax.f32 %v516, %v413
    %v533 = vmax.f32 %v517, %v415
    %v534 = vmax.f32 %v518, %v417
    %v535 = vmax.f32 %v519, %v419
    %v536 = vmax.f32 %v520, %v421
    %v537 = vmax.f32 %v521, %v423
    %v538 = vmax.f32 %v522, %v425
    %v539 = vmax.f32 %v523, %v427
    %v540 = vmax.f32 %v524, %v461
    %v541 = vmax.f32 %v525, %v463
    %v542 = vmax.f32 %v526, %v465
    %v543 = vmax.f32 %v527, %v467
    %v544 = vmax.f32 %v528, %v469
    %v545 = vmax.f32 %v529, %v471
    %v546 = vmax.f32 %v530, %v473
    %v547 = vmax.f32 %v531, %v475
    %v548 = vmax.f32 %v532, %v477
    %v549 = vmax.f32 %v533, %v479
    %v550 = vmax.f32 %v534, %v481
    %v551 = vmax.f32 %v535, %v483
    %v552 = vmax.f32 %v536, %v485
    %v553 = vmax.f32 %v537, %v487
    %v554 = vmax.f32 %v538, %v489
    %v555 = vmax.f32 %v539, %v491
    %vm556 = vcmp.eq.f32.partialorder %v205, %v540
    %vm557 = vcmp.eq.f32.partialorder %v207, %v541
    %vm558 = vcmp.eq.f32.partialorder %v209, %v542
    %vm559 = vcmp.eq.f32.partialorder %v211, %v543
    %vm560 = vcmp.eq.f32.partialorder %v213, %v544
    %vm561 = vcmp.eq.f32.partialorder %v215, %v545
    %vm562 = vcmp.eq.f32.partialorder %v217, %v546
    %vm563 = vcmp.eq.f32.partialorder %v219, %v547
    %vm564 = vcmp.eq.f32.partialorder %v221, %v548
    %vm565 = vcmp.eq.f32.partialorder %v223, %v549
    %vm566 = vcmp.eq.f32.partialorder %v225, %v550
    %vm567 = vcmp.eq.f32.partialorder %v227, %v551
    %vm568 = vcmp.eq.f32.partialorder %v229, %v552
    %vm569 = vcmp.eq.f32.partialorder %v231, %v553
    %vm570 = vcmp.eq.f32.partialorder %v233, %v554
    %vm571 = vcmp.eq.f32.partialorder %v235, %v555
    %v572 = vsel %vm556, 1, 0
    %v573 = vsel %vm557, 1, 0
    %v574 = vsel %vm558, 1, 0
    %v575 = vsel %vm559, 1, 0
    %v576 = vsel %vm560, 1, 0
    %v577 = vsel %vm561, 1, 0
    %v578 = vsel %vm562, 1, 0
    %v579 = vsel %vm563, 1, 0
    %v580 = vsel %vm564, 1, 0
    %v581 = vsel %vm565, 1, 0
    %v582 = vsel %vm566, 1, 0
    %v583 = vsel %vm567, 1, 0
    %v584 = vsel %vm568, 1, 0
    %v585 = vsel %vm569, 1, 0
    %v586 = vsel %vm570, 1, 0
    %v587 = vsel %vm571, 1, 0
    %v588 = vcvt.s32.f32 %v572
    %v589 = vcvt.s32.f32 %v573
    %v590 = vcvt.s32.f32 %v574
    %v591 = vcvt.s32.f32 %v575
    %v592 = vcvt.s32.f32 %v576
    %v593 = vcvt.s32.f32 %v577
    %v594 = vcvt.s32.f32 %v578
    %v595 = vcvt.s32.f32 %v579
    %v596 = vcvt.s32.f32 %v580
    %v597 = vcvt.s32.f32 %v581
    %v598 = vcvt.s32.f32 %v582
    %v599 = vcvt.s32.f32 %v583
    %v600 = vcvt.s32.f32 %v584
    %v601 = vcvt.s32.f32 %v585
    %v602 = vcvt.s32.f32 %v586
    %v603 = vcvt.s32.f32 %v587
    %v604 = vadd.f32 %v588, 0.0
    %v605 = vadd.f32 %v589, 0.0
    %v606 = vadd.f32 %v590, 0.0
    %v607 = vadd.f32 %v591, 0.0
    %v608 = vadd.f32 %v592, 0.0
    %v609 = vadd.f32 %v593, 0.0
    %v610 = vadd.f32 %v594, 0.0
    %v611 = vadd.f32 %v595, 0.0
    %v612 = vadd.f32 %v596, 0.0
    %v613 = vadd.f32 %v597, 0.0
    %v614 = vadd.f32 %v598, 0.0
    %v615 = vadd.f32 %v599, 0.0
    %v616 = vadd.f32 %v600, 0.0
    %v617 = vadd.f32 %v601, 0.0
    %v618 = vadd.f32 %v602, 0.0
    %v619 = vadd.f32 %v603, 0.0
    %v620 = vsel %vm556, -inf, %v205
    %v621 = vsel %vm557, -inf, %v207
    %v622 = vsel %vm558, -inf, %v209
    %v623 = vsel %vm559, -inf, %v211
    %v624 = vsel %vm560, -inf, %v213
    %v625 = vsel %vm561, -inf, %v215
    %v626 = vsel %vm562, -inf, %v217
    %v627 = vsel %vm563, -inf, %v219
    %v628 = vsel %vm564, -inf, %v221
    %v629 = vsel %vm565, -inf, %v223
    %v630 = vsel %vm566, -inf, %v225
    %v631 = vsel %vm567, -inf, %v227
    %v632 = vsel %vm568, -inf, %v229
    %v633 = vsel %vm569, -inf, %v231
    %v634 = vsel %vm570, -inf, %v233
    %v635 = vsel %vm571, -inf, %v235
    %vm636 = vcmp.eq.f32.partialorder %v269, %v540
    %vm637 = vcmp.eq.f32.partialorder %v271, %v541
    %vm638 = vcmp.eq.f32.partialorder %v273, %v542
    %vm639 = vcmp.eq.f32.partialorder %v275, %v543
    %vm640 = vcmp.eq.f32.partialorder %v277, %v544
    %vm641 = vcmp.eq.f32.partialorder %v279, %v545
    %vm642 = vcmp.eq.f32.partialorder %v281, %v546
    %vm643 = vcmp.eq.f32.partialorder %v283, %v547
    %vm644 = vcmp.eq.f32.partialorder %v285, %v548
    %vm645 = vcmp.eq.f32.partialorder %v287, %v549
    %vm646 = vcmp.eq.f32.partialorder %v289, %v550
    %vm647 = vcmp.eq.f32.partialorder %v291, %v551
    %vm648 = vcmp.eq.f32.partialorder %v293, %v552
    %vm649 = vcmp.eq.f32.partialorder %v295, %v553
    %vm650 = vcmp.eq.f32.partialorder %v297, %v554
    %vm651 = vcmp.eq.f32.partialorder %v299, %v555
    %vm652 = vmxor %vm556, 1
    %vm653 = vmxor %vm557, 1
    %vm654 = vmxor %vm558, 1
    %vm655 = vmxor %vm559, 1
    %vm656 = vmxor %vm560, 1
    %vm657 = vmxor %vm561, 1
    %vm658 = vmxor %vm562, 1
    %vm659 = vmxor %vm563, 1
    %vm660 = vmxor %vm564, 1
    %vm661 = vmxor %vm565, 1
    %vm662 = vmxor %vm566, 1
    %vm663 = vmxor %vm567, 1
    %vm664 = vmxor %vm568, 1
    %vm665 = vmxor %vm569, 1
    %vm666 = vmxor %vm570, 1
    %vm667 = vmxor %vm571, 1
    %vm668 = vmand %vm636, %vm652
    %vm669 = vmand %vm637, %vm653
    %vm670 = vmand %vm638, %vm654
    %vm671 = vmand %vm639, %vm655
    %vm672 = vmand %vm640, %vm656
    %vm673 = vmand %vm641, %vm657
    %vm674 = vmand %vm642, %vm658
    %vm675 = vmand %vm643, %vm659
    %vm676 = vmand %vm644, %vm660
    %vm677 = vmand %vm645, %vm661
    %vm678 = vmand %vm646, %vm662
    %vm679 = vmand %vm647, %vm663
    %vm680 = vmand %vm648, %vm664
    %vm681 = vmand %vm649, %vm665
    %vm682 = vmand %vm650, %vm666
    %vm683 = vmand %vm651, %vm667
    %v684 = vsel %vm668, 1, 0
    %v685 = vsel %vm669, 1, 0
    %v686 = vsel %vm670, 1, 0
    %v687 = vsel %vm671, 1, 0
    %v688 = vsel %vm672, 1, 0
    %v689 = vsel %vm673, 1, 0
    %v690 = vsel %vm674, 1, 0
    %v691 = vsel %vm675, 1, 0
    %v692 = vsel %vm676, 1, 0
    %v693 = vsel %vm677, 1, 0
    %v694 = vsel %vm678, 1, 0
    %v695 = vsel %vm679, 1, 0
    %v696 = vsel %vm680, 1, 0
    %v697 = vsel %vm681, 1, 0
    %v698 = vsel %vm682, 1, 0
    %v699 = vsel %vm683, 1, 0
    %v700 = vcvt.s32.f32 %v684
    %v701 = vcvt.s32.f32 %v685
    %v702 = vcvt.s32.f32 %v686
    %v703 = vcvt.s32.f32 %v687
    %v704 = vcvt.s32.f32 %v688
    %v705 = vcvt.s32.f32 %v689
    %v706 = vcvt.s32.f32 %v690
    %v707 = vcvt.s32.f32 %v691
    %v708 = vcvt.s32.f32 %v692
    %v709 = vcvt.s32.f32 %v693
    %v710 = vcvt.s32.f32 %v694
    %v711 = vcvt.s32.f32 %v695
    %v712 = vcvt.s32.f32 %v696
    %v713 = vcvt.s32.f32 %v697
    %v714 = vcvt.s32.f32 %v698
    %v715 = vcvt.s32.f32 %v699
    %v716 = vadd.f32 %v700, 0.0
    %v717 = vadd.f32 %v701, 0.0
    %v718 = vadd.f32 %v702, 0.0
    %v719 = vadd.f32 %v703, 0.0
    %v720 = vadd.f32 %v704, 0.0
    %v721 = vadd.f32 %v705, 0.0
    %v722 = vadd.f32 %v706, 0.0
    %v723 = vadd.f32 %v707, 0.0
    %v724 = vadd.f32 %v708, 0.0
    %v725 = vadd.f32 %v709, 0.0
    %v726 = vadd.f32 %v710, 0.0
    %v727 = vadd.f32 %v711, 0.0
    %v728 = vadd.f32 %v712, 0.0
    %v729 = vadd.f32 %v713, 0.0
    %v730 = vadd.f32 %v714, 0.0
    %v731 = vadd.f32 %v715, 0.0
    %v732 = vsel %vm668, -inf, %v269
    %v733 = vsel %vm669, -inf, %v271
    %v734 = vsel %vm670, -inf, %v273
    %v735 = vsel %vm671, -inf, %v275
    %v736 = vsel %vm672, -inf, %v277
    %v737 = vsel %vm673, -inf, %v279
    %v738 = vsel %vm674, -inf, %v281
    %v739 = vsel %vm675, -inf, %v283
    %v740 = vsel %vm676, -inf, %v285
    %v741 = vsel %vm677, -inf, %v287
    %v742 = vsel %vm678, -inf, %v289
    %v743 = vsel %vm679, -inf, %v291
    %v744 = vsel %vm680, -inf, %v293
    %v745 = vsel %vm681, -inf, %v295
    %v746 = vsel %vm682, -inf, %v297
    %v747 = vsel %vm683, -inf, %v299
    %vm748 = vmor %vm556, %vm668
    %vm749 = vmor %vm557, %vm669
    %vm750 = vmor %vm558, %vm670
    %vm751 = vmor %vm559, %vm671
    %vm752 = vmor %vm560, %vm672
    %vm753 = vmor %vm561, %vm673
    %vm754 = vmor %vm562, %vm674
    %vm755 = vmor %vm563, %vm675
    %vm756 = vmor %vm564, %vm676
    %vm757 = vmor %vm565, %vm677
    %vm758 = vmor %vm566, %vm678
    %vm759 = vmor %vm567, %vm679
    %vm760 = vmor %vm568, %vm680
    %vm761 = vmor %vm569, %vm681
    %vm762 = vmor %vm570, %vm682
    %vm763 = vmor %vm571, %vm683
    %vm764 = vcmp.eq.f32.partialorder %v333, %v540
    %vm765 = vcmp.eq.f32.partialorder %v335, %v541
    %vm766 = vcmp.eq.f32.partialorder %v337, %v542
    %vm767 = vcmp.eq.f32.partialorder %v339, %v543
    %vm768 = vcmp.eq.f32.partialorder %v341, %v544
    %vm769 = vcmp.eq.f32.partialorder %v343, %v545
    %vm770 = vcmp.eq.f32.partialorder %v345, %v546
    %vm771 = vcmp.eq.f32.partialorder %v347, %v547
    %vm772 = vcmp.eq.f32.partialorder %v349, %v548
    %vm773 = vcmp.eq.f32.partialorder %v351, %v549
    %vm774 = vcmp.eq.f32.partialorder %v353, %v550
    %vm775 = vcmp.eq.f32.partialorder %v355, %v551
    %vm776 = vcmp.eq.f32.partialorder %v357, %v552
    %vm777 = vcmp.eq.f32.partialorder %v359, %v553
    %vm778 = vcmp.eq.f32.partialorder %v361, %v554
    %vm779 = vcmp.eq.f32.partialorder %v363, %v555
    %vm780 = vmxor %vm748, 1
    %vm781 = vmxor %vm749, 1
    %vm782 = vmxor %vm750, 1
    %vm783 = vmxor %vm751, 1
    %vm784 = vmxor %vm752, 1
    %vm785 = vmxor %vm753, 1
    %vm786 = vmxor %vm754, 1
    %vm787 = vmxor %vm755, 1
    %vm788 = vmxor %vm756, 1
    %vm789 = vmxor %vm757, 1
    %vm790 = vmxor %vm758, 1
    %vm791 = vmxor %vm759, 1
    %vm792 = vmxor %vm760, 1
    %vm793 = vmxor %vm761, 1
    %vm794 = vmxor %vm762, 1
    %vm795 = vmxor %vm763, 1
    %vm796 = vmand %vm764, %vm780
    %vm797 = vmand %vm765, %vm781
    %vm798 = vmand %vm766, %vm782
    %vm799 = vmand %vm767, %vm783
    %vm800 = vmand %vm768, %vm784
    %vm801 = vmand %vm769, %vm785
    %vm802 = vmand %vm770, %vm786
    %vm803 = vmand %vm771, %vm787
    %vm804 = vmand %vm772, %vm788
    %vm805 = vmand %vm773, %vm789
    %vm806 = vmand %vm774, %vm790
    %vm807 = vmand %vm775, %vm791
    %vm808 = vmand %vm776, %vm792
    %vm809 = vmand %vm777, %vm793
    %vm810 = vmand %vm778, %vm794
    %vm811 = vmand %vm779, %vm795
    %v812 = vsel %vm796, 1, 0
    %v813 = vsel %vm797, 1, 0
    %v814 = vsel %vm798, 1, 0
    %v815 = vsel %vm799, 1, 0
    %v816 = vsel %vm800, 1, 0
    %v817 = vsel %vm801, 1, 0
    %v818 = vsel %vm802, 1, 0
    %v819 = vsel %vm803, 1, 0
    %v820 = vsel %vm804, 1, 0
    %v821 = vsel %vm805, 1, 0
    %v822 = vsel %vm806, 1, 0
    %v823 = vsel %vm807, 1, 0
    %v824 = vsel %vm808, 1, 0
    %v825 = vsel %vm809, 1, 0
    %v826 = vsel %vm810, 1, 0
    %v827 = vsel %vm811, 1, 0
    %v828 = vcvt.s32.f32 %v812
    %v829 = vcvt.s32.f32 %v813
    %v830 = vcvt.s32.f32 %v814
    %v831 = vcvt.s32.f32 %v815
    %v832 = vcvt.s32.f32 %v816
    %v833 = vcvt.s32.f32 %v817
    %v834 = vcvt.s32.f32 %v818
    %v835 = vcvt.s32.f32 %v819
    %v836 = vcvt.s32.f32 %v820
    %v837 = vcvt.s32.f32 %v821
    %v838 = vcvt.s32.f32 %v822
    %v839 = vcvt.s32.f32 %v823
    %v840 = vcvt.s32.f32 %v824
    %v841 = vcvt.s32.f32 %v825
    %v842 = vcvt.s32.f32 %v826
    %v843 = vcvt.s32.f32 %v827
    %v844 = vadd.f32 %v828, 0.0
    %v845 = vadd.f32 %v829, 0.0
    %v846 = vadd.f32 %v830, 0.0
    %v847 = vadd.f32 %v831, 0.0
    %v848 = vadd.f32 %v832, 0.0
    %v849 = vadd.f32 %v833, 0.0
    %v850 = vadd.f32 %v834, 0.0
    %v851 = vadd.f32 %v835, 0.0
    %v852 = vadd.f32 %v836, 0.0
    %v853 = vadd.f32 %v837, 0.0
    %v854 = vadd.f32 %v838, 0.0
    %v855 = vadd.f32 %v839, 0.0
    %v856 = vadd.f32 %v840, 0.0
    %v857 = vadd.f32 %v841, 0.0
    %v858 = vadd.f32 %v842, 0.0
    %v859 = vadd.f32 %v843, 0.0
    %v860 = vsel %vm796, -inf, %v333
    %v861 = vsel %vm797, -inf, %v335
    %v862 = vsel %vm798, -inf, %v337
    %v863 = vsel %vm799, -inf, %v339
    %v864 = vsel %vm800, -inf, %v341
    %v865 = vsel %vm801, -inf, %v343
    %v866 = vsel %vm802, -inf, %v345
    %v867 = vsel %vm803, -inf, %v347
    %v868 = vsel %vm804, -inf, %v349
    %v869 = vsel %vm805, -inf, %v351
    %v870 = vsel %vm806, -inf, %v353
    %v871 = vsel %vm807, -inf, %v355
    %v872 = vsel %vm808, -inf, %v357
    %v873 = vsel %vm809, -inf, %v359
    %v874 = vsel %vm810, -inf, %v361
    %v875 = vsel %vm811, -inf, %v363
    %vm876 = vmor %vm748, %vm796
    %vm877 = vmor %vm749, %vm797
    %vm878 = vmor %vm750, %vm798
    %vm879 = vmor %vm751, %vm799
    %vm880 = vmor %vm752, %vm800
    %vm881 = vmor %vm753, %vm801
    %vm882 = vmor %vm754, %vm802
    %vm883 = vmor %vm755, %vm803
    %vm884 = vmor %vm756, %vm804
    %vm885 = vmor %vm757, %vm805
    %vm886 = vmor %vm758, %vm806
    %vm887 = vmor %vm759, %vm807
    %vm888 = vmor %vm760, %vm808
    %vm889 = vmor %vm761, %vm809
    %vm890 = vmor %vm762, %vm810
    %vm891 = vmor %vm763, %vm811
    %vm892 = vcmp.eq.f32.partialorder %v397, %v540
    %vm893 = vcmp.eq.f32.partialorder %v399, %v541
    %vm894 = vcmp.eq.f32.partialorder %v401, %v542
    %vm895 = vcmp.eq.f32.partialorder %v403, %v543
    %vm896 = vcmp.eq.f32.partialorder %v405, %v544
    %vm897 = vcmp.eq.f32.partialorder %v407, %v545
    %vm898 = vcmp.eq.f32.partialorder %v409, %v546
    %vm899 = vcmp.eq.f32.partialorder %v411, %v547
    %vm900 = vcmp.eq.f32.partialorder %v413, %v548
    %vm901 = vcmp.eq.f32.partialorder %v415, %v549
    %vm902 = vcmp.eq.f32.partialorder %v417, %v550
    %vm903 = vcmp.eq.f32.partialorder %v419, %v551
    %vm904 = vcmp.eq.f32.partialorder %v421, %v552
    %vm905 = vcmp.eq.f32.partialorder %v423, %v553
    %vm906 = vcmp.eq.f32.partialorder %v425, %v554
    %vm907 = vcmp.eq.f32.partialorder %v427, %v555
    %vm908 = vmxor %vm876, 1
    %vm909 = vmxor %vm877, 1
    %vm910 = vmxor %vm878, 1
    %vm911 = vmxor %vm879, 1
    %vm912 = vmxor %vm880, 1
    %vm913 = vmxor %vm881, 1
    %vm914 = vmxor %vm882, 1
    %vm915 = vmxor %vm883, 1
    %vm916 = vmxor %vm884, 1
    %vm917 = vmxor %vm885, 1
    %vm918 = vmxor %vm886, 1
    %vm919 = vmxor %vm887, 1
    %vm920 = vmxor %vm888, 1
    %vm921 = vmxor %vm889, 1
    %vm922 = vmxor %vm890, 1
    %vm923 = vmxor %vm891, 1
    %vm924 = vmand %vm892, %vm908
    %vm925 = vmand %vm893, %vm909
    %vm926 = vmand %vm894, %vm910
    %vm927 = vmand %vm895, %vm911
    %vm928 = vmand %vm896, %vm912
    %vm929 = vmand %vm897, %vm913
    %vm930 = vmand %vm898, %vm914
    %vm931 = vmand %vm899, %vm915
    %vm932 = vmand %vm900, %vm916
    %vm933 = vmand %vm901, %vm917
    %vm934 = vmand %vm902, %vm918
    %vm935 = vmand %vm903, %vm919
    %vm936 = vmand %vm904, %vm920
    %vm937 = vmand %vm905, %vm921
    %vm938 = vmand %vm906, %vm922
    %vm939 = vmand %vm907, %vm923
    %v940 = vsel %vm924, 1, 0
    %v941 = vsel %vm925, 1, 0
    %v942 = vsel %vm926, 1, 0
    %v943 = vsel %vm927, 1, 0
    %v944 = vsel %vm928, 1, 0
    %v945 = vsel %vm929, 1, 0
    %v946 = vsel %vm930, 1, 0
    %v947 = vsel %vm931, 1, 0
    %v948 = vsel %vm932, 1, 0
    %v949 = vsel %vm933, 1, 0
    %v950 = vsel %vm934, 1, 0
    %v951 = vsel %vm935, 1, 0
    %v952 = vsel %vm936, 1, 0
    %v953 = vsel %vm937, 1, 0
    %v954 = vsel %vm938, 1, 0
    %v955 = vsel %vm939, 1, 0
    %v956 = vcvt.s32.f32 %v940
    %v957 = vcvt.s32.f32 %v941
    %v958 = vcvt.s32.f32 %v942
    %v959 = vcvt.s32.f32 %v943
    %v960 = vcvt.s32.f32 %v944
    %v961 = vcvt.s32.f32 %v945
    %v962 = vcvt.s32.f32 %v946
    %v963 = vcvt.s32.f32 %v947
    %v964 = vcvt.s32.f32 %v948
    %v965 = vcvt.s32.f32 %v949
    %v966 = vcvt.s32.f32 %v950
    %v967 = vcvt.s32.f32 %v951
    %v968 = vcvt.s32.f32 %v952
    %v969 = vcvt.s32.f32 %v953
    %v970 = vcvt.s32.f32 %v954
    %v971 = vcvt.s32.f32 %v955
    %v972 = vadd.f32 %v956, 0.0
    %v973 = vadd.f32 %v957, 0.0
    %v974 = vadd.f32 %v958, 0.0
    %v975 = vadd.f32 %v959, 0.0
    %v976 = vadd.f32 %v960, 0.0
    %v977 = vadd.f32 %v961, 0.0
    %v978 = vadd.f32 %v962, 0.0
    %v979 = vadd.f32 %v963, 0.0
    %v980 = vadd.f32 %v964, 0.0
    %v981 = vadd.f32 %v965, 0.0
    %v982 = vadd.f32 %v966, 0.0
    %v983 = vadd.f32 %v967, 0.0
    %v984 = vadd.f32 %v968, 0.0
    %v985 = vadd.f32 %v969, 0.0
    %v986 = vadd.f32 %v970, 0.0
    %v987 = vadd.f32 %v971, 0.0
    %v988 = vsel %vm924, -inf, %v397
    %v989 = vsel %vm925, -inf, %v399
    %v990 = vsel %vm926, -inf, %v401
    %v991 = vsel %vm927, -inf, %v403
    %v992 = vsel %vm928, -inf, %v405
    %v993 = vsel %vm929, -inf, %v407
    %v994 = vsel %vm930, -inf, %v409
    %v995 = vsel %vm931, -inf, %v411
    %v996 = vsel %vm932, -inf, %v413
    %v997 = vsel %vm933, -inf, %v415
    %v998 = vsel %vm934, -inf, %v417
    %v999 = vsel %vm935, -inf, %v419
    %v1000 = vsel %vm936, -inf, %v421
    %v1001 = vsel %vm937, -inf, %v423
    %v1002 = vsel %vm938, -inf, %v425
    %v1003 = vsel %vm939, -inf, %v427
    %vm1004 = vmor %vm876, %vm924
    %vm1005 = vmor %vm877, %vm925
    %vm1006 = vmor %vm878, %vm926
    %vm1007 = vmor %vm879, %vm927
    %vm1008 = vmor %vm880, %vm928
    %vm1009 = vmor %vm881, %vm929
    %vm1010 = vmor %vm882, %vm930
    %vm1011 = vmor %vm883, %vm931
    %vm1012 = vmor %vm884, %vm932
    %vm1013 = vmor %vm885, %vm933
    %vm1014 = vmor %vm886, %vm934
    %vm1015 = vmor %vm887, %vm935
    %vm1016 = vmor %vm888, %vm936
    %vm1017 = vmor %vm889, %vm937
    %vm1018 = vmor %vm890, %vm938
    %vm1019 = vmor %vm891, %vm939
    %vm1020 = vcmp.eq.f32.partialorder %v461, %v540
    %vm1021 = vcmp.eq.f32.partialorder %v463, %v541
    %vm1022 = vcmp.eq.f32.partialorder %v465, %v542
    %vm1023 = vcmp.eq.f32.partialorder %v467, %v543
    %vm1024 = vcmp.eq.f32.partialorder %v469, %v544
    %vm1025 = vcmp.eq.f32.partialorder %v471, %v545
    %vm1026 = vcmp.eq.f32.partialorder %v473, %v546
    %vm1027 = vcmp.eq.f32.partialorder %v475, %v547
    %vm1028 = vcmp.eq.f32.partialorder %v477, %v548
    %vm1029 = vcmp.eq.f32.partialorder %v479, %v549
    %vm1030 = vcmp.eq.f32.partialorder %v481, %v550
    %vm1031 = vcmp.eq.f32.partialorder %v483, %v551
    %vm1032 = vcmp.eq.f32.partialorder %v485, %v552
    %vm1033 = vcmp.eq.f32.partialorder %v487, %v553
    %vm1034 = vcmp.eq.f32.partialorder %v489, %v554
    %vm1035 = vcmp.eq.f32.partialorder %v491, %v555
    %vm1036 = vmxor %vm1004, 1
    %vm1037 = vmxor %vm1005, 1
    %vm1038 = vmxor %vm1006, 1
    %vm1039 = vmxor %vm1007, 1
    %vm1040 = vmxor %vm1008, 1
    %vm1041 = vmxor %vm1009, 1
    %vm1042 = vmxor %vm1010, 1
    %vm1043 = vmxor %vm1011, 1
    %vm1044 = vmxor %vm1012, 1
    %vm1045 = vmxor %vm1013, 1
    %vm1046 = vmxor %vm1014, 1
    %vm1047 = vmxor %vm1015, 1
    %vm1048 = vmxor %vm1016, 1
    %vm1049 = vmxor %vm1017, 1
    %vm1050 = vmxor %vm1018, 1
    %vm1051 = vmxor %vm1019, 1
    %vm1052 = vmand %vm1020, %vm1036
    %vm1053 = vmand %vm1021, %vm1037
    %vm1054 = vmand %vm1022, %vm1038
    %vm1055 = vmand %vm1023, %vm1039
    %vm1056 = vmand %vm1024, %vm1040
    %vm1057 = vmand %vm1025, %vm1041
    %vm1058 = vmand %vm1026, %vm1042
    %vm1059 = vmand %vm1027, %vm1043
    %vm1060 = vmand %vm1028, %vm1044
    %vm1061 = vmand %vm1029, %vm1045
    %vm1062 = vmand %vm1030, %vm1046
    %vm1063 = vmand %vm1031, %vm1047
    %vm1064 = vmand %vm1032, %vm1048
    %vm1065 = vmand %vm1033, %vm1049
    %vm1066 = vmand %vm1034, %vm1050
    %vm1067 = vmand %vm1035, %vm1051
    %v1068 = vsel %vm1052, 1, 0
    %v1069 = vsel %vm1053, 1, 0
    %v1070 = vsel %vm1054, 1, 0
    %v1071 = vsel %vm1055, 1, 0
    %v1072 = vsel %vm1056, 1, 0
    %v1073 = vsel %vm1057, 1, 0
    %v1074 = vsel %vm1058, 1, 0
    %v1075 = vsel %vm1059, 1, 0
    %v1076 = vsel %vm1060, 1, 0
    %v1077 = vsel %vm1061, 1, 0
    %v1078 = vsel %vm1062, 1, 0
    %v1079 = vsel %vm1063, 1, 0
    %v1080 = vsel %vm1064, 1, 0
    %v1081 = vsel %vm1065, 1, 0
    %v1082 = vsel %vm1066, 1, 0
    %v1083 = vsel %vm1067, 1, 0
    %v1084 = vcvt.s32.f32 %v1068
    %v1085 = vcvt.s32.f32 %v1069
    %v1086 = vcvt.s32.f32 %v1070
    %v1087 = vcvt.s32.f32 %v1071
    %v1088 = vcvt.s32.f32 %v1072
    %v1089 = vcvt.s32.f32 %v1073
    %v1090 = vcvt.s32.f32 %v1074
    %v1091 = vcvt.s32.f32 %v1075
    %v1092 = vcvt.s32.f32 %v1076
    %v1093 = vcvt.s32.f32 %v1077
    %v1094 = vcvt.s32.f32 %v1078
    %v1095 = vcvt.s32.f32 %v1079
    %v1096 = vcvt.s32.f32 %v1080
    %v1097 = vcvt.s32.f32 %v1081
    %v1098 = vcvt.s32.f32 %v1082
    %v1099 = vcvt.s32.f32 %v1083
    %v1100 = vadd.f32 %v1084, 0.0
    %v1101 = vadd.f32 %v1085, 0.0
    %v1102 = vadd.f32 %v1086, 0.0
    %v1103 = vadd.f32 %v1087, 0.0
    %v1104 = vadd.f32 %v1088, 0.0
    %v1105 = vadd.f32 %v1089, 0.0
    %v1106 = vadd.f32 %v1090, 0.0
    %v1107 = vadd.f32 %v1091, 0.0
    %v1108 = vadd.f32 %v1092, 0.0
    %v1109 = vadd.f32 %v1093, 0.0
    %v1110 = vadd.f32 %v1094, 0.0
    %v1111 = vadd.f32 %v1095, 0.0
    %v1112 = vadd.f32 %v1096, 0.0
    %v1113 = vadd.f32 %v1097, 0.0
    %v1114 = vadd.f32 %v1098, 0.0
    %v1115 = vadd.f32 %v1099, 0.0
    %v1116 = vsel %vm1052, -inf, %v461
    %v1117 = vsel %vm1053, -inf, %v463
    %v1118 = vsel %vm1054, -inf, %v465
    %v1119 = vsel %vm1055, -inf, %v467
    %v1120 = vsel %vm1056, -inf, %v469
    %v1121 = vsel %vm1057, -inf, %v471
    %v1122 = vsel %vm1058, -inf, %v473
    %v1123 = vsel %vm1059, -inf, %v475
    %v1124 = vsel %vm1060, -inf, %v477
    %v1125 = vsel %vm1061, -inf, %v479
    %v1126 = vsel %vm1062, -inf, %v481
    %v1127 = vsel %vm1063, -inf, %v483
    %v1128 = vsel %vm1064, -inf, %v485
    %v1129 = vsel %vm1065, -inf, %v487
    %v1130 = vsel %vm1066, -inf, %v489
    %v1131 = vsel %vm1067, -inf, %v491
    %v1132 = vmax.f32 %v620, %v732
    %v1133 = vmax.f32 %v621, %v733
    %v1134 = vmax.f32 %v622, %v734
    %v1135 = vmax.f32 %v623, %v735
    %v1136 = vmax.f32 %v624, %v736
    %v1137 = vmax.f32 %v625, %v737
    %v1138 = vmax.f32 %v626, %v738
    %v1139 = vmax.f32 %v627, %v739
    %v1140 = vmax.f32 %v628, %v740
    %v1141 = vmax.f32 %v629, %v741
    %v1142 = vmax.f32 %v630, %v742
    %v1143 = vmax.f32 %v631, %v743
    %v1144 = vmax.f32 %v632, %v744
    %v1145 = vmax.f32 %v633, %v745
    %v1146 = vmax.f32 %v634, %v746
    %v1147 = vmax.f32 %v635, %v747
    %v1148 = vmax.f32 %v1132, %v860
    %v1149 = vmax.f32 %v1133, %v861
    %v1150 = vmax.f32 %v1134, %v862
    %v1151 = vmax.f32 %v1135, %v863
    %v1152 = vmax.f32 %v1136, %v864
    %v1153 = vmax.f32 %v1137, %v865
    %v1154 = vmax.f32 %v1138, %v866
    %v1155 = vmax.f32 %v1139, %v867
    %v1156 = vmax.f32 %v1140, %v868
    %v1157 = vmax.f32 %v1141, %v869
    %v1158 = vmax.f32 %v1142, %v870
    %v1159 = vmax.f32 %v1143, %v871
    %v1160 = vmax.f32 %v1144, %v872
    %v1161 = vmax.f32 %v1145, %v873
    %v1162 = vmax.f32 %v1146, %v874
    %v1163 = vmax.f32 %v1147, %v875
    %v1164 = vmax.f32 %v1148, %v988
    %v1165 = vmax.f32 %v1149, %v989
    %v1166 = vmax.f32 %v1150, %v990
    %v1167 = vmax.f32 %v1151, %v991
    %v1168 = vmax.f32 %v1152, %v992
    %v1169 = vmax.f32 %v1153, %v993
    %v1170 = vmax.f32 %v1154, %v994
    %v1171 = vmax.f32 %v1155, %v995
    %v1172 = vmax.f32 %v1156, %v996
    %v1173 = vmax.f32 %v1157, %v997
    %v1174 = vmax.f32 %v1158, %v998
    %v1175 = vmax.f32 %v1159, %v999
    %v1176 = vmax.f32 %v1160, %v1000
    %v1177 = vmax.f32 %v1161, %v1001
    %v1178 = vmax.f32 %v1162, %v1002
    %v1179 = vmax.f32 %v1163, %v1003
    %v1180 = vmax.f32 %v1164, %v1116
    %v1181 = vmax.f32 %v1165, %v1117
    %v1182 = vmax.f32 %v1166, %v1118
    %v1183 = vmax.f32 %v1167, %v1119
    %v1184 = vmax.f32 %v1168, %v1120
    %v1185 = vmax.f32 %v1169, %v1121
    %v1186 = vmax.f32 %v1170, %v1122
    %v1187 = vmax.f32 %v1171, %v1123
    %v1188 = vmax.f32 %v1172, %v1124
    %v1189 = vmax.f32 %v1173, %v1125
    %v1190 = vmax.f32 %v1174, %v1126
    %v1191 = vmax.f32 %v1175, %v1127
    %v1192 = vmax.f32 %v1176, %v1128
    %v1193 = vmax.f32 %v1177, %v1129
    %v1194 = vmax.f32 %v1178, %v1130
    %v1195 = vmax.f32 %v1179, %v1131
    %vm1196 = vcmp.eq.f32.partialorder %v620, %v1180
    %vm1197 = vcmp.eq.f32.partialorder %v621, %v1181
    %vm1198 = vcmp.eq.f32.partialorder %v622, %v1182
    %vm1199 = vcmp.eq.f32.partialorder %v623, %v1183
    %vm1200 = vcmp.eq.f32.partialorder %v624, %v1184
    %vm1201 = vcmp.eq.f32.partialorder %v625, %v1185
    %vm1202 = vcmp.eq.f32.partialorder %v626, %v1186
    %vm1203 = vcmp.eq.f32.partialorder %v627, %v1187
    %vm1204 = vcmp.eq.f32.partialorder %v628, %v1188
    %vm1205 = vcmp.eq.f32.partialorder %v629, %v1189
    %vm1206 = vcmp.eq.f32.partialorder %v630, %v1190
    %vm1207 = vcmp.eq.f32.partialorder %v631, %v1191
    %vm1208 = vcmp.eq.f32.partialorder %v632, %v1192
    %vm1209 = vcmp.eq.f32.partialorder %v633, %v1193
    %vm1210 = vcmp.eq.f32.partialorder %v634, %v1194
    %vm1211 = vcmp.eq.f32.partialorder %v635, %v1195
    %v1212 = vsel %vm1196, 1, 0
    %v1213 = vsel %vm1197, 1, 0
    %v1214 = vsel %vm1198, 1, 0
    %v1215 = vsel %vm1199, 1, 0
    %v1216 = vsel %vm1200, 1, 0
    %v1217 = vsel %vm1201, 1, 0
    %v1218 = vsel %vm1202, 1, 0
    %v1219 = vsel %vm1203, 1, 0
    %v1220 = vsel %vm1204, 1, 0
    %v1221 = vsel %vm1205, 1, 0
    %v1222 = vsel %vm1206, 1, 0
    %v1223 = vsel %vm1207, 1, 0
    %v1224 = vsel %vm1208, 1, 0
    %v1225 = vsel %vm1209, 1, 0
    %v1226 = vsel %vm1210, 1, 0
    %v1227 = vsel %vm1211, 1, 0
    %v1228 = vcvt.s32.f32 %v1212
    %v1229 = vcvt.s32.f32 %v1213
    %v1230 = vcvt.s32.f32 %v1214
    %v1231 = vcvt.s32.f32 %v1215
    %v1232 = vcvt.s32.f32 %v1216
    %v1233 = vcvt.s32.f32 %v1217
    %v1234 = vcvt.s32.f32 %v1218
    %v1235 = vcvt.s32.f32 %v1219
    %v1236 = vcvt.s32.f32 %v1220
    %v1237 = vcvt.s32.f32 %v1221
    %v1238 = vcvt.s32.f32 %v1222
    %v1239 = vcvt.s32.f32 %v1223
    %v1240 = vcvt.s32.f32 %v1224
    %v1241 = vcvt.s32.f32 %v1225
    %v1242 = vcvt.s32.f32 %v1226
    %v1243 = vcvt.s32.f32 %v1227
    %v1244 = vadd.f32 %v604, %v1228
    %v1245 = vadd.f32 %v605, %v1229
    %v1246 = vadd.f32 %v606, %v1230
    %v1247 = vadd.f32 %v607, %v1231
    %v1248 = vadd.f32 %v608, %v1232
    %v1249 = vadd.f32 %v609, %v1233
    %v1250 = vadd.f32 %v610, %v1234
    %v1251 = vadd.f32 %v611, %v1235
    %v1252 = vadd.f32 %v612, %v1236
    %v1253 = vadd.f32 %v613, %v1237
    %v1254 = vadd.f32 %v614, %v1238
    %v1255 = vadd.f32 %v615, %v1239
    %v1256 = vadd.f32 %v616, %v1240
    %v1257 = vadd.f32 %v617, %v1241
    %v1258 = vadd.f32 %v618, %v1242
    %v1259 = vadd.f32 %v619, %v1243
    %v1260 = vsel %vm1196, -inf, %v620
    %v1261 = vsel %vm1197, -inf, %v621
    %v1262 = vsel %vm1198, -inf, %v622
    %v1263 = vsel %vm1199, -inf, %v623
    %v1264 = vsel %vm1200, -inf, %v624
    %v1265 = vsel %vm1201, -inf, %v625
    %v1266 = vsel %vm1202, -inf, %v626
    %v1267 = vsel %vm1203, -inf, %v627
    %v1268 = vsel %vm1204, -inf, %v628
    %v1269 = vsel %vm1205, -inf, %v629
    %v1270 = vsel %vm1206, -inf, %v630
    %v1271 = vsel %vm1207, -inf, %v631
    %v1272 = vsel %vm1208, -inf, %v632
    %v1273 = vsel %vm1209, -inf, %v633
    %v1274 = vsel %vm1210, -inf, %v634
    %v1275 = vsel %vm1211, -inf, %v635
    %vm1276 = vcmp.eq.f32.partialorder %v732, %v1180
    %vm1277 = vcmp.eq.f32.partialorder %v733, %v1181
    %vm1278 = vcmp.eq.f32.partialorder %v734, %v1182
    %vm1279 = vcmp.eq.f32.partialorder %v735, %v1183
    %vm1280 = vcmp.eq.f32.partialorder %v736, %v1184
    %vm1281 = vcmp.eq.f32.partialorder %v737, %v1185
    %vm1282 = vcmp.eq.f32.partialorder %v738, %v1186
    %vm1283 = vcmp.eq.f32.partialorder %v739, %v1187
    %vm1284 = vcmp.eq.f32.partialorder %v740, %v1188
    %vm1285 = vcmp.eq.f32.partialorder %v741, %v1189
    %vm1286 = vcmp.eq.f32.partialorder %v742, %v1190
    %vm1287 = vcmp.eq.f32.partialorder %v743, %v1191
    %vm1288 = vcmp.eq.f32.partialorder %v744, %v1192
    %vm1289 = vcmp.eq.f32.partialorder %v745, %v1193
    %vm1290 = vcmp.eq.f32.partialorder %v746, %v1194
    %vm1291 = vcmp.eq.f32.partialorder %v747, %v1195
    %vm1292 = vmxor %vm1196, 1
    %vm1293 = vmxor %vm1197, 1
    %vm1294 = vmxor %vm1198, 1
    %vm1295 = vmxor %vm1199, 1
    %vm1296 = vmxor %vm1200, 1
    %vm1297 = vmxor %vm1201, 1
    %vm1298 = vmxor %vm1202, 1
    %vm1299 = vmxor %vm1203, 1
    %vm1300 = vmxor %vm1204, 1
    %vm1301 = vmxor %vm1205, 1
    %vm1302 = vmxor %vm1206, 1
    %vm1303 = vmxor %vm1207, 1
    %vm1304 = vmxor %vm1208, 1
    %vm1305 = vmxor %vm1209, 1
    %vm1306 = vmxor %vm1210, 1
    %vm1307 = vmxor %vm1211, 1
    %vm1308 = vmand %vm1276, %vm1292
    %vm1309 = vmand %vm1277, %vm1293
    %vm1310 = vmand %vm1278, %vm1294
    %vm1311 = vmand %vm1279, %vm1295
    %vm1312 = vmand %vm1280, %vm1296
    %vm1313 = vmand %vm1281, %vm1297
    %vm1314 = vmand %vm1282, %vm1298
    %vm1315 = vmand %vm1283, %vm1299
    %vm1316 = vmand %vm1284, %vm1300
    %vm1317 = vmand %vm1285, %vm1301
    %vm1318 = vmand %vm1286, %vm1302
    %vm1319 = vmand %vm1287, %vm1303
    %vm1320 = vmand %vm1288, %vm1304
    %vm1321 = vmand %vm1289, %vm1305
    %vm1322 = vmand %vm1290, %vm1306
    %vm1323 = vmand %vm1291, %vm1307
    %v1324 = vsel %vm1308, 1, 0
    %v1325 = vsel %vm1309, 1, 0
    %v1326 = vsel %vm1310, 1, 0
    %v1327 = vsel %vm1311, 1, 0
    %v1328 = vsel %vm1312, 1, 0
    %v1329 = vsel %vm1313, 1, 0
    %v1330 = vsel %vm1314, 1, 0
    %v1331 = vsel %vm1315, 1, 0
    %v1332 = vsel %vm1316, 1, 0
    %v1333 = vsel %vm1317, 1, 0
    %v1334 = vsel %vm1318, 1, 0
    %v1335 = vsel %vm1319, 1, 0
    %v1336 = vsel %vm1320, 1, 0
    %v1337 = vsel %vm1321, 1, 0
    %v1338 = vsel %vm1322, 1, 0
    %v1339 = vsel %vm1323, 1, 0
    %v1340 = vcvt.s32.f32 %v1324
    %v1341 = vcvt.s32.f32 %v1325
    %v1342 = vcvt.s32.f32 %v1326
    %v1343 = vcvt.s32.f32 %v1327
    %v1344 = vcvt.s32.f32 %v1328
    %v1345 = vcvt.s32.f32 %v1329
    %v1346 = vcvt.s32.f32 %v1330
    %v1347 = vcvt.s32.f32 %v1331
    %v1348 = vcvt.s32.f32 %v1332
    %v1349 = vcvt.s32.f32 %v1333
    %v1350 = vcvt.s32.f32 %v1334
    %v1351 = vcvt.s32.f32 %v1335
    %v1352 = vcvt.s32.f32 %v1336
    %v1353 = vcvt.s32.f32 %v1337
    %v1354 = vcvt.s32.f32 %v1338
    %v1355 = vcvt.s32.f32 %v1339
    %v1356 = vadd.f32 %v716, %v1340
    %v1357 = vadd.f32 %v717, %v1341
    %v1358 = vadd.f32 %v718, %v1342
    %v1359 = vadd.f32 %v719, %v1343
    %v1360 = vadd.f32 %v720, %v1344
    %v1361 = vadd.f32 %v721, %v1345
    %v1362 = vadd.f32 %v722, %v1346
    %v1363 = vadd.f32 %v723, %v1347
    %v1364 = vadd.f32 %v724, %v1348
    %v1365 = vadd.f32 %v725, %v1349
    %v1366 = vadd.f32 %v726, %v1350
    %v1367 = vadd.f32 %v727, %v1351
    %v1368 = vadd.f32 %v728, %v1352
    %v1369 = vadd.f32 %v729, %v1353
    %v1370 = vadd.f32 %v730, %v1354
    %v1371 = vadd.f32 %v731, %v1355
    %v1372 = vsel %vm1308, -inf, %v732
    %v1373 = vsel %vm1309, -inf, %v733
    %v1374 = vsel %vm1310, -inf, %v734
    %v1375 = vsel %vm1311, -inf, %v735
    %v1376 = vsel %vm1312, -inf, %v736
    %v1377 = vsel %vm1313, -inf, %v737
    %v1378 = vsel %vm1314, -inf, %v738
    %v1379 = vsel %vm1315, -inf, %v739
    %v1380 = vsel %vm1316, -inf, %v740
    %v1381 = vsel %vm1317, -inf, %v741
    %v1382 = vsel %vm1318, -inf, %v742
    %v1383 = vsel %vm1319, -inf, %v743
    %v1384 = vsel %vm1320, -inf, %v744
    %v1385 = vsel %vm1321, -inf, %v745
    %v1386 = vsel %vm1322, -inf, %v746
    %v1387 = vsel %vm1323, -inf, %v747
    %vm1388 = vmor %vm1196, %vm1308
    %vm1389 = vmor %vm1197, %vm1309
    %vm1390 = vmor %vm1198, %vm1310
    %vm1391 = vmor %vm1199, %vm1311
    %vm1392 = vmor %vm1200, %vm1312
    %vm1393 = vmor %vm1201, %vm1313
    %vm1394 = vmor %vm1202, %vm1314
    %vm1395 = vmor %vm1203, %vm1315
    %vm1396 = vmor %vm1204, %vm1316
    %vm1397 = vmor %vm1205, %vm1317
    %vm1398 = vmor %vm1206, %vm1318
    %vm1399 = vmor %vm1207, %vm1319
    %vm1400 = vmor %vm1208, %vm1320
    %vm1401 = vmor %vm1209, %vm1321
    %vm1402 = vmor %vm1210, %vm1322
    %vm1403 = vmor %vm1211, %vm1323
    %vm1404 = vcmp.eq.f32.partialorder %v860, %v1180
    %vm1405 = vcmp.eq.f32.partialorder %v861, %v1181
    %vm1406 = vcmp.eq.f32.partialorder %v862, %v1182
    %vm1407 = vcmp.eq.f32.partialorder %v863, %v1183
    %vm1408 = vcmp.eq.f32.partialorder %v864, %v1184
    %vm1409 = vcmp.eq.f32.partialorder %v865, %v1185
    %vm1410 = vcmp.eq.f32.partialorder %v866, %v1186
    %vm1411 = vcmp.eq.f32.partialorder %v867, %v1187
    %vm1412 = vcmp.eq.f32.partialorder %v868, %v1188
    %vm1413 = vcmp.eq.f32.partialorder %v869, %v1189
    %vm1414 = vcmp.eq.f32.partialorder %v870, %v1190
    %vm1415 = vcmp.eq.f32.partialorder %v871, %v1191
    %vm1416 = vcmp.eq.f32.partialorder %v872, %v1192
    %vm1417 = vcmp.eq.f32.partialorder %v873, %v1193
    %vm1418 = vcmp.eq.f32.partialorder %v874, %v1194
    %vm1419 = vcmp.eq.f32.partialorder %v875, %v1195
    %vm1420 = vmxor %vm1388, 1
    %vm1421 = vmxor %vm1389, 1
    %vm1422 = vmxor %vm1390, 1
    %vm1423 = vmxor %vm1391, 1
    %vm1424 = vmxor %vm1392, 1
    %vm1425 = vmxor %vm1393, 1
    %vm1426 = vmxor %vm1394, 1
    %vm1427 = vmxor %vm1395, 1
    %vm1428 = vmxor %vm1396, 1
    %vm1429 = vmxor %vm1397, 1
    %vm1430 = vmxor %vm1398, 1
    %vm1431 = vmxor %vm1399, 1
    %vm1432 = vmxor %vm1400, 1
    %vm1433 = vmxor %vm1401, 1
    %vm1434 = vmxor %vm1402, 1
    %vm1435 = vmxor %vm1403, 1
    %vm1436 = vmand %vm1404, %vm1420
    %vm1437 = vmand %vm1405, %vm1421
    %vm1438 = vmand %vm1406, %vm1422
    %vm1439 = vmand %vm1407, %vm1423
    %vm1440 = vmand %vm1408, %vm1424
    %vm1441 = vmand %vm1409, %vm1425
    %vm1442 = vmand %vm1410, %vm1426
    %vm1443 = vmand %vm1411, %vm1427
    %vm1444 = vmand %vm1412, %vm1428
    %vm1445 = vmand %vm1413, %vm1429
    %vm1446 = vmand %vm1414, %vm1430
    %vm1447 = vmand %vm1415, %vm1431
    %vm1448 = vmand %vm1416, %vm1432
    %vm1449 = vmand %vm1417, %vm1433
    %vm1450 = vmand %vm1418, %vm1434
    %vm1451 = vmand %vm1419, %vm1435
    %v1452 = vsel %vm1436, 1, 0
    %v1453 = vsel %vm1437, 1, 0
    %v1454 = vsel %vm1438, 1, 0
    %v1455 = vsel %vm1439, 1, 0
    %v1456 = vsel %vm1440, 1, 0
    %v1457 = vsel %vm1441, 1, 0
    %v1458 = vsel %vm1442, 1, 0
    %v1459 = vsel %vm1443, 1, 0
    %v1460 = vsel %vm1444, 1, 0
    %v1461 = vsel %vm1445, 1, 0
    %v1462 = vsel %vm1446, 1, 0
    %v1463 = vsel %vm1447, 1, 0
    %v1464 = vsel %vm1448, 1, 0
    %v1465 = vsel %vm1449, 1, 0
    %v1466 = vsel %vm1450, 1, 0
    %v1467 = vsel %vm1451, 1, 0
    %v1468 = vcvt.s32.f32 %v1452
    %v1469 = vcvt.s32.f32 %v1453
    %v1470 = vcvt.s32.f32 %v1454
    %v1471 = vcvt.s32.f32 %v1455
    %v1472 = vcvt.s32.f32 %v1456
    %v1473 = vcvt.s32.f32 %v1457
    %v1474 = vcvt.s32.f32 %v1458
    %v1475 = vcvt.s32.f32 %v1459
    %v1476 = vcvt.s32.f32 %v1460
    %v1477 = vcvt.s32.f32 %v1461
    %v1478 = vcvt.s32.f32 %v1462
    %v1479 = vcvt.s32.f32 %v1463
    %v1480 = vcvt.s32.f32 %v1464
    %v1481 = vcvt.s32.f32 %v1465
    %v1482 = vcvt.s32.f32 %v1466
    %v1483 = vcvt.s32.f32 %v1467
    %v1484 = vadd.f32 %v844, %v1468
    %v1485 = vadd.f32 %v845, %v1469
    %v1486 = vadd.f32 %v846, %v1470
    %v1487 = vadd.f32 %v847, %v1471
    %v1488 = vadd.f32 %v848, %v1472
    %v1489 = vadd.f32 %v849, %v1473
    %v1490 = vadd.f32 %v850, %v1474
    %v1491 = vadd.f32 %v851, %v1475
    %v1492 = vadd.f32 %v852, %v1476
    %v1493 = vadd.f32 %v853, %v1477
    %v1494 = vadd.f32 %v854, %v1478
    %v1495 = vadd.f32 %v855, %v1479
    %v1496 = vadd.f32 %v856, %v1480
    %v1497 = vadd.f32 %v857, %v1481
    %v1498 = vadd.f32 %v858, %v1482
    %v1499 = vadd.f32 %v859, %v1483
    %v1500 = vsel %vm1436, -inf, %v860
    %v1501 = vsel %vm1437, -inf, %v861
    %v1502 = vsel %vm1438, -inf, %v862
    %v1503 = vsel %vm1439, -inf, %v863
    %v1504 = vsel %vm1440, -inf, %v864
    %v1505 = vsel %vm1441, -inf, %v865
    %v1506 = vsel %vm1442, -inf, %v866
    %v1507 = vsel %vm1443, -inf, %v867
    %v1508 = vsel %vm1444, -inf, %v868
    %v1509 = vsel %vm1445, -inf, %v869
    %v1510 = vsel %vm1446, -inf, %v870
    %v1511 = vsel %vm1447, -inf, %v871
    %v1512 = vsel %vm1448, -inf, %v872
    %v1513 = vsel %vm1449, -inf, %v873
    %v1514 = vsel %vm1450, -inf, %v874
    %v1515 = vsel %vm1451, -inf, %v875
    %vm1516 = vmor %vm1388, %vm1436
    %vm1517 = vmor %vm1389, %vm1437
    %vm1518 = vmor %vm1390, %vm1438
    %vm1519 = vmor %vm1391, %vm1439
    %vm1520 = vmor %vm1392, %vm1440
    %vm1521 = vmor %vm1393, %vm1441
    %vm1522 = vmor %vm1394, %vm1442
    %vm1523 = vmor %vm1395, %vm1443
    %vm1524 = vmor %vm1396, %vm1444
    %vm1525 = vmor %vm1397, %vm1445
    %vm1526 = vmor %vm1398, %vm1446
    %vm1527 = vmor %vm1399, %vm1447
    %vm1528 = vmor %vm1400, %vm1448
    %vm1529 = vmor %vm1401, %vm1449
    %vm1530 = vmor %vm1402, %vm1450
    %vm1531 = vmor %vm1403, %vm1451
    %vm1532 = vcmp.eq.f32.partialorder %v988, %v1180
    %vm1533 = vcmp.eq.f32.partialorder %v989, %v1181
    %vm1534 = vcmp.eq.f32.partialorder %v990, %v1182
    %vm1535 = vcmp.eq.f32.partialorder %v991, %v1183
    %vm1536 = vcmp.eq.f32.partialorder %v992, %v1184
    %vm1537 = vcmp.eq.f32.partialorder %v993, %v1185
    %vm1538 = vcmp.eq.f32.partialorder %v994, %v1186
    %vm1539 = vcmp.eq.f32.partialorder %v995, %v1187
    %vm1540 = vcmp.eq.f32.partialorder %v996, %v1188
    %vm1541 = vcmp.eq.f32.partialorder %v997, %v1189
    %vm1542 = vcmp.eq.f32.partialorder %v998, %v1190
    %vm1543 = vcmp.eq.f32.partialorder %v999, %v1191
    %vm1544 = vcmp.eq.f32.partialorder %v1000, %v1192
    %vm1545 = vcmp.eq.f32.partialorder %v1001, %v1193
    %vm1546 = vcmp.eq.f32.partialorder %v1002, %v1194
    %vm1547 = vcmp.eq.f32.partialorder %v1003, %v1195
    %vm1548 = vmxor %vm1516, 1
    %vm1549 = vmxor %vm1517, 1
    %vm1550 = vmxor %vm1518, 1
    %vm1551 = vmxor %vm1519, 1
    %vm1552 = vmxor %vm1520, 1
    %vm1553 = vmxor %vm1521, 1
    %vm1554 = vmxor %vm1522, 1
    %vm1555 = vmxor %vm1523, 1
    %vm1556 = vmxor %vm1524, 1
    %vm1557 = vmxor %vm1525, 1
    %vm1558 = vmxor %vm1526, 1
    %vm1559 = vmxor %vm1527, 1
    %vm1560 = vmxor %vm1528, 1
    %vm1561 = vmxor %vm1529, 1
    %vm1562 = vmxor %vm1530, 1
    %vm1563 = vmxor %vm1531, 1
    %vm1564 = vmand %vm1532, %vm1548
    %vm1565 = vmand %vm1533, %vm1549
    %vm1566 = vmand %vm1534, %vm1550
    %vm1567 = vmand %vm1535, %vm1551
    %vm1568 = vmand %vm1536, %vm1552
    %vm1569 = vmand %vm1537, %vm1553
    %vm1570 = vmand %vm1538, %vm1554
    %vm1571 = vmand %vm1539, %vm1555
    %vm1572 = vmand %vm1540, %vm1556
    %vm1573 = vmand %vm1541, %vm1557
    %vm1574 = vmand %vm1542, %vm1558
    %vm1575 = vmand %vm1543, %vm1559
    %vm1576 = vmand %vm1544, %vm1560
    %vm1577 = vmand %vm1545, %vm1561
    %vm1578 = vmand %vm1546, %vm1562
    %vm1579 = vmand %vm1547, %vm1563
    %v1580 = vsel %vm1564, 1, 0
    %v1581 = vsel %vm1565, 1, 0
    %v1582 = vsel %vm1566, 1, 0
    %v1583 = vsel %vm1567, 1, 0
    %v1584 = vsel %vm1568, 1, 0
    %v1585 = vsel %vm1569, 1, 0
    %v1586 = vsel %vm1570, 1, 0
    %v1587 = vsel %vm1571, 1, 0
    %v1588 = vsel %vm1572, 1, 0
    %v1589 = vsel %vm1573, 1, 0
    %v1590 = vsel %vm1574, 1, 0
    %v1591 = vsel %vm1575, 1, 0
    %v1592 = vsel %vm1576, 1, 0
    %v1593 = vsel %vm1577, 1, 0
    %v1594 = vsel %vm1578, 1, 0
    %v1595 = vsel %vm1579, 1, 0
    %v1596 = vcvt.s32.f32 %v1580
    %v1597 = vcvt.s32.f32 %v1581
    %v1598 = vcvt.s32.f32 %v1582
    %v1599 = vcvt.s32.f32 %v1583
    %v1600 = vcvt.s32.f32 %v1584
    %v1601 = vcvt.s32.f32 %v1585
    %v1602 = vcvt.s32.f32 %v1586
    %v1603 = vcvt.s32.f32 %v1587
    %v1604 = vcvt.s32.f32 %v1588
    %v1605 = vcvt.s32.f32 %v1589
    %v1606 = vcvt.s32.f32 %v1590
    %v1607 = vcvt.s32.f32 %v1591
    %v1608 = vcvt.s32.f32 %v1592
    %v1609 = vcvt.s32.f32 %v1593
    %v1610 = vcvt.s32.f32 %v1594
    %v1611 = vcvt.s32.f32 %v1595
    %v1612 = vadd.f32 %v972, %v1596
    %v1613 = vadd.f32 %v973, %v1597
    %v1614 = vadd.f32 %v974, %v1598
    %v1615 = vadd.f32 %v975, %v1599
    %v1616 = vadd.f32 %v976, %v1600
    %v1617 = vadd.f32 %v977, %v1601
    %v1618 = vadd.f32 %v978, %v1602
    %v1619 = vadd.f32 %v979, %v1603
    %v1620 = vadd.f32 %v980, %v1604
    %v1621 = vadd.f32 %v981, %v1605
    %v1622 = vadd.f32 %v982, %v1606
    %v1623 = vadd.f32 %v983, %v1607
    %v1624 = vadd.f32 %v984, %v1608
    %v1625 = vadd.f32 %v985, %v1609
    %v1626 = vadd.f32 %v986, %v1610
    %v1627 = vadd.f32 %v987, %v1611
    %v1628 = vsel %vm1564, -inf, %v988
    %v1629 = vsel %vm1565, -inf, %v989
    %v1630 = vsel %vm1566, -inf, %v990
    %v1631 = vsel %vm1567, -inf, %v991
    %v1632 = vsel %vm1568, -inf, %v992
    %v1633 = vsel %vm1569, -inf, %v993
    %v1634 = vsel %vm1570, -inf, %v994
    %v1635 = vsel %vm1571, -inf, %v995
    %v1636 = vsel %vm1572, -inf, %v996
    %v1637 = vsel %vm1573, -inf, %v997
    %v1638 = vsel %vm1574, -inf, %v998
    %v1639 = vsel %vm1575, -inf, %v999
    %v1640 = vsel %vm1576, -inf, %v1000
    %v1641 = vsel %vm1577, -inf, %v1001
    %v1642 = vsel %vm1578, -inf, %v1002
    %v1643 = vsel %vm1579, -inf, %v1003
    %vm1644 = vmor %vm1516, %vm1564
    %vm1645 = vmor %vm1517, %vm1565
    %vm1646 = vmor %vm1518, %vm1566
    %vm1647 = vmor %vm1519, %vm1567
    %vm1648 = vmor %vm1520, %vm1568
    %vm1649 = vmor %vm1521, %vm1569
    %vm1650 = vmor %vm1522, %vm1570
    %vm1651 = vmor %vm1523, %vm1571
    %vm1652 = vmor %vm1524, %vm1572
    %vm1653 = vmor %vm1525, %vm1573
    %vm1654 = vmor %vm1526, %vm1574
    %vm1655 = vmor %vm1527, %vm1575
    %vm1656 = vmor %vm1528, %vm1576
    %vm1657 = vmor %vm1529, %vm1577
    %vm1658 = vmor %vm1530, %vm1578
    %vm1659 = vmor %vm1531, %vm1579
    %vm1660 = vcmp.eq.f32.partialorder %v1116, %v1180
    %vm1661 = vcmp.eq.f32.partialorder %v1117, %v1181
    %vm1662 = vcmp.eq.f32.partialorder %v1118, %v1182
    %vm1663 = vcmp.eq.f32.partialorder %v1119, %v1183
    %vm1664 = vcmp.eq.f32.partialorder %v1120, %v1184
    %vm1665 = vcmp.eq.f32.partialorder %v1121, %v1185
    %vm1666 = vcmp.eq.f32.partialorder %v1122, %v1186
    %vm1667 = vcmp.eq.f32.partialorder %v1123, %v1187
    %vm1668 = vcmp.eq.f32.partialorder %v1124, %v1188
    %vm1669 = vcmp.eq.f32.partialorder %v1125, %v1189
    %vm1670 = vcmp.eq.f32.partialorder %v1126, %v1190
    %vm1671 = vcmp.eq.f32.partialorder %v1127, %v1191
    %vm1672 = vcmp.eq.f32.partialorder %v1128, %v1192
    %vm1673 = vcmp.eq.f32.partialorder %v1129, %v1193
    %vm1674 = vcmp.eq.f32.partialorder %v1130, %v1194
    %vm1675 = vcmp.eq.f32.partialorder %v1131, %v1195
    %vm1676 = vmxor %vm1644, 1
    %vm1677 = vmxor %vm1645, 1
    %vm1678 = vmxor %vm1646, 1
    %vm1679 = vmxor %vm1647, 1
    %vm1680 = vmxor %vm1648, 1
    %vm1681 = vmxor %vm1649, 1
    %vm1682 = vmxor %vm1650, 1
    %vm1683 = vmxor %vm1651, 1
    %vm1684 = vmxor %vm1652, 1
    %vm1685 = vmxor %vm1653, 1
    %vm1686 = vmxor %vm1654, 1
    %vm1687 = vmxor %vm1655, 1
    %vm1688 = vmxor %vm1656, 1
    %vm1689 = vmxor %vm1657, 1
    %vm1690 = vmxor %vm1658, 1
    %vm1691 = vmxor %vm1659, 1
    %vm1692 = vmand %vm1660, %vm1676
    %vm1693 = vmand %vm1661, %vm1677
    %vm1694 = vmand %vm1662, %vm1678
    %vm1695 = vmand %vm1663, %vm1679
    %vm1696 = vmand %vm1664, %vm1680
    %vm1697 = vmand %vm1665, %vm1681
    %vm1698 = vmand %vm1666, %vm1682
    %vm1699 = vmand %vm1667, %vm1683
    %vm1700 = vmand %vm1668, %vm1684
    %vm1701 = vmand %vm1669, %vm1685
    %vm1702 = vmand %vm1670, %vm1686
    %vm1703 = vmand %vm1671, %vm1687
    %vm1704 = vmand %vm1672, %vm1688
    %vm1705 = vmand %vm1673, %vm1689
    %vm1706 = vmand %vm1674, %vm1690
    %vm1707 = vmand %vm1675, %vm1691
    %v1708 = vsel %vm1692, 1, 0
    %v1709 = vsel %vm1693, 1, 0
    %v1710 = vsel %vm1694, 1, 0
    %v1711 = vsel %vm1695, 1, 0
    %v1712 = vsel %vm1696, 1, 0
    %v1713 = vsel %vm1697, 1, 0
    %v1714 = vsel %vm1698, 1, 0
    %v1715 = vsel %vm1699, 1, 0
    %v1716 = vsel %vm1700, 1, 0
    %v1717 = vsel %vm1701, 1, 0
    %v1718 = vsel %vm1702, 1, 0
    %v1719 = vsel %vm1703, 1, 0
    %v1720 = vsel %vm1704, 1, 0
    %v1721 = vsel %vm1705, 1, 0
    %v1722 = vsel %vm1706, 1, 0
    %v1723 = vsel %vm1707, 1, 0
    %v1724 = vcvt.s32.f32 %v1708
    %v1725 = vcvt.s32.f32 %v1709
    %v1726 = vcvt.s32.f32 %v1710
    %v1727 = vcvt.s32.f32 %v1711
    %v1728 = vcvt.s32.f32 %v1712
    %v1729 = vcvt.s32.f32 %v1713
    %v1730 = vcvt.s32.f32 %v1714
    %v1731 = vcvt.s32.f32 %v1715
    %v1732 = vcvt.s32.f32 %v1716
    %v1733 = vcvt.s32.f32 %v1717
    %v1734 = vcvt.s32.f32 %v1718
    %v1735 = vcvt.s32.f32 %v1719
    %v1736 = vcvt.s32.f32 %v1720
    %v1737 = vcvt.s32.f32 %v1721
    %v1738 = vcvt.s32.f32 %v1722
    %v1739 = vcvt.s32.f32 %v1723
    %v1740 = vadd.f32 %v1100, %v1724
    %v1741 = vadd.f32 %v1101, %v1725
    %v1742 = vadd.f32 %v1102, %v1726
    %v1743 = vadd.f32 %v1103, %v1727
    %v1744 = vadd.f32 %v1104, %v1728
    %v1745 = vadd.f32 %v1105, %v1729
    %v1746 = vadd.f32 %v1106, %v1730
    %v1747 = vadd.f32 %v1107, %v1731
    %v1748 = vadd.f32 %v1108, %v1732
    %v1749 = vadd.f32 %v1109, %v1733
    %v1750 = vadd.f32 %v1110, %v1734
    %v1751 = vadd.f32 %v1111, %v1735
    %v1752 = vadd.f32 %v1112, %v1736
    %v1753 = vadd.f32 %v1113, %v1737
    %v1754 = vadd.f32 %v1114, %v1738
    %v1755 = vadd.f32 %v1115, %v1739
    %v1756 = vsel %vm1692, -inf, %v1116
    %v1757 = vsel %vm1693, -inf, %v1117
    %v1758 = vsel %vm1694, -inf, %v1118
    %v1759 = vsel %vm1695, -inf, %v1119
    %v1760 = vsel %vm1696, -inf, %v1120
    %v1761 = vsel %vm1697, -inf, %v1121
    %v1762 = vsel %vm1698, -inf, %v1122
    %v1763 = vsel %vm1699, -inf, %v1123
    %v1764 = vsel %vm1700, -inf, %v1124
    %v1765 = vsel %vm1701, -inf, %v1125
    %v1766 = vsel %vm1702, -inf, %v1126
    %v1767 = vsel %vm1703, -inf, %v1127
    %v1768 = vsel %vm1704, -inf, %v1128
    %v1769 = vsel %vm1705, -inf, %v1129
    %v1770 = vsel %vm1706, -inf, %v1130
    %v1771 = vsel %vm1707, -inf, %v1131
    %v1772 = vmax.f32 %v1260, %v1372
    %v1773 = vmax.f32 %v1261, %v1373
    %v1774 = vmax.f32 %v1262, %v1374
    %v1775 = vmax.f32 %v1263, %v1375
    %v1776 = vmax.f32 %v1264, %v1376
    %v1777 = vmax.f32 %v1265, %v1377
    %v1778 = vmax.f32 %v1266, %v1378
    %v1779 = vmax.f32 %v1267, %v1379
    %v1780 = vmax.f32 %v1268, %v1380
    %v1781 = vmax.f32 %v1269, %v1381
    %v1782 = vmax.f32 %v1270, %v1382
    %v1783 = vmax.f32 %v1271, %v1383
    %v1784 = vmax.f32 %v1272, %v1384
    %v1785 = vmax.f32 %v1273, %v1385
    %v1786 = vmax.f32 %v1274, %v1386
    %v1787 = vmax.f32 %v1275, %v1387
    %v1788 = vmax.f32 %v1772, %v1500
    %v1789 = vmax.f32 %v1773, %v1501
    %v1790 = vmax.f32 %v1774, %v1502
    %v1791 = vmax.f32 %v1775, %v1503
    %v1792 = vmax.f32 %v1776, %v1504
    %v1793 = vmax.f32 %v1777, %v1505
    %v1794 = vmax.f32 %v1778, %v1506
    %v1795 = vmax.f32 %v1779, %v1507
    %v1796 = vmax.f32 %v1780, %v1508
    %v1797 = vmax.f32 %v1781, %v1509
    %v1798 = vmax.f32 %v1782, %v1510
    %v1799 = vmax.f32 %v1783, %v1511
    %v1800 = vmax.f32 %v1784, %v1512
    %v1801 = vmax.f32 %v1785, %v1513
    %v1802 = vmax.f32 %v1786, %v1514
    %v1803 = vmax.f32 %v1787, %v1515
    %v1804 = vmax.f32 %v1788, %v1628
    %v1805 = vmax.f32 %v1789, %v1629
    %v1806 = vmax.f32 %v1790, %v1630
    %v1807 = vmax.f32 %v1791, %v1631
    %v1808 = vmax.f32 %v1792, %v1632
    %v1809 = vmax.f32 %v1793, %v1633
    %v1810 = vmax.f32 %v1794, %v1634
    %v1811 = vmax.f32 %v1795, %v1635
    %v1812 = vmax.f32 %v1796, %v1636
    %v1813 = vmax.f32 %v1797, %v1637
    %v1814 = vmax.f32 %v1798, %v1638
    %v1815 = vmax.f32 %v1799, %v1639
    %v1816 = vmax.f32 %v1800, %v1640
    %v1817 = vmax.f32 %v1801, %v1641
    %v1818 = vmax.f32 %v1802, %v1642
    %v1819 = vmax.f32 %v1803, %v1643
    %v1820 = vmax.f32 %v1804, %v1756
    %v1821 = vmax.f32 %v1805, %v1757
    %v1822 = vmax.f32 %v1806, %v1758
    %v1823 = vmax.f32 %v1807, %v1759
    %v1824 = vmax.f32 %v1808, %v1760
    %v1825 = vmax.f32 %v1809, %v1761
    %v1826 = vmax.f32 %v1810, %v1762
    %v1827 = vmax.f32 %v1811, %v1763
    %v1828 = vmax.f32 %v1812, %v1764
    %v1829 = vmax.f32 %v1813, %v1765
    %v1830 = vmax.f32 %v1814, %v1766
    %v1831 = vmax.f32 %v1815, %v1767
    %v1832 = vmax.f32 %v1816, %v1768
    %v1833 = vmax.f32 %v1817, %v1769
    %v1834 = vmax.f32 %v1818, %v1770
    %v1835 = vmax.f32 %v1819, %v1771
    %vm1836 = vcmp.eq.f32.partialorder %v1260, %v1820
    %vm1837 = vcmp.eq.f32.partialorder %v1261, %v1821
    %vm1838 = vcmp.eq.f32.partialorder %v1262, %v1822
    %vm1839 = vcmp.eq.f32.partialorder %v1263, %v1823
    %vm1840 = vcmp.eq.f32.partialorder %v1264, %v1824
    %vm1841 = vcmp.eq.f32.partialorder %v1265, %v1825
    %vm1842 = vcmp.eq.f32.partialorder %v1266, %v1826
    %vm1843 = vcmp.eq.f32.partialorder %v1267, %v1827
    %vm1844 = vcmp.eq.f32.partialorder %v1268, %v1828
    %vm1845 = vcmp.eq.f32.partialorder %v1269, %v1829
    %vm1846 = vcmp.eq.f32.partialorder %v1270, %v1830
    %vm1847 = vcmp.eq.f32.partialorder %v1271, %v1831
    %vm1848 = vcmp.eq.f32.partialorder %v1272, %v1832
    %vm1849 = vcmp.eq.f32.partialorder %v1273, %v1833
    %vm1850 = vcmp.eq.f32.partialorder %v1274, %v1834
    %vm1851 = vcmp.eq.f32.partialorder %v1275, %v1835
    %v1852 = vsel %vm1836, 1, 0
    %v1853 = vsel %vm1837, 1, 0
    %v1854 = vsel %vm1838, 1, 0
    %v1855 = vsel %vm1839, 1, 0
    %v1856 = vsel %vm1840, 1, 0
    %v1857 = vsel %vm1841, 1, 0
    %v1858 = vsel %vm1842, 1, 0
    %v1859 = vsel %vm1843, 1, 0
    %v1860 = vsel %vm1844, 1, 0
    %v1861 = vsel %vm1845, 1, 0
    %v1862 = vsel %vm1846, 1, 0
    %v1863 = vsel %vm1847, 1, 0
    %v1864 = vsel %vm1848, 1, 0
    %v1865 = vsel %vm1849, 1, 0
    %v1866 = vsel %vm1850, 1, 0
    %v1867 = vsel %vm1851, 1, 0
    %v1868 = vcvt.s32.f32 %v1852
    %v1869 = vcvt.s32.f32 %v1853
    %v1870 = vcvt.s32.f32 %v1854
    %v1871 = vcvt.s32.f32 %v1855
    %v1872 = vcvt.s32.f32 %v1856
    %v1873 = vcvt.s32.f32 %v1857
    %v1874 = vcvt.s32.f32 %v1858
    %v1875 = vcvt.s32.f32 %v1859
    %v1876 = vcvt.s32.f32 %v1860
    %v1877 = vcvt.s32.f32 %v1861
    %v1878 = vcvt.s32.f32 %v1862
    %v1879 = vcvt.s32.f32 %v1863
    %v1880 = vcvt.s32.f32 %v1864
    %v1881 = vcvt.s32.f32 %v1865
    %v1882 = vcvt.s32.f32 %v1866
    %v1883 = vcvt.s32.f32 %v1867
    %v1884 = vadd.f32 %v1244, %v1868
    %v1885 = vadd.f32 %v1245, %v1869
    %v1886 = vadd.f32 %v1246, %v1870
    %v1887 = vadd.f32 %v1247, %v1871
    %v1888 = vadd.f32 %v1248, %v1872
    %v1889 = vadd.f32 %v1249, %v1873
    %v1890 = vadd.f32 %v1250, %v1874
    %v1891 = vadd.f32 %v1251, %v1875
    %v1892 = vadd.f32 %v1252, %v1876
    %v1893 = vadd.f32 %v1253, %v1877
    %v1894 = vadd.f32 %v1254, %v1878
    %v1895 = vadd.f32 %v1255, %v1879
    %v1896 = vadd.f32 %v1256, %v1880
    %v1897 = vadd.f32 %v1257, %v1881
    %v1898 = vadd.f32 %v1258, %v1882
    %v1899 = vadd.f32 %v1259, %v1883
    %vm1900 = vcmp.eq.f32.partialorder %v1372, %v1820
    %vm1901 = vcmp.eq.f32.partialorder %v1373, %v1821
    %vm1902 = vcmp.eq.f32.partialorder %v1374, %v1822
    %vm1903 = vcmp.eq.f32.partialorder %v1375, %v1823
    %vm1904 = vcmp.eq.f32.partialorder %v1376, %v1824
    %vm1905 = vcmp.eq.f32.partialorder %v1377, %v1825
    %vm1906 = vcmp.eq.f32.partialorder %v1378, %v1826
    %vm1907 = vcmp.eq.f32.partialorder %v1379, %v1827
    %vm1908 = vcmp.eq.f32.partialorder %v1380, %v1828
    %vm1909 = vcmp.eq.f32.partialorder %v1381, %v1829
    %vm1910 = vcmp.eq.f32.partialorder %v1382, %v1830
    %vm1911 = vcmp.eq.f32.partialorder %v1383, %v1831
    %vm1912 = vcmp.eq.f32.partialorder %v1384, %v1832
    %vm1913 = vcmp.eq.f32.partialorder %v1385, %v1833
    %vm1914 = vcmp.eq.f32.partialorder %v1386, %v1834
    %vm1915 = vcmp.eq.f32.partialorder %v1387, %v1835
    %vm1916 = vmxor %vm1836, 1
    %vm1917 = vmxor %vm1837, 1
    %vm1918 = vmxor %vm1838, 1
    %vm1919 = vmxor %vm1839, 1
    %vm1920 = vmxor %vm1840, 1
    %vm1921 = vmxor %vm1841, 1
    %vm1922 = vmxor %vm1842, 1
    %vm1923 = vmxor %vm1843, 1
    %vm1924 = vmxor %vm1844, 1
    %vm1925 = vmxor %vm1845, 1
    %vm1926 = vmxor %vm1846, 1
    %vm1927 = vmxor %vm1847, 1
    %vm1928 = vmxor %vm1848, 1
    %vm1929 = vmxor %vm1849, 1
    %vm1930 = vmxor %vm1850, 1
    %vm1931 = vmxor %vm1851, 1
    %vm1932 = vmand %vm1900, %vm1916
    %vm1933 = vmand %vm1901, %vm1917
    %vm1934 = vmand %vm1902, %vm1918
    %vm1935 = vmand %vm1903, %vm1919
    %vm1936 = vmand %vm1904, %vm1920
    %vm1937 = vmand %vm1905, %vm1921
    %vm1938 = vmand %vm1906, %vm1922
    %vm1939 = vmand %vm1907, %vm1923
    %vm1940 = vmand %vm1908, %vm1924
    %vm1941 = vmand %vm1909, %vm1925
    %vm1942 = vmand %vm1910, %vm1926
    %vm1943 = vmand %vm1911, %vm1927
    %vm1944 = vmand %vm1912, %vm1928
    %vm1945 = vmand %vm1913, %vm1929
    %vm1946 = vmand %vm1914, %vm1930
    %vm1947 = vmand %vm1915, %vm1931
    %v1948 = vsel %vm1932, 1, 0
    %v1949 = vsel %vm1933, 1, 0
    %v1950 = vsel %vm1934, 1, 0
    %v1951 = vsel %vm1935, 1, 0
    %v1952 = vsel %vm1936, 1, 0
    %v1953 = vsel %vm1937, 1, 0
    %v1954 = vsel %vm1938, 1, 0
    %v1955 = vsel %vm1939, 1, 0
    %v1956 = vsel %vm1940, 1, 0
    %v1957 = vsel %vm1941, 1, 0
    %v1958 = vsel %vm1942, 1, 0
    %v1959 = vsel %vm1943, 1, 0
    %v1960 = vsel %vm1944, 1, 0
    %v1961 = vsel %vm1945, 1, 0
    %v1962 = vsel %vm1946, 1, 0
    %v1963 = vsel %vm1947, 1, 0
    %v1964 = vcvt.s32.f32 %v1948
    %v1965 = vcvt.s32.f32 %v1949
    %v1966 = vcvt.s32.f32 %v1950
    %v1967 = vcvt.s32.f32 %v1951
    %v1968 = vcvt.s32.f32 %v1952
    %v1969 = vcvt.s32.f32 %v1953
    %v1970 = vcvt.s32.f32 %v1954
    %v1971 = vcvt.s32.f32 %v1955
    %v1972 = vcvt.s32.f32 %v1956
    %v1973 = vcvt.s32.f32 %v1957
    %v1974 = vcvt.s32.f32 %v1958
    %v1975 = vcvt.s32.f32 %v1959
    %v1976 = vcvt.s32.f32 %v1960
    %v1977 = vcvt.s32.f32 %v1961
    %v1978 = vcvt.s32.f32 %v1962
    %v1979 = vcvt.s32.f32 %v1963
    %v1980 = vadd.f32 %v1356, %v1964
    %v1981 = vadd.f32 %v1357, %v1965
    %v1982 = vadd.f32 %v1358, %v1966
    %v1983 = vadd.f32 %v1359, %v1967
    %v1984 = vadd.f32 %v1360, %v1968
    %v1985 = vadd.f32 %v1361, %v1969
    %v1986 = vadd.f32 %v1362, %v1970
    %v1987 = vadd.f32 %v1363, %v1971
    %v1988 = vadd.f32 %v1364, %v1972
    %v1989 = vadd.f32 %v1365, %v1973
    %v1990 = vadd.f32 %v1366, %v1974
    %v1991 = vadd.f32 %v1367, %v1975
    %v1992 = vadd.f32 %v1368, %v1976
    %v1993 = vadd.f32 %v1369, %v1977
    %v1994 = vadd.f32 %v1370, %v1978
    %v1995 = vadd.f32 %v1371, %v1979
    %vm1996 = vmor %vm1836, %vm1932
    %vm1997 = vmor %vm1837, %vm1933
    %vm1998 = vmor %vm1838, %vm1934
    %vm1999 = vmor %vm1839, %vm1935
    %vm2000 = vmor %vm1840, %vm1936
    %vm2001 = vmor %vm1841, %vm1937
    %vm2002 = vmor %vm1842, %vm1938
    %vm2003 = vmor %vm1843, %vm1939
    %vm2004 = vmor %vm1844, %vm1940
    %vm2005 = vmor %vm1845, %vm1941
    %vm2006 = vmor %vm1846, %vm1942
    %vm2007 = vmor %vm1847, %vm1943
    %vm2008 = vmor %vm1848, %vm1944
    %vm2009 = vmor %vm1849, %vm1945
    %vm2010 = vmor %vm1850, %vm1946
    %vm2011 = vmor %vm1851, %vm1947
    %vm2012 = vcmp.eq.f32.partialorder %v1500, %v1820
    %vm2013 = vcmp.eq.f32.partialorder %v1501, %v1821
    %vm2014 = vcmp.eq.f32.partialorder %v1502, %v1822
    %vm2015 = vcmp.eq.f32.partialorder %v1503, %v1823
    %vm2016 = vcmp.eq.f32.partialorder %v1504, %v1824
    %vm2017 = vcmp.eq.f32.partialorder %v1505, %v1825
    %vm2018 = vcmp.eq.f32.partialorder %v1506, %v1826
    %vm2019 = vcmp.eq.f32.partialorder %v1507, %v1827
    %vm2020 = vcmp.eq.f32.partialorder %v1508, %v1828
    %vm2021 = vcmp.eq.f32.partialorder %v1509, %v1829
    %vm2022 = vcmp.eq.f32.partialorder %v1510, %v1830
    %vm2023 = vcmp.eq.f32.partialorder %v1511, %v1831
    %vm2024 = vcmp.eq.f32.partialorder %v1512, %v1832
    %vm2025 = vcmp.eq.f32.partialorder %v1513, %v1833
    %vm2026 = vcmp.eq.f32.partialorder %v1514, %v1834
    %vm2027 = vcmp.eq.f32.partialorder %v1515, %v1835
    %vm2028 = vmxor %vm1996, 1
    %vm2029 = vmxor %vm1997, 1
    %vm2030 = vmxor %vm1998, 1
    %vm2031 = vmxor %vm1999, 1
    %vm2032 = vmxor %vm2000, 1
    %vm2033 = vmxor %vm2001, 1
    %vm2034 = vmxor %vm2002, 1
    %vm2035 = vmxor %vm2003, 1
    %vm2036 = vmxor %vm2004, 1
    %vm2037 = vmxor %vm2005, 1
    %vm2038 = vmxor %vm2006, 1
    %vm2039 = vmxor %vm2007, 1
    %vm2040 = vmxor %vm2008, 1
    %vm2041 = vmxor %vm2009, 1
    %vm2042 = vmxor %vm2010, 1
    %vm2043 = vmxor %vm2011, 1
    %vm2044 = vmand %vm2012, %vm2028
    %vm2045 = vmand %vm2013, %vm2029
    %vm2046 = vmand %vm2014, %vm2030
    %vm2047 = vmand %vm2015, %vm2031
    %vm2048 = vmand %vm2016, %vm2032
    %vm2049 = vmand %vm2017, %vm2033
    %vm2050 = vmand %vm2018, %vm2034
    %vm2051 = vmand %vm2019, %vm2035
    %vm2052 = vmand %vm2020, %vm2036
    %vm2053 = vmand %vm2021, %vm2037
    %vm2054 = vmand %vm2022, %vm2038
    %vm2055 = vmand %vm2023, %vm2039
    %vm2056 = vmand %vm2024, %vm2040
    %vm2057 = vmand %vm2025, %vm2041
    %vm2058 = vmand %vm2026, %vm2042
    %vm2059 = vmand %vm2027, %vm2043
    %v2060 = vsel %vm2044, 1, 0
    %v2061 = vsel %vm2045, 1, 0
    %v2062 = vsel %vm2046, 1, 0
    %v2063 = vsel %vm2047, 1, 0
    %v2064 = vsel %vm2048, 1, 0
    %v2065 = vsel %vm2049, 1, 0
    %v2066 = vsel %vm2050, 1, 0
    %v2067 = vsel %vm2051, 1, 0
    %v2068 = vsel %vm2052, 1, 0
    %v2069 = vsel %vm2053, 1, 0
    %v2070 = vsel %vm2054, 1, 0
    %v2071 = vsel %vm2055, 1, 0
    %v2072 = vsel %vm2056, 1, 0
    %v2073 = vsel %vm2057, 1, 0
    %v2074 = vsel %vm2058, 1, 0
    %v2075 = vsel %vm2059, 1, 0
    %v2076 = vcvt.s32.f32 %v2060
    %v2077 = vcvt.s32.f32 %v2061
    %v2078 = vcvt.s32.f32 %v2062
    %v2079 = vcvt.s32.f32 %v2063
    %v2080 = vcvt.s32.f32 %v2064
    %v2081 = vcvt.s32.f32 %v2065
    %v2082 = vcvt.s32.f32 %v2066
    %v2083 = vcvt.s32.f32 %v2067
    %v2084 = vcvt.s32.f32 %v2068
    %v2085 = vcvt.s32.f32 %v2069
    %v2086 = vcvt.s32.f32 %v2070
    %v2087 = vcvt.s32.f32 %v2071
    %v2088 = vcvt.s32.f32 %v2072
    %v2089 = vcvt.s32.f32 %v2073
    %v2090 = vcvt.s32.f32 %v2074
    %v2091 = vcvt.s32.f32 %v2075
    %v2092 = vadd.f32 %v1484, %v2076
    %v2093 = vadd.f32 %v1485, %v2077
    %v2094 = vadd.f32 %v1486, %v2078
    %v2095 = vadd.f32 %v1487, %v2079
    %v2096 = vadd.f32 %v1488, %v2080
    %v2097 = vadd.f32 %v1489, %v2081
    %v2098 = vadd.f32 %v1490, %v2082
    %v2099 = vadd.f32 %v1491, %v2083
    %v2100 = vadd.f32 %v1492, %v2084
    %v2101 = vadd.f32 %v1493, %v2085
    %v2102 = vadd.f32 %v1494, %v2086
    %v2103 = vadd.f32 %v1495, %v2087
    %v2104 = vadd.f32 %v1496, %v2088
    %v2105 = vadd.f32 %v1497, %v2089
    %v2106 = vadd.f32 %v1498, %v2090
    %v2107 = vadd.f32 %v1499, %v2091
    %vm2108 = vmor %vm1996, %vm2044
    %vm2109 = vmor %vm1997, %vm2045
    %vm2110 = vmor %vm1998, %vm2046
    %vm2111 = vmor %vm1999, %vm2047
    %vm2112 = vmor %vm2000, %vm2048
    %vm2113 = vmor %vm2001, %vm2049
    %vm2114 = vmor %vm2002, %vm2050
    %vm2115 = vmor %vm2003, %vm2051
    %vm2116 = vmor %vm2004, %vm2052
    %vm2117 = vmor %vm2005, %vm2053
    %vm2118 = vmor %vm2006, %vm2054
    %vm2119 = vmor %vm2007, %vm2055
    %vm2120 = vmor %vm2008, %vm2056
    %vm2121 = vmor %vm2009, %vm2057
    %vm2122 = vmor %vm2010, %vm2058
    %vm2123 = vmor %vm2011, %vm2059
    %vm2124 = vcmp.eq.f32.partialorder %v1628, %v1820
    %vm2125 = vcmp.eq.f32.partialorder %v1629, %v1821
    %vm2126 = vcmp.eq.f32.partialorder %v1630, %v1822
    %vm2127 = vcmp.eq.f32.partialorder %v1631, %v1823
    %vm2128 = vcmp.eq.f32.partialorder %v1632, %v1824
    %vm2129 = vcmp.eq.f32.partialorder %v1633, %v1825
    %vm2130 = vcmp.eq.f32.partialorder %v1634, %v1826
    %vm2131 = vcmp.eq.f32.partialorder %v1635, %v1827
    %vm2132 = vcmp.eq.f32.partialorder %v1636, %v1828
    %vm2133 = vcmp.eq.f32.partialorder %v1637, %v1829
    %vm2134 = vcmp.eq.f32.partialorder %v1638, %v1830
    %vm2135 = vcmp.eq.f32.partialorder %v1639, %v1831
    %vm2136 = vcmp.eq.f32.partialorder %v1640, %v1832
    %vm2137 = vcmp.eq.f32.partialorder %v1641, %v1833
    %vm2138 = vcmp.eq.f32.partialorder %v1642, %v1834
    %vm2139 = vcmp.eq.f32.partialorder %v1643, %v1835
    %vm2140 = vmxor %vm2108, 1
    %vm2141 = vmxor %vm2109, 1
    %vm2142 = vmxor %vm2110, 1
    %vm2143 = vmxor %vm2111, 1
    %vm2144 = vmxor %vm2112, 1
    %vm2145 = vmxor %vm2113, 1
    %vm2146 = vmxor %vm2114, 1
    %vm2147 = vmxor %vm2115, 1
    %vm2148 = vmxor %vm2116, 1
    %vm2149 = vmxor %vm2117, 1
    %vm2150 = vmxor %vm2118, 1
    %vm2151 = vmxor %vm2119, 1
    %vm2152 = vmxor %vm2120, 1
    %vm2153 = vmxor %vm2121, 1
    %vm2154 = vmxor %vm2122, 1
    %vm2155 = vmxor %vm2123, 1
    %vm2156 = vmand %vm2124, %vm2140
    %vm2157 = vmand %vm2125, %vm2141
    %vm2158 = vmand %vm2126, %vm2142
    %vm2159 = vmand %vm2127, %vm2143
    %vm2160 = vmand %vm2128, %vm2144
    %vm2161 = vmand %vm2129, %vm2145
    %vm2162 = vmand %vm2130, %vm2146
    %vm2163 = vmand %vm2131, %vm2147
    %vm2164 = vmand %vm2132, %vm2148
    %vm2165 = vmand %vm2133, %vm2149
    %vm2166 = vmand %vm2134, %vm2150
    %vm2167 = vmand %vm2135, %vm2151
    %vm2168 = vmand %vm2136, %vm2152
    %vm2169 = vmand %vm2137, %vm2153
    %vm2170 = vmand %vm2138, %vm2154
    %vm2171 = vmand %vm2139, %vm2155
    %v2172 = vsel %vm2156, 1, 0
    %v2173 = vsel %vm2157, 1, 0
    %v2174 = vsel %vm2158, 1, 0
    %v2175 = vsel %vm2159, 1, 0
    %v2176 = vsel %vm2160, 1, 0
    %v2177 = vsel %vm2161, 1, 0
    %v2178 = vsel %vm2162, 1, 0
    %v2179 = vsel %vm2163, 1, 0
    %v2180 = vsel %vm2164, 1, 0
    %v2181 = vsel %vm2165, 1, 0
    %v2182 = vsel %vm2166, 1, 0
    %v2183 = vsel %vm2167, 1, 0
    %v2184 = vsel %vm2168, 1, 0
    %v2185 = vsel %vm2169, 1, 0
    %v2186 = vsel %vm2170, 1, 0
    %v2187 = vsel %vm2171, 1, 0
    %v2188 = vcvt.s32.f32 %v2172
    %v2189 = vcvt.s32.f32 %v2173
    %v2190 = vcvt.s32.f32 %v2174
    %v2191 = vcvt.s32.f32 %v2175
    %v2192 = vcvt.s32.f32 %v2176
    %v2193 = vcvt.s32.f32 %v2177
    %v2194 = vcvt.s32.f32 %v2178
    %v2195 = vcvt.s32.f32 %v2179
    %v2196 = vcvt.s32.f32 %v2180
    %v2197 = vcvt.s32.f32 %v2181
    %v2198 = vcvt.s32.f32 %v2182
    %v2199 = vcvt.s32.f32 %v2183
    %v2200 = vcvt.s32.f32 %v2184
    %v2201 = vcvt.s32.f32 %v2185
    %v2202 = vcvt.s32.f32 %v2186
    %v2203 = vcvt.s32.f32 %v2187
    %v2204 = vadd.f32 %v1612, %v2188
    %v2205 = vadd.f32 %v1613, %v2189
    %v2206 = vadd.f32 %v1614, %v2190
    %v2207 = vadd.f32 %v1615, %v2191
    %v2208 = vadd.f32 %v1616, %v2192
    %v2209 = vadd.f32 %v1617, %v2193
    %v2210 = vadd.f32 %v1618, %v2194
    %v2211 = vadd.f32 %v1619, %v2195
    %v2212 = vadd.f32 %v1620, %v2196
    %v2213 = vadd.f32 %v1621, %v2197
    %v2214 = vadd.f32 %v1622, %v2198
    %v2215 = vadd.f32 %v1623, %v2199
    %v2216 = vadd.f32 %v1624, %v2200
    %v2217 = vadd.f32 %v1625, %v2201
    %v2218 = vadd.f32 %v1626, %v2202
    %v2219 = vadd.f32 %v1627, %v2203
    %vm2220 = vmor %vm2108, %vm2156
    %vm2221 = vmor %vm2109, %vm2157
    %vm2222 = vmor %vm2110, %vm2158
    %vm2223 = vmor %vm2111, %vm2159
    %vm2224 = vmor %vm2112, %vm2160
    %vm2225 = vmor %vm2113, %vm2161
    %vm2226 = vmor %vm2114, %vm2162
    %vm2227 = vmor %vm2115, %vm2163
    %vm2228 = vmor %vm2116, %vm2164
    %vm2229 = vmor %vm2117, %vm2165
    %vm2230 = vmor %vm2118, %vm2166
    %vm2231 = vmor %vm2119, %vm2167
    %vm2232 = vmor %vm2120, %vm2168
    %vm2233 = vmor %vm2121, %vm2169
    %vm2234 = vmor %vm2122, %vm2170
    %vm2235 = vmor %vm2123, %vm2171
    %vm2236 = vcmp.eq.f32.partialorder %v1756, %v1820
    %vm2237 = vcmp.eq.f32.partialorder %v1757, %v1821
    %vm2238 = vcmp.eq.f32.partialorder %v1758, %v1822
    %vm2239 = vcmp.eq.f32.partialorder %v1759, %v1823
    %vm2240 = vcmp.eq.f32.partialorder %v1760, %v1824
    %vm2241 = vcmp.eq.f32.partialorder %v1761, %v1825
    %vm2242 = vcmp.eq.f32.partialorder %v1762, %v1826
    %vm2243 = vcmp.eq.f32.partialorder %v1763, %v1827
    %vm2244 = vcmp.eq.f32.partialorder %v1764, %v1828
    %vm2245 = vcmp.eq.f32.partialorder %v1765, %v1829
    %vm2246 = vcmp.eq.f32.partialorder %v1766, %v1830
    %vm2247 = vcmp.eq.f32.partialorder %v1767, %v1831
    %vm2248 = vcmp.eq.f32.partialorder %v1768, %v1832
    %vm2249 = vcmp.eq.f32.partialorder %v1769, %v1833
    %vm2250 = vcmp.eq.f32.partialorder %v1770, %v1834
    %vm2251 = vcmp.eq.f32.partialorder %v1771, %v1835
    %vm2252 = vmxor %vm2220, 1
    %vm2253 = vmxor %vm2221, 1
    %vm2254 = vmxor %vm2222, 1
    %vm2255 = vmxor %vm2223, 1
    %vm2256 = vmxor %vm2224, 1
    %vm2257 = vmxor %vm2225, 1
    %vm2258 = vmxor %vm2226, 1
    %vm2259 = vmxor %vm2227, 1
    %vm2260 = vmxor %vm2228, 1
    %vm2261 = vmxor %vm2229, 1
    %vm2262 = vmxor %vm2230, 1
    %vm2263 = vmxor %vm2231, 1
    %vm2264 = vmxor %vm2232, 1
    %vm2265 = vmxor %vm2233, 1
    %vm2266 = vmxor %vm2234, 1
    %vm2267 = vmxor %vm2235, 1
    %vm2268 = vmand %vm2236, %vm2252
    %vm2269 = vmand %vm2237, %vm2253
    %vm2270 = vmand %vm2238, %vm2254
    %vm2271 = vmand %vm2239, %vm2255
    %vm2272 = vmand %vm2240, %vm2256
    %vm2273 = vmand %vm2241, %vm2257
    %vm2274 = vmand %vm2242, %vm2258
    %vm2275 = vmand %vm2243, %vm2259
    %vm2276 = vmand %vm2244, %vm2260
    %vm2277 = vmand %vm2245, %vm2261
    %vm2278 = vmand %vm2246, %vm2262
    %vm2279 = vmand %vm2247, %vm2263
    %vm2280 = vmand %vm2248, %vm2264
    %vm2281 = vmand %vm2249, %vm2265
    %vm2282 = vmand %vm2250, %vm2266
    %vm2283 = vmand %vm2251, %vm2267
    %v2284 = vsel %vm2268, 1, 0
    %v2285 = vsel %vm2269, 1, 0
    %v2286 = vsel %vm2270, 1, 0
    %v2287 = vsel %vm2271, 1, 0
    %v2288 = vsel %vm2272, 1, 0
    %v2289 = vsel %vm2273, 1, 0
    %v2290 = vsel %vm2274, 1, 0
    %v2291 = vsel %vm2275, 1, 0
    %v2292 = vsel %vm2276, 1, 0
    %v2293 = vsel %vm2277, 1, 0
    %v2294 = vsel %vm2278, 1, 0
    %v2295 = vsel %vm2279, 1, 0
    %v2296 = vsel %vm2280, 1, 0
    %v2297 = vsel %vm2281, 1, 0
    %v2298 = vsel %vm2282, 1, 0
    %v2299 = vsel %vm2283, 1, 0
    %v2300 = vcvt.s32.f32 %v2284
    %v2301 = vcvt.s32.f32 %v2285
    %v2302 = vcvt.s32.f32 %v2286
    %v2303 = vcvt.s32.f32 %v2287
    %v2304 = vcvt.s32.f32 %v2288
    %v2305 = vcvt.s32.f32 %v2289
    %v2306 = vcvt.s32.f32 %v2290
    %v2307 = vcvt.s32.f32 %v2291
    %v2308 = vcvt.s32.f32 %v2292
    %v2309 = vcvt.s32.f32 %v2293
    %v2310 = vcvt.s32.f32 %v2294
    %v2311 = vcvt.s32.f32 %v2295
    %v2312 = vcvt.s32.f32 %v2296
    %v2313 = vcvt.s32.f32 %v2297
    %v2314 = vcvt.s32.f32 %v2298
    %v2315 = vcvt.s32.f32 %v2299
    %v2316 = vadd.f32 %v1740, %v2300
    %v2317 = vadd.f32 %v1741, %v2301
    %v2318 = vadd.f32 %v1742, %v2302
    %v2319 = vadd.f32 %v1743, %v2303
    %v2320 = vadd.f32 %v1744, %v2304
    %v2321 = vadd.f32 %v1745, %v2305
    %v2322 = vadd.f32 %v1746, %v2306
    %v2323 = vadd.f32 %v1747, %v2307
    %v2324 = vadd.f32 %v1748, %v2308
    %v2325 = vadd.f32 %v1749, %v2309
    %v2326 = vadd.f32 %v1750, %v2310
    %v2327 = vadd.f32 %v1751, %v2311
    %v2328 = vadd.f32 %v1752, %v2312
    %v2329 = vadd.f32 %v1753, %v2313
    %v2330 = vadd.f32 %v1754, %v2314
    %v2331 = vadd.f32 %v1755, %v2315
    %v2332 = vmul.f32 %v1884, %v56
    %v2333 = vmul.f32 %v1885, %v57
    %v2334 = vmul.f32 %v1886, %v58
    %v2335 = vmul.f32 %v1887, %v59
    %v2336 = vmul.f32 %v1888, %v60
    %v2337 = vmul.f32 %v1889, %v61
    %v2338 = vmul.f32 %v1890, %v62
    %v2339 = vmul.f32 %v1891, %v63
    %v2340 = vmul.f32 %v1892, %v64
    %v2341 = vmul.f32 %v1893, %v65
    %v2342 = vmul.f32 %v1894, %v66
    %v2343 = vmul.f32 %v1895, %v67
    %v2344 = vmul.f32 %v1896, %v68
    %v2345 = vmul.f32 %v1897, %v69
    %v2346 = vmul.f32 %v1898, %v70
    %v2347 = vmul.f32 %v1899, %v71
    %v2348 = vmul.f32 %v1980, %v73
    %v2349 = vmul.f32 %v1981, %v74
    %v2350 = vmul.f32 %v1982, %v75
    %v2351 = vmul.f32 %v1983, %v76
    %v2352 = vmul.f32 %v1984, %v77
    %v2353 = vmul.f32 %v1985, %v78
    %v2354 = vmul.f32 %v1986, %v79
    %v2355 = vmul.f32 %v1987, %v80
    %v2356 = vmul.f32 %v1988, %v81
    %v2357 = vmul.f32 %v1989, %v82
    %v2358 = vmul.f32 %v1990, %v83
    %v2359 = vmul.f32 %v1991, %v84
    %v2360 = vmul.f32 %v1992, %v85
    %v2361 = vmul.f32 %v1993, %v86
    %v2362 = vmul.f32 %v1994, %v87
    %v2363 = vmul.f32 %v1995, %v88
    %v2364 = vadd.f32 %v2332, %v2348
    %v2365 = vadd.f32 %v2333, %v2349
    %v2366 = vadd.f32 %v2334, %v2350
    %v2367 = vadd.f32 %v2335, %v2351
    %v2368 = vadd.f32 %v2336, %v2352
    %v2369 = vadd.f32 %v2337, %v2353
    %v2370 = vadd.f32 %v2338, %v2354
    %v2371 = vadd.f32 %v2339, %v2355
    %v2372 = vadd.f32 %v2340, %v2356
    %v2373 = vadd.f32 %v2341, %v2357
    %v2374 = vadd.f32 %v2342, %v2358
    %v2375 = vadd.f32 %v2343, %v2359
    %v2376 = vadd.f32 %v2344, %v2360
    %v2377 = vadd.f32 %v2345, %v2361
    %v2378 = vadd.f32 %v2346, %v2362
    %v2379 = vadd.f32 %v2347, %v2363
    %v2380 = vmul.f32 %v2092, %v90
    %v2381 = vmul.f32 %v2093, %v91
    %v2382 = vmul.f32 %v2094, %v92
    %v2383 = vmul.f32 %v2095, %v93
    %v2384 = vmul.f32 %v2096, %v94
    %v2385 = vmul.f32 %v2097, %v95
    %v2386 = vmul.f32 %v2098, %v96
    %v2387 = vmul.f32 %v2099, %v97
    %v2388 = vmul.f32 %v2100, %v98
    %v2389 = vmul.f32 %v2101, %v99
    %v2390 = vmul.f32 %v2102, %v100
    %v2391 = vmul.f32 %v2103, %v101
    %v2392 = vmul.f32 %v2104, %v102
    %v2393 = vmul.f32 %v2105, %v103
    %v2394 = vmul.f32 %v2106, %v104
    %v2395 = vmul.f32 %v2107, %v105
    %v2396 = vadd.f32 %v2364, %v2380
    %v2397 = vadd.f32 %v2365, %v2381
    %v2398 = vadd.f32 %v2366, %v2382
    %v2399 = vadd.f32 %v2367, %v2383
    %v2400 = vadd.f32 %v2368, %v2384
    %v2401 = vadd.f32 %v2369, %v2385
    %v2402 = vadd.f32 %v2370, %v2386
    %v2403 = vadd.f32 %v2371, %v2387
    %v2404 = vadd.f32 %v2372, %v2388
    %v2405 = vadd.f32 %v2373, %v2389
    %v2406 = vadd.f32 %v2374, %v2390
    %v2407 = vadd.f32 %v2375, %v2391
    %v2408 = vadd.f32 %v2376, %v2392
    %v2409 = vadd.f32 %v2377, %v2393
    %v2410 = vadd.f32 %v2378, %v2394
    %v2411 = vadd.f32 %v2379, %v2395
    %v2412 = vmul.f32 %v2204, %v107
    %v2413 = vmul.f32 %v2205, %v108
    %v2414 = vmul.f32 %v2206, %v109
    %v2415 = vmul.f32 %v2207, %v110
    %v2416 = vmul.f32 %v2208, %v111
    %v2417 = vmul.f32 %v2209, %v112
    %v2418 = vmul.f32 %v2210, %v113
    %v2419 = vmul.f32 %v2211, %v114
    %v2420 = vmul.f32 %v2212, %v115
    %v2421 = vmul.f32 %v2213, %v116
    %v2422 = vmul.f32 %v2214, %v117
    %v2423 = vmul.f32 %v2215, %v118
    %v2424 = vmul.f32 %v2216, %v119
    %v2425 = vmul.f32 %v2217, %v120
    %v2426 = vmul.f32 %v2218, %v121
    %v2427 = vmul.f32 %v2219, %v122
    %v2428 = vadd.f32 %v2396, %v2412
    %v2429 = vadd.f32 %v2397, %v2413
    %v2430 = vadd.f32 %v2398, %v2414
    %v2431 = vadd.f32 %v2399, %v2415
    %v2432 = vadd.f32 %v2400, %v2416
    %v2433 = vadd.f32 %v2401, %v2417
    %v2434 = vadd.f32 %v2402, %v2418
    %v2435 = vadd.f32 %v2403, %v2419
    %v2436 = vadd.f32 %v2404, %v2420
    %v2437 = vadd.f32 %v2405, %v2421
    %v2438 = vadd.f32 %v2406, %v2422
    %v2439 = vadd.f32 %v2407, %v2423
    %v2440 = vadd.f32 %v2408, %v2424
    %v2441 = vadd.f32 %v2409, %v2425
    %v2442 = vadd.f32 %v2410, %v2426
    %v2443 = vadd.f32 %v2411, %v2427
    %v2444 = vmul.f32 %v2316, %v124
    %v2445 = vmul.f32 %v2317, %v125
    %v2446 = vmul.f32 %v2318, %v126
    %v2447 = vmul.f32 %v2319, %v127
    %v2448 = vmul.f32 %v2320, %v128
    %v2449 = vmul.f32 %v2321, %v129
    %v2450 = vmul.f32 %v2322, %v130
    %v2451 = vmul.f32 %v2323, %v131
    %v2452 = vmul.f32 %v2324, %v132
    %v2453 = vmul.f32 %v2325, %v133
    %v2454 = vmul.f32 %v2326, %v134
    %v2455 = vmul.f32 %v2327, %v135
    %v2456 = vmul.f32 %v2328, %v136
    %v2457 = vmul.f32 %v2329, %v137
    %v2458 = vmul.f32 %v2330, %v138
    %v2459 = vmul.f32 %v2331, %v139
    %v2460 = vadd.f32 %v2428, %v2444
    %v2461 = vadd.f32 %v2429, %v2445
    %v2462 = vadd.f32 %v2430, %v2446
    %v2463 = vadd.f32 %v2431, %v2447
    %v2464 = vadd.f32 %v2432, %v2448
    %v2465 = vadd.f32 %v2433, %v2449
    %v2466 = vadd.f32 %v2434, %v2450
    %v2467 = vadd.f32 %v2435, %v2451
    %v2468 = vadd.f32 %v2436, %v2452
    %v2469 = vadd.f32 %v2437, %v2453
    %v2470 = vadd.f32 %v2438, %v2454
    %v2471 = vadd.f32 %v2439, %v2455
    %v2472 = vadd.f32 %v2440, %v2456
    %v2473 = vadd.f32 %v2441, %v2457
    %v2474 = vadd.f32 %v2442, %v2458
    %v2475 = vadd.f32 %v2443, %v2459
    %v2476 = vmul.f32 %v2460, 0.33333334
    %v2477 = vmul.f32 %v2461, 0.33333334
    %v2478 = vmul.f32 %v2462, 0.33333334
    %v2479 = vmul.f32 %v2463, 0.33333334
    %v2480 = vmul.f32 %v2464, 0.33333334
    %v2481 = vmul.f32 %v2465, 0.33333334
    %v2482 = vmul.f32 %v2466, 0.33333334
    %v2483 = vmul.f32 %v2467, 0.33333334
    %v2484 = vmul.f32 %v2468, 0.33333334
    %v2485 = vmul.f32 %v2469, 0.33333334
    %v2486 = vmul.f32 %v2470, 0.33333334
    %v2487 = vmul.f32 %v2471, 0.33333334
    %v2488 = vmul.f32 %v2472, 0.33333334
    %v2489 = vmul.f32 %v2473, 0.33333334
    %v2490 = vmul.f32 %v2474, 0.33333334
    %v2491 = vmul.f32 %v2475, 0.33333334
    %v2492 = vadd.f32 %v2476, %v40
    %v2493 = vadd.f32 %v2477, %v41
    %v2494 = vadd.f32 %v2478, %v42
    %v2495 = vadd.f32 %v2479, %v43
    %v2496 = vadd.f32 %v2480, %v44
    %v2497 = vadd.f32 %v2481, %v45
    %v2498 = vadd.f32 %v2482, %v46
    %v2499 = vadd.f32 %v2483, %v47
    %v2500 = vadd.f32 %v2484, %v48
    %v2501 = vadd.f32 %v2485, %v49
    %v2502 = vadd.f32 %v2486, %v50
    %v2503 = vadd.f32 %v2487, %v51
    %v2504 = vadd.f32 %v2488, %v52
    %v2505 = vadd.f32 %v2489, %v53
    %v2506 = vadd.f32 %v2490, %v54
    %v2507 = vadd.f32 %v2491, %v55
    %v2508 = vmul.f32 %v2492, 0.5
    %v2509 = vmul.f32 %v2493, 0.5
    %v2510 = vmul.f32 %v2494, 0.5
    %v2511 = vmul.f32 %v2495, 0.5
    %v2512 = vmul.f32 %v2496, 0.5
    %v2513 = vmul.f32 %v2497, 0.5
    %v2514 = vmul.f32 %v2498, 0.5
    %v2515 = vmul.f32 %v2499, 0.5
    %v2516 = vmul.f32 %v2500, 0.5
    %v2517 = vmul.f32 %v2501, 0.5
    %v2518 = vmul.f32 %v2502, 0.5
    %v2519 = vmul.f32 %v2503, 0.5
    %v2520 = vmul.f32 %v2504, 0.5
    %v2521 = vmul.f32 %v2505, 0.5
    %v2522 = vmul.f32 %v2506, 0.5
    %v2523 = vmul.f32 %v2507, 0.5
    %s2524 = scalar_lea.vmem [#allocation2], 128
    %v2525 = vld [vmem:[%s2524] sm:$0xff]
    %v2526 = vld [vmem:[%s2524 + $0x8] sm:$0xff]
    %v2527 = vld [vmem:[%s2524 + $0x10] sm:$0xff]
    %v2528 = vld [vmem:[%s2524 + $0x18] sm:$0xff]
    %v2529 = vld [vmem:[%s2524 + $0x20] sm:$0xff]
    %v2530 = vld [vmem:[%s2524 + $0x28] sm:$0xff]
    %v2531 = vld [vmem:[%s2524 + $0x30] sm:$0xff]
    %v2532 = vld [vmem:[%s2524 + $0x38] sm:$0xff]
    %v2533 = vld [vmem:[%s2524 + $0x40] sm:$0xff]
    %v2534 = vld [vmem:[%s2524 + $0x48] sm:$0xff]
    %v2535 = vld [vmem:[%s2524 + $0x50] sm:$0xff]
    %v2536 = vld [vmem:[%s2524 + $0x58] sm:$0xff]
    %v2537 = vld [vmem:[%s2524 + $0x60] sm:$0xff]
    %v2538 = vld [vmem:[%s2524 + $0x68] sm:$0xff]
    %v2539 = vld [vmem:[%s2524 + $0x70] sm:$0xff]
    %v2540 = vld [vmem:[%s2524 + $0x78] sm:$0xff]
    %s2541 = scalar_lea.vmem [#allocation5], 640
    %v2542 = vld [vmem:[%s2541] sm:$0xff]
    %v2543 = vld [vmem:[%s2541 + $0x8] sm:$0xff]
    %v2544 = vld [vmem:[%s2541 + $0x10] sm:$0xff]
    %v2545 = vld [vmem:[%s2541 + $0x18] sm:$0xff]
    %v2546 = vld [vmem:[%s2541 + $0x20] sm:$0xff]
    %v2547 = vld [vmem:[%s2541 + $0x28] sm:$0xff]
    %v2548 = vld [vmem:[%s2541 + $0x30] sm:$0xff]
    %v2549 = vld [vmem:[%s2541 + $0x38] sm:$0xff]
    %v2550 = vld [vmem:[%s2541 + $0x40] sm:$0xff]
    %v2551 = vld [vmem:[%s2541 + $0x48] sm:$0xff]
    %v2552 = vld [vmem:[%s2541 + $0x50] sm:$0xff]
    %v2553 = vld [vmem:[%s2541 + $0x58] sm:$0xff]
    %v2554 = vld [vmem:[%s2541 + $0x60] sm:$0xff]
    %v2555 = vld [vmem:[%s2541 + $0x68] sm:$0xff]
    %v2556 = vld [vmem:[%s2541 + $0x70] sm:$0xff]
    %v2557 = vld [vmem:[%s2541 + $0x78] sm:$0xff]
    %s2558 = scalar_lea.vmem [#allocation5], 768
    %v2559 = vld [vmem:[%s2558] sm:$0xff]
    %v2560 = vld [vmem:[%s2558 + $0x8] sm:$0xff]
    %v2561 = vld [vmem:[%s2558 + $0x10] sm:$0xff]
    %v2562 = vld [vmem:[%s2558 + $0x18] sm:$0xff]
    %v2563 = vld [vmem:[%s2558 + $0x20] sm:$0xff]
    %v2564 = vld [vmem:[%s2558 + $0x28] sm:$0xff]
    %v2565 = vld [vmem:[%s2558 + $0x30] sm:$0xff]
    %v2566 = vld [vmem:[%s2558 + $0x38] sm:$0xff]
    %v2567 = vld [vmem:[%s2558 + $0x40] sm:$0xff]
    %v2568 = vld [vmem:[%s2558 + $0x48] sm:$0xff]
    %v2569 = vld [vmem:[%s2558 + $0x50] sm:$0xff]
    %v2570 = vld [vmem:[%s2558 + $0x58] sm:$0xff]
    %v2571 = vld [vmem:[%s2558 + $0x60] sm:$0xff]
    %v2572 = vld [vmem:[%s2558 + $0x68] sm:$0xff]
    %v2573 = vld [vmem:[%s2558 + $0x70] sm:$0xff]
    %v2574 = vld [vmem:[%s2558 + $0x78] sm:$0xff]
    %s2575 = scalar_lea.vmem [#allocation5], 896
    %v2576 = vld [vmem:[%s2575] sm:$0xff]
    %v2577 = vld [vmem:[%s2575 + $0x8] sm:$0xff]
    %v2578 = vld [vmem:[%s2575 + $0x10] sm:$0xff]
    %v2579 = vld [vmem:[%s2575 + $0x18] sm:$0xff]
    %v2580 = vld [vmem:[%s2575 + $0x20] sm:$0xff]
    %v2581 = vld [vmem:[%s2575 + $0x28] sm:$0xff]
    %v2582 = vld [vmem:[%s2575 + $0x30] sm:$0xff]
    %v2583 = vld [vmem:[%s2575 + $0x38] sm:$0xff]
    %v2584 = vld [vmem:[%s2575 + $0x40] sm:$0xff]
    %v2585 = vld [vmem:[%s2575 + $0x48] sm:$0xff]
    %v2586 = vld [vmem:[%s2575 + $0x50] sm:$0xff]
    %v2587 = vld [vmem:[%s2575 + $0x58] sm:$0xff]
    %v2588 = vld [vmem:[%s2575 + $0x60] sm:$0xff]
    %v2589 = vld [vmem:[%s2575 + $0x68] sm:$0xff]
    %v2590 = vld [vmem:[%s2575 + $0x70] sm:$0xff]
    %v2591 = vld [vmem:[%s2575 + $0x78] sm:$0xff]
    %s2592 = scalar_lea.vmem [#allocation5], 1024
    %v2593 = vld [vmem:[%s2592] sm:$0xff]
    %v2594 = vld [vmem:[%s2592 + $0x8] sm:$0xff]
    %v2595 = vld [vmem:[%s2592 + $0x10] sm:$0xff]
    %v2596 = vld [vmem:[%s2592 + $0x18] sm:$0xff]
    %v2597 = vld [vmem:[%s2592 + $0x20] sm:$0xff]
    %v2598 = vld [vmem:[%s2592 + $0x28] sm:$0xff]
    %v2599 = vld [vmem:[%s2592 + $0x30] sm:$0xff]
    %v2600 = vld [vmem:[%s2592 + $0x38] sm:$0xff]
    %v2601 = vld [vmem:[%s2592 + $0x40] sm:$0xff]
    %v2602 = vld [vmem:[%s2592 + $0x48] sm:$0xff]
    %v2603 = vld [vmem:[%s2592 + $0x50] sm:$0xff]
    %v2604 = vld [vmem:[%s2592 + $0x58] sm:$0xff]
    %v2605 = vld [vmem:[%s2592 + $0x60] sm:$0xff]
    %v2606 = vld [vmem:[%s2592 + $0x68] sm:$0xff]
    %v2607 = vld [vmem:[%s2592 + $0x70] sm:$0xff]
    %v2608 = vld [vmem:[%s2592 + $0x78] sm:$0xff]
    %s2609 = scalar_lea.vmem [#allocation5], 1152
    %v2610 = vld [vmem:[%s2609] sm:$0xff]
    %v2611 = vld [vmem:[%s2609 + $0x8] sm:$0xff]
    %v2612 = vld [vmem:[%s2609 + $0x10] sm:$0xff]
    %v2613 = vld [vmem:[%s2609 + $0x18] sm:$0xff]
    %v2614 = vld [vmem:[%s2609 + $0x20] sm:$0xff]
    %v2615 = vld [vmem:[%s2609 + $0x28] sm:$0xff]
    %v2616 = vld [vmem:[%s2609 + $0x30] sm:$0xff]
    %v2617 = vld [vmem:[%s2609 + $0x38] sm:$0xff]
    %v2618 = vld [vmem:[%s2609 + $0x40] sm:$0xff]
    %v2619 = vld [vmem:[%s2609 + $0x48] sm:$0xff]
    %v2620 = vld [vmem:[%s2609 + $0x50] sm:$0xff]
    %v2621 = vld [vmem:[%s2609 + $0x58] sm:$0xff]
    %v2622 = vld [vmem:[%s2609 + $0x60] sm:$0xff]
    %v2623 = vld [vmem:[%s2609 + $0x68] sm:$0xff]
    %v2624 = vld [vmem:[%s2609 + $0x70] sm:$0xff]
    %v2625 = vld [vmem:[%s2609 + $0x78] sm:$0xff]
    %v2626 = vmul.f32 %v2525, 2.0
    %v2627 = vmul.f32 %v2526, 2.0
    %v2628 = vmul.f32 %v2527, 2.0
    %v2629 = vmul.f32 %v2528, 2.0
    %v2630 = vmul.f32 %v2529, 2.0
    %v2631 = vmul.f32 %v2530, 2.0
    %v2632 = vmul.f32 %v2531, 2.0
    %v2633 = vmul.f32 %v2532, 2.0
    %v2634 = vmul.f32 %v2533, 2.0
    %v2635 = vmul.f32 %v2534, 2.0
    %v2636 = vmul.f32 %v2535, 2.0
    %v2637 = vmul.f32 %v2536, 2.0
    %v2638 = vmul.f32 %v2537, 2.0
    %v2639 = vmul.f32 %v2538, 2.0
    %v2640 = vmul.f32 %v2539, 2.0
    %v2641 = vmul.f32 %v2540, 2.0
    %v2642 = vadd.f32 %v2626, 2e-06
    %v2643 = vadd.f32 %v2627, 2e-06
    %v2644 = vadd.f32 %v2628, 2e-06
    %v2645 = vadd.f32 %v2629, 2e-06
    %v2646 = vadd.f32 %v2630, 2e-06
    %v2647 = vadd.f32 %v2631, 2e-06
    %v2648 = vadd.f32 %v2632, 2e-06
    %v2649 = vadd.f32 %v2633, 2e-06
    %v2650 = vadd.f32 %v2634, 2e-06
    %v2651 = vadd.f32 %v2635, 2e-06
    %v2652 = vadd.f32 %v2636, 2e-06
    %v2653 = vadd.f32 %v2637, 2e-06
    %v2654 = vadd.f32 %v2638, 2e-06
    %v2655 = vadd.f32 %v2639, 2e-06
    %v2656 = vadd.f32 %v2640, 2e-06
    %v2657 = vadd.f32 %v2641, 2e-06
    %v2658 = vsub.f32 %v2542, %v2642
    %v2659 = vsub.f32 %v2543, %v2643
    %v2660 = vsub.f32 %v2544, %v2644
    %v2661 = vsub.f32 %v2545, %v2645
    %v2662 = vsub.f32 %v2546, %v2646
    %v2663 = vsub.f32 %v2547, %v2647
    %v2664 = vsub.f32 %v2548, %v2648
    %v2665 = vsub.f32 %v2549, %v2649
    %v2666 = vsub.f32 %v2550, %v2650
    %v2667 = vsub.f32 %v2551, %v2651
    %v2668 = vsub.f32 %v2552, %v2652
    %v2669 = vsub.f32 %v2553, %v2653
    %v2670 = vsub.f32 %v2554, %v2654
    %v2671 = vsub.f32 %v2555, %v2655
    %v2672 = vsub.f32 %v2556, %v2656
    %v2673 = vsub.f32 %v2557, %v2657
    %v2674 = vmul.f32 %v2542, %v2658
    %v2675 = vmul.f32 %v2543, %v2659
    %v2676 = vmul.f32 %v2544, %v2660
    %v2677 = vmul.f32 %v2545, %v2661
    %v2678 = vmul.f32 %v2546, %v2662
    %v2679 = vmul.f32 %v2547, %v2663
    %v2680 = vmul.f32 %v2548, %v2664
    %v2681 = vmul.f32 %v2549, %v2665
    %v2682 = vmul.f32 %v2550, %v2666
    %v2683 = vmul.f32 %v2551, %v2667
    %v2684 = vmul.f32 %v2552, %v2668
    %v2685 = vmul.f32 %v2553, %v2669
    %v2686 = vmul.f32 %v2554, %v2670
    %v2687 = vmul.f32 %v2555, %v2671
    %v2688 = vmul.f32 %v2556, %v2672
    %v2689 = vmul.f32 %v2557, %v2673
    %2690 = vadd.xlane.f32.xlu0 %v2674
    %v2691 = vpop.xlane.xlu0 %2690
    %2692 = vadd.xlane.f32.xlu0 %v2675
    %v2693 = vpop.xlane.xlu0 %2692
    %2694 = vadd.xlane.f32.xlu0 %v2676
    %v2695 = vpop.xlane.xlu0 %2694
    %2696 = vadd.xlane.f32.xlu0 %v2677
    %v2697 = vpop.xlane.xlu0 %2696
    %2698 = vadd.xlane.f32.xlu0 %v2678
    %v2699 = vpop.xlane.xlu0 %2698
    %2700 = vadd.xlane.f32.xlu0 %v2679
    %v2701 = vpop.xlane.xlu0 %2700
    %2702 = vadd.xlane.f32.xlu0 %v2680
    %v2703 = vpop.xlane.xlu0 %2702
    %2704 = vadd.xlane.f32.xlu0 %v2681
    %v2705 = vpop.xlane.xlu0 %2704
    %2706 = vadd.xlane.f32.xlu0 %v2682
    %v2707 = vpop.xlane.xlu0 %2706
    %2708 = vadd.xlane.f32.xlu0 %v2683
    %v2709 = vpop.xlane.xlu0 %2708
    %2710 = vadd.xlane.f32.xlu0 %v2684
    %v2711 = vpop.xlane.xlu0 %2710
    %2712 = vadd.xlane.f32.xlu0 %v2685
    %v2713 = vpop.xlane.xlu0 %2712
    %2714 = vadd.xlane.f32.xlu0 %v2686
    %v2715 = vpop.xlane.xlu0 %2714
    %2716 = vadd.xlane.f32.xlu0 %v2687
    %v2717 = vpop.xlane.xlu0 %2716
    %2718 = vadd.xlane.f32.xlu0 %v2688
    %v2719 = vpop.xlane.xlu0 %2718
    %2720 = vadd.xlane.f32.xlu0 %v2689
    %v2721 = vpop.xlane.xlu0 %2720
    %v2722 = vsub.f32 %v2559, %v2642
    %v2723 = vsub.f32 %v2560, %v2643
    %v2724 = vsub.f32 %v2561, %v2644
    %v2725 = vsub.f32 %v2562, %v2645
    %v2726 = vsub.f32 %v2563, %v2646
    %v2727 = vsub.f32 %v2564, %v2647
    %v2728 = vsub.f32 %v2565, %v2648
    %v2729 = vsub.f32 %v2566, %v2649
    %v2730 = vsub.f32 %v2567, %v2650
    %v2731 = vsub.f32 %v2568, %v2651
    %v2732 = vsub.f32 %v2569, %v2652
    %v2733 = vsub.f32 %v2570, %v2653
    %v2734 = vsub.f32 %v2571, %v2654
    %v2735 = vsub.f32 %v2572, %v2655
    %v2736 = vsub.f32 %v2573, %v2656
    %v2737 = vsub.f32 %v2574, %v2657
    %v2738 = vmul.f32 %v2559, %v2722
    %v2739 = vmul.f32 %v2560, %v2723
    %v2740 = vmul.f32 %v2561, %v2724
    %v2741 = vmul.f32 %v2562, %v2725
    %v2742 = vmul.f32 %v2563, %v2726
    %v2743 = vmul.f32 %v2564, %v2727
    %v2744 = vmul.f32 %v2565, %v2728
    %v2745 = vmul.f32 %v2566, %v2729
    %v2746 = vmul.f32 %v2567, %v2730
    %v2747 = vmul.f32 %v2568, %v2731
    %v2748 = vmul.f32 %v2569, %v2732
    %v2749 = vmul.f32 %v2570, %v2733
    %v2750 = vmul.f32 %v2571, %v2734
    %v2751 = vmul.f32 %v2572, %v2735
    %v2752 = vmul.f32 %v2573, %v2736
    %v2753 = vmul.f32 %v2574, %v2737
    %2754 = vadd.xlane.f32.xlu0 %v2738
    %v2755 = vpop.xlane.xlu0 %2754
    %2756 = vadd.xlane.f32.xlu0 %v2739
    %v2757 = vpop.xlane.xlu0 %2756
    %2758 = vadd.xlane.f32.xlu0 %v2740
    %v2759 = vpop.xlane.xlu0 %2758
    %2760 = vadd.xlane.f32.xlu0 %v2741
    %v2761 = vpop.xlane.xlu0 %2760
    %2762 = vadd.xlane.f32.xlu0 %v2742
    %v2763 = vpop.xlane.xlu0 %2762
    %2764 = vadd.xlane.f32.xlu0 %v2743
    %v2765 = vpop.xlane.xlu0 %2764
    %2766 = vadd.xlane.f32.xlu0 %v2744
    %v2767 = vpop.xlane.xlu0 %2766
    %2768 = vadd.xlane.f32.xlu0 %v2745
    %v2769 = vpop.xlane.xlu0 %2768
    %2770 = vadd.xlane.f32.xlu0 %v2746
    %v2771 = vpop.xlane.xlu0 %2770
    %2772 = vadd.xlane.f32.xlu0 %v2747
    %v2773 = vpop.xlane.xlu0 %2772
    %2774 = vadd.xlane.f32.xlu0 %v2748
    %v2775 = vpop.xlane.xlu0 %2774
    %2776 = vadd.xlane.f32.xlu0 %v2749
    %v2777 = vpop.xlane.xlu0 %2776
    %2778 = vadd.xlane.f32.xlu0 %v2750
    %v2779 = vpop.xlane.xlu0 %2778
    %2780 = vadd.xlane.f32.xlu0 %v2751
    %v2781 = vpop.xlane.xlu0 %2780
    %2782 = vadd.xlane.f32.xlu0 %v2752
    %v2783 = vpop.xlane.xlu0 %2782
    %2784 = vadd.xlane.f32.xlu0 %v2753
    %v2785 = vpop.xlane.xlu0 %2784
    %v2786 = vsub.f32 %v2576, %v2642
    %v2787 = vsub.f32 %v2577, %v2643
    %v2788 = vsub.f32 %v2578, %v2644
    %v2789 = vsub.f32 %v2579, %v2645
    %v2790 = vsub.f32 %v2580, %v2646
    %v2791 = vsub.f32 %v2581, %v2647
    %v2792 = vsub.f32 %v2582, %v2648
    %v2793 = vsub.f32 %v2583, %v2649
    %v2794 = vsub.f32 %v2584, %v2650
    %v2795 = vsub.f32 %v2585, %v2651
    %v2796 = vsub.f32 %v2586, %v2652
    %v2797 = vsub.f32 %v2587, %v2653
    %v2798 = vsub.f32 %v2588, %v2654
    %v2799 = vsub.f32 %v2589, %v2655
    %v2800 = vsub.f32 %v2590, %v2656
    %v2801 = vsub.f32 %v2591, %v2657
    %v2802 = vmul.f32 %v2576, %v2786
    %v2803 = vmul.f32 %v2577, %v2787
    %v2804 = vmul.f32 %v2578, %v2788
    %v2805 = vmul.f32 %v2579, %v2789
    %v2806 = vmul.f32 %v2580, %v2790
    %v2807 = vmul.f32 %v2581, %v2791
    %v2808 = vmul.f32 %v2582, %v2792
    %v2809 = vmul.f32 %v2583, %v2793
    %v2810 = vmul.f32 %v2584, %v2794
    %v2811 = vmul.f32 %v2585, %v2795
    %v2812 = vmul.f32 %v2586, %v2796
    %v2813 = vmul.f32 %v2587, %v2797
    %v2814 = vmul.f32 %v2588, %v2798
    %v2815 = vmul.f32 %v2589, %v2799
    %v2816 = vmul.f32 %v2590, %v2800
    %v2817 = vmul.f32 %v2591, %v2801
    %2818 = vadd.xlane.f32.xlu0 %v2802
    %v2819 = vpop.xlane.xlu0 %2818
    %2820 = vadd.xlane.f32.xlu0 %v2803
    %v2821 = vpop.xlane.xlu0 %2820
    %2822 = vadd.xlane.f32.xlu0 %v2804
    %v2823 = vpop.xlane.xlu0 %2822
    %2824 = vadd.xlane.f32.xlu0 %v2805
    %v2825 = vpop.xlane.xlu0 %2824
    %2826 = vadd.xlane.f32.xlu0 %v2806
    %v2827 = vpop.xlane.xlu0 %2826
    %2828 = vadd.xlane.f32.xlu0 %v2807
    %v2829 = vpop.xlane.xlu0 %2828
    %2830 = vadd.xlane.f32.xlu0 %v2808
    %v2831 = vpop.xlane.xlu0 %2830
    %2832 = vadd.xlane.f32.xlu0 %v2809
    %v2833 = vpop.xlane.xlu0 %2832
    %2834 = vadd.xlane.f32.xlu0 %v2810
    %v2835 = vpop.xlane.xlu0 %2834
    %2836 = vadd.xlane.f32.xlu0 %v2811
    %v2837 = vpop.xlane.xlu0 %2836
    %2838 = vadd.xlane.f32.xlu0 %v2812
    %v2839 = vpop.xlane.xlu0 %2838
    %2840 = vadd.xlane.f32.xlu0 %v2813
    %v2841 = vpop.xlane.xlu0 %2840
    %2842 = vadd.xlane.f32.xlu0 %v2814
    %v2843 = vpop.xlane.xlu0 %2842
    %2844 = vadd.xlane.f32.xlu0 %v2815
    %v2845 = vpop.xlane.xlu0 %2844
    %2846 = vadd.xlane.f32.xlu0 %v2816
    %v2847 = vpop.xlane.xlu0 %2846
    %2848 = vadd.xlane.f32.xlu0 %v2817
    %v2849 = vpop.xlane.xlu0 %2848
    %v2850 = vsub.f32 %v2593, %v2642
    %v2851 = vsub.f32 %v2594, %v2643
    %v2852 = vsub.f32 %v2595, %v2644
    %v2853 = vsub.f32 %v2596, %v2645
    %v2854 = vsub.f32 %v2597, %v2646
    %v2855 = vsub.f32 %v2598, %v2647
    %v2856 = vsub.f32 %v2599, %v2648
    %v2857 = vsub.f32 %v2600, %v2649
    %v2858 = vsub.f32 %v2601, %v2650
    %v2859 = vsub.f32 %v2602, %v2651
    %v2860 = vsub.f32 %v2603, %v2652
    %v2861 = vsub.f32 %v2604, %v2653
    %v2862 = vsub.f32 %v2605, %v2654
    %v2863 = vsub.f32 %v2606, %v2655
    %v2864 = vsub.f32 %v2607, %v2656
    %v2865 = vsub.f32 %v2608, %v2657
    %v2866 = vmul.f32 %v2593, %v2850
    %v2867 = vmul.f32 %v2594, %v2851
    %v2868 = vmul.f32 %v2595, %v2852
    %v2869 = vmul.f32 %v2596, %v2853
    %v2870 = vmul.f32 %v2597, %v2854
    %v2871 = vmul.f32 %v2598, %v2855
    %v2872 = vmul.f32 %v2599, %v2856
    %v2873 = vmul.f32 %v2600, %v2857
    %v2874 = vmul.f32 %v2601, %v2858
    %v2875 = vmul.f32 %v2602, %v2859
    %v2876 = vmul.f32 %v2603, %v2860
    %v2877 = vmul.f32 %v2604, %v2861
    %v2878 = vmul.f32 %v2605, %v2862
    %v2879 = vmul.f32 %v2606, %v2863
    %v2880 = vmul.f32 %v2607, %v2864
    %v2881 = vmul.f32 %v2608, %v2865
    %2882 = vadd.xlane.f32.xlu0 %v2866
    %v2883 = vpop.xlane.xlu0 %2882
    %2884 = vadd.xlane.f32.xlu0 %v2867
    %v2885 = vpop.xlane.xlu0 %2884
    %2886 = vadd.xlane.f32.xlu0 %v2868
    %v2887 = vpop.xlane.xlu0 %2886
    %2888 = vadd.xlane.f32.xlu0 %v2869
    %v2889 = vpop.xlane.xlu0 %2888
    %2890 = vadd.xlane.f32.xlu0 %v2870
    %v2891 = vpop.xlane.xlu0 %2890
    %2892 = vadd.xlane.f32.xlu0 %v2871
    %v2893 = vpop.xlane.xlu0 %2892
    %2894 = vadd.xlane.f32.xlu0 %v2872
    %v2895 = vpop.xlane.xlu0 %2894
    %2896 = vadd.xlane.f32.xlu0 %v2873
    %v2897 = vpop.xlane.xlu0 %2896
    %2898 = vadd.xlane.f32.xlu0 %v2874
    %v2899 = vpop.xlane.xlu0 %2898
    %2900 = vadd.xlane.f32.xlu0 %v2875
    %v2901 = vpop.xlane.xlu0 %2900
    %2902 = vadd.xlane.f32.xlu0 %v2876
    %v2903 = vpop.xlane.xlu0 %2902
    %2904 = vadd.xlane.f32.xlu0 %v2877
    %v2905 = vpop.xlane.xlu0 %2904
    %2906 = vadd.xlane.f32.xlu0 %v2878
    %v2907 = vpop.xlane.xlu0 %2906
    %2908 = vadd.xlane.f32.xlu0 %v2879
    %v2909 = vpop.xlane.xlu0 %2908
    %2910 = vadd.xlane.f32.xlu0 %v2880
    %v2911 = vpop.xlane.xlu0 %2910
    %2912 = vadd.xlane.f32.xlu0 %v2881
    %v2913 = vpop.xlane.xlu0 %2912
    %v2914 = vsub.f32 %v2610, %v2642
    %v2915 = vsub.f32 %v2611, %v2643
    %v2916 = vsub.f32 %v2612, %v2644
    %v2917 = vsub.f32 %v2613, %v2645
    %v2918 = vsub.f32 %v2614, %v2646
    %v2919 = vsub.f32 %v2615, %v2647
    %v2920 = vsub.f32 %v2616, %v2648
    %v2921 = vsub.f32 %v2617, %v2649
    %v2922 = vsub.f32 %v2618, %v2650
    %v2923 = vsub.f32 %v2619, %v2651
    %v2924 = vsub.f32 %v2620, %v2652
    %v2925 = vsub.f32 %v2621, %v2653
    %v2926 = vsub.f32 %v2622, %v2654
    %v2927 = vsub.f32 %v2623, %v2655
    %v2928 = vsub.f32 %v2624, %v2656
    %v2929 = vsub.f32 %v2625, %v2657
    %v2930 = vmul.f32 %v2610, %v2914
    %v2931 = vmul.f32 %v2611, %v2915
    %v2932 = vmul.f32 %v2612, %v2916
    %v2933 = vmul.f32 %v2613, %v2917
    %v2934 = vmul.f32 %v2614, %v2918
    %v2935 = vmul.f32 %v2615, %v2919
    %v2936 = vmul.f32 %v2616, %v2920
    %v2937 = vmul.f32 %v2617, %v2921
    %v2938 = vmul.f32 %v2618, %v2922
    %v2939 = vmul.f32 %v2619, %v2923
    %v2940 = vmul.f32 %v2620, %v2924
    %v2941 = vmul.f32 %v2621, %v2925
    %v2942 = vmul.f32 %v2622, %v2926
    %v2943 = vmul.f32 %v2623, %v2927
    %v2944 = vmul.f32 %v2624, %v2928
    %v2945 = vmul.f32 %v2625, %v2929
    %2946 = vadd.xlane.f32.xlu0 %v2930
    %v2947 = vpop.xlane.xlu0 %2946
    %2948 = vadd.xlane.f32.xlu0 %v2931
    %v2949 = vpop.xlane.xlu0 %2948
    %2950 = vadd.xlane.f32.xlu0 %v2932
    %v2951 = vpop.xlane.xlu0 %2950
    %2952 = vadd.xlane.f32.xlu0 %v2933
    %v2953 = vpop.xlane.xlu0 %2952
    %2954 = vadd.xlane.f32.xlu0 %v2934
    %v2955 = vpop.xlane.xlu0 %2954
    %2956 = vadd.xlane.f32.xlu0 %v2935
    %v2957 = vpop.xlane.xlu0 %2956
    %2958 = vadd.xlane.f32.xlu0 %v2936
    %v2959 = vpop.xlane.xlu0 %2958
    %2960 = vadd.xlane.f32.xlu0 %v2937
    %v2961 = vpop.xlane.xlu0 %2960
    %2962 = vadd.xlane.f32.xlu0 %v2938
    %v2963 = vpop.xlane.xlu0 %2962
    %2964 = vadd.xlane.f32.xlu0 %v2939
    %v2965 = vpop.xlane.xlu0 %2964
    %2966 = vadd.xlane.f32.xlu0 %v2940
    %v2967 = vpop.xlane.xlu0 %2966
    %2968 = vadd.xlane.f32.xlu0 %v2941
    %v2969 = vpop.xlane.xlu0 %2968
    %2970 = vadd.xlane.f32.xlu0 %v2942
    %v2971 = vpop.xlane.xlu0 %2970
    %2972 = vadd.xlane.f32.xlu0 %v2943
    %v2973 = vpop.xlane.xlu0 %2972
    %2974 = vadd.xlane.f32.xlu0 %v2944
    %v2975 = vpop.xlane.xlu0 %2974
    %2976 = vadd.xlane.f32.xlu0 %v2945
    %v2977 = vpop.xlane.xlu0 %2976
    %v2978 = vmax.f32 %v2691, %v2755
    %v2979 = vmax.f32 %v2693, %v2757
    %v2980 = vmax.f32 %v2695, %v2759
    %v2981 = vmax.f32 %v2697, %v2761
    %v2982 = vmax.f32 %v2699, %v2763
    %v2983 = vmax.f32 %v2701, %v2765
    %v2984 = vmax.f32 %v2703, %v2767
    %v2985 = vmax.f32 %v2705, %v2769
    %v2986 = vmax.f32 %v2707, %v2771
    %v2987 = vmax.f32 %v2709, %v2773
    %v2988 = vmax.f32 %v2711, %v2775
    %v2989 = vmax.f32 %v2713, %v2777
    %v2990 = vmax.f32 %v2715, %v2779
    %v2991 = vmax.f32 %v2717, %v2781
    %v2992 = vmax.f32 %v2719, %v2783
    %v2993 = vmax.f32 %v2721, %v2785
    %v2994 = vmax.f32 %v2978, %v2819
    %v2995 = vmax.f32 %v2979, %v2821
    %v2996 = vmax.f32 %v2980, %v2823
    %v2997 = vmax.f32 %v2981, %v2825
    %v2998 = vmax.f32 %v2982, %v2827
    %v2999 = vmax.f32 %v2983, %v2829
    %v3000 = vmax.f32 %v2984, %v2831
    %v3001 = vmax.f32 %v2985, %v2833
    %v3002 = vmax.f32 %v2986, %v2835
    %v3003 = vmax.f32 %v2987, %v2837
    %v3004 = vmax.f32 %v2988, %v2839
    %v3005 = vmax.f32 %v2989, %v2841
    %v3006 = vmax.f32 %v2990, %v2843
    %v3007 = vmax.f32 %v2991, %v2845
    %v3008 = vmax.f32 %v2992, %v2847
    %v3009 = vmax.f32 %v2993, %v2849
    %v3010 = vmax.f32 %v2994, %v2883
    %v3011 = vmax.f32 %v2995, %v2885
    %v3012 = vmax.f32 %v2996, %v2887
    %v3013 = vmax.f32 %v2997, %v2889
    %v3014 = vmax.f32 %v2998, %v2891
    %v3015 = vmax.f32 %v2999, %v2893
    %v3016 = vmax.f32 %v3000, %v2895
    %v3017 = vmax.f32 %v3001, %v2897
    %v3018 = vmax.f32 %v3002, %v2899
    %v3019 = vmax.f32 %v3003, %v2901
    %v3020 = vmax.f32 %v3004, %v2903
    %v3021 = vmax.f32 %v3005, %v2905
    %v3022 = vmax.f32 %v3006, %v2907
    %v3023 = vmax.f32 %v3007, %v2909
    %v3024 = vmax.f32 %v3008, %v2911
    %v3025 = vmax.f32 %v3009, %v2913
    %v3026 = vmax.f32 %v3010, %v2947
    %v3027 = vmax.f32 %v3011, %v2949
    %v3028 = vmax.f32 %v3012, %v2951
    %v3029 = vmax.f32 %v3013, %v2953
    %v3030 = vmax.f32 %v3014, %v2955
    %v3031 = vmax.f32 %v3015, %v2957
    %v3032 = vmax.f32 %v3016, %v2959
    %v3033 = vmax.f32 %v3017, %v2961
    %v3034 = vmax.f32 %v3018, %v2963
    %v3035 = vmax.f32 %v3019, %v2965
    %v3036 = vmax.f32 %v3020, %v2967
    %v3037 = vmax.f32 %v3021, %v2969
    %v3038 = vmax.f32 %v3022, %v2971
    %v3039 = vmax.f32 %v3023, %v2973
    %v3040 = vmax.f32 %v3024, %v2975
    %v3041 = vmax.f32 %v3025, %v2977
    %vm3042 = vcmp.eq.f32.partialorder %v2691, %v3026
    %vm3043 = vcmp.eq.f32.partialorder %v2693, %v3027
    %vm3044 = vcmp.eq.f32.partialorder %v2695, %v3028
    %vm3045 = vcmp.eq.f32.partialorder %v2697, %v3029
    %vm3046 = vcmp.eq.f32.partialorder %v2699, %v3030
    %vm3047 = vcmp.eq.f32.partialorder %v2701, %v3031
    %vm3048 = vcmp.eq.f32.partialorder %v2703, %v3032
    %vm3049 = vcmp.eq.f32.partialorder %v2705, %v3033
    %vm3050 = vcmp.eq.f32.partialorder %v2707, %v3034
    %vm3051 = vcmp.eq.f32.partialorder %v2709, %v3035
    %vm3052 = vcmp.eq.f32.partialorder %v2711, %v3036
    %vm3053 = vcmp.eq.f32.partialorder %v2713, %v3037
    %vm3054 = vcmp.eq.f32.partialorder %v2715, %v3038
    %vm3055 = vcmp.eq.f32.partialorder %v2717, %v3039
    %vm3056 = vcmp.eq.f32.partialorder %v2719, %v3040
    %vm3057 = vcmp.eq.f32.partialorder %v2721, %v3041
    %v3058 = vsel %vm3042, 1, 0
    %v3059 = vsel %vm3043, 1, 0
    %v3060 = vsel %vm3044, 1, 0
    %v3061 = vsel %vm3045, 1, 0
    %v3062 = vsel %vm3046, 1, 0
    %v3063 = vsel %vm3047, 1, 0
    %v3064 = vsel %vm3048, 1, 0
    %v3065 = vsel %vm3049, 1, 0
    %v3066 = vsel %vm3050, 1, 0
    %v3067 = vsel %vm3051, 1, 0
    %v3068 = vsel %vm3052, 1, 0
    %v3069 = vsel %vm3053, 1, 0
    %v3070 = vsel %vm3054, 1, 0
    %v3071 = vsel %vm3055, 1, 0
    %v3072 = vsel %vm3056, 1, 0
    %v3073 = vsel %vm3057, 1, 0
    %v3074 = vcvt.s32.f32 %v3058
    %v3075 = vcvt.s32.f32 %v3059
    %v3076 = vcvt.s32.f32 %v3060
    %v3077 = vcvt.s32.f32 %v3061
    %v3078 = vcvt.s32.f32 %v3062
    %v3079 = vcvt.s32.f32 %v3063
    %v3080 = vcvt.s32.f32 %v3064
    %v3081 = vcvt.s32.f32 %v3065
    %v3082 = vcvt.s32.f32 %v3066
    %v3083 = vcvt.s32.f32 %v3067
    %v3084 = vcvt.s32.f32 %v3068
    %v3085 = vcvt.s32.f32 %v3069
    %v3086 = vcvt.s32.f32 %v3070
    %v3087 = vcvt.s32.f32 %v3071
    %v3088 = vcvt.s32.f32 %v3072
    %v3089 = vcvt.s32.f32 %v3073
    %v3090 = vadd.f32 %v3074, 0.0
    %v3091 = vadd.f32 %v3075, 0.0
    %v3092 = vadd.f32 %v3076, 0.0
    %v3093 = vadd.f32 %v3077, 0.0
    %v3094 = vadd.f32 %v3078, 0.0
    %v3095 = vadd.f32 %v3079, 0.0
    %v3096 = vadd.f32 %v3080, 0.0
    %v3097 = vadd.f32 %v3081, 0.0
    %v3098 = vadd.f32 %v3082, 0.0
    %v3099 = vadd.f32 %v3083, 0.0
    %v3100 = vadd.f32 %v3084, 0.0
    %v3101 = vadd.f32 %v3085, 0.0
    %v3102 = vadd.f32 %v3086, 0.0
    %v3103 = vadd.f32 %v3087, 0.0
    %v3104 = vadd.f32 %v3088, 0.0
    %v3105 = vadd.f32 %v3089, 0.0
    %v3106 = vsel %vm3042, -inf, %v2691
    %v3107 = vsel %vm3043, -inf, %v2693
    %v3108 = vsel %vm3044, -inf, %v2695
    %v3109 = vsel %vm3045, -inf, %v2697
    %v3110 = vsel %vm3046, -inf, %v2699
    %v3111 = vsel %vm3047, -inf, %v2701
    %v3112 = vsel %vm3048, -inf, %v2703
    %v3113 = vsel %vm3049, -inf, %v2705
    %v3114 = vsel %vm3050, -inf, %v2707
    %v3115 = vsel %vm3051, -inf, %v2709
    %v3116 = vsel %vm3052, -inf, %v2711
    %v3117 = vsel %vm3053, -inf, %v2713
    %v3118 = vsel %vm3054, -inf, %v2715
    %v3119 = vsel %vm3055, -inf, %v2717
    %v3120 = vsel %vm3056, -inf, %v2719
    %v3121 = vsel %vm3057, -inf, %v2721
    %vm3122 = vcmp.eq.f32.partialorder %v2755, %v3026
    %vm3123 = vcmp.eq.f32.partialorder %v2757, %v3027
    %vm3124 = vcmp.eq.f32.partialorder %v2759, %v3028
    %vm3125 = vcmp.eq.f32.partialorder %v2761, %v3029
    %vm3126 = vcmp.eq.f32.partialorder %v2763, %v3030
    %vm3127 = vcmp.eq.f32.partialorder %v2765, %v3031
    %vm3128 = vcmp.eq.f32.partialorder %v2767, %v3032
    %vm3129 = vcmp.eq.f32.partialorder %v2769, %v3033
    %vm3130 = vcmp.eq.f32.partialorder %v2771, %v3034
    %vm3131 = vcmp.eq.f32.partialorder %v2773, %v3035
    %vm3132 = vcmp.eq.f32.partialorder %v2775, %v3036
    %vm3133 = vcmp.eq.f32.partialorder %v2777, %v3037
    %vm3134 = vcmp.eq.f32.partialorder %v2779, %v3038
    %vm3135 = vcmp.eq.f32.partialorder %v2781, %v3039
    %vm3136 = vcmp.eq.f32.partialorder %v2783, %v3040
    %vm3137 = vcmp.eq.f32.partialorder %v2785, %v3041
    %vm3138 = vmxor %vm3042, 1
    %vm3139 = vmxor %vm3043, 1
    %vm3140 = vmxor %vm3044, 1
    %vm3141 = vmxor %vm3045, 1
    %vm3142 = vmxor %vm3046, 1
    %vm3143 = vmxor %vm3047, 1
    %vm3144 = vmxor %vm3048, 1
    %vm3145 = vmxor %vm3049, 1
    %vm3146 = vmxor %vm3050, 1
    %vm3147 = vmxor %vm3051, 1
    %vm3148 = vmxor %vm3052, 1
    %vm3149 = vmxor %vm3053, 1
    %vm3150 = vmxor %vm3054, 1
    %vm3151 = vmxor %vm3055, 1
    %vm3152 = vmxor %vm3056, 1
    %vm3153 = vmxor %vm3057, 1
    %vm3154 = vmand %vm3122, %vm3138
    %vm3155 = vmand %vm3123, %vm3139
    %vm3156 = vmand %vm3124, %vm3140
    %vm3157 = vmand %vm3125, %vm3141
    %vm3158 = vmand %vm3126, %vm3142
    %vm3159 = vmand %vm3127, %vm3143
    %vm3160 = vmand %vm3128, %vm3144
    %vm3161 = vmand %vm3129, %vm3145
    %vm3162 = vmand %vm3130, %vm3146
    %vm3163 = vmand %vm3131, %vm3147
    %vm3164 = vmand %vm3132, %vm3148
    %vm3165 = vmand %vm3133, %vm3149
    %vm3166 = vmand %vm3134, %vm3150
    %vm3167 = vmand %vm3135, %vm3151
    %vm3168 = vmand %vm3136, %vm3152
    %vm3169 = vmand %vm3137, %vm3153
    %v3170 = vsel %vm3154, 1, 0
    %v3171 = vsel %vm3155, 1, 0
    %v3172 = vsel %vm3156, 1, 0
    %v3173 = vsel %vm3157, 1, 0
    %v3174 = vsel %vm3158, 1, 0
    %v3175 = vsel %vm3159, 1, 0
    %v3176 = vsel %vm3160, 1, 0
    %v3177 = vsel %vm3161, 1, 0
    %v3178 = vsel %vm3162, 1, 0
    %v3179 = vsel %vm3163, 1, 0
    %v3180 = vsel %vm3164, 1, 0
    %v3181 = vsel %vm3165, 1, 0
    %v3182 = vsel %vm3166, 1, 0
    %v3183 = vsel %vm3167, 1, 0
    %v3184 = vsel %vm3168, 1, 0
    %v3185 = vsel %vm3169, 1, 0
    %v3186 = vcvt.s32.f32 %v3170
    %v3187 = vcvt.s32.f32 %v3171
    %v3188 = vcvt.s32.f32 %v3172
    %v3189 = vcvt.s32.f32 %v3173
    %v3190 = vcvt.s32.f32 %v3174
    %v3191 = vcvt.s32.f32 %v3175
    %v3192 = vcvt.s32.f32 %v3176
    %v3193 = vcvt.s32.f32 %v3177
    %v3194 = vcvt.s32.f32 %v3178
    %v3195 = vcvt.s32.f32 %v3179
    %v3196 = vcvt.s32.f32 %v3180
    %v3197 = vcvt.s32.f32 %v3181
    %v3198 = vcvt.s32.f32 %v3182
    %v3199 = vcvt.s32.f32 %v3183
    %v3200 = vcvt.s32.f32 %v3184
    %v3201 = vcvt.s32.f32 %v3185
    %v3202 = vadd.f32 %v3186, 0.0
    %v3203 = vadd.f32 %v3187, 0.0
    %v3204 = vadd.f32 %v3188, 0.0
    %v3205 = vadd.f32 %v3189, 0.0
    %v3206 = vadd.f32 %v3190, 0.0
    %v3207 = vadd.f32 %v3191, 0.0
    %v3208 = vadd.f32 %v3192, 0.0
    %v3209 = vadd.f32 %v3193, 0.0
    %v3210 = vadd.f32 %v3194, 0.0
    %v3211 = vadd.f32 %v3195, 0.0
    %v3212 = vadd.f32 %v3196, 0.0
    %v3213 = vadd.f32 %v3197, 0.0
    %v3214 = vadd.f32 %v3198, 0.0
    %v3215 = vadd.f32 %v3199, 0.0
    %v3216 = vadd.f32 %v3200, 0.0
    %v3217 = vadd.f32 %v3201, 0.0
    %v3218 = vsel %vm3154, -inf, %v2755
    %v3219 = vsel %vm3155, -inf, %v2757
    %v3220 = vsel %vm3156, -inf, %v2759
    %v3221 = vsel %vm3157, -inf, %v2761
    %v3222 = vsel %vm3158, -inf, %v2763
    %v3223 = vsel %vm3159, -inf, %v2765
    %v3224 = vsel %vm3160, -inf, %v2767
    %v3225 = vsel %vm3161, -inf, %v2769
    %v3226 = vsel %vm3162, -inf, %v2771
    %v3227 = vsel %vm3163, -inf, %v2773
    %v3228 = vsel %vm3164, -inf, %v2775
    %v3229 = vsel %vm3165, -inf, %v2777
    %v3230 = vsel %vm3166, -inf, %v2779
    %v3231 = vsel %vm3167, -inf, %v2781
    %v3232 = vsel %vm3168, -inf, %v2783
    %v3233 = vsel %vm3169, -inf, %v2785
    %vm3234 = vmor %vm3042, %vm3154
    %vm3235 = vmor %vm3043, %vm3155
    %vm3236 = vmor %vm3044, %vm3156
    %vm3237 = vmor %vm3045, %vm3157
    %vm3238 = vmor %vm3046, %vm3158
    %vm3239 = vmor %vm3047, %vm3159
    %vm3240 = vmor %vm3048, %vm3160
    %vm3241 = vmor %vm3049, %vm3161
    %vm3242 = vmor %vm3050, %vm3162
    %vm3243 = vmor %vm3051, %vm3163
    %vm3244 = vmor %vm3052, %vm3164
    %vm3245 = vmor %vm3053, %vm3165
    %vm3246 = vmor %vm3054, %vm3166
    %vm3247 = vmor %vm3055, %vm3167
    %vm3248 = vmor %vm3056, %vm3168
    %vm3249 = vmor %vm3057, %vm3169
    %vm3250 = vcmp.eq.f32.partialorder %v2819, %v3026
    %vm3251 = vcmp.eq.f32.partialorder %v2821, %v3027
    %vm3252 = vcmp.eq.f32.partialorder %v2823, %v3028
    %vm3253 = vcmp.eq.f32.partialorder %v2825, %v3029
    %vm3254 = vcmp.eq.f32.partialorder %v2827, %v3030
    %vm3255 = vcmp.eq.f32.partialorder %v2829, %v3031
    %vm3256 = vcmp.eq.f32.partialorder %v2831, %v3032
    %vm3257 = vcmp.eq.f32.partialorder %v2833, %v3033
    %vm3258 = vcmp.eq.f32.partialorder %v2835, %v3034
    %vm3259 = vcmp.eq.f32.partialorder %v2837, %v3035
    %vm3260 = vcmp.eq.f32.partialorder %v2839, %v3036
    %vm3261 = vcmp.eq.f32.partialorder %v2841, %v3037
    %vm3262 = vcmp.eq.f32.partialorder %v2843, %v3038
    %vm3263 = vcmp.eq.f32.partialorder %v2845, %v3039
    %vm3264 = vcmp.eq.f32.partialorder %v2847, %v3040
    %vm3265 = vcmp.eq.f32.partialorder %v2849, %v3041
    %vm3266 = vmxor %vm3234, 1
    %vm3267 = vmxor %vm3235, 1
    %vm3268 = vmxor %vm3236, 1
    %vm3269 = vmxor %vm3237, 1
    %vm3270 = vmxor %vm3238, 1
    %vm3271 = vmxor %vm3239, 1
    %vm3272 = vmxor %vm3240, 1
    %vm3273 = vmxor %vm3241, 1
    %vm3274 = vmxor %vm3242, 1
    %vm3275 = vmxor %vm3243, 1
    %vm3276 = vmxor %vm3244, 1
    %vm3277 = vmxor %vm3245, 1
    %vm3278 = vmxor %vm3246, 1
    %vm3279 = vmxor %vm3247, 1
    %vm3280 = vmxor %vm3248, 1
    %vm3281 = vmxor %vm3249, 1
    %vm3282 = vmand %vm3250, %vm3266
    %vm3283 = vmand %vm3251, %vm3267
    %vm3284 = vmand %vm3252, %vm3268
    %vm3285 = vmand %vm3253, %vm3269
    %vm3286 = vmand %vm3254, %vm3270
    %vm3287 = vmand %vm3255, %vm3271
    %vm3288 = vmand %vm3256, %vm3272
    %vm3289 = vmand %vm3257, %vm3273
    %vm3290 = vmand %vm3258, %vm3274
    %vm3291 = vmand %vm3259, %vm3275
    %vm3292 = vmand %vm3260, %vm3276
    %vm3293 = vmand %vm3261, %vm3277
    %vm3294 = vmand %vm3262, %vm3278
    %vm3295 = vmand %vm3263, %vm3279
    %vm3296 = vmand %vm3264, %vm3280
    %vm3297 = vmand %vm3265, %vm3281
    %v3298 = vsel %vm3282, 1, 0
    %v3299 = vsel %vm3283, 1, 0
    %v3300 = vsel %vm3284, 1, 0
    %v3301 = vsel %vm3285, 1, 0
    %v3302 = vsel %vm3286, 1, 0
    %v3303 = vsel %vm3287, 1, 0
    %v3304 = vsel %vm3288, 1, 0
    %v3305 = vsel %vm3289, 1, 0
    %v3306 = vsel %vm3290, 1, 0
    %v3307 = vsel %vm3291, 1, 0
    %v3308 = vsel %vm3292, 1, 0
    %v3309 = vsel %vm3293, 1, 0
    %v3310 = vsel %vm3294, 1, 0
    %v3311 = vsel %vm3295, 1, 0
    %v3312 = vsel %vm3296, 1, 0
    %v3313 = vsel %vm3297, 1, 0
    %v3314 = vcvt.s32.f32 %v3298
    %v3315 = vcvt.s32.f32 %v3299
    %v3316 = vcvt.s32.f32 %v3300
    %v3317 = vcvt.s32.f32 %v3301
    %v3318 = vcvt.s32.f32 %v3302
    %v3319 = vcvt.s32.f32 %v3303
    %v3320 = vcvt.s32.f32 %v3304
    %v3321 = vcvt.s32.f32 %v3305
    %v3322 = vcvt.s32.f32 %v3306
    %v3323 = vcvt.s32.f32 %v3307
    %v3324 = vcvt.s32.f32 %v3308
    %v3325 = vcvt.s32.f32 %v3309
    %v3326 = vcvt.s32.f32 %v3310
    %v3327 = vcvt.s32.f32 %v3311
    %v3328 = vcvt.s32.f32 %v3312
    %v3329 = vcvt.s32.f32 %v3313
    %v3330 = vadd.f32 %v3314, 0.0
    %v3331 = vadd.f32 %v3315, 0.0
    %v3332 = vadd.f32 %v3316, 0.0
    %v3333 = vadd.f32 %v3317, 0.0
    %v3334 = vadd.f32 %v3318, 0.0
    %v3335 = vadd.f32 %v3319, 0.0
    %v3336 = vadd.f32 %v3320, 0.0
    %v3337 = vadd.f32 %v3321, 0.0
    %v3338 = vadd.f32 %v3322, 0.0
    %v3339 = vadd.f32 %v3323, 0.0
    %v3340 = vadd.f32 %v3324, 0.0
    %v3341 = vadd.f32 %v3325, 0.0
    %v3342 = vadd.f32 %v3326, 0.0
    %v3343 = vadd.f32 %v3327, 0.0
    %v3344 = vadd.f32 %v3328, 0.0
    %v3345 = vadd.f32 %v3329, 0.0
    %v3346 = vsel %vm3282, -inf, %v2819
    %v3347 = vsel %vm3283, -inf, %v2821
    %v3348 = vsel %vm3284, -inf, %v2823
    %v3349 = vsel %vm3285, -inf, %v2825
    %v3350 = vsel %vm3286, -inf, %v2827
    %v3351 = vsel %vm3287, -inf, %v2829
    %v3352 = vsel %vm3288, -inf, %v2831
    %v3353 = vsel %vm3289, -inf, %v2833
    %v3354 = vsel %vm3290, -inf, %v2835
    %v3355 = vsel %vm3291, -inf, %v2837
    %v3356 = vsel %vm3292, -inf, %v2839
    %v3357 = vsel %vm3293, -inf, %v2841
    %v3358 = vsel %vm3294, -inf, %v2843
    %v3359 = vsel %vm3295, -inf, %v2845
    %v3360 = vsel %vm3296, -inf, %v2847
    %v3361 = vsel %vm3297, -inf, %v2849
    %vm3362 = vmor %vm3234, %vm3282
    %vm3363 = vmor %vm3235, %vm3283
    %vm3364 = vmor %vm3236, %vm3284
    %vm3365 = vmor %vm3237, %vm3285
    %vm3366 = vmor %vm3238, %vm3286
    %vm3367 = vmor %vm3239, %vm3287
    %vm3368 = vmor %vm3240, %vm3288
    %vm3369 = vmor %vm3241, %vm3289
    %vm3370 = vmor %vm3242, %vm3290
    %vm3371 = vmor %vm3243, %vm3291
    %vm3372 = vmor %vm3244, %vm3292
    %vm3373 = vmor %vm3245, %vm3293
    %vm3374 = vmor %vm3246, %vm3294
    %vm3375 = vmor %vm3247, %vm3295
    %vm3376 = vmor %vm3248, %vm3296
    %vm3377 = vmor %vm3249, %vm3297
    %vm3378 = vcmp.eq.f32.partialorder %v2883, %v3026
    %vm3379 = vcmp.eq.f32.partialorder %v2885, %v3027
    %vm3380 = vcmp.eq.f32.partialorder %v2887, %v3028
    %vm3381 = vcmp.eq.f32.partialorder %v2889, %v3029
    %vm3382 = vcmp.eq.f32.partialorder %v2891, %v3030
    %vm3383 = vcmp.eq.f32.partialorder %v2893, %v3031
    %vm3384 = vcmp.eq.f32.partialorder %v2895, %v3032
    %vm3385 = vcmp.eq.f32.partialorder %v2897, %v3033
    %vm3386 = vcmp.eq.f32.partialorder %v2899, %v3034
    %vm3387 = vcmp.eq.f32.partialorder %v2901, %v3035
    %vm3388 = vcmp.eq.f32.partialorder %v2903, %v3036
    %vm3389 = vcmp.eq.f32.partialorder %v2905, %v3037
    %vm3390 = vcmp.eq.f32.partialorder %v2907, %v3038
    %vm3391 = vcmp.eq.f32.partialorder %v2909, %v3039
    %vm3392 = vcmp.eq.f32.partialorder %v2911, %v3040
    %vm3393 = vcmp.eq.f32.partialorder %v2913, %v3041
    %vm3394 = vmxor %vm3362, 1
    %vm3395 = vmxor %vm3363, 1
    %vm3396 = vmxor %vm3364, 1
    %vm3397 = vmxor %vm3365, 1
    %vm3398 = vmxor %vm3366, 1
    %vm3399 = vmxor %vm3367, 1
    %vm3400 = vmxor %vm3368, 1
    %vm3401 = vmxor %vm3369, 1
    %vm3402 = vmxor %vm3370, 1
    %vm3403 = vmxor %vm3371, 1
    %vm3404 = vmxor %vm3372, 1
    %vm3405 = vmxor %vm3373, 1
    %vm3406 = vmxor %vm3374, 1
    %vm3407 = vmxor %vm3375, 1
    %vm3408 = vmxor %vm3376, 1
    %vm3409 = vmxor %vm3377, 1
    %vm3410 = vmand %vm3378, %vm3394
    %vm3411 = vmand %vm3379, %vm3395
    %vm3412 = vmand %vm3380, %vm3396
    %vm3413 = vmand %vm3381, %vm3397
    %vm3414 = vmand %vm3382, %vm3398
    %vm3415 = vmand %vm3383, %vm3399
    %vm3416 = vmand %vm3384, %vm3400
    %vm3417 = vmand %vm3385, %vm3401
    %vm3418 = vmand %vm3386, %vm3402
    %vm3419 = vmand %vm3387, %vm3403
    %vm3420 = vmand %vm3388, %vm3404
    %vm3421 = vmand %vm3389, %vm3405
    %vm3422 = vmand %vm3390, %vm3406
    %vm3423 = vmand %vm3391, %vm3407
    %vm3424 = vmand %vm3392, %vm3408
    %vm3425 = vmand %vm3393, %vm3409
    %v3426 = vsel %vm3410, 1, 0
    %v3427 = vsel %vm3411, 1, 0
    %v3428 = vsel %vm3412, 1, 0
    %v3429 = vsel %vm3413, 1, 0
    %v3430 = vsel %vm3414, 1, 0
    %v3431 = vsel %vm3415, 1, 0
    %v3432 = vsel %vm3416, 1, 0
    %v3433 = vsel %vm3417, 1, 0
    %v3434 = vsel %vm3418, 1, 0
    %v3435 = vsel %vm3419, 1, 0
    %v3436 = vsel %vm3420, 1, 0
    %v3437 = vsel %vm3421, 1, 0
    %v3438 = vsel %vm3422, 1, 0
    %v3439 = vsel %vm3423, 1, 0
    %v3440 = vsel %vm3424, 1, 0
    %v3441 = vsel %vm3425, 1, 0
    %v3442 = vcvt.s32.f32 %v3426
    %v3443 = vcvt.s32.f32 %v3427
    %v3444 = vcvt.s32.f32 %v3428
    %v3445 = vcvt.s32.f32 %v3429
    %v3446 = vcvt.s32.f32 %v3430
    %v3447 = vcvt.s32.f32 %v3431
    %v3448 = vcvt.s32.f32 %v3432
    %v3449 = vcvt.s32.f32 %v3433
    %v3450 = vcvt.s32.f32 %v3434
    %v3451 = vcvt.s32.f32 %v3435
    %v3452 = vcvt.s32.f32 %v3436
    %v3453 = vcvt.s32.f32 %v3437
    %v3454 = vcvt.s32.f32 %v3438
    %v3455 = vcvt.s32.f32 %v3439
    %v3456 = vcvt.s32.f32 %v3440
    %v3457 = vcvt.s32.f32 %v3441
    %v3458 = vadd.f32 %v3442, 0.0
    %v3459 = vadd.f32 %v3443, 0.0
    %v3460 = vadd.f32 %v3444, 0.0
    %v3461 = vadd.f32 %v3445, 0.0
    %v3462 = vadd.f32 %v3446, 0.0
    %v3463 = vadd.f32 %v3447, 0.0
    %v3464 = vadd.f32 %v3448, 0.0
    %v3465 = vadd.f32 %v3449, 0.0
    %v3466 = vadd.f32 %v3450, 0.0
    %v3467 = vadd.f32 %v3451, 0.0
    %v3468 = vadd.f32 %v3452, 0.0
    %v3469 = vadd.f32 %v3453, 0.0
    %v3470 = vadd.f32 %v3454, 0.0
    %v3471 = vadd.f32 %v3455, 0.0
    %v3472 = vadd.f32 %v3456, 0.0
    %v3473 = vadd.f32 %v3457, 0.0
    %v3474 = vsel %vm3410, -inf, %v2883
    %v3475 = vsel %vm3411, -inf, %v2885
    %v3476 = vsel %vm3412, -inf, %v2887
    %v3477 = vsel %vm3413, -inf, %v2889
    %v3478 = vsel %vm3414, -inf, %v2891
    %v3479 = vsel %vm3415, -inf, %v2893
    %v3480 = vsel %vm3416, -inf, %v2895
    %v3481 = vsel %vm3417, -inf, %v2897
    %v3482 = vsel %vm3418, -inf, %v2899
    %v3483 = vsel %vm3419, -inf, %v2901
    %v3484 = vsel %vm3420, -inf, %v2903
    %v3485 = vsel %vm3421, -inf, %v2905
    %v3486 = vsel %vm3422, -inf, %v2907
    %v3487 = vsel %vm3423, -inf, %v2909
    %v3488 = vsel %vm3424, -inf, %v2911
    %v3489 = vsel %vm3425, -inf, %v2913
    %vm3490 = vmor %vm3362, %vm3410
    %vm3491 = vmor %vm3363, %vm3411
    %vm3492 = vmor %vm3364, %vm3412
    %vm3493 = vmor %vm3365, %vm3413
    %vm3494 = vmor %vm3366, %vm3414
    %vm3495 = vmor %vm3367, %vm3415
    %vm3496 = vmor %vm3368, %vm3416
    %vm3497 = vmor %vm3369, %vm3417
    %vm3498 = vmor %vm3370, %vm3418
    %vm3499 = vmor %vm3371, %vm3419
    %vm3500 = vmor %vm3372, %vm3420
    %vm3501 = vmor %vm3373, %vm3421
    %vm3502 = vmor %vm3374, %vm3422
    %vm3503 = vmor %vm3375, %vm3423
    %vm3504 = vmor %vm3376, %vm3424
    %vm3505 = vmor %vm3377, %vm3425
    %vm3506 = vcmp.eq.f32.partialorder %v2947, %v3026
    %vm3507 = vcmp.eq.f32.partialorder %v2949, %v3027
    %vm3508 = vcmp.eq.f32.partialorder %v2951, %v3028
    %vm3509 = vcmp.eq.f32.partialorder %v2953, %v3029
    %vm3510 = vcmp.eq.f32.partialorder %v2955, %v3030
    %vm3511 = vcmp.eq.f32.partialorder %v2957, %v3031
    %vm3512 = vcmp.eq.f32.partialorder %v2959, %v3032
    %vm3513 = vcmp.eq.f32.partialorder %v2961, %v3033
    %vm3514 = vcmp.eq.f32.partialorder %v2963, %v3034
    %vm3515 = vcmp.eq.f32.partialorder %v2965, %v3035
    %vm3516 = vcmp.eq.f32.partialorder %v2967, %v3036
    %vm3517 = vcmp.eq.f32.partialorder %v2969, %v3037
    %vm3518 = vcmp.eq.f32.partialorder %v2971, %v3038
    %vm3519 = vcmp.eq.f32.partialorder %v2973, %v3039
    %vm3520 = vcmp.eq.f32.partialorder %v2975, %v3040
    %vm3521 = vcmp.eq.f32.partialorder %v2977, %v3041
    %vm3522 = vmxor %vm3490, 1
    %vm3523 = vmxor %vm3491, 1
    %vm3524 = vmxor %vm3492, 1
    %vm3525 = vmxor %vm3493, 1
    %vm3526 = vmxor %vm3494, 1
    %vm3527 = vmxor %vm3495, 1
    %vm3528 = vmxor %vm3496, 1
    %vm3529 = vmxor %vm3497, 1
    %vm3530 = vmxor %vm3498, 1
    %vm3531 = vmxor %vm3499, 1
    %vm3532 = vmxor %vm3500, 1
    %vm3533 = vmxor %vm3501, 1
    %vm3534 = vmxor %vm3502, 1
    %vm3535 = vmxor %vm3503, 1
    %vm3536 = vmxor %vm3504, 1
    %vm3537 = vmxor %vm3505, 1
    %vm3538 = vmand %vm3506, %vm3522
    %vm3539 = vmand %vm3507, %vm3523
    %vm3540 = vmand %vm3508, %vm3524
    %vm3541 = vmand %vm3509, %vm3525
    %vm3542 = vmand %vm3510, %vm3526
    %vm3543 = vmand %vm3511, %vm3527
    %vm3544 = vmand %vm3512, %vm3528
    %vm3545 = vmand %vm3513, %vm3529
    %vm3546 = vmand %vm3514, %vm3530
    %vm3547 = vmand %vm3515, %vm3531
    %vm3548 = vmand %vm3516, %vm3532
    %vm3549 = vmand %vm3517, %vm3533
    %vm3550 = vmand %vm3518, %vm3534
    %vm3551 = vmand %vm3519, %vm3535
    %vm3552 = vmand %vm3520, %vm3536
    %vm3553 = vmand %vm3521, %vm3537
    %v3554 = vsel %vm3538, 1, 0
    %v3555 = vsel %vm3539, 1, 0
    %v3556 = vsel %vm3540, 1, 0
    %v3557 = vsel %vm3541, 1, 0
    %v3558 = vsel %vm3542, 1, 0
    %v3559 = vsel %vm3543, 1, 0
    %v3560 = vsel %vm3544, 1, 0
    %v3561 = vsel %vm3545, 1, 0
    %v3562 = vsel %vm3546, 1, 0
    %v3563 = vsel %vm3547, 1, 0
    %v3564 = vsel %vm3548, 1, 0
    %v3565 = vsel %vm3549, 1, 0
    %v3566 = vsel %vm3550, 1, 0
    %v3567 = vsel %vm3551, 1, 0
    %v3568 = vsel %vm3552, 1, 0
    %v3569 = vsel %vm3553, 1, 0
    %v3570 = vcvt.s32.f32 %v3554
    %v3571 = vcvt.s32.f32 %v3555
    %v3572 = vcvt.s32.f32 %v3556
    %v3573 = vcvt.s32.f32 %v3557
    %v3574 = vcvt.s32.f32 %v3558
    %v3575 = vcvt.s32.f32 %v3559
    %v3576 = vcvt.s32.f32 %v3560
    %v3577 = vcvt.s32.f32 %v3561
    %v3578 = vcvt.s32.f32 %v3562
    %v3579 = vcvt.s32.f32 %v3563
    %v3580 = vcvt.s32.f32 %v3564
    %v3581 = vcvt.s32.f32 %v3565
    %v3582 = vcvt.s32.f32 %v3566
    %v3583 = vcvt.s32.f32 %v3567
    %v3584 = vcvt.s32.f32 %v3568
    %v3585 = vcvt.s32.f32 %v3569
    %v3586 = vadd.f32 %v3570, 0.0
    %v3587 = vadd.f32 %v3571, 0.0
    %v3588 = vadd.f32 %v3572, 0.0
    %v3589 = vadd.f32 %v3573, 0.0
    %v3590 = vadd.f32 %v3574, 0.0
    %v3591 = vadd.f32 %v3575, 0.0
    %v3592 = vadd.f32 %v3576, 0.0
    %v3593 = vadd.f32 %v3577, 0.0
    %v3594 = vadd.f32 %v3578, 0.0
    %v3595 = vadd.f32 %v3579, 0.0
    %v3596 = vadd.f32 %v3580, 0.0
    %v3597 = vadd.f32 %v3581, 0.0
    %v3598 = vadd.f32 %v3582, 0.0
    %v3599 = vadd.f32 %v3583, 0.0
    %v3600 = vadd.f32 %v3584, 0.0
    %v3601 = vadd.f32 %v3585, 0.0
    %v3602 = vsel %vm3538, -inf, %v2947
    %v3603 = vsel %vm3539, -inf, %v2949
    %v3604 = vsel %vm3540, -inf, %v2951
    %v3605 = vsel %vm3541, -inf, %v2953
    %v3606 = vsel %vm3542, -inf, %v2955
    %v3607 = vsel %vm3543, -inf, %v2957
    %v3608 = vsel %vm3544, -inf, %v2959
    %v3609 = vsel %vm3545, -inf, %v2961
    %v3610 = vsel %vm3546, -inf, %v2963
    %v3611 = vsel %vm3547, -inf, %v2965
    %v3612 = vsel %vm3548, -inf, %v2967
    %v3613 = vsel %vm3549, -inf, %v2969
    %v3614 = vsel %vm3550, -inf, %v2971
    %v3615 = vsel %vm3551, -inf, %v2973
    %v3616 = vsel %vm3552, -inf, %v2975
    %v3617 = vsel %vm3553, -inf, %v2977
    %v3618 = vmax.f32 %v3106, %v3218
    %v3619 = vmax.f32 %v3107, %v3219
    %v3620 = vmax.f32 %v3108, %v3220
    %v3621 = vmax.f32 %v3109, %v3221
    %v3622 = vmax.f32 %v3110, %v3222
    %v3623 = vmax.f32 %v3111, %v3223
    %v3624 = vmax.f32 %v3112, %v3224
    %v3625 = vmax.f32 %v3113, %v3225
    %v3626 = vmax.f32 %v3114, %v3226
    %v3627 = vmax.f32 %v3115, %v3227
    %v3628 = vmax.f32 %v3116, %v3228
    %v3629 = vmax.f32 %v3117, %v3229
    %v3630 = vmax.f32 %v3118, %v3230
    %v3631 = vmax.f32 %v3119, %v3231
    %v3632 = vmax.f32 %v3120, %v3232
    %v3633 = vmax.f32 %v3121, %v3233
    %v3634 = vmax.f32 %v3618, %v3346
    %v3635 = vmax.f32 %v3619, %v3347
    %v3636 = vmax.f32 %v3620, %v3348
    %v3637 = vmax.f32 %v3621, %v3349
    %v3638 = vmax.f32 %v3622, %v3350
    %v3639 = vmax.f32 %v3623, %v3351
    %v3640 = vmax.f32 %v3624, %v3352
    %v3641 = vmax.f32 %v3625, %v3353
    %v3642 = vmax.f32 %v3626, %v3354
    %v3643 = vmax.f32 %v3627, %v3355
    %v3644 = vmax.f32 %v3628, %v3356
    %v3645 = vmax.f32 %v3629, %v3357
    %v3646 = vmax.f32 %v3630, %v3358
    %v3647 = vmax.f32 %v3631, %v3359
    %v3648 = vmax.f32 %v3632, %v3360
    %v3649 = vmax.f32 %v3633, %v3361
    %v3650 = vmax.f32 %v3634, %v3474
    %v3651 = vmax.f32 %v3635, %v3475
    %v3652 = vmax.f32 %v3636, %v3476
    %v3653 = vmax.f32 %v3637, %v3477
    %v3654 = vmax.f32 %v3638, %v3478
    %v3655 = vmax.f32 %v3639, %v3479
    %v3656 = vmax.f32 %v3640, %v3480
    %v3657 = vmax.f32 %v3641, %v3481
    %v3658 = vmax.f32 %v3642, %v3482
    %v3659 = vmax.f32 %v3643, %v3483
    %v3660 = vmax.f32 %v3644, %v3484
    %v3661 = vmax.f32 %v3645, %v3485
    %v3662 = vmax.f32 %v3646, %v3486
    %v3663 = vmax.f32 %v3647, %v3487
    %v3664 = vmax.f32 %v3648, %v3488
    %v3665 = vmax.f32 %v3649, %v3489
    %v3666 = vmax.f32 %v3650, %v3602
    %v3667 = vmax.f32 %v3651, %v3603
    %v3668 = vmax.f32 %v3652, %v3604
    %v3669 = vmax.f32 %v3653, %v3605
    %v3670 = vmax.f32 %v3654, %v3606
    %v3671 = vmax.f32 %v3655, %v3607
    %v3672 = vmax.f32 %v3656, %v3608
    %v3673 = vmax.f32 %v3657, %v3609
    %v3674 = vmax.f32 %v3658, %v3610
    %v3675 = vmax.f32 %v3659, %v3611
    %v3676 = vmax.f32 %v3660, %v3612
    %v3677 = vmax.f32 %v3661, %v3613
    %v3678 = vmax.f32 %v3662, %v3614
    %v3679 = vmax.f32 %v3663, %v3615
    %v3680 = vmax.f32 %v3664, %v3616
    %v3681 = vmax.f32 %v3665, %v3617
    %vm3682 = vcmp.eq.f32.partialorder %v3106, %v3666
    %vm3683 = vcmp.eq.f32.partialorder %v3107, %v3667
    %vm3684 = vcmp.eq.f32.partialorder %v3108, %v3668
    %vm3685 = vcmp.eq.f32.partialorder %v3109, %v3669
    %vm3686 = vcmp.eq.f32.partialorder %v3110, %v3670
    %vm3687 = vcmp.eq.f32.partialorder %v3111, %v3671
    %vm3688 = vcmp.eq.f32.partialorder %v3112, %v3672
    %vm3689 = vcmp.eq.f32.partialorder %v3113, %v3673
    %vm3690 = vcmp.eq.f32.partialorder %v3114, %v3674
    %vm3691 = vcmp.eq.f32.partialorder %v3115, %v3675
    %vm3692 = vcmp.eq.f32.partialorder %v3116, %v3676
    %vm3693 = vcmp.eq.f32.partialorder %v3117, %v3677
    %vm3694 = vcmp.eq.f32.partialorder %v3118, %v3678
    %vm3695 = vcmp.eq.f32.partialorder %v3119, %v3679
    %vm3696 = vcmp.eq.f32.partialorder %v3120, %v3680
    %vm3697 = vcmp.eq.f32.partialorder %v3121, %v3681
    %v3698 = vsel %vm3682, 1, 0
    %v3699 = vsel %vm3683, 1, 0
    %v3700 = vsel %vm3684, 1, 0
    %v3701 = vsel %vm3685, 1, 0
    %v3702 = vsel %vm3686, 1, 0
    %v3703 = vsel %vm3687, 1, 0
    %v3704 = vsel %vm3688, 1, 0
    %v3705 = vsel %vm3689, 1, 0
    %v3706 = vsel %vm3690, 1, 0
    %v3707 = vsel %vm3691, 1, 0
    %v3708 = vsel %vm3692, 1, 0
    %v3709 = vsel %vm3693, 1, 0
    %v3710 = vsel %vm3694, 1, 0
    %v3711 = vsel %vm3695, 1, 0
    %v3712 = vsel %vm3696, 1, 0
    %v3713 = vsel %vm3697, 1, 0
    %v3714 = vcvt.s32.f32 %v3698
    %v3715 = vcvt.s32.f32 %v3699
    %v3716 = vcvt.s32.f32 %v3700
    %v3717 = vcvt.s32.f32 %v3701
    %v3718 = vcvt.s32.f32 %v3702
    %v3719 = vcvt.s32.f32 %v3703
    %v3720 = vcvt.s32.f32 %v3704
    %v3721 = vcvt.s32.f32 %v3705
    %v3722 = vcvt.s32.f32 %v3706
    %v3723 = vcvt.s32.f32 %v3707
    %v3724 = vcvt.s32.f32 %v3708
    %v3725 = vcvt.s32.f32 %v3709
    %v3726 = vcvt.s32.f32 %v3710
    %v3727 = vcvt.s32.f32 %v3711
    %v3728 = vcvt.s32.f32 %v3712
    %v3729 = vcvt.s32.f32 %v3713
    %v3730 = vadd.f32 %v3090, %v3714
    %v3731 = vadd.f32 %v3091, %v3715
    %v3732 = vadd.f32 %v3092, %v3716
    %v3733 = vadd.f32 %v3093, %v3717
    %v3734 = vadd.f32 %v3094, %v3718
    %v3735 = vadd.f32 %v3095, %v3719
    %v3736 = vadd.f32 %v3096, %v3720
    %v3737 = vadd.f32 %v3097, %v3721
    %v3738 = vadd.f32 %v3098, %v3722
    %v3739 = vadd.f32 %v3099, %v3723
    %v3740 = vadd.f32 %v3100, %v3724
    %v3741 = vadd.f32 %v3101, %v3725
    %v3742 = vadd.f32 %v3102, %v3726
    %v3743 = vadd.f32 %v3103, %v3727
    %v3744 = vadd.f32 %v3104, %v3728
    %v3745 = vadd.f32 %v3105, %v3729
    %v3746 = vsel %vm3682, -inf, %v3106
    %v3747 = vsel %vm3683, -inf, %v3107
    %v3748 = vsel %vm3684, -inf, %v3108
    %v3749 = vsel %vm3685, -inf, %v3109
    %v3750 = vsel %vm3686, -inf, %v3110
    %v3751 = vsel %vm3687, -inf, %v3111
    %v3752 = vsel %vm3688, -inf, %v3112
    %v3753 = vsel %vm3689, -inf, %v3113
    %v3754 = vsel %vm3690, -inf, %v3114
    %v3755 = vsel %vm3691, -inf, %v3115
    %v3756 = vsel %vm3692, -inf, %v3116
    %v3757 = vsel %vm3693, -inf, %v3117
    %v3758 = vsel %vm3694, -inf, %v3118
    %v3759 = vsel %vm3695, -inf, %v3119
    %v3760 = vsel %vm3696, -inf, %v3120
    %v3761 = vsel %vm3697, -inf, %v3121
    %vm3762 = vcmp.eq.f32.partialorder %v3218, %v3666
    %vm3763 = vcmp.eq.f32.partialorder %v3219, %v3667
    %vm3764 = vcmp.eq.f32.partialorder %v3220, %v3668
    %vm3765 = vcmp.eq.f32.partialorder %v3221, %v3669
    %vm3766 = vcmp.eq.f32.partialorder %v3222, %v3670
    %vm3767 = vcmp.eq.f32.partialorder %v3223, %v3671
    %vm3768 = vcmp.eq.f32.partialorder %v3224, %v3672
    %vm3769 = vcmp.eq.f32.partialorder %v3225, %v3673
    %vm3770 = vcmp.eq.f32.partialorder %v3226, %v3674
    %vm3771 = vcmp.eq.f32.partialorder %v3227, %v3675
    %vm3772 = vcmp.eq.f32.partialorder %v3228, %v3676
    %vm3773 = vcmp.eq.f32.partialorder %v3229, %v3677
    %vm3774 = vcmp.eq.f32.partialorder %v3230, %v3678
    %vm3775 = vcmp.eq.f32.partialorder %v3231, %v3679
    %vm3776 = vcmp.eq.f32.partialorder %v3232, %v3680
    %vm3777 = vcmp.eq.f32.partialorder %v3233, %v3681
    %vm3778 = vmxor %vm3682, 1
    %vm3779 = vmxor %vm3683, 1
    %vm3780 = vmxor %vm3684, 1
    %vm3781 = vmxor %vm3685, 1
    %vm3782 = vmxor %vm3686, 1
    %vm3783 = vmxor %vm3687, 1
    %vm3784 = vmxor %vm3688, 1
    %vm3785 = vmxor %vm3689, 1
    %vm3786 = vmxor %vm3690, 1
    %vm3787 = vmxor %vm3691, 1
    %vm3788 = vmxor %vm3692, 1
    %vm3789 = vmxor %vm3693, 1
    %vm3790 = vmxor %vm3694, 1
    %vm3791 = vmxor %vm3695, 1
    %vm3792 = vmxor %vm3696, 1
    %vm3793 = vmxor %vm3697, 1
    %vm3794 = vmand %vm3762, %vm3778
    %vm3795 = vmand %vm3763, %vm3779
    %vm3796 = vmand %vm3764, %vm3780
    %vm3797 = vmand %vm3765, %vm3781
    %vm3798 = vmand %vm3766, %vm3782
    %vm3799 = vmand %vm3767, %vm3783
    %vm3800 = vmand %vm3768, %vm3784
    %vm3801 = vmand %vm3769, %vm3785
    %vm3802 = vmand %vm3770, %vm3786
    %vm3803 = vmand %vm3771, %vm3787
    %vm3804 = vmand %vm3772, %vm3788
    %vm3805 = vmand %vm3773, %vm3789
    %vm3806 = vmand %vm3774, %vm3790
    %vm3807 = vmand %vm3775, %vm3791
    %vm3808 = vmand %vm3776, %vm3792
    %vm3809 = vmand %vm3777, %vm3793
    %v3810 = vsel %vm3794, 1, 0
    %v3811 = vsel %vm3795, 1, 0
    %v3812 = vsel %vm3796, 1, 0
    %v3813 = vsel %vm3797, 1, 0
    %v3814 = vsel %vm3798, 1, 0
    %v3815 = vsel %vm3799, 1, 0
    %v3816 = vsel %vm3800, 1, 0
    %v3817 = vsel %vm3801, 1, 0
    %v3818 = vsel %vm3802, 1, 0
    %v3819 = vsel %vm3803, 1, 0
    %v3820 = vsel %vm3804, 1, 0
    %v3821 = vsel %vm3805, 1, 0
    %v3822 = vsel %vm3806, 1, 0
    %v3823 = vsel %vm3807, 1, 0
    %v3824 = vsel %vm3808, 1, 0
    %v3825 = vsel %vm3809, 1, 0
    %v3826 = vcvt.s32.f32 %v3810
    %v3827 = vcvt.s32.f32 %v3811
    %v3828 = vcvt.s32.f32 %v3812
    %v3829 = vcvt.s32.f32 %v3813
    %v3830 = vcvt.s32.f32 %v3814
    %v3831 = vcvt.s32.f32 %v3815
    %v3832 = vcvt.s32.f32 %v3816
    %v3833 = vcvt.s32.f32 %v3817
    %v3834 = vcvt.s32.f32 %v3818
    %v3835 = vcvt.s32.f32 %v3819
    %v3836 = vcvt.s32.f32 %v3820
    %v3837 = vcvt.s32.f32 %v3821
    %v3838 = vcvt.s32.f32 %v3822
    %v3839 = vcvt.s32.f32 %v3823
    %v3840 = vcvt.s32.f32 %v3824
    %v3841 = vcvt.s32.f32 %v3825
    %v3842 = vadd.f32 %v3202, %v3826
    %v3843 = vadd.f32 %v3203, %v3827
    %v3844 = vadd.f32 %v3204, %v3828
    %v3845 = vadd.f32 %v3205, %v3829
    %v3846 = vadd.f32 %v3206, %v3830
    %v3847 = vadd.f32 %v3207, %v3831
    %v3848 = vadd.f32 %v3208, %v3832
    %v3849 = vadd.f32 %v3209, %v3833
    %v3850 = vadd.f32 %v3210, %v3834
    %v3851 = vadd.f32 %v3211, %v3835
    %v3852 = vadd.f32 %v3212, %v3836
    %v3853 = vadd.f32 %v3213, %v3837
    %v3854 = vadd.f32 %v3214, %v3838
    %v3855 = vadd.f32 %v3215, %v3839
    %v3856 = vadd.f32 %v3216, %v3840
    %v3857 = vadd.f32 %v3217, %v3841
    %v3858 = vsel %vm3794, -inf, %v3218
    %v3859 = vsel %vm3795, -inf, %v3219
    %v3860 = vsel %vm3796, -inf, %v3220
    %v3861 = vsel %vm3797, -inf, %v3221
    %v3862 = vsel %vm3798, -inf, %v3222
    %v3863 = vsel %vm3799, -inf, %v3223
    %v3864 = vsel %vm3800, -inf, %v3224
    %v3865 = vsel %vm3801, -inf, %v3225
    %v3866 = vsel %vm3802, -inf, %v3226
    %v3867 = vsel %vm3803, -inf, %v3227
    %v3868 = vsel %vm3804, -inf, %v3228
    %v3869 = vsel %vm3805, -inf, %v3229
    %v3870 = vsel %vm3806, -inf, %v3230
    %v3871 = vsel %vm3807, -inf, %v3231
    %v3872 = vsel %vm3808, -inf, %v3232
    %v3873 = vsel %vm3809, -inf, %v3233
    %vm3874 = vmor %vm3682, %vm3794
    %vm3875 = vmor %vm3683, %vm3795
    %vm3876 = vmor %vm3684, %vm3796
    %vm3877 = vmor %vm3685, %vm3797
    %vm3878 = vmor %vm3686, %vm3798
    %vm3879 = vmor %vm3687, %vm3799
    %vm3880 = vmor %vm3688, %vm3800
    %vm3881 = vmor %vm3689, %vm3801
    %vm3882 = vmor %vm3690, %vm3802
    %vm3883 = vmor %vm3691, %vm3803
    %vm3884 = vmor %vm3692, %vm3804
    %vm3885 = vmor %vm3693, %vm3805
    %vm3886 = vmor %vm3694, %vm3806
    %vm3887 = vmor %vm3695, %vm3807
    %vm3888 = vmor %vm3696, %vm3808
    %vm3889 = vmor %vm3697, %vm3809
    %vm3890 = vcmp.eq.f32.partialorder %v3346, %v3666
    %vm3891 = vcmp.eq.f32.partialorder %v3347, %v3667
    %vm3892 = vcmp.eq.f32.partialorder %v3348, %v3668
    %vm3893 = vcmp.eq.f32.partialorder %v3349, %v3669
    %vm3894 = vcmp.eq.f32.partialorder %v3350, %v3670
    %vm3895 = vcmp.eq.f32.partialorder %v3351, %v3671
    %vm3896 = vcmp.eq.f32.partialorder %v3352, %v3672
    %vm3897 = vcmp.eq.f32.partialorder %v3353, %v3673
    %vm3898 = vcmp.eq.f32.partialorder %v3354, %v3674
    %vm3899 = vcmp.eq.f32.partialorder %v3355, %v3675
    %vm3900 = vcmp.eq.f32.partialorder %v3356, %v3676
    %vm3901 = vcmp.eq.f32.partialorder %v3357, %v3677
    %vm3902 = vcmp.eq.f32.partialorder %v3358, %v3678
    %vm3903 = vcmp.eq.f32.partialorder %v3359, %v3679
    %vm3904 = vcmp.eq.f32.partialorder %v3360, %v3680
    %vm3905 = vcmp.eq.f32.partialorder %v3361, %v3681
    %vm3906 = vmxor %vm3874, 1
    %vm3907 = vmxor %vm3875, 1
    %vm3908 = vmxor %vm3876, 1
    %vm3909 = vmxor %vm3877, 1
    %vm3910 = vmxor %vm3878, 1
    %vm3911 = vmxor %vm3879, 1
    %vm3912 = vmxor %vm3880, 1
    %vm3913 = vmxor %vm3881, 1
    %vm3914 = vmxor %vm3882, 1
    %vm3915 = vmxor %vm3883, 1
    %vm3916 = vmxor %vm3884, 1
    %vm3917 = vmxor %vm3885, 1
    %vm3918 = vmxor %vm3886, 1
    %vm3919 = vmxor %vm3887, 1
    %vm3920 = vmxor %vm3888, 1
    %vm3921 = vmxor %vm3889, 1
    %vm3922 = vmand %vm3890, %vm3906
    %vm3923 = vmand %vm3891, %vm3907
    %vm3924 = vmand %vm3892, %vm3908
    %vm3925 = vmand %vm3893, %vm3909
    %vm3926 = vmand %vm3894, %vm3910
    %vm3927 = vmand %vm3895, %vm3911
    %vm3928 = vmand %vm3896, %vm3912
    %vm3929 = vmand %vm3897, %vm3913
    %vm3930 = vmand %vm3898, %vm3914
    %vm3931 = vmand %vm3899, %vm3915
    %vm3932 = vmand %vm3900, %vm3916
    %vm3933 = vmand %vm3901, %vm3917
    %vm3934 = vmand %vm3902, %vm3918
    %vm3935 = vmand %vm3903, %vm3919
    %vm3936 = vmand %vm3904, %vm3920
    %vm3937 = vmand %vm3905, %vm3921
    %v3938 = vsel %vm3922, 1, 0
    %v3939 = vsel %vm3923, 1, 0
    %v3940 = vsel %vm3924, 1, 0
    %v3941 = vsel %vm3925, 1, 0
    %v3942 = vsel %vm3926, 1, 0
    %v3943 = vsel %vm3927, 1, 0
    %v3944 = vsel %vm3928, 1, 0
    %v3945 = vsel %vm3929, 1, 0
    %v3946 = vsel %vm3930, 1, 0
    %v3947 = vsel %vm3931, 1, 0
    %v3948 = vsel %vm3932, 1, 0
    %v3949 = vsel %vm3933, 1, 0
    %v3950 = vsel %vm3934, 1, 0
    %v3951 = vsel %vm3935, 1, 0
    %v3952 = vsel %vm3936, 1, 0
    %v3953 = vsel %vm3937, 1, 0
    %v3954 = vcvt.s32.f32 %v3938
    %v3955 = vcvt.s32.f32 %v3939
    %v3956 = vcvt.s32.f32 %v3940
    %v3957 = vcvt.s32.f32 %v3941
    %v3958 = vcvt.s32.f32 %v3942
    %v3959 = vcvt.s32.f32 %v3943
    %v3960 = vcvt.s32.f32 %v3944
    %v3961 = vcvt.s32.f32 %v3945
    %v3962 = vcvt.s32.f32 %v3946
    %v3963 = vcvt.s32.f32 %v3947
    %v3964 = vcvt.s32.f32 %v3948
    %v3965 = vcvt.s32.f32 %v3949
    %v3966 = vcvt.s32.f32 %v3950
    %v3967 = vcvt.s32.f32 %v3951
    %v3968 = vcvt.s32.f32 %v3952
    %v3969 = vcvt.s32.f32 %v3953
    %v3970 = vadd.f32 %v3330, %v3954
    %v3971 = vadd.f32 %v3331, %v3955
    %v3972 = vadd.f32 %v3332, %v3956
    %v3973 = vadd.f32 %v3333, %v3957
    %v3974 = vadd.f32 %v3334, %v3958
    %v3975 = vadd.f32 %v3335, %v3959
    %v3976 = vadd.f32 %v3336, %v3960
    %v3977 = vadd.f32 %v3337, %v3961
    %v3978 = vadd.f32 %v3338, %v3962
    %v3979 = vadd.f32 %v3339, %v3963
    %v3980 = vadd.f32 %v3340, %v3964
    %v3981 = vadd.f32 %v3341, %v3965
    %v3982 = vadd.f32 %v3342, %v3966
    %v3983 = vadd.f32 %v3343, %v3967
    %v3984 = vadd.f32 %v3344, %v3968
    %v3985 = vadd.f32 %v3345, %v3969
    %v3986 = vsel %vm3922, -inf, %v3346
    %v3987 = vsel %vm3923, -inf, %v3347
    %v3988 = vsel %vm3924, -inf, %v3348
    %v3989 = vsel %vm3925, -inf, %v3349
    %v3990 = vsel %vm3926, -inf, %v3350
    %v3991 = vsel %vm3927, -inf, %v3351
    %v3992 = vsel %vm3928, -inf, %v3352
    %v3993 = vsel %vm3929, -inf, %v3353
    %v3994 = vsel %vm3930, -inf, %v3354
    %v3995 = vsel %vm3931, -inf, %v3355
    %v3996 = vsel %vm3932, -inf, %v3356
    %v3997 = vsel %vm3933, -inf, %v3357
    %v3998 = vsel %vm3934, -inf, %v3358
    %v3999 = vsel %vm3935, -inf, %v3359
    %v4000 = vsel %vm3936, -inf, %v3360
    %v4001 = vsel %vm3937, -inf, %v3361
    %vm4002 = vmor %vm3874, %vm3922
    %vm4003 = vmor %vm3875, %vm3923
    %vm4004 = vmor %vm3876, %vm3924
    %vm4005 = vmor %vm3877, %vm3925
    %vm4006 = vmor %vm3878, %vm3926
    %vm4007 = vmor %vm3879, %vm3927
    %vm4008 = vmor %vm3880, %vm3928
    %vm4009 = vmor %vm3881, %vm3929
    %vm4010 = vmor %vm3882, %vm3930
    %vm4011 = vmor %vm3883, %vm3931
    %vm4012 = vmor %vm3884, %vm3932
    %vm4013 = vmor %vm3885, %vm3933
    %vm4014 = vmor %vm3886, %vm3934
    %vm4015 = vmor %vm3887, %vm3935
    %vm4016 = vmor %vm3888, %vm3936
    %vm4017 = vmor %vm3889, %vm3937
    %vm4018 = vcmp.eq.f32.partialorder %v3474, %v3666
    %vm4019 = vcmp.eq.f32.partialorder %v3475, %v3667
    %vm4020 = vcmp.eq.f32.partialorder %v3476, %v3668
    %vm4021 = vcmp.eq.f32.partialorder %v3477, %v3669
    %vm4022 = vcmp.eq.f32.partialorder %v3478, %v3670
    %vm4023 = vcmp.eq.f32.partialorder %v3479, %v3671
    %vm4024 = vcmp.eq.f32.partialorder %v3480, %v3672
    %vm4025 = vcmp.eq.f32.partialorder %v3481, %v3673
    %vm4026 = vcmp.eq.f32.partialorder %v3482, %v3674
    %vm4027 = vcmp.eq.f32.partialorder %v3483, %v3675
    %vm4028 = vcmp.eq.f32.partialorder %v3484, %v3676
    %vm4029 = vcmp.eq.f32.partialorder %v3485, %v3677
    %vm4030 = vcmp.eq.f32.partialorder %v3486, %v3678
    %vm4031 = vcmp.eq.f32.partialorder %v3487, %v3679
    %vm4032 = vcmp.eq.f32.partialorder %v3488, %v3680
    %vm4033 = vcmp.eq.f32.partialorder %v3489, %v3681
    %vm4034 = vmxor %vm4002, 1
    %vm4035 = vmxor %vm4003, 1
    %vm4036 = vmxor %vm4004, 1
    %vm4037 = vmxor %vm4005, 1
    %vm4038 = vmxor %vm4006, 1
    %vm4039 = vmxor %vm4007, 1
    %vm4040 = vmxor %vm4008, 1
    %vm4041 = vmxor %vm4009, 1
    %vm4042 = vmxor %vm4010, 1
    %vm4043 = vmxor %vm4011, 1
    %vm4044 = vmxor %vm4012, 1
    %vm4045 = vmxor %vm4013, 1
    %vm4046 = vmxor %vm4014, 1
    %vm4047 = vmxor %vm4015, 1
    %vm4048 = vmxor %vm4016, 1
    %vm4049 = vmxor %vm4017, 1
    %vm4050 = vmand %vm4018, %vm4034
    %vm4051 = vmand %vm4019, %vm4035
    %vm4052 = vmand %vm4020, %vm4036
    %vm4053 = vmand %vm4021, %vm4037
    %vm4054 = vmand %vm4022, %vm4038
    %vm4055 = vmand %vm4023, %vm4039
    %vm4056 = vmand %vm4024, %vm4040
    %vm4057 = vmand %vm4025, %vm4041
    %vm4058 = vmand %vm4026, %vm4042
    %vm4059 = vmand %vm4027, %vm4043
    %vm4060 = vmand %vm4028, %vm4044
    %vm4061 = vmand %vm4029, %vm4045
    %vm4062 = vmand %vm4030, %vm4046
    %vm4063 = vmand %vm4031, %vm4047
    %vm4064 = vmand %vm4032, %vm4048
    %vm4065 = vmand %vm4033, %vm4049
    %v4066 = vsel %vm4050, 1, 0
    %v4067 = vsel %vm4051, 1, 0
    %v4068 = vsel %vm4052, 1, 0
    %v4069 = vsel %vm4053, 1, 0
    %v4070 = vsel %vm4054, 1, 0
    %v4071 = vsel %vm4055, 1, 0
    %v4072 = vsel %vm4056, 1, 0
    %v4073 = vsel %vm4057, 1, 0
    %v4074 = vsel %vm4058, 1, 0
    %v4075 = vsel %vm4059, 1, 0
    %v4076 = vsel %vm4060, 1, 0
    %v4077 = vsel %vm4061, 1, 0
    %v4078 = vsel %vm4062, 1, 0
    %v4079 = vsel %vm4063, 1, 0
    %v4080 = vsel %vm4064, 1, 0
    %v4081 = vsel %vm4065, 1, 0
    %v4082 = vcvt.s32.f32 %v4066
    %v4083 = vcvt.s32.f32 %v4067
    %v4084 = vcvt.s32.f32 %v4068
    %v4085 = vcvt.s32.f32 %v4069
    %v4086 = vcvt.s32.f32 %v4070
    %v4087 = vcvt.s32.f32 %v4071
    %v4088 = vcvt.s32.f32 %v4072
    %v4089 = vcvt.s32.f32 %v4073
    %v4090 = vcvt.s32.f32 %v4074
    %v4091 = vcvt.s32.f32 %v4075
    %v4092 = vcvt.s32.f32 %v4076
    %v4093 = vcvt.s32.f32 %v4077
    %v4094 = vcvt.s32.f32 %v4078
    %v4095 = vcvt.s32.f32 %v4079
    %v4096 = vcvt.s32.f32 %v4080
    %v4097 = vcvt.s32.f32 %v4081
    %v4098 = vadd.f32 %v3458, %v4082
    %v4099 = vadd.f32 %v3459, %v4083
    %v4100 = vadd.f32 %v3460, %v4084
    %v4101 = vadd.f32 %v3461, %v4085
    %v4102 = vadd.f32 %v3462, %v4086
    %v4103 = vadd.f32 %v3463, %v4087
    %v4104 = vadd.f32 %v3464, %v4088
    %v4105 = vadd.f32 %v3465, %v4089
    %v4106 = vadd.f32 %v3466, %v4090
    %v4107 = vadd.f32 %v3467, %v4091
    %v4108 = vadd.f32 %v3468, %v4092
    %v4109 = vadd.f32 %v3469, %v4093
    %v4110 = vadd.f32 %v3470, %v4094
    %v4111 = vadd.f32 %v3471, %v4095
    %v4112 = vadd.f32 %v3472, %v4096
    %v4113 = vadd.f32 %v3473, %v4097
    %v4114 = vsel %vm4050, -inf, %v3474
    %v4115 = vsel %vm4051, -inf, %v3475
    %v4116 = vsel %vm4052, -inf, %v3476
    %v4117 = vsel %vm4053, -inf, %v3477
    %v4118 = vsel %vm4054, -inf, %v3478
    %v4119 = vsel %vm4055, -inf, %v3479
    %v4120 = vsel %vm4056, -inf, %v3480
    %v4121 = vsel %vm4057, -inf, %v3481
    %v4122 = vsel %vm4058, -inf, %v3482
    %v4123 = vsel %vm4059, -inf, %v3483
    %v4124 = vsel %vm4060, -inf, %v3484
    %v4125 = vsel %vm4061, -inf, %v3485
    %v4126 = vsel %vm4062, -inf, %v3486
    %v4127 = vsel %vm4063, -inf, %v3487
    %v4128 = vsel %vm4064, -inf, %v3488
    %v4129 = vsel %vm4065, -inf, %v3489
    %vm4130 = vmor %vm4002, %vm4050
    %vm4131 = vmor %vm4003, %vm4051
    %vm4132 = vmor %vm4004, %vm4052
    %vm4133 = vmor %vm4005, %vm4053
    %vm4134 = vmor %vm4006, %vm4054
    %vm4135 = vmor %vm4007, %vm4055
    %vm4136 = vmor %vm4008, %vm4056
    %vm4137 = vmor %vm4009, %vm4057
    %vm4138 = vmor %vm4010, %vm4058
    %vm4139 = vmor %vm4011, %vm4059
    %vm4140 = vmor %vm4012, %vm4060
    %vm4141 = vmor %vm4013, %vm4061
    %vm4142 = vmor %vm4014, %vm4062
    %vm4143 = vmor %vm4015, %vm4063
    %vm4144 = vmor %vm4016, %vm4064
    %vm4145 = vmor %vm4017, %vm4065
    %vm4146 = vcmp.eq.f32.partialorder %v3602, %v3666
    %vm4147 = vcmp.eq.f32.partialorder %v3603, %v3667
    %vm4148 = vcmp.eq.f32.partialorder %v3604, %v3668
    %vm4149 = vcmp.eq.f32.partialorder %v3605, %v3669
    %vm4150 = vcmp.eq.f32.partialorder %v3606, %v3670
    %vm4151 = vcmp.eq.f32.partialorder %v3607, %v3671
    %vm4152 = vcmp.eq.f32.partialorder %v3608, %v3672
    %vm4153 = vcmp.eq.f32.partialorder %v3609, %v3673
    %vm4154 = vcmp.eq.f32.partialorder %v3610, %v3674
    %vm4155 = vcmp.eq.f32.partialorder %v3611, %v3675
    %vm4156 = vcmp.eq.f32.partialorder %v3612, %v3676
    %vm4157 = vcmp.eq.f32.partialorder %v3613, %v3677
    %vm4158 = vcmp.eq.f32.partialorder %v3614, %v3678
    %vm4159 = vcmp.eq.f32.partialorder %v3615, %v3679
    %vm4160 = vcmp.eq.f32.partialorder %v3616, %v3680
    %vm4161 = vcmp.eq.f32.partialorder %v3617, %v3681
    %vm4162 = vmxor %vm4130, 1
    %vm4163 = vmxor %vm4131, 1
    %vm4164 = vmxor %vm4132, 1
    %vm4165 = vmxor %vm4133, 1
    %vm4166 = vmxor %vm4134, 1
    %vm4167 = vmxor %vm4135, 1
    %vm4168 = vmxor %vm4136, 1
    %vm4169 = vmxor %vm4137, 1
    %vm4170 = vmxor %vm4138, 1
    %vm4171 = vmxor %vm4139, 1
    %vm4172 = vmxor %vm4140, 1
    %vm4173 = vmxor %vm4141, 1
    %vm4174 = vmxor %vm4142, 1
    %vm4175 = vmxor %vm4143, 1
    %vm4176 = vmxor %vm4144, 1
    %vm4177 = vmxor %vm4145, 1
    %vm4178 = vmand %vm4146, %vm4162
    %vm4179 = vmand %vm4147, %vm4163
    %vm4180 = vmand %vm4148, %vm4164
    %vm4181 = vmand %vm4149, %vm4165
    %vm4182 = vmand %vm4150, %vm4166
    %vm4183 = vmand %vm4151, %vm4167
    %vm4184 = vmand %vm4152, %vm4168
    %vm4185 = vmand %vm4153, %vm4169
    %vm4186 = vmand %vm4154, %vm4170
    %vm4187 = vmand %vm4155, %vm4171
    %vm4188 = vmand %vm4156, %vm4172
    %vm4189 = vmand %vm4157, %vm4173
    %vm4190 = vmand %vm4158, %vm4174
    %vm4191 = vmand %vm4159, %vm4175
    %vm4192 = vmand %vm4160, %vm4176
    %vm4193 = vmand %vm4161, %vm4177
    %v4194 = vsel %vm4178, 1, 0
    %v4195 = vsel %vm4179, 1, 0
    %v4196 = vsel %vm4180, 1, 0
    %v4197 = vsel %vm4181, 1, 0
    %v4198 = vsel %vm4182, 1, 0
    %v4199 = vsel %vm4183, 1, 0
    %v4200 = vsel %vm4184, 1, 0
    %v4201 = vsel %vm4185, 1, 0
    %v4202 = vsel %vm4186, 1, 0
    %v4203 = vsel %vm4187, 1, 0
    %v4204 = vsel %vm4188, 1, 0
    %v4205 = vsel %vm4189, 1, 0
    %v4206 = vsel %vm4190, 1, 0
    %v4207 = vsel %vm4191, 1, 0
    %v4208 = vsel %vm4192, 1, 0
    %v4209 = vsel %vm4193, 1, 0
    %v4210 = vcvt.s32.f32 %v4194
    %v4211 = vcvt.s32.f32 %v4195
    %v4212 = vcvt.s32.f32 %v4196
    %v4213 = vcvt.s32.f32 %v4197
    %v4214 = vcvt.s32.f32 %v4198
    %v4215 = vcvt.s32.f32 %v4199
    %v4216 = vcvt.s32.f32 %v4200
    %v4217 = vcvt.s32.f32 %v4201
    %v4218 = vcvt.s32.f32 %v4202
    %v4219 = vcvt.s32.f32 %v4203
    %v4220 = vcvt.s32.f32 %v4204
    %v4221 = vcvt.s32.f32 %v4205
    %v4222 = vcvt.s32.f32 %v4206
    %v4223 = vcvt.s32.f32 %v4207
    %v4224 = vcvt.s32.f32 %v4208
    %v4225 = vcvt.s32.f32 %v4209
    %v4226 = vadd.f32 %v3586, %v4210
    %v4227 = vadd.f32 %v3587, %v4211
    %v4228 = vadd.f32 %v3588, %v4212
    %v4229 = vadd.f32 %v3589, %v4213
    %v4230 = vadd.f32 %v3590, %v4214
    %v4231 = vadd.f32 %v3591, %v4215
    %v4232 = vadd.f32 %v3592, %v4216
    %v4233 = vadd.f32 %v3593, %v4217
    %v4234 = vadd.f32 %v3594, %v4218
    %v4235 = vadd.f32 %v3595, %v4219
    %v4236 = vadd.f32 %v3596, %v4220
    %v4237 = vadd.f32 %v3597, %v4221
    %v4238 = vadd.f32 %v3598, %v4222
    %v4239 = vadd.f32 %v3599, %v4223
    %v4240 = vadd.f32 %v3600, %v4224
    %v4241 = vadd.f32 %v3601, %v4225
    %v4242 = vsel %vm4178, -inf, %v3602
    %v4243 = vsel %vm4179, -inf, %v3603
    %v4244 = vsel %vm4180, -inf, %v3604
    %v4245 = vsel %vm4181, -inf, %v3605
    %v4246 = vsel %vm4182, -inf, %v3606
    %v4247 = vsel %vm4183, -inf, %v3607
    %v4248 = vsel %vm4184, -inf, %v3608
    %v4249 = vsel %vm4185, -inf, %v3609
    %v4250 = vsel %vm4186, -inf, %v3610
    %v4251 = vsel %vm4187, -inf, %v3611
    %v4252 = vsel %vm4188, -inf, %v3612
    %v4253 = vsel %vm4189, -inf, %v3613
    %v4254 = vsel %vm4190, -inf, %v3614
    %v4255 = vsel %vm4191, -inf, %v3615
    %v4256 = vsel %vm4192, -inf, %v3616
    %v4257 = vsel %vm4193, -inf, %v3617
    %v4258 = vmax.f32 %v3746, %v3858
    %v4259 = vmax.f32 %v3747, %v3859
    %v4260 = vmax.f32 %v3748, %v3860
    %v4261 = vmax.f32 %v3749, %v3861
    %v4262 = vmax.f32 %v3750, %v3862
    %v4263 = vmax.f32 %v3751, %v3863
    %v4264 = vmax.f32 %v3752, %v3864
    %v4265 = vmax.f32 %v3753, %v3865
    %v4266 = vmax.f32 %v3754, %v3866
    %v4267 = vmax.f32 %v3755, %v3867
    %v4268 = vmax.f32 %v3756, %v3868
    %v4269 = vmax.f32 %v3757, %v3869
    %v4270 = vmax.f32 %v3758, %v3870
    %v4271 = vmax.f32 %v3759, %v3871
    %v4272 = vmax.f32 %v3760, %v3872
    %v4273 = vmax.f32 %v3761, %v3873
    %v4274 = vmax.f32 %v4258, %v3986
    %v4275 = vmax.f32 %v4259, %v3987
    %v4276 = vmax.f32 %v4260, %v3988
    %v4277 = vmax.f32 %v4261, %v3989
    %v4278 = vmax.f32 %v4262, %v3990
    %v4279 = vmax.f32 %v4263, %v3991
    %v4280 = vmax.f32 %v4264, %v3992
    %v4281 = vmax.f32 %v4265, %v3993
    %v4282 = vmax.f32 %v4266, %v3994
    %v4283 = vmax.f32 %v4267, %v3995
    %v4284 = vmax.f32 %v4268, %v3996
    %v4285 = vmax.f32 %v4269, %v3997
    %v4286 = vmax.f32 %v4270, %v3998
    %v4287 = vmax.f32 %v4271, %v3999
    %v4288 = vmax.f32 %v4272, %v4000
    %v4289 = vmax.f32 %v4273, %v4001
    %v4290 = vmax.f32 %v4274, %v4114
    %v4291 = vmax.f32 %v4275, %v4115
    %v4292 = vmax.f32 %v4276, %v4116
    %v4293 = vmax.f32 %v4277, %v4117
    %v4294 = vmax.f32 %v4278, %v4118
    %v4295 = vmax.f32 %v4279, %v4119
    %v4296 = vmax.f32 %v4280, %v4120
    %v4297 = vmax.f32 %v4281, %v4121
    %v4298 = vmax.f32 %v4282, %v4122
    %v4299 = vmax.f32 %v4283, %v4123
    %v4300 = vmax.f32 %v4284, %v4124
    %v4301 = vmax.f32 %v4285, %v4125
    %v4302 = vmax.f32 %v4286, %v4126
    %v4303 = vmax.f32 %v4287, %v4127
    %v4304 = vmax.f32 %v4288, %v4128
    %v4305 = vmax.f32 %v4289, %v4129
    %v4306 = vmax.f32 %v4290, %v4242
    %v4307 = vmax.f32 %v4291, %v4243
    %v4308 = vmax.f32 %v4292, %v4244
    %v4309 = vmax.f32 %v4293, %v4245
    %v4310 = vmax.f32 %v4294, %v4246
    %v4311 = vmax.f32 %v4295, %v4247
    %v4312 = vmax.f32 %v4296, %v4248
    %v4313 = vmax.f32 %v4297, %v4249
    %v4314 = vmax.f32 %v4298, %v4250
    %v4315 = vmax.f32 %v4299, %v4251
    %v4316 = vmax.f32 %v4300, %v4252
    %v4317 = vmax.f32 %v4301, %v4253
    %v4318 = vmax.f32 %v4302, %v4254
    %v4319 = vmax.f32 %v4303, %v4255
    %v4320 = vmax.f32 %v4304, %v4256
    %v4321 = vmax.f32 %v4305, %v4257
    %vm4322 = vcmp.eq.f32.partialorder %v3746, %v4306
    %vm4323 = vcmp.eq.f32.partialorder %v3747, %v4307
    %vm4324 = vcmp.eq.f32.partialorder %v3748, %v4308
    %vm4325 = vcmp.eq.f32.partialorder %v3749, %v4309
    %vm4326 = vcmp.eq.f32.partialorder %v3750, %v4310
    %vm4327 = vcmp.eq.f32.partialorder %v3751, %v4311
    %vm4328 = vcmp.eq.f32.partialorder %v3752, %v4312
    %vm4329 = vcmp.eq.f32.partialorder %v3753, %v4313
    %vm4330 = vcmp.eq.f32.partialorder %v3754, %v4314
    %vm4331 = vcmp.eq.f32.partialorder %v3755, %v4315
    %vm4332 = vcmp.eq.f32.partialorder %v3756, %v4316
    %vm4333 = vcmp.eq.f32.partialorder %v3757, %v4317
    %vm4334 = vcmp.eq.f32.partialorder %v3758, %v4318
    %vm4335 = vcmp.eq.f32.partialorder %v3759, %v4319
    %vm4336 = vcmp.eq.f32.partialorder %v3760, %v4320
    %vm4337 = vcmp.eq.f32.partialorder %v3761, %v4321
    %v4338 = vsel %vm4322, 1, 0
    %v4339 = vsel %vm4323, 1, 0
    %v4340 = vsel %vm4324, 1, 0
    %v4341 = vsel %vm4325, 1, 0
    %v4342 = vsel %vm4326, 1, 0
    %v4343 = vsel %vm4327, 1, 0
    %v4344 = vsel %vm4328, 1, 0
    %v4345 = vsel %vm4329, 1, 0
    %v4346 = vsel %vm4330, 1, 0
    %v4347 = vsel %vm4331, 1, 0
    %v4348 = vsel %vm4332, 1, 0
    %v4349 = vsel %vm4333, 1, 0
    %v4350 = vsel %vm4334, 1, 0
    %v4351 = vsel %vm4335, 1, 0
    %v4352 = vsel %vm4336, 1, 0
    %v4353 = vsel %vm4337, 1, 0
    %v4354 = vcvt.s32.f32 %v4338
    %v4355 = vcvt.s32.f32 %v4339
    %v4356 = vcvt.s32.f32 %v4340
    %v4357 = vcvt.s32.f32 %v4341
    %v4358 = vcvt.s32.f32 %v4342
    %v4359 = vcvt.s32.f32 %v4343
    %v4360 = vcvt.s32.f32 %v4344
    %v4361 = vcvt.s32.f32 %v4345
    %v4362 = vcvt.s32.f32 %v4346
    %v4363 = vcvt.s32.f32 %v4347
    %v4364 = vcvt.s32.f32 %v4348
    %v4365 = vcvt.s32.f32 %v4349
    %v4366 = vcvt.s32.f32 %v4350
    %v4367 = vcvt.s32.f32 %v4351
    %v4368 = vcvt.s32.f32 %v4352
    %v4369 = vcvt.s32.f32 %v4353
    %v4370 = vadd.f32 %v3730, %v4354
    %v4371 = vadd.f32 %v3731, %v4355
    %v4372 = vadd.f32 %v3732, %v4356
    %v4373 = vadd.f32 %v3733, %v4357
    %v4374 = vadd.f32 %v3734, %v4358
    %v4375 = vadd.f32 %v3735, %v4359
    %v4376 = vadd.f32 %v3736, %v4360
    %v4377 = vadd.f32 %v3737, %v4361
    %v4378 = vadd.f32 %v3738, %v4362
    %v4379 = vadd.f32 %v3739, %v4363
    %v4380 = vadd.f32 %v3740, %v4364
    %v4381 = vadd.f32 %v3741, %v4365
    %v4382 = vadd.f32 %v3742, %v4366
    %v4383 = vadd.f32 %v3743, %v4367
    %v4384 = vadd.f32 %v3744, %v4368
    %v4385 = vadd.f32 %v3745, %v4369
    %vm4386 = vcmp.eq.f32.partialorder %v3858, %v4306
    %vm4387 = vcmp.eq.f32.partialorder %v3859, %v4307
    %vm4388 = vcmp.eq.f32.partialorder %v3860, %v4308
    %vm4389 = vcmp.eq.f32.partialorder %v3861, %v4309
    %vm4390 = vcmp.eq.f32.partialorder %v3862, %v4310
    %vm4391 = vcmp.eq.f32.partialorder %v3863, %v4311
    %vm4392 = vcmp.eq.f32.partialorder %v3864, %v4312
    %vm4393 = vcmp.eq.f32.partialorder %v3865, %v4313
    %vm4394 = vcmp.eq.f32.partialorder %v3866, %v4314
    %vm4395 = vcmp.eq.f32.partialorder %v3867, %v4315
    %vm4396 = vcmp.eq.f32.partialorder %v3868, %v4316
    %vm4397 = vcmp.eq.f32.partialorder %v3869, %v4317
    %vm4398 = vcmp.eq.f32.partialorder %v3870, %v4318
    %vm4399 = vcmp.eq.f32.partialorder %v3871, %v4319
    %vm4400 = vcmp.eq.f32.partialorder %v3872, %v4320
    %vm4401 = vcmp.eq.f32.partialorder %v3873, %v4321
    %vm4402 = vmxor %vm4322, 1
    %vm4403 = vmxor %vm4323, 1
    %vm4404 = vmxor %vm4324, 1
    %vm4405 = vmxor %vm4325, 1
    %vm4406 = vmxor %vm4326, 1
    %vm4407 = vmxor %vm4327, 1
    %vm4408 = vmxor %vm4328, 1
    %vm4409 = vmxor %vm4329, 1
    %vm4410 = vmxor %vm4330, 1
    %vm4411 = vmxor %vm4331, 1
    %vm4412 = vmxor %vm4332, 1
    %vm4413 = vmxor %vm4333, 1
    %vm4414 = vmxor %vm4334, 1
    %vm4415 = vmxor %vm4335, 1
    %vm4416 = vmxor %vm4336, 1
    %vm4417 = vmxor %vm4337, 1
    %vm4418 = vmand %vm4386, %vm4402
    %vm4419 = vmand %vm4387, %vm4403
    %vm4420 = vmand %vm4388, %vm4404
    %vm4421 = vmand %vm4389, %vm4405
    %vm4422 = vmand %vm4390, %vm4406
    %vm4423 = vmand %vm4391, %vm4407
    %vm4424 = vmand %vm4392, %vm4408
    %vm4425 = vmand %vm4393, %vm4409
    %vm4426 = vmand %vm4394, %vm4410
    %vm4427 = vmand %vm4395, %vm4411
    %vm4428 = vmand %vm4396, %vm4412
    %vm4429 = vmand %vm4397, %vm4413
    %vm4430 = vmand %vm4398, %vm4414
    %vm4431 = vmand %vm4399, %vm4415
    %vm4432 = vmand %vm4400, %vm4416
    %vm4433 = vmand %vm4401, %vm4417
    %v4434 = vsel %vm4418, 1, 0
    %v4435 = vsel %vm4419, 1, 0
    %v4436 = vsel %vm4420, 1, 0
    %v4437 = vsel %vm4421, 1, 0
    %v4438 = vsel %vm4422, 1, 0
    %v4439 = vsel %vm4423, 1, 0
    %v4440 = vsel %vm4424, 1, 0
    %v4441 = vsel %vm4425, 1, 0
    %v4442 = vsel %vm4426, 1, 0
    %v4443 = vsel %vm4427, 1, 0
    %v4444 = vsel %vm4428, 1, 0
    %v4445 = vsel %vm4429, 1, 0
    %v4446 = vsel %vm4430, 1, 0
    %v4447 = vsel %vm4431, 1, 0
    %v4448 = vsel %vm4432, 1, 0
    %v4449 = vsel %vm4433, 1, 0
    %v4450 = vcvt.s32.f32 %v4434
    %v4451 = vcvt.s32.f32 %v4435
    %v4452 = vcvt.s32.f32 %v4436
    %v4453 = vcvt.s32.f32 %v4437
    %v4454 = vcvt.s32.f32 %v4438
    %v4455 = vcvt.s32.f32 %v4439
    %v4456 = vcvt.s32.f32 %v4440
    %v4457 = vcvt.s32.f32 %v4441
    %v4458 = vcvt.s32.f32 %v4442
    %v4459 = vcvt.s32.f32 %v4443
    %v4460 = vcvt.s32.f32 %v4444
    %v4461 = vcvt.s32.f32 %v4445
    %v4462 = vcvt.s32.f32 %v4446
    %v4463 = vcvt.s32.f32 %v4447
    %v4464 = vcvt.s32.f32 %v4448
    %v4465 = vcvt.s32.f32 %v4449
    %v4466 = vadd.f32 %v3842, %v4450
    %v4467 = vadd.f32 %v3843, %v4451
    %v4468 = vadd.f32 %v3844, %v4452
    %v4469 = vadd.f32 %v3845, %v4453
    %v4470 = vadd.f32 %v3846, %v4454
    %v4471 = vadd.f32 %v3847, %v4455
    %v4472 = vadd.f32 %v3848, %v4456
    %v4473 = vadd.f32 %v3849, %v4457
    %v4474 = vadd.f32 %v3850, %v4458
    %v4475 = vadd.f32 %v3851, %v4459
    %v4476 = vadd.f32 %v3852, %v4460
    %v4477 = vadd.f32 %v3853, %v4461
    %v4478 = vadd.f32 %v3854, %v4462
    %v4479 = vadd.f32 %v3855, %v4463
    %v4480 = vadd.f32 %v3856, %v4464
    %v4481 = vadd.f32 %v3857, %v4465
    %vm4482 = vmor %vm4322, %vm4418
    %vm4483 = vmor %vm4323, %vm4419
    %vm4484 = vmor %vm4324, %vm4420
    %vm4485 = vmor %vm4325, %vm4421
    %vm4486 = vmor %vm4326, %vm4422
    %vm4487 = vmor %vm4327, %vm4423
    %vm4488 = vmor %vm4328, %vm4424
    %vm4489 = vmor %vm4329, %vm4425
    %vm4490 = vmor %vm4330, %vm4426
    %vm4491 = vmor %vm4331, %vm4427
    %vm4492 = vmor %vm4332, %vm4428
    %vm4493 = vmor %vm4333, %vm4429
    %vm4494 = vmor %vm4334, %vm4430
    %vm4495 = vmor %vm4335, %vm4431
    %vm4496 = vmor %vm4336, %vm4432
    %vm4497 = vmor %vm4337, %vm4433
    %vm4498 = vcmp.eq.f32.partialorder %v3986, %v4306
    %vm4499 = vcmp.eq.f32.partialorder %v3987, %v4307
    %vm4500 = vcmp.eq.f32.partialorder %v3988, %v4308
    %vm4501 = vcmp.eq.f32.partialorder %v3989, %v4309
    %vm4502 = vcmp.eq.f32.partialorder %v3990, %v4310
    %vm4503 = vcmp.eq.f32.partialorder %v3991, %v4311
    %vm4504 = vcmp.eq.f32.partialorder %v3992, %v4312
    %vm4505 = vcmp.eq.f32.partialorder %v3993, %v4313
    %vm4506 = vcmp.eq.f32.partialorder %v3994, %v4314
    %vm4507 = vcmp.eq.f32.partialorder %v3995, %v4315
    %vm4508 = vcmp.eq.f32.partialorder %v3996, %v4316
    %vm4509 = vcmp.eq.f32.partialorder %v3997, %v4317
    %vm4510 = vcmp.eq.f32.partialorder %v3998, %v4318
    %vm4511 = vcmp.eq.f32.partialorder %v3999, %v4319
    %vm4512 = vcmp.eq.f32.partialorder %v4000, %v4320
    %vm4513 = vcmp.eq.f32.partialorder %v4001, %v4321
    %vm4514 = vmxor %vm4482, 1
    %vm4515 = vmxor %vm4483, 1
    %vm4516 = vmxor %vm4484, 1
    %vm4517 = vmxor %vm4485, 1
    %vm4518 = vmxor %vm4486, 1
    %vm4519 = vmxor %vm4487, 1
    %vm4520 = vmxor %vm4488, 1
    %vm4521 = vmxor %vm4489, 1
    %vm4522 = vmxor %vm4490, 1
    %vm4523 = vmxor %vm4491, 1
    %vm4524 = vmxor %vm4492, 1
    %vm4525 = vmxor %vm4493, 1
    %vm4526 = vmxor %vm4494, 1
    %vm4527 = vmxor %vm4495, 1
    %vm4528 = vmxor %vm4496, 1
    %vm4529 = vmxor %vm4497, 1
    %vm4530 = vmand %vm4498, %vm4514
    %vm4531 = vmand %vm4499, %vm4515
    %vm4532 = vmand %vm4500, %vm4516
    %vm4533 = vmand %vm4501, %vm4517
    %vm4534 = vmand %vm4502, %vm4518
    %vm4535 = vmand %vm4503, %vm4519
    %vm4536 = vmand %vm4504, %vm4520
    %vm4537 = vmand %vm4505, %vm4521
    %vm4538 = vmand %vm4506, %vm4522
    %vm4539 = vmand %vm4507, %vm4523
    %vm4540 = vmand %vm4508, %vm4524
    %vm4541 = vmand %vm4509, %vm4525
    %vm4542 = vmand %vm4510, %vm4526
    %vm4543 = vmand %vm4511, %vm4527
    %vm4544 = vmand %vm4512, %vm4528
    %vm4545 = vmand %vm4513, %vm4529
    %v4546 = vsel %vm4530, 1, 0
    %v4547 = vsel %vm4531, 1, 0
    %v4548 = vsel %vm4532, 1, 0
    %v4549 = vsel %vm4533, 1, 0
    %v4550 = vsel %vm4534, 1, 0
    %v4551 = vsel %vm4535, 1, 0
    %v4552 = vsel %vm4536, 1, 0
    %v4553 = vsel %vm4537, 1, 0
    %v4554 = vsel %vm4538, 1, 0
    %v4555 = vsel %vm4539, 1, 0
    %v4556 = vsel %vm4540, 1, 0
    %v4557 = vsel %vm4541, 1, 0
    %v4558 = vsel %vm4542, 1, 0
    %v4559 = vsel %vm4543, 1, 0
    %v4560 = vsel %vm4544, 1, 0
    %v4561 = vsel %vm4545, 1, 0
    %v4562 = vcvt.s32.f32 %v4546
    %v4563 = vcvt.s32.f32 %v4547
    %v4564 = vcvt.s32.f32 %v4548
    %v4565 = vcvt.s32.f32 %v4549
    %v4566 = vcvt.s32.f32 %v4550
    %v4567 = vcvt.s32.f32 %v4551
    %v4568 = vcvt.s32.f32 %v4552
    %v4569 = vcvt.s32.f32 %v4553
    %v4570 = vcvt.s32.f32 %v4554
    %v4571 = vcvt.s32.f32 %v4555
    %v4572 = vcvt.s32.f32 %v4556
    %v4573 = vcvt.s32.f32 %v4557
    %v4574 = vcvt.s32.f32 %v4558
    %v4575 = vcvt.s32.f32 %v4559
    %v4576 = vcvt.s32.f32 %v4560
    %v4577 = vcvt.s32.f32 %v4561
    %v4578 = vadd.f32 %v3970, %v4562
    %v4579 = vadd.f32 %v3971, %v4563
    %v4580 = vadd.f32 %v3972, %v4564
    %v4581 = vadd.f32 %v3973, %v4565
    %v4582 = vadd.f32 %v3974, %v4566
    %v4583 = vadd.f32 %v3975, %v4567
    %v4584 = vadd.f32 %v3976, %v4568
    %v4585 = vadd.f32 %v3977, %v4569
    %v4586 = vadd.f32 %v3978, %v4570
    %v4587 = vadd.f32 %v3979, %v4571
    %v4588 = vadd.f32 %v3980, %v4572
    %v4589 = vadd.f32 %v3981, %v4573
    %v4590 = vadd.f32 %v3982, %v4574
    %v4591 = vadd.f32 %v3983, %v4575
    %v4592 = vadd.f32 %v3984, %v4576
    %v4593 = vadd.f32 %v3985, %v4577
    %vm4594 = vmor %vm4482, %vm4530
    %vm4595 = vmor %vm4483, %vm4531
    %vm4596 = vmor %vm4484, %vm4532
    %vm4597 = vmor %vm4485, %vm4533
    %vm4598 = vmor %vm4486, %vm4534
    %vm4599 = vmor %vm4487, %vm4535
    %vm4600 = vmor %vm4488, %vm4536
    %vm4601 = vmor %vm4489, %vm4537
    %vm4602 = vmor %vm4490, %vm4538
    %vm4603 = vmor %vm4491, %vm4539
    %vm4604 = vmor %vm4492, %vm4540
    %vm4605 = vmor %vm4493, %vm4541
    %vm4606 = vmor %vm4494, %vm4542
    %vm4607 = vmor %vm4495, %vm4543
    %vm4608 = vmor %vm4496, %vm4544
    %vm4609 = vmor %vm4497, %vm4545
    %vm4610 = vcmp.eq.f32.partialorder %v4114, %v4306
    %vm4611 = vcmp.eq.f32.partialorder %v4115, %v4307
    %vm4612 = vcmp.eq.f32.partialorder %v4116, %v4308
    %vm4613 = vcmp.eq.f32.partialorder %v4117, %v4309
    %vm4614 = vcmp.eq.f32.partialorder %v4118, %v4310
    %vm4615 = vcmp.eq.f32.partialorder %v4119, %v4311
    %vm4616 = vcmp.eq.f32.partialorder %v4120, %v4312
    %vm4617 = vcmp.eq.f32.partialorder %v4121, %v4313
    %vm4618 = vcmp.eq.f32.partialorder %v4122, %v4314
    %vm4619 = vcmp.eq.f32.partialorder %v4123, %v4315
    %vm4620 = vcmp.eq.f32.partialorder %v4124, %v4316
    %vm4621 = vcmp.eq.f32.partialorder %v4125, %v4317
    %vm4622 = vcmp.eq.f32.partialorder %v4126, %v4318
    %vm4623 = vcmp.eq.f32.partialorder %v4127, %v4319
    %vm4624 = vcmp.eq.f32.partialorder %v4128, %v4320
    %vm4625 = vcmp.eq.f32.partialorder %v4129, %v4321
    %vm4626 = vmxor %vm4594, 1
    %vm4627 = vmxor %vm4595, 1
    %vm4628 = vmxor %vm4596, 1
    %vm4629 = vmxor %vm4597, 1
    %vm4630 = vmxor %vm4598, 1
    %vm4631 = vmxor %vm4599, 1
    %vm4632 = vmxor %vm4600, 1
    %vm4633 = vmxor %vm4601, 1
    %vm4634 = vmxor %vm4602, 1
    %vm4635 = vmxor %vm4603, 1
    %vm4636 = vmxor %vm4604, 1
    %vm4637 = vmxor %vm4605, 1
    %vm4638 = vmxor %vm4606, 1
    %vm4639 = vmxor %vm4607, 1
    %vm4640 = vmxor %vm4608, 1
    %vm4641 = vmxor %vm4609, 1
    %vm4642 = vmand %vm4610, %vm4626
    %vm4643 = vmand %vm4611, %vm4627
    %vm4644 = vmand %vm4612, %vm4628
    %vm4645 = vmand %vm4613, %vm4629
    %vm4646 = vmand %vm4614, %vm4630
    %vm4647 = vmand %vm4615, %vm4631
    %vm4648 = vmand %vm4616, %vm4632
    %vm4649 = vmand %vm4617, %vm4633
    %vm4650 = vmand %vm4618, %vm4634
    %vm4651 = vmand %vm4619, %vm4635
    %vm4652 = vmand %vm4620, %vm4636
    %vm4653 = vmand %vm4621, %vm4637
    %vm4654 = vmand %vm4622, %vm4638
    %vm4655 = vmand %vm4623, %vm4639
    %vm4656 = vmand %vm4624, %vm4640
    %vm4657 = vmand %vm4625, %vm4641
    %v4658 = vsel %vm4642, 1, 0
    %v4659 = vsel %vm4643, 1, 0
    %v4660 = vsel %vm4644, 1, 0
    %v4661 = vsel %vm4645, 1, 0
    %v4662 = vsel %vm4646, 1, 0
    %v4663 = vsel %vm4647, 1, 0
    %v4664 = vsel %vm4648, 1, 0
    %v4665 = vsel %vm4649, 1, 0
    %v4666 = vsel %vm4650, 1, 0
    %v4667 = vsel %vm4651, 1, 0
    %v4668 = vsel %vm4652, 1, 0
    %v4669 = vsel %vm4653, 1, 0
    %v4670 = vsel %vm4654, 1, 0
    %v4671 = vsel %vm4655, 1, 0
    %v4672 = vsel %vm4656, 1, 0
    %v4673 = vsel %vm4657, 1, 0
    %v4674 = vcvt.s32.f32 %v4658
    %v4675 = vcvt.s32.f32 %v4659
    %v4676 = vcvt.s32.f32 %v4660
    %v4677 = vcvt.s32.f32 %v4661
    %v4678 = vcvt.s32.f32 %v4662
    %v4679 = vcvt.s32.f32 %v4663
    %v4680 = vcvt.s32.f32 %v4664
    %v4681 = vcvt.s32.f32 %v4665
    %v4682 = vcvt.s32.f32 %v4666
    %v4683 = vcvt.s32.f32 %v4667
    %v4684 = vcvt.s32.f32 %v4668
    %v4685 = vcvt.s32.f32 %v4669
    %v4686 = vcvt.s32.f32 %v4670
    %v4687 = vcvt.s32.f32 %v4671
    %v4688 = vcvt.s32.f32 %v4672
    %v4689 = vcvt.s32.f32 %v4673
    %v4690 = vadd.f32 %v4098, %v4674
    %v4691 = vadd.f32 %v4099, %v4675
    %v4692 = vadd.f32 %v4100, %v4676
    %v4693 = vadd.f32 %v4101, %v4677
    %v4694 = vadd.f32 %v4102, %v4678
    %v4695 = vadd.f32 %v4103, %v4679
    %v4696 = vadd.f32 %v4104, %v4680
    %v4697 = vadd.f32 %v4105, %v4681
    %v4698 = vadd.f32 %v4106, %v4682
    %v4699 = vadd.f32 %v4107, %v4683
    %v4700 = vadd.f32 %v4108, %v4684
    %v4701 = vadd.f32 %v4109, %v4685
    %v4702 = vadd.f32 %v4110, %v4686
    %v4703 = vadd.f32 %v4111, %v4687
    %v4704 = vadd.f32 %v4112, %v4688
    %v4705 = vadd.f32 %v4113, %v4689
    %vm4706 = vmor %vm4594, %vm4642
    %vm4707 = vmor %vm4595, %vm4643
    %vm4708 = vmor %vm4596, %vm4644
    %vm4709 = vmor %vm4597, %vm4645
    %vm4710 = vmor %vm4598, %vm4646
    %vm4711 = vmor %vm4599, %vm4647
    %vm4712 = vmor %vm4600, %vm4648
    %vm4713 = vmor %vm4601, %vm4649
    %vm4714 = vmor %vm4602, %vm4650
    %vm4715 = vmor %vm4603, %vm4651
    %vm4716 = vmor %vm4604, %vm4652
    %vm4717 = vmor %vm4605, %vm4653
    %vm4718 = vmor %vm4606, %vm4654
    %vm4719 = vmor %vm4607, %vm4655
    %vm4720 = vmor %vm4608, %vm4656
    %vm4721 = vmor %vm4609, %vm4657
    %vm4722 = vcmp.eq.f32.partialorder %v4242, %v4306
    %vm4723 = vcmp.eq.f32.partialorder %v4243, %v4307
    %vm4724 = vcmp.eq.f32.partialorder %v4244, %v4308
    %vm4725 = vcmp.eq.f32.partialorder %v4245, %v4309
    %vm4726 = vcmp.eq.f32.partialorder %v4246, %v4310
    %vm4727 = vcmp.eq.f32.partialorder %v4247, %v4311
    %vm4728 = vcmp.eq.f32.partialorder %v4248, %v4312
    %vm4729 = vcmp.eq.f32.partialorder %v4249, %v4313
    %vm4730 = vcmp.eq.f32.partialorder %v4250, %v4314
    %vm4731 = vcmp.eq.f32.partialorder %v4251, %v4315
    %vm4732 = vcmp.eq.f32.partialorder %v4252, %v4316
    %vm4733 = vcmp.eq.f32.partialorder %v4253, %v4317
    %vm4734 = vcmp.eq.f32.partialorder %v4254, %v4318
    %vm4735 = vcmp.eq.f32.partialorder %v4255, %v4319
    %vm4736 = vcmp.eq.f32.partialorder %v4256, %v4320
    %vm4737 = vcmp.eq.f32.partialorder %v4257, %v4321
    %vm4738 = vmxor %vm4706, 1
    %vm4739 = vmxor %vm4707, 1
    %vm4740 = vmxor %vm4708, 1
    %vm4741 = vmxor %vm4709, 1
    %vm4742 = vmxor %vm4710, 1
    %vm4743 = vmxor %vm4711, 1
    %vm4744 = vmxor %vm4712, 1
    %vm4745 = vmxor %vm4713, 1
    %vm4746 = vmxor %vm4714, 1
    %vm4747 = vmxor %vm4715, 1
    %vm4748 = vmxor %vm4716, 1
    %vm4749 = vmxor %vm4717, 1
    %vm4750 = vmxor %vm4718, 1
    %vm4751 = vmxor %vm4719, 1
    %vm4752 = vmxor %vm4720, 1
    %vm4753 = vmxor %vm4721, 1
    %vm4754 = vmand %vm4722, %vm4738
    %vm4755 = vmand %vm4723, %vm4739
    %vm4756 = vmand %vm4724, %vm4740
    %vm4757 = vmand %vm4725, %vm4741
    %vm4758 = vmand %vm4726, %vm4742
    %vm4759 = vmand %vm4727, %vm4743
    %vm4760 = vmand %vm4728, %vm4744
    %vm4761 = vmand %vm4729, %vm4745
    %vm4762 = vmand %vm4730, %vm4746
    %vm4763 = vmand %vm4731, %vm4747
    %vm4764 = vmand %vm4732, %vm4748
    %vm4765 = vmand %vm4733, %vm4749
    %vm4766 = vmand %vm4734, %vm4750
    %vm4767 = vmand %vm4735, %vm4751
    %vm4768 = vmand %vm4736, %vm4752
    %vm4769 = vmand %vm4737, %vm4753
    %v4770 = vsel %vm4754, 1, 0
    %v4771 = vsel %vm4755, 1, 0
    %v4772 = vsel %vm4756, 1, 0
    %v4773 = vsel %vm4757, 1, 0
    %v4774 = vsel %vm4758, 1, 0
    %v4775 = vsel %vm4759, 1, 0
    %v4776 = vsel %vm4760, 1, 0
    %v4777 = vsel %vm4761, 1, 0
    %v4778 = vsel %vm4762, 1, 0
    %v4779 = vsel %vm4763, 1, 0
    %v4780 = vsel %vm4764, 1, 0
    %v4781 = vsel %vm4765, 1, 0
    %v4782 = vsel %vm4766, 1, 0
    %v4783 = vsel %vm4767, 1, 0
    %v4784 = vsel %vm4768, 1, 0
    %v4785 = vsel %vm4769, 1, 0
    %v4786 = vcvt.s32.f32 %v4770
    %v4787 = vcvt.s32.f32 %v4771
    %v4788 = vcvt.s32.f32 %v4772
    %v4789 = vcvt.s32.f32 %v4773
    %v4790 = vcvt.s32.f32 %v4774
    %v4791 = vcvt.s32.f32 %v4775
    %v4792 = vcvt.s32.f32 %v4776
    %v4793 = vcvt.s32.f32 %v4777
    %v4794 = vcvt.s32.f32 %v4778
    %v4795 = vcvt.s32.f32 %v4779
    %v4796 = vcvt.s32.f32 %v4780
    %v4797 = vcvt.s32.f32 %v4781
    %v4798 = vcvt.s32.f32 %v4782
    %v4799 = vcvt.s32.f32 %v4783
    %v4800 = vcvt.s32.f32 %v4784
    %v4801 = vcvt.s32.f32 %v4785
    %v4802 = vadd.f32 %v4226, %v4786
    %v4803 = vadd.f32 %v4227, %v4787
    %v4804 = vadd.f32 %v4228, %v4788
    %v4805 = vadd.f32 %v4229, %v4789
    %v4806 = vadd.f32 %v4230, %v4790
    %v4807 = vadd.f32 %v4231, %v4791
    %v4808 = vadd.f32 %v4232, %v4792
    %v4809 = vadd.f32 %v4233, %v4793
    %v4810 = vadd.f32 %v4234, %v4794
    %v4811 = vadd.f32 %v4235, %v4795
    %v4812 = vadd.f32 %v4236, %v4796
    %v4813 = vadd.f32 %v4237, %v4797
    %v4814 = vadd.f32 %v4238, %v4798
    %v4815 = vadd.f32 %v4239, %v4799
    %v4816 = vadd.f32 %v4240, %v4800
    %v4817 = vadd.f32 %v4241, %v4801
    %v4818 = vmul.f32 %v4370, %v2542
    %v4819 = vmul.f32 %v4371, %v2543
    %v4820 = vmul.f32 %v4372, %v2544
    %v4821 = vmul.f32 %v4373, %v2545
    %v4822 = vmul.f32 %v4374, %v2546
    %v4823 = vmul.f32 %v4375, %v2547
    %v4824 = vmul.f32 %v4376, %v2548
    %v4825 = vmul.f32 %v4377, %v2549
    %v4826 = vmul.f32 %v4378, %v2550
    %v4827 = vmul.f32 %v4379, %v2551
    %v4828 = vmul.f32 %v4380, %v2552
    %v4829 = vmul.f32 %v4381, %v2553
    %v4830 = vmul.f32 %v4382, %v2554
    %v4831 = vmul.f32 %v4383, %v2555
    %v4832 = vmul.f32 %v4384, %v2556
    %v4833 = vmul.f32 %v4385, %v2557
    %v4834 = vmul.f32 %v4466, %v2559
    %v4835 = vmul.f32 %v4467, %v2560
    %v4836 = vmul.f32 %v4468, %v2561
    %v4837 = vmul.f32 %v4469, %v2562
    %v4838 = vmul.f32 %v4470, %v2563
    %v4839 = vmul.f32 %v4471, %v2564
    %v4840 = vmul.f32 %v4472, %v2565
    %v4841 = vmul.f32 %v4473, %v2566
    %v4842 = vmul.f32 %v4474, %v2567
    %v4843 = vmul.f32 %v4475, %v2568
    %v4844 = vmul.f32 %v4476, %v2569
    %v4845 = vmul.f32 %v4477, %v2570
    %v4846 = vmul.f32 %v4478, %v2571
    %v4847 = vmul.f32 %v4479, %v2572
    %v4848 = vmul.f32 %v4480, %v2573
    %v4849 = vmul.f32 %v4481, %v2574
    %v4850 = vadd.f32 %v4818, %v4834
    %v4851 = vadd.f32 %v4819, %v4835
    %v4852 = vadd.f32 %v4820, %v4836
    %v4853 = vadd.f32 %v4821, %v4837
    %v4854 = vadd.f32 %v4822, %v4838
    %v4855 = vadd.f32 %v4823, %v4839
    %v4856 = vadd.f32 %v4824, %v4840
    %v4857 = vadd.f32 %v4825, %v4841
    %v4858 = vadd.f32 %v4826, %v4842
    %v4859 = vadd.f32 %v4827, %v4843
    %v4860 = vadd.f32 %v4828, %v4844
    %v4861 = vadd.f32 %v4829, %v4845
    %v4862 = vadd.f32 %v4830, %v4846
    %v4863 = vadd.f32 %v4831, %v4847
    %v4864 = vadd.f32 %v4832, %v4848
    %v4865 = vadd.f32 %v4833, %v4849
    %v4866 = vmul.f32 %v4578, %v2576
    %v4867 = vmul.f32 %v4579, %v2577
    %v4868 = vmul.f32 %v4580, %v2578
    %v4869 = vmul.f32 %v4581, %v2579
    %v4870 = vmul.f32 %v4582, %v2580
    %v4871 = vmul.f32 %v4583, %v2581
    %v4872 = vmul.f32 %v4584, %v2582
    %v4873 = vmul.f32 %v4585, %v2583
    %v4874 = vmul.f32 %v4586, %v2584
    %v4875 = vmul.f32 %v4587, %v2585
    %v4876 = vmul.f32 %v4588, %v2586
    %v4877 = vmul.f32 %v4589, %v2587
    %v4878 = vmul.f32 %v4590, %v2588
    %v4879 = vmul.f32 %v4591, %v2589
    %v4880 = vmul.f32 %v4592, %v2590
    %v4881 = vmul.f32 %v4593, %v2591
    %v4882 = vadd.f32 %v4850, %v4866
    %v4883 = vadd.f32 %v4851, %v4867
    %v4884 = vadd.f32 %v4852, %v4868
    %v4885 = vadd.f32 %v4853, %v4869
    %v4886 = vadd.f32 %v4854, %v4870
    %v4887 = vadd.f32 %v4855, %v4871
    %v4888 = vadd.f32 %v4856, %v4872
    %v4889 = vadd.f32 %v4857, %v4873
    %v4890 = vadd.f32 %v4858, %v4874
    %v4891 = vadd.f32 %v4859, %v4875
    %v4892 = vadd.f32 %v4860, %v4876
    %v4893 = vadd.f32 %v4861, %v4877
    %v4894 = vadd.f32 %v4862, %v4878
    %v4895 = vadd.f32 %v4863, %v4879
    %v4896 = vadd.f32 %v4864, %v4880
    %v4897 = vadd.f32 %v4865, %v4881
    %v4898 = vmul.f32 %v4690, %v2593
    %v4899 = vmul.f32 %v4691, %v2594
    %v4900 = vmul.f32 %v4692, %v2595
    %v4901 = vmul.f32 %v4693, %v2596
    %v4902 = vmul.f32 %v4694, %v2597
    %v4903 = vmul.f32 %v4695, %v2598
    %v4904 = vmul.f32 %v4696, %v2599
    %v4905 = vmul.f32 %v4697, %v2600
    %v4906 = vmul.f32 %v4698, %v2601
    %v4907 = vmul.f32 %v4699, %v2602
    %v4908 = vmul.f32 %v4700, %v2603
    %v4909 = vmul.f32 %v4701, %v2604
    %v4910 = vmul.f32 %v4702, %v2605
    %v4911 = vmul.f32 %v4703, %v2606
    %v4912 = vmul.f32 %v4704, %v2607
    %v4913 = vmul.f32 %v4705, %v2608
    %v4914 = vadd.f32 %v4882, %v4898
    %v4915 = vadd.f32 %v4883, %v4899
    %v4916 = vadd.f32 %v4884, %v4900
    %v4917 = vadd.f32 %v4885, %v4901
    %v4918 = vadd.f32 %v4886, %v4902
    %v4919 = vadd.f32 %v4887, %v4903
    %v4920 = vadd.f32 %v4888, %v4904
    %v4921 = vadd.f32 %v4889, %v4905
    %v4922 = vadd.f32 %v4890, %v4906
    %v4923 = vadd.f32 %v4891, %v4907
    %v4924 = vadd.f32 %v4892, %v4908
    %v4925 = vadd.f32 %v4893, %v4909
    %v4926 = vadd.f32 %v4894, %v4910
    %v4927 = vadd.f32 %v4895, %v4911
    %v4928 = vadd.f32 %v4896, %v4912
    %v4929 = vadd.f32 %v4897, %v4913
    %v4930 = vmul.f32 %v4802, %v2610
    %v4931 = vmul.f32 %v4803, %v2611
    %v4932 = vmul.f32 %v4804, %v2612
    %v4933 = vmul.f32 %v4805, %v2613
    %v4934 = vmul.f32 %v4806, %v2614
    %v4935 = vmul.f32 %v4807, %v2615
    %v4936 = vmul.f32 %v4808, %v2616
    %v4937 = vmul.f32 %v4809, %v2617
    %v4938 = vmul.f32 %v4810, %v2618
    %v4939 = vmul.f32 %v4811, %v2619
    %v4940 = vmul.f32 %v4812, %v2620
    %v4941 = vmul.f32 %v4813, %v2621
    %v4942 = vmul.f32 %v4814, %v2622
    %v4943 = vmul.f32 %v4815, %v2623
    %v4944 = vmul.f32 %v4816, %v2624
    %v4945 = vmul.f32 %v4817, %v2625
    %v4946 = vadd.f32 %v4914, %v4930
    %v4947 = vadd.f32 %v4915, %v4931
    %v4948 = vadd.f32 %v4916, %v4932
    %v4949 = vadd.f32 %v4917, %v4933
    %v4950 = vadd.f32 %v4918, %v4934
    %v4951 = vadd.f32 %v4919, %v4935
    %v4952 = vadd.f32 %v4920, %v4936
    %v4953 = vadd.f32 %v4921, %v4937
    %v4954 = vadd.f32 %v4922, %v4938
    %v4955 = vadd.f32 %v4923, %v4939
    %v4956 = vadd.f32 %v4924, %v4940
    %v4957 = vadd.f32 %v4925, %v4941
    %v4958 = vadd.f32 %v4926, %v4942
    %v4959 = vadd.f32 %v4927, %v4943
    %v4960 = vadd.f32 %v4928, %v4944
    %v4961 = vadd.f32 %v4929, %v4945
    %v4962 = vmul.f32 %v4946, 0.33333334
    %v4963 = vmul.f32 %v4947, 0.33333334
    %v4964 = vmul.f32 %v4948, 0.33333334
    %v4965 = vmul.f32 %v4949, 0.33333334
    %v4966 = vmul.f32 %v4950, 0.33333334
    %v4967 = vmul.f32 %v4951, 0.33333334
    %v4968 = vmul.f32 %v4952, 0.33333334
    %v4969 = vmul.f32 %v4953, 0.33333334
    %v4970 = vmul.f32 %v4954, 0.33333334
    %v4971 = vmul.f32 %v4955, 0.33333334
    %v4972 = vmul.f32 %v4956, 0.33333334
    %v4973 = vmul.f32 %v4957, 0.33333334
    %v4974 = vmul.f32 %v4958, 0.33333334
    %v4975 = vmul.f32 %v4959, 0.33333334
    %v4976 = vmul.f32 %v4960, 0.33333334
    %v4977 = vmul.f32 %v4961, 0.33333334
    %v4978 = vadd.f32 %v4962, %v2525
    %v4979 = vadd.f32 %v4963, %v2526
    %v4980 = vadd.f32 %v4964, %v2527
    %v4981 = vadd.f32 %v4965, %v2528
    %v4982 = vadd.f32 %v4966, %v2529
    %v4983 = vadd.f32 %v4967, %v2530
    %v4984 = vadd.f32 %v4968, %v2531
    %v4985 = vadd.f32 %v4969, %v2532
    %v4986 = vadd.f32 %v4970, %v2533
    %v4987 = vadd.f32 %v4971, %v2534
    %v4988 = vadd.f32 %v4972, %v2535
    %v4989 = vadd.f32 %v4973, %v2536
    %v4990 = vadd.f32 %v4974, %v2537
    %v4991 = vadd.f32 %v4975, %v2538
    %v4992 = vadd.f32 %v4976, %v2539
    %v4993 = vadd.f32 %v4977, %v2540
    %v4994 = vmul.f32 %v4978, 0.5
    %v4995 = vmul.f32 %v4979, 0.5
    %v4996 = vmul.f32 %v4980, 0.5
    %v4997 = vmul.f32 %v4981, 0.5
    %v4998 = vmul.f32 %v4982, 0.5
    %v4999 = vmul.f32 %v4983, 0.5
    %v5000 = vmul.f32 %v4984, 0.5
    %v5001 = vmul.f32 %v4985, 0.5
    %v5002 = vmul.f32 %v4986, 0.5
    %v5003 = vmul.f32 %v4987, 0.5
    %v5004 = vmul.f32 %v4988, 0.5
    %v5005 = vmul.f32 %v4989, 0.5
    %v5006 = vmul.f32 %v4990, 0.5
    %v5007 = vmul.f32 %v4991, 0.5
    %v5008 = vmul.f32 %v4992, 0.5
    %v5009 = vmul.f32 %v4993, 0.5
    %v5010 = vadd.f32 %v2508, %v4994
    %v5011 = vadd.f32 %v2509, %v4995
    %v5012 = vadd.f32 %v2510, %v4996
    %v5013 = vadd.f32 %v2511, %v4997
    %v5014 = vadd.f32 %v2512, %v4998
    %v5015 = vadd.f32 %v2513, %v4999
    %v5016 = vadd.f32 %v2514, %v5000
    %v5017 = vadd.f32 %v2515, %v5001
    %v5018 = vadd.f32 %v2516, %v5002
    %v5019 = vadd.f32 %v2517, %v5003
    %v5020 = vadd.f32 %v2518, %v5004
    %v5021 = vadd.f32 %v2519, %v5005
    %v5022 = vadd.f32 %v2520, %v5006
    %v5023 = vadd.f32 %v2521, %v5007
    %v5024 = vadd.f32 %v2522, %v5008
    %v5025 = vadd.f32 %v2523, %v5009
    %s5026 = scalar_lea.vmem [#allocation2], 256
    %v5027 = vld [vmem:[%s5026] sm:$0xff]
    %v5028 = vld [vmem:[%s5026 + $0x8] sm:$0xff]
    %v5029 = vld [vmem:[%s5026 + $0x10] sm:$0xff]
    %v5030 = vld [vmem:[%s5026 + $0x18] sm:$0xff]
    %v5031 = vld [vmem:[%s5026 + $0x20] sm:$0xff]
    %v5032 = vld [vmem:[%s5026 + $0x28] sm:$0xff]
    %v5033 = vld [vmem:[%s5026 + $0x30] sm:$0xff]
    %v5034 = vld [vmem:[%s5026 + $0x38] sm:$0xff]
    %v5035 = vld [vmem:[%s5026 + $0x40] sm:$0xff]
    %v5036 = vld [vmem:[%s5026 + $0x48] sm:$0xff]
    %v5037 = vld [vmem:[%s5026 + $0x50] sm:$0xff]
    %v5038 = vld [vmem:[%s5026 + $0x58] sm:$0xff]
    %v5039 = vld [vmem:[%s5026 + $0x60] sm:$0xff]
    %v5040 = vld [vmem:[%s5026 + $0x68] sm:$0xff]
    %v5041 = vld [vmem:[%s5026 + $0x70] sm:$0xff]
    %v5042 = vld [vmem:[%s5026 + $0x78] sm:$0xff]
    %s5043 = scalar_lea.vmem [#allocation5], 1280
    %v5044 = vld [vmem:[%s5043] sm:$0xff]
    %v5045 = vld [vmem:[%s5043 + $0x8] sm:$0xff]
    %v5046 = vld [vmem:[%s5043 + $0x10] sm:$0xff]
    %v5047 = vld [vmem:[%s5043 + $0x18] sm:$0xff]
    %v5048 = vld [vmem:[%s5043 + $0x20] sm:$0xff]
    %v5049 = vld [vmem:[%s5043 + $0x28] sm:$0xff]
    %v5050 = vld [vmem:[%s5043 + $0x30] sm:$0xff]
    %v5051 = vld [vmem:[%s5043 + $0x38] sm:$0xff]
    %v5052 = vld [vmem:[%s5043 + $0x40] sm:$0xff]
    %v5053 = vld [vmem:[%s5043 + $0x48] sm:$0xff]
    %v5054 = vld [vmem:[%s5043 + $0x50] sm:$0xff]
    %v5055 = vld [vmem:[%s5043 + $0x58] sm:$0xff]
    %v5056 = vld [vmem:[%s5043 + $0x60] sm:$0xff]
    %v5057 = vld [vmem:[%s5043 + $0x68] sm:$0xff]
    %v5058 = vld [vmem:[%s5043 + $0x70] sm:$0xff]
    %v5059 = vld [vmem:[%s5043 + $0x78] sm:$0xff]
    %s5060 = scalar_lea.vmem [#allocation5], 1408
    %v5061 = vld [vmem:[%s5060] sm:$0xff]
    %v5062 = vld [vmem:[%s5060 + $0x8] sm:$0xff]
    %v5063 = vld [vmem:[%s5060 + $0x10] sm:$0xff]
    %v5064 = vld [vmem:[%s5060 + $0x18] sm:$0xff]
    %v5065 = vld [vmem:[%s5060 + $0x20] sm:$0xff]
    %v5066 = vld [vmem:[%s5060 + $0x28] sm:$0xff]
    %v5067 = vld [vmem:[%s5060 + $0x30] sm:$0xff]
    %v5068 = vld [vmem:[%s5060 + $0x38] sm:$0xff]
    %v5069 = vld [vmem:[%s5060 + $0x40] sm:$0xff]
    %v5070 = vld [vmem:[%s5060 + $0x48] sm:$0xff]
    %v5071 = vld [vmem:[%s5060 + $0x50] sm:$0xff]
    %v5072 = vld [vmem:[%s5060 + $0x58] sm:$0xff]
    %v5073 = vld [vmem:[%s5060 + $0x60] sm:$0xff]
    %v5074 = vld [vmem:[%s5060 + $0x68] sm:$0xff]
    %v5075 = vld [vmem:[%s5060 + $0x70] sm:$0xff]
    %v5076 = vld [vmem:[%s5060 + $0x78] sm:$0xff]
    %s5077 = scalar_lea.vmem [#allocation5], 1536
    %v5078 = vld [vmem:[%s5077] sm:$0xff]
    %v5079 = vld [vmem:[%s5077 + $0x8] sm:$0xff]
    %v5080 = vld [vmem:[%s5077 + $0x10] sm:$0xff]
    %v5081 = vld [vmem:[%s5077 + $0x18] sm:$0xff]
    %v5082 = vld [vmem:[%s5077 + $0x20] sm:$0xff]
    %v5083 = vld [vmem:[%s5077 + $0x28] sm:$0xff]
    %v5084 = vld [vmem:[%s5077 + $0x30] sm:$0xff]
    %v5085 = vld [vmem:[%s5077 + $0x38] sm:$0xff]
    %v5086 = vld [vmem:[%s5077 + $0x40] sm:$0xff]
    %v5087 = vld [vmem:[%s5077 + $0x48] sm:$0xff]
    %v5088 = vld [vmem:[%s5077 + $0x50] sm:$0xff]
    %v5089 = vld [vmem:[%s5077 + $0x58] sm:$0xff]
    %v5090 = vld [vmem:[%s5077 + $0x60] sm:$0xff]
    %v5091 = vld [vmem:[%s5077 + $0x68] sm:$0xff]
    %v5092 = vld [vmem:[%s5077 + $0x70] sm:$0xff]
    %v5093 = vld [vmem:[%s5077 + $0x78] sm:$0xff]
    %s5094 = scalar_lea.vmem [#allocation5], 1664
    %v5095 = vld [vmem:[%s5094] sm:$0xff]
    %v5096 = vld [vmem:[%s5094 + $0x8] sm:$0xff]
    %v5097 = vld [vmem:[%s5094 + $0x10] sm:$0xff]
    %v5098 = vld [vmem:[%s5094 + $0x18] sm:$0xff]
    %v5099 = vld [vmem:[%s5094 + $0x20] sm:$0xff]
    %v5100 = vld [vmem:[%s5094 + $0x28] sm:$0xff]
    %v5101 = vld [vmem:[%s5094 + $0x30] sm:$0xff]
    %v5102 = vld [vmem:[%s5094 + $0x38] sm:$0xff]
    %v5103 = vld [vmem:[%s5094 + $0x40] sm:$0xff]
    %v5104 = vld [vmem:[%s5094 + $0x48] sm:$0xff]
    %v5105 = vld [vmem:[%s5094 + $0x50] sm:$0xff]
    %v5106 = vld [vmem:[%s5094 + $0x58] sm:$0xff]
    %v5107 = vld [vmem:[%s5094 + $0x60] sm:$0xff]
    %v5108 = vld [vmem:[%s5094 + $0x68] sm:$0xff]
    %v5109 = vld [vmem:[%s5094 + $0x70] sm:$0xff]
    %v5110 = vld [vmem:[%s5094 + $0x78] sm:$0xff]
    %s5111 = scalar_lea.vmem [#allocation5], 1792
    %v5112 = vld [vmem:[%s5111] sm:$0xff]
    %v5113 = vld [vmem:[%s5111 + $0x8] sm:$0xff]
    %v5114 = vld [vmem:[%s5111 + $0x10] sm:$0xff]
    %v5115 = vld [vmem:[%s5111 + $0x18] sm:$0xff]
    %v5116 = vld [vmem:[%s5111 + $0x20] sm:$0xff]
    %v5117 = vld [vmem:[%s5111 + $0x28] sm:$0xff]
    %v5118 = vld [vmem:[%s5111 + $0x30] sm:$0xff]
    %v5119 = vld [vmem:[%s5111 + $0x38] sm:$0xff]
    %v5120 = vld [vmem:[%s5111 + $0x40] sm:$0xff]
    %v5121 = vld [vmem:[%s5111 + $0x48] sm:$0xff]
    %v5122 = vld [vmem:[%s5111 + $0x50] sm:$0xff]
    %v5123 = vld [vmem:[%s5111 + $0x58] sm:$0xff]
    %v5124 = vld [vmem:[%s5111 + $0x60] sm:$0xff]
    %v5125 = vld [vmem:[%s5111 + $0x68] sm:$0xff]
    %v5126 = vld [vmem:[%s5111 + $0x70] sm:$0xff]
    %v5127 = vld [vmem:[%s5111 + $0x78] sm:$0xff]
    %v5128 = vmul.f32 %v5027, 2.0
    %v5129 = vmul.f32 %v5028, 2.0
    %v5130 = vmul.f32 %v5029, 2.0
    %v5131 = vmul.f32 %v5030, 2.0
    %v5132 = vmul.f32 %v5031, 2.0
    %v5133 = vmul.f32 %v5032, 2.0
    %v5134 = vmul.f32 %v5033, 2.0
    %v5135 = vmul.f32 %v5034, 2.0
    %v5136 = vmul.f32 %v5035, 2.0
    %v5137 = vmul.f32 %v5036, 2.0
    %v5138 = vmul.f32 %v5037, 2.0
    %v5139 = vmul.f32 %v5038, 2.0
    %v5140 = vmul.f32 %v5039, 2.0
    %v5141 = vmul.f32 %v5040, 2.0
    %v5142 = vmul.f32 %v5041, 2.0
    %v5143 = vmul.f32 %v5042, 2.0
    %v5144 = vadd.f32 %v5128, 2e-06
    %v5145 = vadd.f32 %v5129, 2e-06
    %v5146 = vadd.f32 %v5130, 2e-06
    %v5147 = vadd.f32 %v5131, 2e-06
    %v5148 = vadd.f32 %v5132, 2e-06
    %v5149 = vadd.f32 %v5133, 2e-06
    %v5150 = vadd.f32 %v5134, 2e-06
    %v5151 = vadd.f32 %v5135, 2e-06
    %v5152 = vadd.f32 %v5136, 2e-06
    %v5153 = vadd.f32 %v5137, 2e-06
    %v5154 = vadd.f32 %v5138, 2e-06
    %v5155 = vadd.f32 %v5139, 2e-06
    %v5156 = vadd.f32 %v5140, 2e-06
    %v5157 = vadd.f32 %v5141, 2e-06
    %v5158 = vadd.f32 %v5142, 2e-06
    %v5159 = vadd.f32 %v5143, 2e-06
    %v5160 = vsub.f32 %v5044, %v5144
    %v5161 = vsub.f32 %v5045, %v5145
    %v5162 = vsub.f32 %v5046, %v5146
    %v5163 = vsub.f32 %v5047, %v5147
    %v5164 = vsub.f32 %v5048, %v5148
    %v5165 = vsub.f32 %v5049, %v5149
    %v5166 = vsub.f32 %v5050, %v5150
    %v5167 = vsub.f32 %v5051, %v5151
    %v5168 = vsub.f32 %v5052, %v5152
    %v5169 = vsub.f32 %v5053, %v5153
    %v5170 = vsub.f32 %v5054, %v5154
    %v5171 = vsub.f32 %v5055, %v5155
    %v5172 = vsub.f32 %v5056, %v5156
    %v5173 = vsub.f32 %v5057, %v5157
    %v5174 = vsub.f32 %v5058, %v5158
    %v5175 = vsub.f32 %v5059, %v5159
    %v5176 = vmul.f32 %v5044, %v5160
    %v5177 = vmul.f32 %v5045, %v5161
    %v5178 = vmul.f32 %v5046, %v5162
    %v5179 = vmul.f32 %v5047, %v5163
    %v5180 = vmul.f32 %v5048, %v5164
    %v5181 = vmul.f32 %v5049, %v5165
    %v5182 = vmul.f32 %v5050, %v5166
    %v5183 = vmul.f32 %v5051, %v5167
    %v5184 = vmul.f32 %v5052, %v5168
    %v5185 = vmul.f32 %v5053, %v5169
    %v5186 = vmul.f32 %v5054, %v5170
    %v5187 = vmul.f32 %v5055, %v5171
    %v5188 = vmul.f32 %v5056, %v5172
    %v5189 = vmul.f32 %v5057, %v5173
    %v5190 = vmul.f32 %v5058, %v5174
    %v5191 = vmul.f32 %v5059, %v5175
    %5192 = vadd.xlane.f32.xlu0 %v5176
    %v5193 = vpop.xlane.xlu0 %5192
    %5194 = vadd.xlane.f32.xlu0 %v5177
    %v5195 = vpop.xlane.xlu0 %5194
    %5196 = vadd.xlane.f32.xlu0 %v5178
    %v5197 = vpop.xlane.xlu0 %5196
    %5198 = vadd.xlane.f32.xlu0 %v5179
    %v5199 = vpop.xlane.xlu0 %5198
    %5200 = vadd.xlane.f32.xlu0 %v5180
    %v5201 = vpop.xlane.xlu0 %5200
    %5202 = vadd.xlane.f32.xlu0 %v5181
    %v5203 = vpop.xlane.xlu0 %5202
    %5204 = vadd.xlane.f32.xlu0 %v5182
    %v5205 = vpop.xlane.xlu0 %5204
    %5206 = vadd.xlane.f32.xlu0 %v5183
    %v5207 = vpop.xlane.xlu0 %5206
    %5208 = vadd.xlane.f32.xlu0 %v5184
    %v5209 = vpop.xlane.xlu0 %5208
    %5210 = vadd.xlane.f32.xlu0 %v5185
    %v5211 = vpop.xlane.xlu0 %5210
    %5212 = vadd.xlane.f32.xlu0 %v5186
    %v5213 = vpop.xlane.xlu0 %5212
    %5214 = vadd.xlane.f32.xlu0 %v5187
    %v5215 = vpop.xlane.xlu0 %5214
    %5216 = vadd.xlane.f32.xlu0 %v5188
    %v5217 = vpop.xlane.xlu0 %5216
    %5218 = vadd.xlane.f32.xlu0 %v5189
    %v5219 = vpop.xlane.xlu0 %5218
    %5220 = vadd.xlane.f32.xlu0 %v5190
    %v5221 = vpop.xlane.xlu0 %5220
    %5222 = vadd.xlane.f32.xlu0 %v5191
    %v5223 = vpop.xlane.xlu0 %5222
    %v5224 = vsub.f32 %v5061, %v5144
    %v5225 = vsub.f32 %v5062, %v5145
    %v5226 = vsub.f32 %v5063, %v5146
    %v5227 = vsub.f32 %v5064, %v5147
    %v5228 = vsub.f32 %v5065, %v5148
    %v5229 = vsub.f32 %v5066, %v5149
    %v5230 = vsub.f32 %v5067, %v5150
    %v5231 = vsub.f32 %v5068, %v5151
    %v5232 = vsub.f32 %v5069, %v5152
    %v5233 = vsub.f32 %v5070, %v5153
    %v5234 = vsub.f32 %v5071, %v5154
    %v5235 = vsub.f32 %v5072, %v5155
    %v5236 = vsub.f32 %v5073, %v5156
    %v5237 = vsub.f32 %v5074, %v5157
    %v5238 = vsub.f32 %v5075, %v5158
    %v5239 = vsub.f32 %v5076, %v5159
    %v5240 = vmul.f32 %v5061, %v5224
    %v5241 = vmul.f32 %v5062, %v5225
    %v5242 = vmul.f32 %v5063, %v5226
    %v5243 = vmul.f32 %v5064, %v5227
    %v5244 = vmul.f32 %v5065, %v5228
    %v5245 = vmul.f32 %v5066, %v5229
    %v5246 = vmul.f32 %v5067, %v5230
    %v5247 = vmul.f32 %v5068, %v5231
    %v5248 = vmul.f32 %v5069, %v5232
    %v5249 = vmul.f32 %v5070, %v5233
    %v5250 = vmul.f32 %v5071, %v5234
    %v5251 = vmul.f32 %v5072, %v5235
    %v5252 = vmul.f32 %v5073, %v5236
    %v5253 = vmul.f32 %v5074, %v5237
    %v5254 = vmul.f32 %v5075, %v5238
    %v5255 = vmul.f32 %v5076, %v5239
    %5256 = vadd.xlane.f32.xlu0 %v5240
    %v5257 = vpop.xlane.xlu0 %5256
    %5258 = vadd.xlane.f32.xlu0 %v5241
    %v5259 = vpop.xlane.xlu0 %5258
    %5260 = vadd.xlane.f32.xlu0 %v5242
    %v5261 = vpop.xlane.xlu0 %5260
    %5262 = vadd.xlane.f32.xlu0 %v5243
    %v5263 = vpop.xlane.xlu0 %5262
    %5264 = vadd.xlane.f32.xlu0 %v5244
    %v5265 = vpop.xlane.xlu0 %5264
    %5266 = vadd.xlane.f32.xlu0 %v5245
    %v5267 = vpop.xlane.xlu0 %5266
    %5268 = vadd.xlane.f32.xlu0 %v5246
    %v5269 = vpop.xlane.xlu0 %5268
    %5270 = vadd.xlane.f32.xlu0 %v5247
    %v5271 = vpop.xlane.xlu0 %5270
    %5272 = vadd.xlane.f32.xlu0 %v5248
    %v5273 = vpop.xlane.xlu0 %5272
    %5274 = vadd.xlane.f32.xlu0 %v5249
    %v5275 = vpop.xlane.xlu0 %5274
    %5276 = vadd.xlane.f32.xlu0 %v5250
    %v5277 = vpop.xlane.xlu0 %5276
    %5278 = vadd.xlane.f32.xlu0 %v5251
    %v5279 = vpop.xlane.xlu0 %5278
    %5280 = vadd.xlane.f32.xlu0 %v5252
    %v5281 = vpop.xlane.xlu0 %5280
    %5282 = vadd.xlane.f32.xlu0 %v5253
    %v5283 = vpop.xlane.xlu0 %5282
    %5284 = vadd.xlane.f32.xlu0 %v5254
    %v5285 = vpop.xlane.xlu0 %5284
    %5286 = vadd.xlane.f32.xlu0 %v5255
    %v5287 = vpop.xlane.xlu0 %5286
    %v5288 = vsub.f32 %v5078, %v5144
    %v5289 = vsub.f32 %v5079, %v5145
    %v5290 = vsub.f32 %v5080, %v5146
    %v5291 = vsub.f32 %v5081, %v5147
    %v5292 = vsub.f32 %v5082, %v5148
    %v5293 = vsub.f32 %v5083, %v5149
    %v5294 = vsub.f32 %v5084, %v5150
    %v5295 = vsub.f32 %v5085, %v5151
    %v5296 = vsub.f32 %v5086, %v5152
    %v5297 = vsub.f32 %v5087, %v5153
    %v5298 = vsub.f32 %v5088, %v5154
    %v5299 = vsub.f32 %v5089, %v5155
    %v5300 = vsub.f32 %v5090, %v5156
    %v5301 = vsub.f32 %v5091, %v5157
    %v5302 = vsub.f32 %v5092, %v5158
    %v5303 = vsub.f32 %v5093, %v5159
    %v5304 = vmul.f32 %v5078, %v5288
    %v5305 = vmul.f32 %v5079, %v5289
    %v5306 = vmul.f32 %v5080, %v5290
    %v5307 = vmul.f32 %v5081, %v5291
    %v5308 = vmul.f32 %v5082, %v5292
    %v5309 = vmul.f32 %v5083, %v5293
    %v5310 = vmul.f32 %v5084, %v5294
    %v5311 = vmul.f32 %v5085, %v5295
    %v5312 = vmul.f32 %v5086, %v5296
    %v5313 = vmul.f32 %v5087, %v5297
    %v5314 = vmul.f32 %v5088, %v5298
    %v5315 = vmul.f32 %v5089, %v5299
    %v5316 = vmul.f32 %v5090, %v5300
    %v5317 = vmul.f32 %v5091, %v5301
    %v5318 = vmul.f32 %v5092, %v5302
    %v5319 = vmul.f32 %v5093, %v5303
    %5320 = vadd.xlane.f32.xlu0 %v5304
    %v5321 = vpop.xlane.xlu0 %5320
    %5322 = vadd.xlane.f32.xlu0 %v5305
    %v5323 = vpop.xlane.xlu0 %5322
    %5324 = vadd.xlane.f32.xlu0 %v5306
    %v5325 = vpop.xlane.xlu0 %5324
    %5326 = vadd.xlane.f32.xlu0 %v5307
    %v5327 = vpop.xlane.xlu0 %5326
    %5328 = vadd.xlane.f32.xlu0 %v5308
    %v5329 = vpop.xlane.xlu0 %5328
    %5330 = vadd.xlane.f32.xlu0 %v5309
    %v5331 = vpop.xlane.xlu0 %5330
    %5332 = vadd.xlane.f32.xlu0 %v5310
    %v5333 = vpop.xlane.xlu0 %5332
    %5334 = vadd.xlane.f32.xlu0 %v5311
    %v5335 = vpop.xlane.xlu0 %5334
    %5336 = vadd.xlane.f32.xlu0 %v5312
    %v5337 = vpop.xlane.xlu0 %5336
    %5338 = vadd.xlane.f32.xlu0 %v5313
    %v5339 = vpop.xlane.xlu0 %5338
    %5340 = vadd.xlane.f32.xlu0 %v5314
    %v5341 = vpop.xlane.xlu0 %5340
    %5342 = vadd.xlane.f32.xlu0 %v5315
    %v5343 = vpop.xlane.xlu0 %5342
    %5344 = vadd.xlane.f32.xlu0 %v5316
    %v5345 = vpop.xlane.xlu0 %5344
    %5346 = vadd.xlane.f32.xlu0 %v5317
    %v5347 = vpop.xlane.xlu0 %5346
    %5348 = vadd.xlane.f32.xlu0 %v5318
    %v5349 = vpop.xlane.xlu0 %5348
    %5350 = vadd.xlane.f32.xlu0 %v5319
    %v5351 = vpop.xlane.xlu0 %5350
    %v5352 = vsub.f32 %v5095, %v5144
    %v5353 = vsub.f32 %v5096, %v5145
    %v5354 = vsub.f32 %v5097, %v5146
    %v5355 = vsub.f32 %v5098, %v5147
    %v5356 = vsub.f32 %v5099, %v5148
    %v5357 = vsub.f32 %v5100, %v5149
    %v5358 = vsub.f32 %v5101, %v5150
    %v5359 = vsub.f32 %v5102, %v5151
    %v5360 = vsub.f32 %v5103, %v5152
    %v5361 = vsub.f32 %v5104, %v5153
    %v5362 = vsub.f32 %v5105, %v5154
    %v5363 = vsub.f32 %v5106, %v5155
    %v5364 = vsub.f32 %v5107, %v5156
    %v5365 = vsub.f32 %v5108, %v5157
    %v5366 = vsub.f32 %v5109, %v5158
    %v5367 = vsub.f32 %v5110, %v5159
    %v5368 = vmul.f32 %v5095, %v5352
    %v5369 = vmul.f32 %v5096, %v5353
    %v5370 = vmul.f32 %v5097, %v5354
    %v5371 = vmul.f32 %v5098, %v5355
    %v5372 = vmul.f32 %v5099, %v5356
    %v5373 = vmul.f32 %v5100, %v5357
    %v5374 = vmul.f32 %v5101, %v5358
    %v5375 = vmul.f32 %v5102, %v5359
    %v5376 = vmul.f32 %v5103, %v5360
    %v5377 = vmul.f32 %v5104, %v5361
    %v5378 = vmul.f32 %v5105, %v5362
    %v5379 = vmul.f32 %v5106, %v5363
    %v5380 = vmul.f32 %v5107, %v5364
    %v5381 = vmul.f32 %v5108, %v5365
    %v5382 = vmul.f32 %v5109, %v5366
    %v5383 = vmul.f32 %v5110, %v5367
    %5384 = vadd.xlane.f32.xlu0 %v5368
    %v5385 = vpop.xlane.xlu0 %5384
    %5386 = vadd.xlane.f32.xlu0 %v5369
    %v5387 = vpop.xlane.xlu0 %5386
    %5388 = vadd.xlane.f32.xlu0 %v5370
    %v5389 = vpop.xlane.xlu0 %5388
    %5390 = vadd.xlane.f32.xlu0 %v5371
    %v5391 = vpop.xlane.xlu0 %5390
    %5392 = vadd.xlane.f32.xlu0 %v5372
    %v5393 = vpop.xlane.xlu0 %5392
    %5394 = vadd.xlane.f32.xlu0 %v5373
    %v5395 = vpop.xlane.xlu0 %5394
    %5396 = vadd.xlane.f32.xlu0 %v5374
    %v5397 = vpop.xlane.xlu0 %5396
    %5398 = vadd.xlane.f32.xlu0 %v5375
    %v5399 = vpop.xlane.xlu0 %5398
    %5400 = vadd.xlane.f32.xlu0 %v5376
    %v5401 = vpop.xlane.xlu0 %5400
    %5402 = vadd.xlane.f32.xlu0 %v5377
    %v5403 = vpop.xlane.xlu0 %5402
    %5404 = vadd.xlane.f32.xlu0 %v5378
    %v5405 = vpop.xlane.xlu0 %5404
    %5406 = vadd.xlane.f32.xlu0 %v5379
    %v5407 = vpop.xlane.xlu0 %5406
    %5408 = vadd.xlane.f32.xlu0 %v5380
    %v5409 = vpop.xlane.xlu0 %5408
    %5410 = vadd.xlane.f32.xlu0 %v5381
    %v5411 = vpop.xlane.xlu0 %5410
    %5412 = vadd.xlane.f32.xlu0 %v5382
    %v5413 = vpop.xlane.xlu0 %5412
    %5414 = vadd.xlane.f32.xlu0 %v5383
    %v5415 = vpop.xlane.xlu0 %5414
    %v5416 = vsub.f32 %v5112, %v5144
    %v5417 = vsub.f32 %v5113, %v5145
    %v5418 = vsub.f32 %v5114, %v5146
    %v5419 = vsub.f32 %v5115, %v5147
    %v5420 = vsub.f32 %v5116, %v5148
    %v5421 = vsub.f32 %v5117, %v5149
    %v5422 = vsub.f32 %v5118, %v5150
    %v5423 = vsub.f32 %v5119, %v5151
    %v5424 = vsub.f32 %v5120, %v5152
    %v5425 = vsub.f32 %v5121, %v5153
    %v5426 = vsub.f32 %v5122, %v5154
    %v5427 = vsub.f32 %v5123, %v5155
    %v5428 = vsub.f32 %v5124, %v5156
    %v5429 = vsub.f32 %v5125, %v5157
    %v5430 = vsub.f32 %v5126, %v5158
    %v5431 = vsub.f32 %v5127, %v5159
    %v5432 = vmul.f32 %v5112, %v5416
    %v5433 = vmul.f32 %v5113, %v5417
    %v5434 = vmul.f32 %v5114, %v5418
    %v5435 = vmul.f32 %v5115, %v5419
    %v5436 = vmul.f32 %v5116, %v5420
    %v5437 = vmul.f32 %v5117, %v5421
    %v5438 = vmul.f32 %v5118, %v5422
    %v5439 = vmul.f32 %v5119, %v5423
    %v5440 = vmul.f32 %v5120, %v5424
    %v5441 = vmul.f32 %v5121, %v5425
    %v5442 = vmul.f32 %v5122, %v5426
    %v5443 = vmul.f32 %v5123, %v5427
    %v5444 = vmul.f32 %v5124, %v5428
    %v5445 = vmul.f32 %v5125, %v5429
    %v5446 = vmul.f32 %v5126, %v5430
    %v5447 = vmul.f32 %v5127, %v5431
    %5448 = vadd.xlane.f32.xlu0 %v5432
    %v5449 = vpop.xlane.xlu0 %5448
    %5450 = vadd.xlane.f32.xlu0 %v5433
    %v5451 = vpop.xlane.xlu0 %5450
    %5452 = vadd.xlane.f32.xlu0 %v5434
    %v5453 = vpop.xlane.xlu0 %5452
    %5454 = vadd.xlane.f32.xlu0 %v5435
    %v5455 = vpop.xlane.xlu0 %5454
    %5456 = vadd.xlane.f32.xlu0 %v5436
    %v5457 = vpop.xlane.xlu0 %5456
    %5458 = vadd.xlane.f32.xlu0 %v5437
    %v5459 = vpop.xlane.xlu0 %5458
    %5460 = vadd.xlane.f32.xlu0 %v5438
    %v5461 = vpop.xlane.xlu0 %5460
    %5462 = vadd.xlane.f32.xlu0 %v5439
    %v5463 = vpop.xlane.xlu0 %5462
    %5464 = vadd.xlane.f32.xlu0 %v5440
    %v5465 = vpop.xlane.xlu0 %5464
    %5466 = vadd.xlane.f32.xlu0 %v5441
    %v5467 = vpop.xlane.xlu0 %5466
    %5468 = vadd.xlane.f32.xlu0 %v5442
    %v5469 = vpop.xlane.xlu0 %5468
    %5470 = vadd.xlane.f32.xlu0 %v5443
    %v5471 = vpop.xlane.xlu0 %5470
    %5472 = vadd.xlane.f32.xlu0 %v5444
    %v5473 = vpop.xlane.xlu0 %5472
    %5474 = vadd.xlane.f32.xlu0 %v5445
    %v5475 = vpop.xlane.xlu0 %5474
    %5476 = vadd.xlane.f32.xlu0 %v5446
    %v5477 = vpop.xlane.xlu0 %5476
    %5478 = vadd.xlane.f32.xlu0 %v5447
    %v5479 = vpop.xlane.xlu0 %5478
    %v5480 = vmax.f32 %v5193, %v5257
    %v5481 = vmax.f32 %v5195, %v5259
    %v5482 = vmax.f32 %v5197, %v5261
    %v5483 = vmax.f32 %v5199, %v5263
    %v5484 = vmax.f32 %v5201, %v5265
    %v5485 = vmax.f32 %v5203, %v5267
    %v5486 = vmax.f32 %v5205, %v5269
    %v5487 = vmax.f32 %v5207, %v5271
    %v5488 = vmax.f32 %v5209, %v5273
    %v5489 = vmax.f32 %v5211, %v5275
    %v5490 = vmax.f32 %v5213, %v5277
    %v5491 = vmax.f32 %v5215, %v5279
    %v5492 = vmax.f32 %v5217, %v5281
    %v5493 = vmax.f32 %v5219, %v5283
    %v5494 = vmax.f32 %v5221, %v5285
    %v5495 = vmax.f32 %v5223, %v5287
    %v5496 = vmax.f32 %v5480, %v5321
    %v5497 = vmax.f32 %v5481, %v5323
    %v5498 = vmax.f32 %v5482, %v5325
    %v5499 = vmax.f32 %v5483, %v5327
    %v5500 = vmax.f32 %v5484, %v5329
    %v5501 = vmax.f32 %v5485, %v5331
    %v5502 = vmax.f32 %v5486, %v5333
    %v5503 = vmax.f32 %v5487, %v5335
    %v5504 = vmax.f32 %v5488, %v5337
    %v5505 = vmax.f32 %v5489, %v5339
    %v5506 = vmax.f32 %v5490, %v5341
    %v5507 = vmax.f32 %v5491, %v5343
    %v5508 = vmax.f32 %v5492, %v5345
    %v5509 = vmax.f32 %v5493, %v5347
    %v5510 = vmax.f32 %v5494, %v5349
    %v5511 = vmax.f32 %v5495, %v5351
    %v5512 = vmax.f32 %v5496, %v5385
    %v5513 = vmax.f32 %v5497, %v5387
    %v5514 = vmax.f32 %v5498, %v5389
    %v5515 = vmax.f32 %v5499, %v5391
    %v5516 = vmax.f32 %v5500, %v5393
    %v5517 = vmax.f32 %v5501, %v5395
    %v5518 = vmax.f32 %v5502, %v5397
    %v5519 = vmax.f32 %v5503, %v5399
    %v5520 = vmax.f32 %v5504, %v5401
    %v5521 = vmax.f32 %v5505, %v5403
    %v5522 = vmax.f32 %v5506, %v5405
    %v5523 = vmax.f32 %v5507, %v5407
    %v5524 = vmax.f32 %v5508, %v5409
    %v5525 = vmax.f32 %v5509, %v5411
    %v5526 = vmax.f32 %v5510, %v5413
    %v5527 = vmax.f32 %v5511, %v5415
    %v5528 = vmax.f32 %v5512, %v5449
    %v5529 = vmax.f32 %v5513, %v5451
    %v5530 = vmax.f32 %v5514, %v5453
    %v5531 = vmax.f32 %v5515, %v5455
    %v5532 = vmax.f32 %v5516, %v5457
    %v5533 = vmax.f32 %v5517, %v5459
    %v5534 = vmax.f32 %v5518, %v5461
    %v5535 = vmax.f32 %v5519, %v5463
    %v5536 = vmax.f32 %v5520, %v5465
    %v5537 = vmax.f32 %v5521, %v5467
    %v5538 = vmax.f32 %v5522, %v5469
    %v5539 = vmax.f32 %v5523, %v5471
    %v5540 = vmax.f32 %v5524, %v5473
    %v5541 = vmax.f32 %v5525, %v5475
    %v5542 = vmax.f32 %v5526, %v5477
    %v5543 = vmax.f32 %v5527, %v5479
    %vm5544 = vcmp.eq.f32.partialorder %v5193, %v5528
    %vm5545 = vcmp.eq.f32.partialorder %v5195, %v5529
    %vm5546 = vcmp.eq.f32.partialorder %v5197, %v5530
    %vm5547 = vcmp.eq.f32.partialorder %v5199, %v5531
    %vm5548 = vcmp.eq.f32.partialorder %v5201, %v5532
    %vm5549 = vcmp.eq.f32.partialorder %v5203, %v5533
    %vm5550 = vcmp.eq.f32.partialorder %v5205, %v5534
    %vm5551 = vcmp.eq.f32.partialorder %v5207, %v5535
    %vm5552 = vcmp.eq.f32.partialorder %v5209, %v5536
    %vm5553 = vcmp.eq.f32.partialorder %v5211, %v5537
    %vm5554 = vcmp.eq.f32.partialorder %v5213, %v5538
    %vm5555 = vcmp.eq.f32.partialorder %v5215, %v5539
    %vm5556 = vcmp.eq.f32.partialorder %v5217, %v5540
    %vm5557 = vcmp.eq.f32.partialorder %v5219, %v5541
    %vm5558 = vcmp.eq.f32.partialorder %v5221, %v5542
    %vm5559 = vcmp.eq.f32.partialorder %v5223, %v5543
    %v5560 = vsel %vm5544, 1, 0
    %v5561 = vsel %vm5545, 1, 0
    %v5562 = vsel %vm5546, 1, 0
    %v5563 = vsel %vm5547, 1, 0
    %v5564 = vsel %vm5548, 1, 0
    %v5565 = vsel %vm5549, 1, 0
    %v5566 = vsel %vm5550, 1, 0
    %v5567 = vsel %vm5551, 1, 0
    %v5568 = vsel %vm5552, 1, 0
    %v5569 = vsel %vm5553, 1, 0
    %v5570 = vsel %vm5554, 1, 0
    %v5571 = vsel %vm5555, 1, 0
    %v5572 = vsel %vm5556, 1, 0
    %v5573 = vsel %vm5557, 1, 0
    %v5574 = vsel %vm5558, 1, 0
    %v5575 = vsel %vm5559, 1, 0
    %v5576 = vcvt.s32.f32 %v5560
    %v5577 = vcvt.s32.f32 %v5561
    %v5578 = vcvt.s32.f32 %v5562
    %v5579 = vcvt.s32.f32 %v5563
    %v5580 = vcvt.s32.f32 %v5564
    %v5581 = vcvt.s32.f32 %v5565
    %v5582 = vcvt.s32.f32 %v5566
    %v5583 = vcvt.s32.f32 %v5567
    %v5584 = vcvt.s32.f32 %v5568
    %v5585 = vcvt.s32.f32 %v5569
    %v5586 = vcvt.s32.f32 %v5570
    %v5587 = vcvt.s32.f32 %v5571
    %v5588 = vcvt.s32.f32 %v5572
    %v5589 = vcvt.s32.f32 %v5573
    %v5590 = vcvt.s32.f32 %v5574
    %v5591 = vcvt.s32.f32 %v5575
    %v5592 = vadd.f32 %v5576, 0.0
    %v5593 = vadd.f32 %v5577, 0.0
    %v5594 = vadd.f32 %v5578, 0.0
    %v5595 = vadd.f32 %v5579, 0.0
    %v5596 = vadd.f32 %v5580, 0.0
    %v5597 = vadd.f32 %v5581, 0.0
    %v5598 = vadd.f32 %v5582, 0.0
    %v5599 = vadd.f32 %v5583, 0.0
    %v5600 = vadd.f32 %v5584, 0.0
    %v5601 = vadd.f32 %v5585, 0.0
    %v5602 = vadd.f32 %v5586, 0.0
    %v5603 = vadd.f32 %v5587, 0.0
    %v5604 = vadd.f32 %v5588, 0.0
    %v5605 = vadd.f32 %v5589, 0.0
    %v5606 = vadd.f32 %v5590, 0.0
    %v5607 = vadd.f32 %v5591, 0.0
    %v5608 = vsel %vm5544, -inf, %v5193
    %v5609 = vsel %vm5545, -inf, %v5195
    %v5610 = vsel %vm5546, -inf, %v5197
    %v5611 = vsel %vm5547, -inf, %v5199
    %v5612 = vsel %vm5548, -inf, %v5201
    %v5613 = vsel %vm5549, -inf, %v5203
    %v5614 = vsel %vm5550, -inf, %v5205
    %v5615 = vsel %vm5551, -inf, %v5207
    %v5616 = vsel %vm5552, -inf, %v5209
    %v5617 = vsel %vm5553, -inf, %v5211
    %v5618 = vsel %vm5554, -inf, %v5213
    %v5619 = vsel %vm5555, -inf, %v5215
    %v5620 = vsel %vm5556, -inf, %v5217
    %v5621 = vsel %vm5557, -inf, %v5219
    %v5622 = vsel %vm5558, -inf, %v5221
    %v5623 = vsel %vm5559, -inf, %v5223
    %vm5624 = vcmp.eq.f32.partialorder %v5257, %v5528
    %vm5625 = vcmp.eq.f32.partialorder %v5259, %v5529
    %vm5626 = vcmp.eq.f32.partialorder %v5261, %v5530
    %vm5627 = vcmp.eq.f32.partialorder %v5263, %v5531
    %vm5628 = vcmp.eq.f32.partialorder %v5265, %v5532
    %vm5629 = vcmp.eq.f32.partialorder %v5267, %v5533
    %vm5630 = vcmp.eq.f32.partialorder %v5269, %v5534
    %vm5631 = vcmp.eq.f32.partialorder %v5271, %v5535
    %vm5632 = vcmp.eq.f32.partialorder %v5273, %v5536
    %vm5633 = vcmp.eq.f32.partialorder %v5275, %v5537
    %vm5634 = vcmp.eq.f32.partialorder %v5277, %v5538
    %vm5635 = vcmp.eq.f32.partialorder %v5279, %v5539
    %vm5636 = vcmp.eq.f32.partialorder %v5281, %v5540
    %vm5637 = vcmp.eq.f32.partialorder %v5283, %v5541
    %vm5638 = vcmp.eq.f32.partialorder %v5285, %v5542
    %vm5639 = vcmp.eq.f32.partialorder %v5287, %v5543
    %vm5640 = vmxor %vm5544, 1
    %vm5641 = vmxor %vm5545, 1
    %vm5642 = vmxor %vm5546, 1
    %vm5643 = vmxor %vm5547, 1
    %vm5644 = vmxor %vm5548, 1
    %vm5645 = vmxor %vm5549, 1
    %vm5646 = vmxor %vm5550, 1
    %vm5647 = vmxor %vm5551, 1
    %vm5648 = vmxor %vm5552, 1
    %vm5649 = vmxor %vm5553, 1
    %vm5650 = vmxor %vm5554, 1
    %vm5651 = vmxor %vm5555, 1
    %vm5652 = vmxor %vm5556, 1
    %vm5653 = vmxor %vm5557, 1
    %vm5654 = vmxor %vm5558, 1
    %vm5655 = vmxor %vm5559, 1
    %vm5656 = vmand %vm5624, %vm5640
    %vm5657 = vmand %vm5625, %vm5641
    %vm5658 = vmand %vm5626, %vm5642
    %vm5659 = vmand %vm5627, %vm5643
    %vm5660 = vmand %vm5628, %vm5644
    %vm5661 = vmand %vm5629, %vm5645
    %vm5662 = vmand %vm5630, %vm5646
    %vm5663 = vmand %vm5631, %vm5647
    %vm5664 = vmand %vm5632, %vm5648
    %vm5665 = vmand %vm5633, %vm5649
    %vm5666 = vmand %vm5634, %vm5650
    %vm5667 = vmand %vm5635, %vm5651
    %vm5668 = vmand %vm5636, %vm5652
    %vm5669 = vmand %vm5637, %vm5653
    %vm5670 = vmand %vm5638, %vm5654
    %vm5671 = vmand %vm5639, %vm5655
    %v5672 = vsel %vm5656, 1, 0
    %v5673 = vsel %vm5657, 1, 0
    %v5674 = vsel %vm5658, 1, 0
    %v5675 = vsel %vm5659, 1, 0
    %v5676 = vsel %vm5660, 1, 0
    %v5677 = vsel %vm5661, 1, 0
    %v5678 = vsel %vm5662, 1, 0
    %v5679 = vsel %vm5663, 1, 0
    %v5680 = vsel %vm5664, 1, 0
    %v5681 = vsel %vm5665, 1, 0
    %v5682 = vsel %vm5666, 1, 0
    %v5683 = vsel %vm5667, 1, 0
    %v5684 = vsel %vm5668, 1, 0
    %v5685 = vsel %vm5669, 1, 0
    %v5686 = vsel %vm5670, 1, 0
    %v5687 = vsel %vm5671, 1, 0
    %v5688 = vcvt.s32.f32 %v5672
    %v5689 = vcvt.s32.f32 %v5673
    %v5690 = vcvt.s32.f32 %v5674
    %v5691 = vcvt.s32.f32 %v5675
    %v5692 = vcvt.s32.f32 %v5676
    %v5693 = vcvt.s32.f32 %v5677
    %v5694 = vcvt.s32.f32 %v5678
    %v5695 = vcvt.s32.f32 %v5679
    %v5696 = vcvt.s32.f32 %v5680
    %v5697 = vcvt.s32.f32 %v5681
    %v5698 = vcvt.s32.f32 %v5682
    %v5699 = vcvt.s32.f32 %v5683
    %v5700 = vcvt.s32.f32 %v5684
    %v5701 = vcvt.s32.f32 %v5685
    %v5702 = vcvt.s32.f32 %v5686
    %v5703 = vcvt.s32.f32 %v5687
    %v5704 = vadd.f32 %v5688, 0.0
    %v5705 = vadd.f32 %v5689, 0.0
    %v5706 = vadd.f32 %v5690, 0.0
    %v5707 = vadd.f32 %v5691, 0.0
    %v5708 = vadd.f32 %v5692, 0.0
    %v5709 = vadd.f32 %v5693, 0.0
    %v5710 = vadd.f32 %v5694, 0.0
    %v5711 = vadd.f32 %v5695, 0.0
    %v5712 = vadd.f32 %v5696, 0.0
    %v5713 = vadd.f32 %v5697, 0.0
    %v5714 = vadd.f32 %v5698, 0.0
    %v5715 = vadd.f32 %v5699, 0.0
    %v5716 = vadd.f32 %v5700, 0.0
    %v5717 = vadd.f32 %v5701, 0.0
    %v5718 = vadd.f32 %v5702, 0.0
    %v5719 = vadd.f32 %v5703, 0.0
    %v5720 = vsel %vm5656, -inf, %v5257
    %v5721 = vsel %vm5657, -inf, %v5259
    %v5722 = vsel %vm5658, -inf, %v5261
    %v5723 = vsel %vm5659, -inf, %v5263
    %v5724 = vsel %vm5660, -inf, %v5265
    %v5725 = vsel %vm5661, -inf, %v5267
    %v5726 = vsel %vm5662, -inf, %v5269
    %v5727 = vsel %vm5663, -inf, %v5271
    %v5728 = vsel %vm5664, -inf, %v5273
    %v5729 = vsel %vm5665, -inf, %v5275
    %v5730 = vsel %vm5666, -inf, %v5277
    %v5731 = vsel %vm5667, -inf, %v5279
    %v5732 = vsel %vm5668, -inf, %v5281
    %v5733 = vsel %vm5669, -inf, %v5283
    %v5734 = vsel %vm5670, -inf, %v5285
    %v5735 = vsel %vm5671, -inf, %v5287
    %vm5736 = vmor %vm5544, %vm5656
    %vm5737 = vmor %vm5545, %vm5657
    %vm5738 = vmor %vm5546, %vm5658
    %vm5739 = vmor %vm5547, %vm5659
    %vm5740 = vmor %vm5548, %vm5660
    %vm5741 = vmor %vm5549, %vm5661
    %vm5742 = vmor %vm5550, %vm5662
    %vm5743 = vmor %vm5551, %vm5663
    %vm5744 = vmor %vm5552, %vm5664
    %vm5745 = vmor %vm5553, %vm5665
    %vm5746 = vmor %vm5554, %vm5666
    %vm5747 = vmor %vm5555, %vm5667
    %vm5748 = vmor %vm5556, %vm5668
    %vm5749 = vmor %vm5557, %vm5669
    %vm5750 = vmor %vm5558, %vm5670
    %vm5751 = vmor %vm5559, %vm5671
    %vm5752 = vcmp.eq.f32.partialorder %v5321, %v5528
    %vm5753 = vcmp.eq.f32.partialorder %v5323, %v5529
    %vm5754 = vcmp.eq.f32.partialorder %v5325, %v5530
    %vm5755 = vcmp.eq.f32.partialorder %v5327, %v5531
    %vm5756 = vcmp.eq.f32.partialorder %v5329, %v5532
    %vm5757 = vcmp.eq.f32.partialorder %v5331, %v5533
    %vm5758 = vcmp.eq.f32.partialorder %v5333, %v5534
    %vm5759 = vcmp.eq.f32.partialorder %v5335, %v5535
    %vm5760 = vcmp.eq.f32.partialorder %v5337, %v5536
    %vm5761 = vcmp.eq.f32.partialorder %v5339, %v5537
    %vm5762 = vcmp.eq.f32.partialorder %v5341, %v5538
    %vm5763 = vcmp.eq.f32.partialorder %v5343, %v5539
    %vm5764 = vcmp.eq.f32.partialorder %v5345, %v5540
    %vm5765 = vcmp.eq.f32.partialorder %v5347, %v5541
    %vm5766 = vcmp.eq.f32.partialorder %v5349, %v5542
    %vm5767 = vcmp.eq.f32.partialorder %v5351, %v5543
    %vm5768 = vmxor %vm5736, 1
    %vm5769 = vmxor %vm5737, 1
    %vm5770 = vmxor %vm5738, 1
    %vm5771 = vmxor %vm5739, 1
    %vm5772 = vmxor %vm5740, 1
    %vm5773 = vmxor %vm5741, 1
    %vm5774 = vmxor %vm5742, 1
    %vm5775 = vmxor %vm5743, 1
    %vm5776 = vmxor %vm5744, 1
    %vm5777 = vmxor %vm5745, 1
    %vm5778 = vmxor %vm5746, 1
    %vm5779 = vmxor %vm5747, 1
    %vm5780 = vmxor %vm5748, 1
    %vm5781 = vmxor %vm5749, 1
    %vm5782 = vmxor %vm5750, 1
    %vm5783 = vmxor %vm5751, 1
    %vm5784 = vmand %vm5752, %vm5768
    %vm5785 = vmand %vm5753, %vm5769
    %vm5786 = vmand %vm5754, %vm5770
    %vm5787 = vmand %vm5755, %vm5771
    %vm5788 = vmand %vm5756, %vm5772
    %vm5789 = vmand %vm5757, %vm5773
    %vm5790 = vmand %vm5758, %vm5774
    %vm5791 = vmand %vm5759, %vm5775
    %vm5792 = vmand %vm5760, %vm5776
    %vm5793 = vmand %vm5761, %vm5777
    %vm5794 = vmand %vm5762, %vm5778
    %vm5795 = vmand %vm5763, %vm5779
    %vm5796 = vmand %vm5764, %vm5780
    %vm5797 = vmand %vm5765, %vm5781
    %vm5798 = vmand %vm5766, %vm5782
    %vm5799 = vmand %vm5767, %vm5783
    %v5800 = vsel %vm5784, 1, 0
    %v5801 = vsel %vm5785, 1, 0
    %v5802 = vsel %vm5786, 1, 0
    %v5803 = vsel %vm5787, 1, 0
    %v5804 = vsel %vm5788, 1, 0
    %v5805 = vsel %vm5789, 1, 0
    %v5806 = vsel %vm5790, 1, 0
    %v5807 = vsel %vm5791, 1, 0
    %v5808 = vsel %vm5792, 1, 0
    %v5809 = vsel %vm5793, 1, 0
    %v5810 = vsel %vm5794, 1, 0
    %v5811 = vsel %vm5795, 1, 0
    %v5812 = vsel %vm5796, 1, 0
    %v5813 = vsel %vm5797, 1, 0
    %v5814 = vsel %vm5798, 1, 0
    %v5815 = vsel %vm5799, 1, 0
    %v5816 = vcvt.s32.f32 %v5800
    %v5817 = vcvt.s32.f32 %v5801
    %v5818 = vcvt.s32.f32 %v5802
    %v5819 = vcvt.s32.f32 %v5803
    %v5820 = vcvt.s32.f32 %v5804
    %v5821 = vcvt.s32.f32 %v5805
    %v5822 = vcvt.s32.f32 %v5806
    %v5823 = vcvt.s32.f32 %v5807
    %v5824 = vcvt.s32.f32 %v5808
    %v5825 = vcvt.s32.f32 %v5809
    %v5826 = vcvt.s32.f32 %v5810
    %v5827 = vcvt.s32.f32 %v5811
    %v5828 = vcvt.s32.f32 %v5812
    %v5829 = vcvt.s32.f32 %v5813
    %v5830 = vcvt.s32.f32 %v5814
    %v5831 = vcvt.s32.f32 %v5815
    %v5832 = vadd.f32 %v5816, 0.0
    %v5833 = vadd.f32 %v5817, 0.0
    %v5834 = vadd.f32 %v5818, 0.0
    %v5835 = vadd.f32 %v5819, 0.0
    %v5836 = vadd.f32 %v5820, 0.0
    %v5837 = vadd.f32 %v5821, 0.0
    %v5838 = vadd.f32 %v5822, 0.0
    %v5839 = vadd.f32 %v5823, 0.0
    %v5840 = vadd.f32 %v5824, 0.0
    %v5841 = vadd.f32 %v5825, 0.0
    %v5842 = vadd.f32 %v5826, 0.0
    %v5843 = vadd.f32 %v5827, 0.0
    %v5844 = vadd.f32 %v5828, 0.0
    %v5845 = vadd.f32 %v5829, 0.0
    %v5846 = vadd.f32 %v5830, 0.0
    %v5847 = vadd.f32 %v5831, 0.0
    %v5848 = vsel %vm5784, -inf, %v5321
    %v5849 = vsel %vm5785, -inf, %v5323
    %v5850 = vsel %vm5786, -inf, %v5325
    %v5851 = vsel %vm5787, -inf, %v5327
    %v5852 = vsel %vm5788, -inf, %v5329
    %v5853 = vsel %vm5789, -inf, %v5331
    %v5854 = vsel %vm5790, -inf, %v5333
    %v5855 = vsel %vm5791, -inf, %v5335
    %v5856 = vsel %vm5792, -inf, %v5337
    %v5857 = vsel %vm5793, -inf, %v5339
    %v5858 = vsel %vm5794, -inf, %v5341
    %v5859 = vsel %vm5795, -inf, %v5343
    %v5860 = vsel %vm5796, -inf, %v5345
    %v5861 = vsel %vm5797, -inf, %v5347
    %v5862 = vsel %vm5798, -inf, %v5349
    %v5863 = vsel %vm5799, -inf, %v5351
    %vm5864 = vmor %vm5736, %vm5784
    %vm5865 = vmor %vm5737, %vm5785
    %vm5866 = vmor %vm5738, %vm5786
    %vm5867 = vmor %vm5739, %vm5787
    %vm5868 = vmor %vm5740, %vm5788
    %vm5869 = vmor %vm5741, %vm5789
    %vm5870 = vmor %vm5742, %vm5790
    %vm5871 = vmor %vm5743, %vm5791
    %vm5872 = vmor %vm5744, %vm5792
    %vm5873 = vmor %vm5745, %vm5793
    %vm5874 = vmor %vm5746, %vm5794
    %vm5875 = vmor %vm5747, %vm5795
    %vm5876 = vmor %vm5748, %vm5796
    %vm5877 = vmor %vm5749, %vm5797
    %vm5878 = vmor %vm5750, %vm5798
    %vm5879 = vmor %vm5751, %vm5799
    %vm5880 = vcmp.eq.f32.partialorder %v5385, %v5528
    %vm5881 = vcmp.eq.f32.partialorder %v5387, %v5529
    %vm5882 = vcmp.eq.f32.partialorder %v5389, %v5530
    %vm5883 = vcmp.eq.f32.partialorder %v5391, %v5531
    %vm5884 = vcmp.eq.f32.partialorder %v5393, %v5532
    %vm5885 = vcmp.eq.f32.partialorder %v5395, %v5533
    %vm5886 = vcmp.eq.f32.partialorder %v5397, %v5534
    %vm5887 = vcmp.eq.f32.partialorder %v5399, %v5535
    %vm5888 = vcmp.eq.f32.partialorder %v5401, %v5536
    %vm5889 = vcmp.eq.f32.partialorder %v5403, %v5537
    %vm5890 = vcmp.eq.f32.partialorder %v5405, %v5538
    %vm5891 = vcmp.eq.f32.partialorder %v5407, %v5539
    %vm5892 = vcmp.eq.f32.partialorder %v5409, %v5540
    %vm5893 = vcmp.eq.f32.partialorder %v5411, %v5541
    %vm5894 = vcmp.eq.f32.partialorder %v5413, %v5542
    %vm5895 = vcmp.eq.f32.partialorder %v5415, %v5543
    %vm5896 = vmxor %vm5864, 1
    %vm5897 = vmxor %vm5865, 1
    %vm5898 = vmxor %vm5866, 1
    %vm5899 = vmxor %vm5867, 1
    %vm5900 = vmxor %vm5868, 1
    %vm5901 = vmxor %vm5869, 1
    %vm5902 = vmxor %vm5870, 1
    %vm5903 = vmxor %vm5871, 1
    %vm5904 = vmxor %vm5872, 1
    %vm5905 = vmxor %vm5873, 1
    %vm5906 = vmxor %vm5874, 1
    %vm5907 = vmxor %vm5875, 1
    %vm5908 = vmxor %vm5876, 1
    %vm5909 = vmxor %vm5877, 1
    %vm5910 = vmxor %vm5878, 1
    %vm5911 = vmxor %vm5879, 1
    %vm5912 = vmand %vm5880, %vm5896
    %vm5913 = vmand %vm5881, %vm5897
    %vm5914 = vmand %vm5882, %vm5898
    %vm5915 = vmand %vm5883, %vm5899
    %vm5916 = vmand %vm5884, %vm5900
    %vm5917 = vmand %vm5885, %vm5901
    %vm5918 = vmand %vm5886, %vm5902
    %vm5919 = vmand %vm5887, %vm5903
    %vm5920 = vmand %vm5888, %vm5904
    %vm5921 = vmand %vm5889, %vm5905
    %vm5922 = vmand %vm5890, %vm5906
    %vm5923 = vmand %vm5891, %vm5907
    %vm5924 = vmand %vm5892, %vm5908
    %vm5925 = vmand %vm5893, %vm5909
    %vm5926 = vmand %vm5894, %vm5910
    %vm5927 = vmand %vm5895, %vm5911
    %v5928 = vsel %vm5912, 1, 0
    %v5929 = vsel %vm5913, 1, 0
    %v5930 = vsel %vm5914, 1, 0
    %v5931 = vsel %vm5915, 1, 0
    %v5932 = vsel %vm5916, 1, 0
    %v5933 = vsel %vm5917, 1, 0
    %v5934 = vsel %vm5918, 1, 0
    %v5935 = vsel %vm5919, 1, 0
    %v5936 = vsel %vm5920, 1, 0
    %v5937 = vsel %vm5921, 1, 0
    %v5938 = vsel %vm5922, 1, 0
    %v5939 = vsel %vm5923, 1, 0
    %v5940 = vsel %vm5924, 1, 0
    %v5941 = vsel %vm5925, 1, 0
    %v5942 = vsel %vm5926, 1, 0
    %v5943 = vsel %vm5927, 1, 0
    %v5944 = vcvt.s32.f32 %v5928
    %v5945 = vcvt.s32.f32 %v5929
    %v5946 = vcvt.s32.f32 %v5930
    %v5947 = vcvt.s32.f32 %v5931
    %v5948 = vcvt.s32.f32 %v5932
    %v5949 = vcvt.s32.f32 %v5933
    %v5950 = vcvt.s32.f32 %v5934
    %v5951 = vcvt.s32.f32 %v5935
    %v5952 = vcvt.s32.f32 %v5936
    %v5953 = vcvt.s32.f32 %v5937
    %v5954 = vcvt.s32.f32 %v5938
    %v5955 = vcvt.s32.f32 %v5939
    %v5956 = vcvt.s32.f32 %v5940
    %v5957 = vcvt.s32.f32 %v5941
    %v5958 = vcvt.s32.f32 %v5942
    %v5959 = vcvt.s32.f32 %v5943
    %v5960 = vadd.f32 %v5944, 0.0
    %v5961 = vadd.f32 %v5945, 0.0
    %v5962 = vadd.f32 %v5946, 0.0
    %v5963 = vadd.f32 %v5947, 0.0
    %v5964 = vadd.f32 %v5948, 0.0
    %v5965 = vadd.f32 %v5949, 0.0
    %v5966 = vadd.f32 %v5950, 0.0
    %v5967 = vadd.f32 %v5951, 0.0
    %v5968 = vadd.f32 %v5952, 0.0
    %v5969 = vadd.f32 %v5953, 0.0
    %v5970 = vadd.f32 %v5954, 0.0
    %v5971 = vadd.f32 %v5955, 0.0
    %v5972 = vadd.f32 %v5956, 0.0
    %v5973 = vadd.f32 %v5957, 0.0
    %v5974 = vadd.f32 %v5958, 0.0
    %v5975 = vadd.f32 %v5959, 0.0
    %v5976 = vsel %vm5912, -inf, %v5385
    %v5977 = vsel %vm5913, -inf, %v5387
    %v5978 = vsel %vm5914, -inf, %v5389
    %v5979 = vsel %vm5915, -inf, %v5391
    %v5980 = vsel %vm5916, -inf, %v5393
    %v5981 = vsel %vm5917, -inf, %v5395
    %v5982 = vsel %vm5918, -inf, %v5397
    %v5983 = vsel %vm5919, -inf, %v5399
    %v5984 = vsel %vm5920, -inf, %v5401
    %v5985 = vsel %vm5921, -inf, %v5403
    %v5986 = vsel %vm5922, -inf, %v5405
    %v5987 = vsel %vm5923, -inf, %v5407
    %v5988 = vsel %vm5924, -inf, %v5409
    %v5989 = vsel %vm5925, -inf, %v5411
    %v5990 = vsel %vm5926, -inf, %v5413
    %v5991 = vsel %vm5927, -inf, %v5415
    %vm5992 = vmor %vm5864, %vm5912
    %vm5993 = vmor %vm5865, %vm5913
    %vm5994 = vmor %vm5866, %vm5914
    %vm5995 = vmor %vm5867, %vm5915
    %vm5996 = vmor %vm5868, %vm5916
    %vm5997 = vmor %vm5869, %vm5917
    %vm5998 = vmor %vm5870, %vm5918
    %vm5999 = vmor %vm5871, %vm5919
    %vm6000 = vmor %vm5872, %vm5920
    %vm6001 = vmor %vm5873, %vm5921
    %vm6002 = vmor %vm5874, %vm5922
    %vm6003 = vmor %vm5875, %vm5923
    %vm6004 = vmor %vm5876, %vm5924
    %vm6005 = vmor %vm5877, %vm5925
    %vm6006 = vmor %vm5878, %vm5926
    %vm6007 = vmor %vm5879, %vm5927
    %vm6008 = vcmp.eq.f32.partialorder %v5449, %v5528
    %vm6009 = vcmp.eq.f32.partialorder %v5451, %v5529
    %vm6010 = vcmp.eq.f32.partialorder %v5453, %v5530
    %vm6011 = vcmp.eq.f32.partialorder %v5455, %v5531
    %vm6012 = vcmp.eq.f32.partialorder %v5457, %v5532
    %vm6013 = vcmp.eq.f32.partialorder %v5459, %v5533
    %vm6014 = vcmp.eq.f32.partialorder %v5461, %v5534
    %vm6015 = vcmp.eq.f32.partialorder %v5463, %v5535
    %vm6016 = vcmp.eq.f32.partialorder %v5465, %v5536
    %vm6017 = vcmp.eq.f32.partialorder %v5467, %v5537
    %vm6018 = vcmp.eq.f32.partialorder %v5469, %v5538
    %vm6019 = vcmp.eq.f32.partialorder %v5471, %v5539
    %vm6020 = vcmp.eq.f32.partialorder %v5473, %v5540
    %vm6021 = vcmp.eq.f32.partialorder %v5475, %v5541
    %vm6022 = vcmp.eq.f32.partialorder %v5477, %v5542
    %vm6023 = vcmp.eq.f32.partialorder %v5479, %v5543
    %vm6024 = vmxor %vm5992, 1
    %vm6025 = vmxor %vm5993, 1
    %vm6026 = vmxor %vm5994, 1
    %vm6027 = vmxor %vm5995, 1
    %vm6028 = vmxor %vm5996, 1
    %vm6029 = vmxor %vm5997, 1
    %vm6030 = vmxor %vm5998, 1
    %vm6031 = vmxor %vm5999, 1
    %vm6032 = vmxor %vm6000, 1
    %vm6033 = vmxor %vm6001, 1
    %vm6034 = vmxor %vm6002, 1
    %vm6035 = vmxor %vm6003, 1
    %vm6036 = vmxor %vm6004, 1
    %vm6037 = vmxor %vm6005, 1
    %vm6038 = vmxor %vm6006, 1
    %vm6039 = vmxor %vm6007, 1
    %vm6040 = vmand %vm6008, %vm6024
    %vm6041 = vmand %vm6009, %vm6025
    %vm6042 = vmand %vm6010, %vm6026
    %vm6043 = vmand %vm6011, %vm6027
    %vm6044 = vmand %vm6012, %vm6028
    %vm6045 = vmand %vm6013, %vm6029
    %vm6046 = vmand %vm6014, %vm6030
    %vm6047 = vmand %vm6015, %vm6031
    %vm6048 = vmand %vm6016, %vm6032
    %vm6049 = vmand %vm6017, %vm6033
    %vm6050 = vmand %vm6018, %vm6034
    %vm6051 = vmand %vm6019, %vm6035
    %vm6052 = vmand %vm6020, %vm6036
    %vm6053 = vmand %vm6021, %vm6037
    %vm6054 = vmand %vm6022, %vm6038
    %vm6055 = vmand %vm6023, %vm6039
    %v6056 = vsel %vm6040, 1, 0
    %v6057 = vsel %vm6041, 1, 0
    %v6058 = vsel %vm6042, 1, 0
    %v6059 = vsel %vm6043, 1, 0
    %v6060 = vsel %vm6044, 1, 0
    %v6061 = vsel %vm6045, 1, 0
    %v6062 = vsel %vm6046, 1, 0
    %v6063 = vsel %vm6047, 1, 0
    %v6064 = vsel %vm6048, 1, 0
    %v6065 = vsel %vm6049, 1, 0
    %v6066 = vsel %vm6050, 1, 0
    %v6067 = vsel %vm6051, 1, 0
    %v6068 = vsel %vm6052, 1, 0
    %v6069 = vsel %vm6053, 1, 0
    %v6070 = vsel %vm6054, 1, 0
    %v6071 = vsel %vm6055, 1, 0
    %v6072 = vcvt.s32.f32 %v6056
    %v6073 = vcvt.s32.f32 %v6057
    %v6074 = vcvt.s32.f32 %v6058
    %v6075 = vcvt.s32.f32 %v6059
    %v6076 = vcvt.s32.f32 %v6060
    %v6077 = vcvt.s32.f32 %v6061
    %v6078 = vcvt.s32.f32 %v6062
    %v6079 = vcvt.s32.f32 %v6063
    %v6080 = vcvt.s32.f32 %v6064
    %v6081 = vcvt.s32.f32 %v6065
    %v6082 = vcvt.s32.f32 %v6066
    %v6083 = vcvt.s32.f32 %v6067
    %v6084 = vcvt.s32.f32 %v6068
    %v6085 = vcvt.s32.f32 %v6069
    %v6086 = vcvt.s32.f32 %v6070
    %v6087 = vcvt.s32.f32 %v6071
    %v6088 = vadd.f32 %v6072, 0.0
    %v6089 = vadd.f32 %v6073, 0.0
    %v6090 = vadd.f32 %v6074, 0.0
    %v6091 = vadd.f32 %v6075, 0.0
    %v6092 = vadd.f32 %v6076, 0.0
    %v6093 = vadd.f32 %v6077, 0.0
    %v6094 = vadd.f32 %v6078, 0.0
    %v6095 = vadd.f32 %v6079, 0.0
    %v6096 = vadd.f32 %v6080, 0.0
    %v6097 = vadd.f32 %v6081, 0.0
    %v6098 = vadd.f32 %v6082, 0.0
    %v6099 = vadd.f32 %v6083, 0.0
    %v6100 = vadd.f32 %v6084, 0.0
    %v6101 = vadd.f32 %v6085, 0.0
    %v6102 = vadd.f32 %v6086, 0.0
    %v6103 = vadd.f32 %v6087, 0.0
    %v6104 = vsel %vm6040, -inf, %v5449
    %v6105 = vsel %vm6041, -inf, %v5451
    %v6106 = vsel %vm6042, -inf, %v5453
    %v6107 = vsel %vm6043, -inf, %v5455
    %v6108 = vsel %vm6044, -inf, %v5457
    %v6109 = vsel %vm6045, -inf, %v5459
    %v6110 = vsel %vm6046, -inf, %v5461
    %v6111 = vsel %vm6047, -inf, %v5463
    %v6112 = vsel %vm6048, -inf, %v5465
    %v6113 = vsel %vm6049, -inf, %v5467
    %v6114 = vsel %vm6050, -inf, %v5469
    %v6115 = vsel %vm6051, -inf, %v5471
    %v6116 = vsel %vm6052, -inf, %v5473
    %v6117 = vsel %vm6053, -inf, %v5475
    %v6118 = vsel %vm6054, -inf, %v5477
    %v6119 = vsel %vm6055, -inf, %v5479
    %v6120 = vmax.f32 %v5608, %v5720
    %v6121 = vmax.f32 %v5609, %v5721
    %v6122 = vmax.f32 %v5610, %v5722
    %v6123 = vmax.f32 %v5611, %v5723
    %v6124 = vmax.f32 %v5612, %v5724
    %v6125 = vmax.f32 %v5613, %v5725
    %v6126 = vmax.f32 %v5614, %v5726
    %v6127 = vmax.f32 %v5615, %v5727
    %v6128 = vmax.f32 %v5616, %v5728
    %v6129 = vmax.f32 %v5617, %v5729
    %v6130 = vmax.f32 %v5618, %v5730
    %v6131 = vmax.f32 %v5619, %v5731
    %v6132 = vmax.f32 %v5620, %v5732
    %v6133 = vmax.f32 %v5621, %v5733
    %v6134 = vmax.f32 %v5622, %v5734
    %v6135 = vmax.f32 %v5623, %v5735
    %v6136 = vmax.f32 %v6120, %v5848
    %v6137 = vmax.f32 %v6121, %v5849
    %v6138 = vmax.f32 %v6122, %v5850
    %v6139 = vmax.f32 %v6123, %v5851
    %v6140 = vmax.f32 %v6124, %v5852
    %v6141 = vmax.f32 %v6125, %v5853
    %v6142 = vmax.f32 %v6126, %v5854
    %v6143 = vmax.f32 %v6127, %v5855
    %v6144 = vmax.f32 %v6128, %v5856
    %v6145 = vmax.f32 %v6129, %v5857
    %v6146 = vmax.f32 %v6130, %v5858
    %v6147 = vmax.f32 %v6131, %v5859
    %v6148 = vmax.f32 %v6132, %v5860
    %v6149 = vmax.f32 %v6133, %v5861
    %v6150 = vmax.f32 %v6134, %v5862
    %v6151 = vmax.f32 %v6135, %v5863
    %v6152 = vmax.f32 %v6136, %v5976
    %v6153 = vmax.f32 %v6137, %v5977
    %v6154 = vmax.f32 %v6138, %v5978
    %v6155 = vmax.f32 %v6139, %v5979
    %v6156 = vmax.f32 %v6140, %v5980
    %v6157 = vmax.f32 %v6141, %v5981
    %v6158 = vmax.f32 %v6142, %v5982
    %v6159 = vmax.f32 %v6143, %v5983
    %v6160 = vmax.f32 %v6144, %v5984
    %v6161 = vmax.f32 %v6145, %v5985
    %v6162 = vmax.f32 %v6146, %v5986
    %v6163 = vmax.f32 %v6147, %v5987
    %v6164 = vmax.f32 %v6148, %v5988
    %v6165 = vmax.f32 %v6149, %v5989
    %v6166 = vmax.f32 %v6150, %v5990
    %v6167 = vmax.f32 %v6151, %v5991
    %v6168 = vmax.f32 %v6152, %v6104
    %v6169 = vmax.f32 %v6153, %v6105
    %v6170 = vmax.f32 %v6154, %v6106
    %v6171 = vmax.f32 %v6155, %v6107
    %v6172 = vmax.f32 %v6156, %v6108
    %v6173 = vmax.f32 %v6157, %v6109
    %v6174 = vmax.f32 %v6158, %v6110
    %v6175 = vmax.f32 %v6159, %v6111
    %v6176 = vmax.f32 %v6160, %v6112
    %v6177 = vmax.f32 %v6161, %v6113
    %v6178 = vmax.f32 %v6162, %v6114
    %v6179 = vmax.f32 %v6163, %v6115
    %v6180 = vmax.f32 %v6164, %v6116
    %v6181 = vmax.f32 %v6165, %v6117
    %v6182 = vmax.f32 %v6166, %v6118
    %v6183 = vmax.f32 %v6167, %v6119
    %vm6184 = vcmp.eq.f32.partialorder %v5608, %v6168
    %vm6185 = vcmp.eq.f32.partialorder %v5609, %v6169
    %vm6186 = vcmp.eq.f32.partialorder %v5610, %v6170
    %vm6187 = vcmp.eq.f32.partialorder %v5611, %v6171
    %vm6188 = vcmp.eq.f32.partialorder %v5612, %v6172
    %vm6189 = vcmp.eq.f32.partialorder %v5613, %v6173
    %vm6190 = vcmp.eq.f32.partialorder %v5614, %v6174
    %vm6191 = vcmp.eq.f32.partialorder %v5615, %v6175
    %vm6192 = vcmp.eq.f32.partialorder %v5616, %v6176
    %vm6193 = vcmp.eq.f32.partialorder %v5617, %v6177
    %vm6194 = vcmp.eq.f32.partialorder %v5618, %v6178
    %vm6195 = vcmp.eq.f32.partialorder %v5619, %v6179
    %vm6196 = vcmp.eq.f32.partialorder %v5620, %v6180
    %vm6197 = vcmp.eq.f32.partialorder %v5621, %v6181
    %vm6198 = vcmp.eq.f32.partialorder %v5622, %v6182
    %vm6199 = vcmp.eq.f32.partialorder %v5623, %v6183
    %v6200 = vsel %vm6184, 1, 0
    %v6201 = vsel %vm6185, 1, 0
    %v6202 = vsel %vm6186, 1, 0
    %v6203 = vsel %vm6187, 1, 0
    %v6204 = vsel %vm6188, 1, 0
    %v6205 = vsel %vm6189, 1, 0
    %v6206 = vsel %vm6190, 1, 0
    %v6207 = vsel %vm6191, 1, 0
    %v6208 = vsel %vm6192, 1, 0
    %v6209 = vsel %vm6193, 1, 0
    %v6210 = vsel %vm6194, 1, 0
    %v6211 = vsel %vm6195, 1, 0
    %v6212 = vsel %vm6196, 1, 0
    %v6213 = vsel %vm6197, 1, 0
    %v6214 = vsel %vm6198, 1, 0
    %v6215 = vsel %vm6199, 1, 0
    %v6216 = vcvt.s32.f32 %v6200
    %v6217 = vcvt.s32.f32 %v6201
    %v6218 = vcvt.s32.f32 %v6202
    %v6219 = vcvt.s32.f32 %v6203
    %v6220 = vcvt.s32.f32 %v6204
    %v6221 = vcvt.s32.f32 %v6205
    %v6222 = vcvt.s32.f32 %v6206
    %v6223 = vcvt.s32.f32 %v6207
    %v6224 = vcvt.s32.f32 %v6208
    %v6225 = vcvt.s32.f32 %v6209
    %v6226 = vcvt.s32.f32 %v6210
    %v6227 = vcvt.s32.f32 %v6211
    %v6228 = vcvt.s32.f32 %v6212
    %v6229 = vcvt.s32.f32 %v6213
    %v6230 = vcvt.s32.f32 %v6214
    %v6231 = vcvt.s32.f32 %v6215
    %v6232 = vadd.f32 %v5592, %v6216
    %v6233 = vadd.f32 %v5593, %v6217
    %v6234 = vadd.f32 %v5594, %v6218
    %v6235 = vadd.f32 %v5595, %v6219
    %v6236 = vadd.f32 %v5596, %v6220
    %v6237 = vadd.f32 %v5597, %v6221
    %v6238 = vadd.f32 %v5598, %v6222
    %v6239 = vadd.f32 %v5599, %v6223
    %v6240 = vadd.f32 %v5600, %v6224
    %v6241 = vadd.f32 %v5601, %v6225
    %v6242 = vadd.f32 %v5602, %v6226
    %v6243 = vadd.f32 %v5603, %v6227
    %v6244 = vadd.f32 %v5604, %v6228
    %v6245 = vadd.f32 %v5605, %v6229
    %v6246 = vadd.f32 %v5606, %v6230
    %v6247 = vadd.f32 %v5607, %v6231
    %v6248 = vsel %vm6184, -inf, %v5608
    %v6249 = vsel %vm6185, -inf, %v5609
    %v6250 = vsel %vm6186, -inf, %v5610
    %v6251 = vsel %vm6187, -inf, %v5611
    %v6252 = vsel %vm6188, -inf, %v5612
    %v6253 = vsel %vm6189, -inf, %v5613
    %v6254 = vsel %vm6190, -inf, %v5614
    %v6255 = vsel %vm6191, -inf, %v5615
    %v6256 = vsel %vm6192, -inf, %v5616
    %v6257 = vsel %vm6193, -inf, %v5617
    %v6258 = vsel %vm6194, -inf, %v5618
    %v6259 = vsel %vm6195, -inf, %v5619
    %v6260 = vsel %vm6196, -inf, %v5620
    %v6261 = vsel %vm6197, -inf, %v5621
    %v6262 = vsel %vm6198, -inf, %v5622
    %v6263 = vsel %vm6199, -inf, %v5623
    %vm6264 = vcmp.eq.f32.partialorder %v5720, %v6168
    %vm6265 = vcmp.eq.f32.partialorder %v5721, %v6169
    %vm6266 = vcmp.eq.f32.partialorder %v5722, %v6170
    %vm6267 = vcmp.eq.f32.partialorder %v5723, %v6171
    %vm6268 = vcmp.eq.f32.partialorder %v5724, %v6172
    %vm6269 = vcmp.eq.f32.partialorder %v5725, %v6173
    %vm6270 = vcmp.eq.f32.partialorder %v5726, %v6174
    %vm6271 = vcmp.eq.f32.partialorder %v5727, %v6175
    %vm6272 = vcmp.eq.f32.partialorder %v5728, %v6176
    %vm6273 = vcmp.eq.f32.partialorder %v5729, %v6177
    %vm6274 = vcmp.eq.f32.partialorder %v5730, %v6178
    %vm6275 = vcmp.eq.f32.partialorder %v5731, %v6179
    %vm6276 = vcmp.eq.f32.partialorder %v5732, %v6180
    %vm6277 = vcmp.eq.f32.partialorder %v5733, %v6181
    %vm6278 = vcmp.eq.f32.partialorder %v5734, %v6182
    %vm6279 = vcmp.eq.f32.partialorder %v5735, %v6183
    %vm6280 = vmxor %vm6184, 1
    %vm6281 = vmxor %vm6185, 1
    %vm6282 = vmxor %vm6186, 1
    %vm6283 = vmxor %vm6187, 1
    %vm6284 = vmxor %vm6188, 1
    %vm6285 = vmxor %vm6189, 1
    %vm6286 = vmxor %vm6190, 1
    %vm6287 = vmxor %vm6191, 1
    %vm6288 = vmxor %vm6192, 1
    %vm6289 = vmxor %vm6193, 1
    %vm6290 = vmxor %vm6194, 1
    %vm6291 = vmxor %vm6195, 1
    %vm6292 = vmxor %vm6196, 1
    %vm6293 = vmxor %vm6197, 1
    %vm6294 = vmxor %vm6198, 1
    %vm6295 = vmxor %vm6199, 1
    %vm6296 = vmand %vm6264, %vm6280
    %vm6297 = vmand %vm6265, %vm6281
    %vm6298 = vmand %vm6266, %vm6282
    %vm6299 = vmand %vm6267, %vm6283
    %vm6300 = vmand %vm6268, %vm6284
    %vm6301 = vmand %vm6269, %vm6285
    %vm6302 = vmand %vm6270, %vm6286
    %vm6303 = vmand %vm6271, %vm6287
    %vm6304 = vmand %vm6272, %vm6288
    %vm6305 = vmand %vm6273, %vm6289
    %vm6306 = vmand %vm6274, %vm6290
    %vm6307 = vmand %vm6275, %vm6291
    %vm6308 = vmand %vm6276, %vm6292
    %vm6309 = vmand %vm6277, %vm6293
    %vm6310 = vmand %vm6278, %vm6294
    %vm6311 = vmand %vm6279, %vm6295
    %v6312 = vsel %vm6296, 1, 0
    %v6313 = vsel %vm6297, 1, 0
    %v6314 = vsel %vm6298, 1, 0
    %v6315 = vsel %vm6299, 1, 0
    %v6316 = vsel %vm6300, 1, 0
    %v6317 = vsel %vm6301, 1, 0
    %v6318 = vsel %vm6302, 1, 0
    %v6319 = vsel %vm6303, 1, 0
    %v6320 = vsel %vm6304, 1, 0
    %v6321 = vsel %vm6305, 1, 0
    %v6322 = vsel %vm6306, 1, 0
    %v6323 = vsel %vm6307, 1, 0
    %v6324 = vsel %vm6308, 1, 0
    %v6325 = vsel %vm6309, 1, 0
    %v6326 = vsel %vm6310, 1, 0
    %v6327 = vsel %vm6311, 1, 0
    %v6328 = vcvt.s32.f32 %v6312
    %v6329 = vcvt.s32.f32 %v6313
    %v6330 = vcvt.s32.f32 %v6314
    %v6331 = vcvt.s32.f32 %v6315
    %v6332 = vcvt.s32.f32 %v6316
    %v6333 = vcvt.s32.f32 %v6317
    %v6334 = vcvt.s32.f32 %v6318
    %v6335 = vcvt.s32.f32 %v6319
    %v6336 = vcvt.s32.f32 %v6320
    %v6337 = vcvt.s32.f32 %v6321
    %v6338 = vcvt.s32.f32 %v6322
    %v6339 = vcvt.s32.f32 %v6323
    %v6340 = vcvt.s32.f32 %v6324
    %v6341 = vcvt.s32.f32 %v6325
    %v6342 = vcvt.s32.f32 %v6326
    %v6343 = vcvt.s32.f32 %v6327
    %v6344 = vadd.f32 %v5704, %v6328
    %v6345 = vadd.f32 %v5705, %v6329
    %v6346 = vadd.f32 %v5706, %v6330
    %v6347 = vadd.f32 %v5707, %v6331
    %v6348 = vadd.f32 %v5708, %v6332
    %v6349 = vadd.f32 %v5709, %v6333
    %v6350 = vadd.f32 %v5710, %v6334
    %v6351 = vadd.f32 %v5711, %v6335
    %v6352 = vadd.f32 %v5712, %v6336
    %v6353 = vadd.f32 %v5713, %v6337
    %v6354 = vadd.f32 %v5714, %v6338
    %v6355 = vadd.f32 %v5715, %v6339
    %v6356 = vadd.f32 %v5716, %v6340
    %v6357 = vadd.f32 %v5717, %v6341
    %v6358 = vadd.f32 %v5718, %v6342
    %v6359 = vadd.f32 %v5719, %v6343
    %v6360 = vsel %vm6296, -inf, %v5720
    %v6361 = vsel %vm6297, -inf, %v5721
    %v6362 = vsel %vm6298, -inf, %v5722
    %v6363 = vsel %vm6299, -inf, %v5723
    %v6364 = vsel %vm6300, -inf, %v5724
    %v6365 = vsel %vm6301, -inf, %v5725
    %v6366 = vsel %vm6302, -inf, %v5726
    %v6367 = vsel %vm6303, -inf, %v5727
    %v6368 = vsel %vm6304, -inf, %v5728
    %v6369 = vsel %vm6305, -inf, %v5729
    %v6370 = vsel %vm6306, -inf, %v5730
    %v6371 = vsel %vm6307, -inf, %v5731
    %v6372 = vsel %vm6308, -inf, %v5732
    %v6373 = vsel %vm6309, -inf, %v5733
    %v6374 = vsel %vm6310, -inf, %v5734
    %v6375 = vsel %vm6311, -inf, %v5735
    %vm6376 = vmor %vm6184, %vm6296
    %vm6377 = vmor %vm6185, %vm6297
    %vm6378 = vmor %vm6186, %vm6298
    %vm6379 = vmor %vm6187, %vm6299
    %vm6380 = vmor %vm6188, %vm6300
    %vm6381 = vmor %vm6189, %vm6301
    %vm6382 = vmor %vm6190, %vm6302
    %vm6383 = vmor %vm6191, %vm6303
    %vm6384 = vmor %vm6192, %vm6304
    %vm6385 = vmor %vm6193, %vm6305
    %vm6386 = vmor %vm6194, %vm6306
    %vm6387 = vmor %vm6195, %vm6307
    %vm6388 = vmor %vm6196, %vm6308
    %vm6389 = vmor %vm6197, %vm6309
    %vm6390 = vmor %vm6198, %vm6310
    %vm6391 = vmor %vm6199, %vm6311
    %vm6392 = vcmp.eq.f32.partialorder %v5848, %v6168
    %vm6393 = vcmp.eq.f32.partialorder %v5849, %v6169
    %vm6394 = vcmp.eq.f32.partialorder %v5850, %v6170
    %vm6395 = vcmp.eq.f32.partialorder %v5851, %v6171
    %vm6396 = vcmp.eq.f32.partialorder %v5852, %v6172
    %vm6397 = vcmp.eq.f32.partialorder %v5853, %v6173
    %vm6398 = vcmp.eq.f32.partialorder %v5854, %v6174
    %vm6399 = vcmp.eq.f32.partialorder %v5855, %v6175
    %vm6400 = vcmp.eq.f32.partialorder %v5856, %v6176
    %vm6401 = vcmp.eq.f32.partialorder %v5857, %v6177
    %vm6402 = vcmp.eq.f32.partialorder %v5858, %v6178
    %vm6403 = vcmp.eq.f32.partialorder %v5859, %v6179
    %vm6404 = vcmp.eq.f32.partialorder %v5860, %v6180
    %vm6405 = vcmp.eq.f32.partialorder %v5861, %v6181
    %vm6406 = vcmp.eq.f32.partialorder %v5862, %v6182
    %vm6407 = vcmp.eq.f32.partialorder %v5863, %v6183
    %vm6408 = vmxor %vm6376, 1
    %vm6409 = vmxor %vm6377, 1
    %vm6410 = vmxor %vm6378, 1
    %vm6411 = vmxor %vm6379, 1
    %vm6412 = vmxor %vm6380, 1
    %vm6413 = vmxor %vm6381, 1
    %vm6414 = vmxor %vm6382, 1
    %vm6415 = vmxor %vm6383, 1
    %vm6416 = vmxor %vm6384, 1
    %vm6417 = vmxor %vm6385, 1
    %vm6418 = vmxor %vm6386, 1
    %vm6419 = vmxor %vm6387, 1
    %vm6420 = vmxor %vm6388, 1
    %vm6421 = vmxor %vm6389, 1
    %vm6422 = vmxor %vm6390, 1
    %vm6423 = vmxor %vm6391, 1
    %vm6424 = vmand %vm6392, %vm6408
    %vm6425 = vmand %vm6393, %vm6409
    %vm6426 = vmand %vm6394, %vm6410
    %vm6427 = vmand %vm6395, %vm6411
    %vm6428 = vmand %vm6396, %vm6412
    %vm6429 = vmand %vm6397, %vm6413
    %vm6430 = vmand %vm6398, %vm6414
    %vm6431 = vmand %vm6399, %vm6415
    %vm6432 = vmand %vm6400, %vm6416
    %vm6433 = vmand %vm6401, %vm6417
    %vm6434 = vmand %vm6402, %vm6418
    %vm6435 = vmand %vm6403, %vm6419
    %vm6436 = vmand %vm6404, %vm6420
    %vm6437 = vmand %vm6405, %vm6421
    %vm6438 = vmand %vm6406, %vm6422
    %vm6439 = vmand %vm6407, %vm6423
    %v6440 = vsel %vm6424, 1, 0
    %v6441 = vsel %vm6425, 1, 0
    %v6442 = vsel %vm6426, 1, 0
    %v6443 = vsel %vm6427, 1, 0
    %v6444 = vsel %vm6428, 1, 0
    %v6445 = vsel %vm6429, 1, 0
    %v6446 = vsel %vm6430, 1, 0
    %v6447 = vsel %vm6431, 1, 0
    %v6448 = vsel %vm6432, 1, 0
    %v6449 = vsel %vm6433, 1, 0
    %v6450 = vsel %vm6434, 1, 0
    %v6451 = vsel %vm6435, 1, 0
    %v6452 = vsel %vm6436, 1, 0
    %v6453 = vsel %vm6437, 1, 0
    %v6454 = vsel %vm6438, 1, 0
    %v6455 = vsel %vm6439, 1, 0
    %v6456 = vcvt.s32.f32 %v6440
    %v6457 = vcvt.s32.f32 %v6441
    %v6458 = vcvt.s32.f32 %v6442
    %v6459 = vcvt.s32.f32 %v6443
    %v6460 = vcvt.s32.f32 %v6444
    %v6461 = vcvt.s32.f32 %v6445
    %v6462 = vcvt.s32.f32 %v6446
    %v6463 = vcvt.s32.f32 %v6447
    %v6464 = vcvt.s32.f32 %v6448
    %v6465 = vcvt.s32.f32 %v6449
    %v6466 = vcvt.s32.f32 %v6450
    %v6467 = vcvt.s32.f32 %v6451
    %v6468 = vcvt.s32.f32 %v6452
    %v6469 = vcvt.s32.f32 %v6453
    %v6470 = vcvt.s32.f32 %v6454
    %v6471 = vcvt.s32.f32 %v6455
    %v6472 = vadd.f32 %v5832, %v6456
    %v6473 = vadd.f32 %v5833, %v6457
    %v6474 = vadd.f32 %v5834, %v6458
    %v6475 = vadd.f32 %v5835, %v6459
    %v6476 = vadd.f32 %v5836, %v6460
    %v6477 = vadd.f32 %v5837, %v6461
    %v6478 = vadd.f32 %v5838, %v6462
    %v6479 = vadd.f32 %v5839, %v6463
    %v6480 = vadd.f32 %v5840, %v6464
    %v6481 = vadd.f32 %v5841, %v6465
    %v6482 = vadd.f32 %v5842, %v6466
    %v6483 = vadd.f32 %v5843, %v6467
    %v6484 = vadd.f32 %v5844, %v6468
    %v6485 = vadd.f32 %v5845, %v6469
    %v6486 = vadd.f32 %v5846, %v6470
    %v6487 = vadd.f32 %v5847, %v6471
    %v6488 = vsel %vm6424, -inf, %v5848
    %v6489 = vsel %vm6425, -inf, %v5849
    %v6490 = vsel %vm6426, -inf, %v5850
    %v6491 = vsel %vm6427, -inf, %v5851
    %v6492 = vsel %vm6428, -inf, %v5852
    %v6493 = vsel %vm6429, -inf, %v5853
    %v6494 = vsel %vm6430, -inf, %v5854
    %v6495 = vsel %vm6431, -inf, %v5855
    %v6496 = vsel %vm6432, -inf, %v5856
    %v6497 = vsel %vm6433, -inf, %v5857
    %v6498 = vsel %vm6434, -inf, %v5858
    %v6499 = vsel %vm6435, -inf, %v5859
    %v6500 = vsel %vm6436, -inf, %v5860
    %v6501 = vsel %vm6437, -inf, %v5861
    %v6502 = vsel %vm6438, -inf, %v5862
    %v6503 = vsel %vm6439, -inf, %v5863
    %vm6504 = vmor %vm6376, %vm6424
    %vm6505 = vmor %vm6377, %vm6425
    %vm6506 = vmor %vm6378, %vm6426
    %vm6507 = vmor %vm6379, %vm6427
    %vm6508 = vmor %vm6380, %vm6428
    %vm6509 = vmor %vm6381, %vm6429
    %vm6510 = vmor %vm6382, %vm6430
    %vm6511 = vmor %vm6383, %vm6431
    %vm6512 = vmor %vm6384, %vm6432
    %vm6513 = vmor %vm6385, %vm6433
    %vm6514 = vmor %vm6386, %vm6434
    %vm6515 = vmor %vm6387, %vm6435
    %vm6516 = vmor %vm6388, %vm6436
    %vm6517 = vmor %vm6389, %vm6437
    %vm6518 = vmor %vm6390, %vm6438
    %vm6519 = vmor %vm6391, %vm6439
    %vm6520 = vcmp.eq.f32.partialorder %v5976, %v6168
    %vm6521 = vcmp.eq.f32.partialorder %v5977, %v6169
    %vm6522 = vcmp.eq.f32.partialorder %v5978, %v6170
    %vm6523 = vcmp.eq.f32.partialorder %v5979, %v6171
    %vm6524 = vcmp.eq.f32.partialorder %v5980, %v6172
    %vm6525 = vcmp.eq.f32.partialorder %v5981, %v6173
    %vm6526 = vcmp.eq.f32.partialorder %v5982, %v6174
    %vm6527 = vcmp.eq.f32.partialorder %v5983, %v6175
    %vm6528 = vcmp.eq.f32.partialorder %v5984, %v6176
    %vm6529 = vcmp.eq.f32.partialorder %v5985, %v6177
    %vm6530 = vcmp.eq.f32.partialorder %v5986, %v6178
    %vm6531 = vcmp.eq.f32.partialorder %v5987, %v6179
    %vm6532 = vcmp.eq.f32.partialorder %v5988, %v6180
    %vm6533 = vcmp.eq.f32.partialorder %v5989, %v6181
    %vm6534 = vcmp.eq.f32.partialorder %v5990, %v6182
    %vm6535 = vcmp.eq.f32.partialorder %v5991, %v6183
    %vm6536 = vmxor %vm6504, 1
    %vm6537 = vmxor %vm6505, 1
    %vm6538 = vmxor %vm6506, 1
    %vm6539 = vmxor %vm6507, 1
    %vm6540 = vmxor %vm6508, 1
    %vm6541 = vmxor %vm6509, 1
    %vm6542 = vmxor %vm6510, 1
    %vm6543 = vmxor %vm6511, 1
    %vm6544 = vmxor %vm6512, 1
    %vm6545 = vmxor %vm6513, 1
    %vm6546 = vmxor %vm6514, 1
    %vm6547 = vmxor %vm6515, 1
    %vm6548 = vmxor %vm6516, 1
    %vm6549 = vmxor %vm6517, 1
    %vm6550 = vmxor %vm6518, 1
    %vm6551 = vmxor %vm6519, 1
    %vm6552 = vmand %vm6520, %vm6536
    %vm6553 = vmand %vm6521, %vm6537
    %vm6554 = vmand %vm6522, %vm6538
    %vm6555 = vmand %vm6523, %vm6539
    %vm6556 = vmand %vm6524, %vm6540
    %vm6557 = vmand %vm6525, %vm6541
    %vm6558 = vmand %vm6526, %vm6542
    %vm6559 = vmand %vm6527, %vm6543
    %vm6560 = vmand %vm6528, %vm6544
    %vm6561 = vmand %vm6529, %vm6545
    %vm6562 = vmand %vm6530, %vm6546
    %vm6563 = vmand %vm6531, %vm6547
    %vm6564 = vmand %vm6532, %vm6548
    %vm6565 = vmand %vm6533, %vm6549
    %vm6566 = vmand %vm6534, %vm6550
    %vm6567 = vmand %vm6535, %vm6551
    %v6568 = vsel %vm6552, 1, 0
    %v6569 = vsel %vm6553, 1, 0
    %v6570 = vsel %vm6554, 1, 0
    %v6571 = vsel %vm6555, 1, 0
    %v6572 = vsel %vm6556, 1, 0
    %v6573 = vsel %vm6557, 1, 0
    %v6574 = vsel %vm6558, 1, 0
    %v6575 = vsel %vm6559, 1, 0
    %v6576 = vsel %vm6560, 1, 0
    %v6577 = vsel %vm6561, 1, 0
    %v6578 = vsel %vm6562, 1, 0
    %v6579 = vsel %vm6563, 1, 0
    %v6580 = vsel %vm6564, 1, 0
    %v6581 = vsel %vm6565, 1, 0
    %v6582 = vsel %vm6566, 1, 0
    %v6583 = vsel %vm6567, 1, 0
    %v6584 = vcvt.s32.f32 %v6568
    %v6585 = vcvt.s32.f32 %v6569
    %v6586 = vcvt.s32.f32 %v6570
    %v6587 = vcvt.s32.f32 %v6571
    %v6588 = vcvt.s32.f32 %v6572
    %v6589 = vcvt.s32.f32 %v6573
    %v6590 = vcvt.s32.f32 %v6574
    %v6591 = vcvt.s32.f32 %v6575
    %v6592 = vcvt.s32.f32 %v6576
    %v6593 = vcvt.s32.f32 %v6577
    %v6594 = vcvt.s32.f32 %v6578
    %v6595 = vcvt.s32.f32 %v6579
    %v6596 = vcvt.s32.f32 %v6580
    %v6597 = vcvt.s32.f32 %v6581
    %v6598 = vcvt.s32.f32 %v6582
    %v6599 = vcvt.s32.f32 %v6583
    %v6600 = vadd.f32 %v5960, %v6584
    %v6601 = vadd.f32 %v5961, %v6585
    %v6602 = vadd.f32 %v5962, %v6586
    %v6603 = vadd.f32 %v5963, %v6587
    %v6604 = vadd.f32 %v5964, %v6588
    %v6605 = vadd.f32 %v5965, %v6589
    %v6606 = vadd.f32 %v5966, %v6590
    %v6607 = vadd.f32 %v5967, %v6591
    %v6608 = vadd.f32 %v5968, %v6592
    %v6609 = vadd.f32 %v5969, %v6593
    %v6610 = vadd.f32 %v5970, %v6594
    %v6611 = vadd.f32 %v5971, %v6595
    %v6612 = vadd.f32 %v5972, %v6596
    %v6613 = vadd.f32 %v5973, %v6597
    %v6614 = vadd.f32 %v5974, %v6598
    %v6615 = vadd.f32 %v5975, %v6599
    %v6616 = vsel %vm6552, -inf, %v5976
    %v6617 = vsel %vm6553, -inf, %v5977
    %v6618 = vsel %vm6554, -inf, %v5978
    %v6619 = vsel %vm6555, -inf, %v5979
    %v6620 = vsel %vm6556, -inf, %v5980
    %v6621 = vsel %vm6557, -inf, %v5981
    %v6622 = vsel %vm6558, -inf, %v5982
    %v6623 = vsel %vm6559, -inf, %v5983
    %v6624 = vsel %vm6560, -inf, %v5984
    %v6625 = vsel %vm6561, -inf, %v5985
    %v6626 = vsel %vm6562, -inf, %v5986
    %v6627 = vsel %vm6563, -inf, %v5987
    %v6628 = vsel %vm6564, -inf, %v5988
    %v6629 = vsel %vm6565, -inf, %v5989
    %v6630 = vsel %vm6566, -inf, %v5990
    %v6631 = vsel %vm6567, -inf, %v5991
    %vm6632 = vmor %vm6504, %vm6552
    %vm6633 = vmor %vm6505, %vm6553
    %vm6634 = vmor %vm6506, %vm6554
    %vm6635 = vmor %vm6507, %vm6555
    %vm6636 = vmor %vm6508, %vm6556
    %vm6637 = vmor %vm6509, %vm6557
    %vm6638 = vmor %vm6510, %vm6558
    %vm6639 = vmor %vm6511, %vm6559
    %vm6640 = vmor %vm6512, %vm6560
    %vm6641 = vmor %vm6513, %vm6561
    %vm6642 = vmor %vm6514, %vm6562
    %vm6643 = vmor %vm6515, %vm6563
    %vm6644 = vmor %vm6516, %vm6564
    %vm6645 = vmor %vm6517, %vm6565
    %vm6646 = vmor %vm6518, %vm6566
    %vm6647 = vmor %vm6519, %vm6567
    %vm6648 = vcmp.eq.f32.partialorder %v6104, %v6168
    %vm6649 = vcmp.eq.f32.partialorder %v6105, %v6169
    %vm6650 = vcmp.eq.f32.partialorder %v6106, %v6170
    %vm6651 = vcmp.eq.f32.partialorder %v6107, %v6171
    %vm6652 = vcmp.eq.f32.partialorder %v6108, %v6172
    %vm6653 = vcmp.eq.f32.partialorder %v6109, %v6173
    %vm6654 = vcmp.eq.f32.partialorder %v6110, %v6174
    %vm6655 = vcmp.eq.f32.partialorder %v6111, %v6175
    %vm6656 = vcmp.eq.f32.partialorder %v6112, %v6176
    %vm6657 = vcmp.eq.f32.partialorder %v6113, %v6177
    %vm6658 = vcmp.eq.f32.partialorder %v6114, %v6178
    %vm6659 = vcmp.eq.f32.partialorder %v6115, %v6179
    %vm6660 = vcmp.eq.f32.partialorder %v6116, %v6180
    %vm6661 = vcmp.eq.f32.partialorder %v6117, %v6181
    %vm6662 = vcmp.eq.f32.partialorder %v6118, %v6182
    %vm6663 = vcmp.eq.f32.partialorder %v6119, %v6183
    %vm6664 = vmxor %vm6632, 1
    %vm6665 = vmxor %vm6633, 1
    %vm6666 = vmxor %vm6634, 1
    %vm6667 = vmxor %vm6635, 1
    %vm6668 = vmxor %vm6636, 1
    %vm6669 = vmxor %vm6637, 1
    %vm6670 = vmxor %vm6638, 1
    %vm6671 = vmxor %vm6639, 1
    %vm6672 = vmxor %vm6640, 1
    %vm6673 = vmxor %vm6641, 1
    %vm6674 = vmxor %vm6642, 1
    %vm6675 = vmxor %vm6643, 1
    %vm6676 = vmxor %vm6644, 1
    %vm6677 = vmxor %vm6645, 1
    %vm6678 = vmxor %vm6646, 1
    %vm6679 = vmxor %vm6647, 1
    %vm6680 = vmand %vm6648, %vm6664
    %vm6681 = vmand %vm6649, %vm6665
    %vm6682 = vmand %vm6650, %vm6666
    %vm6683 = vmand %vm6651, %vm6667
    %vm6684 = vmand %vm6652, %vm6668
    %vm6685 = vmand %vm6653, %vm6669
    %vm6686 = vmand %vm6654, %vm6670
    %vm6687 = vmand %vm6655, %vm6671
    %vm6688 = vmand %vm6656, %vm6672
    %vm6689 = vmand %vm6657, %vm6673
    %vm6690 = vmand %vm6658, %vm6674
    %vm6691 = vmand %vm6659, %vm6675
    %vm6692 = vmand %vm6660, %vm6676
    %vm6693 = vmand %vm6661, %vm6677
    %vm6694 = vmand %vm6662, %vm6678
    %vm6695 = vmand %vm6663, %vm6679
    %v6696 = vsel %vm6680, 1, 0
    %v6697 = vsel %vm6681, 1, 0
    %v6698 = vsel %vm6682, 1, 0
    %v6699 = vsel %vm6683, 1, 0
    %v6700 = vsel %vm6684, 1, 0
    %v6701 = vsel %vm6685, 1, 0
    %v6702 = vsel %vm6686, 1, 0
    %v6703 = vsel %vm6687, 1, 0
    %v6704 = vsel %vm6688, 1, 0
    %v6705 = vsel %vm6689, 1, 0
    %v6706 = vsel %vm6690, 1, 0
    %v6707 = vsel %vm6691, 1, 0
    %v6708 = vsel %vm6692, 1, 0
    %v6709 = vsel %vm6693, 1, 0
    %v6710 = vsel %vm6694, 1, 0
    %v6711 = vsel %vm6695, 1, 0
    %v6712 = vcvt.s32.f32 %v6696
    %v6713 = vcvt.s32.f32 %v6697
    %v6714 = vcvt.s32.f32 %v6698
    %v6715 = vcvt.s32.f32 %v6699
    %v6716 = vcvt.s32.f32 %v6700
    %v6717 = vcvt.s32.f32 %v6701
    %v6718 = vcvt.s32.f32 %v6702
    %v6719 = vcvt.s32.f32 %v6703
    %v6720 = vcvt.s32.f32 %v6704
    %v6721 = vcvt.s32.f32 %v6705
    %v6722 = vcvt.s32.f32 %v6706
    %v6723 = vcvt.s32.f32 %v6707
    %v6724 = vcvt.s32.f32 %v6708
    %v6725 = vcvt.s32.f32 %v6709
    %v6726 = vcvt.s32.f32 %v6710
    %v6727 = vcvt.s32.f32 %v6711
    %v6728 = vadd.f32 %v6088, %v6712
    %v6729 = vadd.f32 %v6089, %v6713
    %v6730 = vadd.f32 %v6090, %v6714
    %v6731 = vadd.f32 %v6091, %v6715
    %v6732 = vadd.f32 %v6092, %v6716
    %v6733 = vadd.f32 %v6093, %v6717
    %v6734 = vadd.f32 %v6094, %v6718
    %v6735 = vadd.f32 %v6095, %v6719
    %v6736 = vadd.f32 %v6096, %v6720
    %v6737 = vadd.f32 %v6097, %v6721
    %v6738 = vadd.f32 %v6098, %v6722
    %v6739 = vadd.f32 %v6099, %v6723
    %v6740 = vadd.f32 %v6100, %v6724
    %v6741 = vadd.f32 %v6101, %v6725
    %v6742 = vadd.f32 %v6102, %v6726
    %v6743 = vadd.f32 %v6103, %v6727
    %v6744 = vsel %vm6680, -inf, %v6104
    %v6745 = vsel %vm6681, -inf, %v6105
    %v6746 = vsel %vm6682, -inf, %v6106
    %v6747 = vsel %vm6683, -inf, %v6107
    %v6748 = vsel %vm6684, -inf, %v6108
    %v6749 = vsel %vm6685, -inf, %v6109
    %v6750 = vsel %vm6686, -inf, %v6110
    %v6751 = vsel %vm6687, -inf, %v6111
    %v6752 = vsel %vm6688, -inf, %v6112
    %v6753 = vsel %vm6689, -inf, %v6113
    %v6754 = vsel %vm6690, -inf, %v6114
    %v6755 = vsel %vm6691, -inf, %v6115
    %v6756 = vsel %vm6692, -inf, %v6116
    %v6757 = vsel %vm6693, -inf, %v6117
    %v6758 = vsel %vm6694, -inf, %v6118
    %v6759 = vsel %vm6695, -inf, %v6119
    %v6760 = vmax.f32 %v6248, %v6360
    %v6761 = vmax.f32 %v6249, %v6361
    %v6762 = vmax.f32 %v6250, %v6362
    %v6763 = vmax.f32 %v6251, %v6363
    %v6764 = vmax.f32 %v6252, %v6364
    %v6765 = vmax.f32 %v6253, %v6365
    %v6766 = vmax.f32 %v6254, %v6366
    %v6767 = vmax.f32 %v6255, %v6367
    %v6768 = vmax.f32 %v6256, %v6368
    %v6769 = vmax.f32 %v6257, %v6369
    %v6770 = vmax.f32 %v6258, %v6370
    %v6771 = vmax.f32 %v6259, %v6371
    %v6772 = vmax.f32 %v6260, %v6372
    %v6773 = vmax.f32 %v6261, %v6373
    %v6774 = vmax.f32 %v6262, %v6374
    %v6775 = vmax.f32 %v6263, %v6375
    %v6776 = vmax.f32 %v6760, %v6488
    %v6777 = vmax.f32 %v6761, %v6489
    %v6778 = vmax.f32 %v6762, %v6490
    %v6779 = vmax.f32 %v6763, %v6491
    %v6780 = vmax.f32 %v6764, %v6492
    %v6781 = vmax.f32 %v6765, %v6493
    %v6782 = vmax.f32 %v6766, %v6494
    %v6783 = vmax.f32 %v6767, %v6495
    %v6784 = vmax.f32 %v6768, %v6496
    %v6785 = vmax.f32 %v6769, %v6497
    %v6786 = vmax.f32 %v6770, %v6498
    %v6787 = vmax.f32 %v6771, %v6499
    %v6788 = vmax.f32 %v6772, %v6500
    %v6789 = vmax.f32 %v6773, %v6501
    %v6790 = vmax.f32 %v6774, %v6502
    %v6791 = vmax.f32 %v6775, %v6503
    %v6792 = vmax.f32 %v6776, %v6616
    %v6793 = vmax.f32 %v6777, %v6617
    %v6794 = vmax.f32 %v6778, %v6618
    %v6795 = vmax.f32 %v6779, %v6619
    %v6796 = vmax.f32 %v6780, %v6620
    %v6797 = vmax.f32 %v6781, %v6621
    %v6798 = vmax.f32 %v6782, %v6622
    %v6799 = vmax.f32 %v6783, %v6623
    %v6800 = vmax.f32 %v6784, %v6624
    %v6801 = vmax.f32 %v6785, %v6625
    %v6802 = vmax.f32 %v6786, %v6626
    %v6803 = vmax.f32 %v6787, %v6627
    %v6804 = vmax.f32 %v6788, %v6628
    %v6805 = vmax.f32 %v6789, %v6629
    %v6806 = vmax.f32 %v6790, %v6630
    %v6807 = vmax.f32 %v6791, %v6631
    %v6808 = vmax.f32 %v6792, %v6744
    %v6809 = vmax.f32 %v6793, %v6745
    %v6810 = vmax.f32 %v6794, %v6746
    %v6811 = vmax.f32 %v6795, %v6747
    %v6812 = vmax.f32 %v6796, %v6748
    %v6813 = vmax.f32 %v6797, %v6749
    %v6814 = vmax.f32 %v6798, %v6750
    %v6815 = vmax.f32 %v6799, %v6751
    %v6816 = vmax.f32 %v6800, %v6752
    %v6817 = vmax.f32 %v6801, %v6753
    %v6818 = vmax.f32 %v6802, %v6754
    %v6819 = vmax.f32 %v6803, %v6755
    %v6820 = vmax.f32 %v6804, %v6756
    %v6821 = vmax.f32 %v6805, %v6757
    %v6822 = vmax.f32 %v6806, %v6758
    %v6823 = vmax.f32 %v6807, %v6759
    %vm6824 = vcmp.eq.f32.partialorder %v6248, %v6808
    %vm6825 = vcmp.eq.f32.partialorder %v6249, %v6809
    %vm6826 = vcmp.eq.f32.partialorder %v6250, %v6810
    %vm6827 = vcmp.eq.f32.partialorder %v6251, %v6811
    %vm6828 = vcmp.eq.f32.partialorder %v6252, %v6812
    %vm6829 = vcmp.eq.f32.partialorder %v6253, %v6813
    %vm6830 = vcmp.eq.f32.partialorder %v6254, %v6814
    %vm6831 = vcmp.eq.f32.partialorder %v6255, %v6815
    %vm6832 = vcmp.eq.f32.partialorder %v6256, %v6816
    %vm6833 = vcmp.eq.f32.partialorder %v6257, %v6817
    %vm6834 = vcmp.eq.f32.partialorder %v6258, %v6818
    %vm6835 = vcmp.eq.f32.partialorder %v6259, %v6819
    %vm6836 = vcmp.eq.f32.partialorder %v6260, %v6820
    %vm6837 = vcmp.eq.f32.partialorder %v6261, %v6821
    %vm6838 = vcmp.eq.f32.partialorder %v6262, %v6822
    %vm6839 = vcmp.eq.f32.partialorder %v6263, %v6823
    %v6840 = vsel %vm6824, 1, 0
    %v6841 = vsel %vm6825, 1, 0
    %v6842 = vsel %vm6826, 1, 0
    %v6843 = vsel %vm6827, 1, 0
    %v6844 = vsel %vm6828, 1, 0
    %v6845 = vsel %vm6829, 1, 0
    %v6846 = vsel %vm6830, 1, 0
    %v6847 = vsel %vm6831, 1, 0
    %v6848 = vsel %vm6832, 1, 0
    %v6849 = vsel %vm6833, 1, 0
    %v6850 = vsel %vm6834, 1, 0
    %v6851 = vsel %vm6835, 1, 0
    %v6852 = vsel %vm6836, 1, 0
    %v6853 = vsel %vm6837, 1, 0
    %v6854 = vsel %vm6838, 1, 0
    %v6855 = vsel %vm6839, 1, 0
    %v6856 = vcvt.s32.f32 %v6840
    %v6857 = vcvt.s32.f32 %v6841
    %v6858 = vcvt.s32.f32 %v6842
    %v6859 = vcvt.s32.f32 %v6843
    %v6860 = vcvt.s32.f32 %v6844
    %v6861 = vcvt.s32.f32 %v6845
    %v6862 = vcvt.s32.f32 %v6846
    %v6863 = vcvt.s32.f32 %v6847
    %v6864 = vcvt.s32.f32 %v6848
    %v6865 = vcvt.s32.f32 %v6849
    %v6866 = vcvt.s32.f32 %v6850
    %v6867 = vcvt.s32.f32 %v6851
    %v6868 = vcvt.s32.f32 %v6852
    %v6869 = vcvt.s32.f32 %v6853
    %v6870 = vcvt.s32.f32 %v6854
    %v6871 = vcvt.s32.f32 %v6855
    %v6872 = vadd.f32 %v6232, %v6856
    %v6873 = vadd.f32 %v6233, %v6857
    %v6874 = vadd.f32 %v6234, %v6858
    %v6875 = vadd.f32 %v6235, %v6859
    %v6876 = vadd.f32 %v6236, %v6860
    %v6877 = vadd.f32 %v6237, %v6861
    %v6878 = vadd.f32 %v6238, %v6862
    %v6879 = vadd.f32 %v6239, %v6863
    %v6880 = vadd.f32 %v6240, %v6864
    %v6881 = vadd.f32 %v6241, %v6865
    %v6882 = vadd.f32 %v6242, %v6866
    %v6883 = vadd.f32 %v6243, %v6867
    %v6884 = vadd.f32 %v6244, %v6868
    %v6885 = vadd.f32 %v6245, %v6869
    %v6886 = vadd.f32 %v6246, %v6870
    %v6887 = vadd.f32 %v6247, %v6871
    %vm6888 = vcmp.eq.f32.partialorder %v6360, %v6808
    %vm6889 = vcmp.eq.f32.partialorder %v6361, %v6809
    %vm6890 = vcmp.eq.f32.partialorder %v6362, %v6810
    %vm6891 = vcmp.eq.f32.partialorder %v6363, %v6811
    %vm6892 = vcmp.eq.f32.partialorder %v6364, %v6812
    %vm6893 = vcmp.eq.f32.partialorder %v6365, %v6813
    %vm6894 = vcmp.eq.f32.partialorder %v6366, %v6814
    %vm6895 = vcmp.eq.f32.partialorder %v6367, %v6815
    %vm6896 = vcmp.eq.f32.partialorder %v6368, %v6816
    %vm6897 = vcmp.eq.f32.partialorder %v6369, %v6817
    %vm6898 = vcmp.eq.f32.partialorder %v6370, %v6818
    %vm6899 = vcmp.eq.f32.partialorder %v6371, %v6819
    %vm6900 = vcmp.eq.f32.partialorder %v6372, %v6820
    %vm6901 = vcmp.eq.f32.partialorder %v6373, %v6821
    %vm6902 = vcmp.eq.f32.partialorder %v6374, %v6822
    %vm6903 = vcmp.eq.f32.partialorder %v6375, %v6823
    %vm6904 = vmxor %vm6824, 1
    %vm6905 = vmxor %vm6825, 1
    %vm6906 = vmxor %vm6826, 1
    %vm6907 = vmxor %vm6827, 1
    %vm6908 = vmxor %vm6828, 1
    %vm6909 = vmxor %vm6829, 1
    %vm6910 = vmxor %vm6830, 1
    %vm6911 = vmxor %vm6831, 1
    %vm6912 = vmxor %vm6832, 1
    %vm6913 = vmxor %vm6833, 1
    %vm6914 = vmxor %vm6834, 1
    %vm6915 = vmxor %vm6835, 1
    %vm6916 = vmxor %vm6836, 1
    %vm6917 = vmxor %vm6837, 1
    %vm6918 = vmxor %vm6838, 1
    %vm6919 = vmxor %vm6839, 1
    %vm6920 = vmand %vm6888, %vm6904
    %vm6921 = vmand %vm6889, %vm6905
    %vm6922 = vmand %vm6890, %vm6906
    %vm6923 = vmand %vm6891, %vm6907
    %vm6924 = vmand %vm6892, %vm6908
    %vm6925 = vmand %vm6893, %vm6909
    %vm6926 = vmand %vm6894, %vm6910
    %vm6927 = vmand %vm6895, %vm6911
    %vm6928 = vmand %vm6896, %vm6912
    %vm6929 = vmand %vm6897, %vm6913
    %vm6930 = vmand %vm6898, %vm6914
    %vm6931 = vmand %vm6899, %vm6915
    %vm6932 = vmand %vm6900, %vm6916
    %vm6933 = vmand %vm6901, %vm6917
    %vm6934 = vmand %vm6902, %vm6918
    %vm6935 = vmand %vm6903, %vm6919
    %v6936 = vsel %vm6920, 1, 0
    %v6937 = vsel %vm6921, 1, 0
    %v6938 = vsel %vm6922, 1, 0
    %v6939 = vsel %vm6923, 1, 0
    %v6940 = vsel %vm6924, 1, 0
    %v6941 = vsel %vm6925, 1, 0
    %v6942 = vsel %vm6926, 1, 0
    %v6943 = vsel %vm6927, 1, 0
    %v6944 = vsel %vm6928, 1, 0
    %v6945 = vsel %vm6929, 1, 0
    %v6946 = vsel %vm6930, 1, 0
    %v6947 = vsel %vm6931, 1, 0
    %v6948 = vsel %vm6932, 1, 0
    %v6949 = vsel %vm6933, 1, 0
    %v6950 = vsel %vm6934, 1, 0
    %v6951 = vsel %vm6935, 1, 0
    %v6952 = vcvt.s32.f32 %v6936
    %v6953 = vcvt.s32.f32 %v6937
    %v6954 = vcvt.s32.f32 %v6938
    %v6955 = vcvt.s32.f32 %v6939
    %v6956 = vcvt.s32.f32 %v6940
    %v6957 = vcvt.s32.f32 %v6941
    %v6958 = vcvt.s32.f32 %v6942
    %v6959 = vcvt.s32.f32 %v6943
    %v6960 = vcvt.s32.f32 %v6944
    %v6961 = vcvt.s32.f32 %v6945
    %v6962 = vcvt.s32.f32 %v6946
    %v6963 = vcvt.s32.f32 %v6947
    %v6964 = vcvt.s32.f32 %v6948
    %v6965 = vcvt.s32.f32 %v6949
    %v6966 = vcvt.s32.f32 %v6950
    %v6967 = vcvt.s32.f32 %v6951
    %v6968 = vadd.f32 %v6344, %v6952
    %v6969 = vadd.f32 %v6345, %v6953
    %v6970 = vadd.f32 %v6346, %v6954
    %v6971 = vadd.f32 %v6347, %v6955
    %v6972 = vadd.f32 %v6348, %v6956
    %v6973 = vadd.f32 %v6349, %v6957
    %v6974 = vadd.f32 %v6350, %v6958
    %v6975 = vadd.f32 %v6351, %v6959
    %v6976 = vadd.f32 %v6352, %v6960
    %v6977 = vadd.f32 %v6353, %v6961
    %v6978 = vadd.f32 %v6354, %v6962
    %v6979 = vadd.f32 %v6355, %v6963
    %v6980 = vadd.f32 %v6356, %v6964
    %v6981 = vadd.f32 %v6357, %v6965
    %v6982 = vadd.f32 %v6358, %v6966
    %v6983 = vadd.f32 %v6359, %v6967
    %vm6984 = vmor %vm6824, %vm6920
    %vm6985 = vmor %vm6825, %vm6921
    %vm6986 = vmor %vm6826, %vm6922
    %vm6987 = vmor %vm6827, %vm6923
    %vm6988 = vmor %vm6828, %vm6924
    %vm6989 = vmor %vm6829, %vm6925
    %vm6990 = vmor %vm6830, %vm6926
    %vm6991 = vmor %vm6831, %vm6927
    %vm6992 = vmor %vm6832, %vm6928
    %vm6993 = vmor %vm6833, %vm6929
    %vm6994 = vmor %vm6834, %vm6930
    %vm6995 = vmor %vm6835, %vm6931
    %vm6996 = vmor %vm6836, %vm6932
    %vm6997 = vmor %vm6837, %vm6933
    %vm6998 = vmor %vm6838, %vm6934
    %vm6999 = vmor %vm6839, %vm6935
    %vm7000 = vcmp.eq.f32.partialorder %v6488, %v6808
    %vm7001 = vcmp.eq.f32.partialorder %v6489, %v6809
    %vm7002 = vcmp.eq.f32.partialorder %v6490, %v6810
    %vm7003 = vcmp.eq.f32.partialorder %v6491, %v6811
    %vm7004 = vcmp.eq.f32.partialorder %v6492, %v6812
    %vm7005 = vcmp.eq.f32.partialorder %v6493, %v6813
    %vm7006 = vcmp.eq.f32.partialorder %v6494, %v6814
    %vm7007 = vcmp.eq.f32.partialorder %v6495, %v6815
    %vm7008 = vcmp.eq.f32.partialorder %v6496, %v6816
    %vm7009 = vcmp.eq.f32.partialorder %v6497, %v6817
    %vm7010 = vcmp.eq.f32.partialorder %v6498, %v6818
    %vm7011 = vcmp.eq.f32.partialorder %v6499, %v6819
    %vm7012 = vcmp.eq.f32.partialorder %v6500, %v6820
    %vm7013 = vcmp.eq.f32.partialorder %v6501, %v6821
    %vm7014 = vcmp.eq.f32.partialorder %v6502, %v6822
    %vm7015 = vcmp.eq.f32.partialorder %v6503, %v6823
    %vm7016 = vmxor %vm6984, 1
    %vm7017 = vmxor %vm6985, 1
    %vm7018 = vmxor %vm6986, 1
    %vm7019 = vmxor %vm6987, 1
    %vm7020 = vmxor %vm6988, 1
    %vm7021 = vmxor %vm6989, 1
    %vm7022 = vmxor %vm6990, 1
    %vm7023 = vmxor %vm6991, 1
    %vm7024 = vmxor %vm6992, 1
    %vm7025 = vmxor %vm6993, 1
    %vm7026 = vmxor %vm6994, 1
    %vm7027 = vmxor %vm6995, 1
    %vm7028 = vmxor %vm6996, 1
    %vm7029 = vmxor %vm6997, 1
    %vm7030 = vmxor %vm6998, 1
    %vm7031 = vmxor %vm6999, 1
    %vm7032 = vmand %vm7000, %vm7016
    %vm7033 = vmand %vm7001, %vm7017
    %vm7034 = vmand %vm7002, %vm7018
    %vm7035 = vmand %vm7003, %vm7019
    %vm7036 = vmand %vm7004, %vm7020
    %vm7037 = vmand %vm7005, %vm7021
    %vm7038 = vmand %vm7006, %vm7022
    %vm7039 = vmand %vm7007, %vm7023
    %vm7040 = vmand %vm7008, %vm7024
    %vm7041 = vmand %vm7009, %vm7025
    %vm7042 = vmand %vm7010, %vm7026
    %vm7043 = vmand %vm7011, %vm7027
    %vm7044 = vmand %vm7012, %vm7028
    %vm7045 = vmand %vm7013, %vm7029
    %vm7046 = vmand %vm7014, %vm7030
    %vm7047 = vmand %vm7015, %vm7031
    %v7048 = vsel %vm7032, 1, 0
    %v7049 = vsel %vm7033, 1, 0
    %v7050 = vsel %vm7034, 1, 0
    %v7051 = vsel %vm7035, 1, 0
    %v7052 = vsel %vm7036, 1, 0
    %v7053 = vsel %vm7037, 1, 0
    %v7054 = vsel %vm7038, 1, 0
    %v7055 = vsel %vm7039, 1, 0
    %v7056 = vsel %vm7040, 1, 0
    %v7057 = vsel %vm7041, 1, 0
    %v7058 = vsel %vm7042, 1, 0
    %v7059 = vsel %vm7043, 1, 0
    %v7060 = vsel %vm7044, 1, 0
    %v7061 = vsel %vm7045, 1, 0
    %v7062 = vsel %vm7046, 1, 0
    %v7063 = vsel %vm7047, 1, 0
    %v7064 = vcvt.s32.f32 %v7048
    %v7065 = vcvt.s32.f32 %v7049
    %v7066 = vcvt.s32.f32 %v7050
    %v7067 = vcvt.s32.f32 %v7051
    %v7068 = vcvt.s32.f32 %v7052
    %v7069 = vcvt.s32.f32 %v7053
    %v7070 = vcvt.s32.f32 %v7054
    %v7071 = vcvt.s32.f32 %v7055
    %v7072 = vcvt.s32.f32 %v7056
    %v7073 = vcvt.s32.f32 %v7057
    %v7074 = vcvt.s32.f32 %v7058
    %v7075 = vcvt.s32.f32 %v7059
    %v7076 = vcvt.s32.f32 %v7060
    %v7077 = vcvt.s32.f32 %v7061
    %v7078 = vcvt.s32.f32 %v7062
    %v7079 = vcvt.s32.f32 %v7063
    %v7080 = vadd.f32 %v6472, %v7064
    %v7081 = vadd.f32 %v6473, %v7065
    %v7082 = vadd.f32 %v6474, %v7066
    %v7083 = vadd.f32 %v6475, %v7067
    %v7084 = vadd.f32 %v6476, %v7068
    %v7085 = vadd.f32 %v6477, %v7069
    %v7086 = vadd.f32 %v6478, %v7070
    %v7087 = vadd.f32 %v6479, %v7071
    %v7088 = vadd.f32 %v6480, %v7072
    %v7089 = vadd.f32 %v6481, %v7073
    %v7090 = vadd.f32 %v6482, %v7074
    %v7091 = vadd.f32 %v6483, %v7075
    %v7092 = vadd.f32 %v6484, %v7076
    %v7093 = vadd.f32 %v6485, %v7077
    %v7094 = vadd.f32 %v6486, %v7078
    %v7095 = vadd.f32 %v6487, %v7079
    %vm7096 = vmor %vm6984, %vm7032
    %vm7097 = vmor %vm6985, %vm7033
    %vm7098 = vmor %vm6986, %vm7034
    %vm7099 = vmor %vm6987, %vm7035
    %vm7100 = vmor %vm6988, %vm7036
    %vm7101 = vmor %vm6989, %vm7037
    %vm7102 = vmor %vm6990, %vm7038
    %vm7103 = vmor %vm6991, %vm7039
    %vm7104 = vmor %vm6992, %vm7040
    %vm7105 = vmor %vm6993, %vm7041
    %vm7106 = vmor %vm6994, %vm7042
    %vm7107 = vmor %vm6995, %vm7043
    %vm7108 = vmor %vm6996, %vm7044
    %vm7109 = vmor %vm6997, %vm7045
    %vm7110 = vmor %vm6998, %vm7046
    %vm7111 = vmor %vm6999, %vm7047
    %vm7112 = vcmp.eq.f32.partialorder %v6616, %v6808
    %vm7113 = vcmp.eq.f32.partialorder %v6617, %v6809
    %vm7114 = vcmp.eq.f32.partialorder %v6618, %v6810
    %vm7115 = vcmp.eq.f32.partialorder %v6619, %v6811
    %vm7116 = vcmp.eq.f32.partialorder %v6620, %v6812
    %vm7117 = vcmp.eq.f32.partialorder %v6621, %v6813
    %vm7118 = vcmp.eq.f32.partialorder %v6622, %v6814
    %vm7119 = vcmp.eq.f32.partialorder %v6623, %v6815
    %vm7120 = vcmp.eq.f32.partialorder %v6624, %v6816
    %vm7121 = vcmp.eq.f32.partialorder %v6625, %v6817
    %vm7122 = vcmp.eq.f32.partialorder %v6626, %v6818
    %vm7123 = vcmp.eq.f32.partialorder %v6627, %v6819
    %vm7124 = vcmp.eq.f32.partialorder %v6628, %v6820
    %vm7125 = vcmp.eq.f32.partialorder %v6629, %v6821
    %vm7126 = vcmp.eq.f32.partialorder %v6630, %v6822
    %vm7127 = vcmp.eq.f32.partialorder %v6631, %v6823
    %vm7128 = vmxor %vm7096, 1
    %vm7129 = vmxor %vm7097, 1
    %vm7130 = vmxor %vm7098, 1
    %vm7131 = vmxor %vm7099, 1
    %vm7132 = vmxor %vm7100, 1
    %vm7133 = vmxor %vm7101, 1
    %vm7134 = vmxor %vm7102, 1
    %vm7135 = vmxor %vm7103, 1
    %vm7136 = vmxor %vm7104, 1
    %vm7137 = vmxor %vm7105, 1
    %vm7138 = vmxor %vm7106, 1
    %vm7139 = vmxor %vm7107, 1
    %vm7140 = vmxor %vm7108, 1
    %vm7141 = vmxor %vm7109, 1
    %vm7142 = vmxor %vm7110, 1
    %vm7143 = vmxor %vm7111, 1
    %vm7144 = vmand %vm7112, %vm7128
    %vm7145 = vmand %vm7113, %vm7129
    %vm7146 = vmand %vm7114, %vm7130
    %vm7147 = vmand %vm7115, %vm7131
    %vm7148 = vmand %vm7116, %vm7132
    %vm7149 = vmand %vm7117, %vm7133
    %vm7150 = vmand %vm7118, %vm7134
    %vm7151 = vmand %vm7119, %vm7135
    %vm7152 = vmand %vm7120, %vm7136
    %vm7153 = vmand %vm7121, %vm7137
    %vm7154 = vmand %vm7122, %vm7138
    %vm7155 = vmand %vm7123, %vm7139
    %vm7156 = vmand %vm7124, %vm7140
    %vm7157 = vmand %vm7125, %vm7141
    %vm7158 = vmand %vm7126, %vm7142
    %vm7159 = vmand %vm7127, %vm7143
    %v7160 = vsel %vm7144, 1, 0
    %v7161 = vsel %vm7145, 1, 0
    %v7162 = vsel %vm7146, 1, 0
    %v7163 = vsel %vm7147, 1, 0
    %v7164 = vsel %vm7148, 1, 0
    %v7165 = vsel %vm7149, 1, 0
    %v7166 = vsel %vm7150, 1, 0
    %v7167 = vsel %vm7151, 1, 0
    %v7168 = vsel %vm7152, 1, 0
    %v7169 = vsel %vm7153, 1, 0
    %v7170 = vsel %vm7154, 1, 0
    %v7171 = vsel %vm7155, 1, 0
    %v7172 = vsel %vm7156, 1, 0
    %v7173 = vsel %vm7157, 1, 0
    %v7174 = vsel %vm7158, 1, 0
    %v7175 = vsel %vm7159, 1, 0
    %v7176 = vcvt.s32.f32 %v7160
    %v7177 = vcvt.s32.f32 %v7161
    %v7178 = vcvt.s32.f32 %v7162
    %v7179 = vcvt.s32.f32 %v7163
    %v7180 = vcvt.s32.f32 %v7164
    %v7181 = vcvt.s32.f32 %v7165
    %v7182 = vcvt.s32.f32 %v7166
    %v7183 = vcvt.s32.f32 %v7167
    %v7184 = vcvt.s32.f32 %v7168
    %v7185 = vcvt.s32.f32 %v7169
    %v7186 = vcvt.s32.f32 %v7170
    %v7187 = vcvt.s32.f32 %v7171
    %v7188 = vcvt.s32.f32 %v7172
    %v7189 = vcvt.s32.f32 %v7173
    %v7190 = vcvt.s32.f32 %v7174
    %v7191 = vcvt.s32.f32 %v7175
    %v7192 = vadd.f32 %v6600, %v7176
    %v7193 = vadd.f32 %v6601, %v7177
    %v7194 = vadd.f32 %v6602, %v7178
    %v7195 = vadd.f32 %v6603, %v7179
    %v7196 = vadd.f32 %v6604, %v7180
    %v7197 = vadd.f32 %v6605, %v7181
    %v7198 = vadd.f32 %v6606, %v7182
    %v7199 = vadd.f32 %v6607, %v7183
    %v7200 = vadd.f32 %v6608, %v7184
    %v7201 = vadd.f32 %v6609, %v7185
    %v7202 = vadd.f32 %v6610, %v7186
    %v7203 = vadd.f32 %v6611, %v7187
    %v7204 = vadd.f32 %v6612, %v7188
    %v7205 = vadd.f32 %v6613, %v7189
    %v7206 = vadd.f32 %v6614, %v7190
    %v7207 = vadd.f32 %v6615, %v7191
    %vm7208 = vmor %vm7096, %vm7144
    %vm7209 = vmor %vm7097, %vm7145
    %vm7210 = vmor %vm7098, %vm7146
    %vm7211 = vmor %vm7099, %vm7147
    %vm7212 = vmor %vm7100, %vm7148
    %vm7213 = vmor %vm7101, %vm7149
    %vm7214 = vmor %vm7102, %vm7150
    %vm7215 = vmor %vm7103, %vm7151
    %vm7216 = vmor %vm7104, %vm7152
    %vm7217 = vmor %vm7105, %vm7153
    %vm7218 = vmor %vm7106, %vm7154
    %vm7219 = vmor %vm7107, %vm7155
    %vm7220 = vmor %vm7108, %vm7156
    %vm7221 = vmor %vm7109, %vm7157
    %vm7222 = vmor %vm7110, %vm7158
    %vm7223 = vmor %vm7111, %vm7159
    %vm7224 = vcmp.eq.f32.partialorder %v6744, %v6808
    %vm7225 = vcmp.eq.f32.partialorder %v6745, %v6809
    %vm7226 = vcmp.eq.f32.partialorder %v6746, %v6810
    %vm7227 = vcmp.eq.f32.partialorder %v6747, %v6811
    %vm7228 = vcmp.eq.f32.partialorder %v6748, %v6812
    %vm7229 = vcmp.eq.f32.partialorder %v6749, %v6813
    %vm7230 = vcmp.eq.f32.partialorder %v6750, %v6814
    %vm7231 = vcmp.eq.f32.partialorder %v6751, %v6815
    %vm7232 = vcmp.eq.f32.partialorder %v6752, %v6816
    %vm7233 = vcmp.eq.f32.partialorder %v6753, %v6817
    %vm7234 = vcmp.eq.f32.partialorder %v6754, %v6818
    %vm7235 = vcmp.eq.f32.partialorder %v6755, %v6819
    %vm7236 = vcmp.eq.f32.partialorder %v6756, %v6820
    %vm7237 = vcmp.eq.f32.partialorder %v6757, %v6821
    %vm7238 = vcmp.eq.f32.partialorder %v6758, %v6822
    %vm7239 = vcmp.eq.f32.partialorder %v6759, %v6823
    %vm7240 = vmxor %vm7208, 1
    %vm7241 = vmxor %vm7209, 1
    %vm7242 = vmxor %vm7210, 1
    %vm7243 = vmxor %vm7211, 1
    %vm7244 = vmxor %vm7212, 1
    %vm7245 = vmxor %vm7213, 1
    %vm7246 = vmxor %vm7214, 1
    %vm7247 = vmxor %vm7215, 1
    %vm7248 = vmxor %vm7216, 1
    %vm7249 = vmxor %vm7217, 1
    %vm7250 = vmxor %vm7218, 1
    %vm7251 = vmxor %vm7219, 1
    %vm7252 = vmxor %vm7220, 1
    %vm7253 = vmxor %vm7221, 1
    %vm7254 = vmxor %vm7222, 1
    %vm7255 = vmxor %vm7223, 1
    %vm7256 = vmand %vm7224, %vm7240
    %vm7257 = vmand %vm7225, %vm7241
    %vm7258 = vmand %vm7226, %vm7242
    %vm7259 = vmand %vm7227, %vm7243
    %vm7260 = vmand %vm7228, %vm7244
    %vm7261 = vmand %vm7229, %vm7245
    %vm7262 = vmand %vm7230, %vm7246
    %vm7263 = vmand %vm7231, %vm7247
    %vm7264 = vmand %vm7232, %vm7248
    %vm7265 = vmand %vm7233, %vm7249
    %vm7266 = vmand %vm7234, %vm7250
    %vm7267 = vmand %vm7235, %vm7251
    %vm7268 = vmand %vm7236, %vm7252
    %vm7269 = vmand %vm7237, %vm7253
    %vm7270 = vmand %vm7238, %vm7254
    %vm7271 = vmand %vm7239, %vm7255
    %v7272 = vsel %vm7256, 1, 0
    %v7273 = vsel %vm7257, 1, 0
    %v7274 = vsel %vm7258, 1, 0
    %v7275 = vsel %vm7259, 1, 0
    %v7276 = vsel %vm7260, 1, 0
    %v7277 = vsel %vm7261, 1, 0
    %v7278 = vsel %vm7262, 1, 0
    %v7279 = vsel %vm7263, 1, 0
    %v7280 = vsel %vm7264, 1, 0
    %v7281 = vsel %vm7265, 1, 0
    %v7282 = vsel %vm7266, 1, 0
    %v7283 = vsel %vm7267, 1, 0
    %v7284 = vsel %vm7268, 1, 0
    %v7285 = vsel %vm7269, 1, 0
    %v7286 = vsel %vm7270, 1, 0
    %v7287 = vsel %vm7271, 1, 0
    %v7288 = vcvt.s32.f32 %v7272
    %v7289 = vcvt.s32.f32 %v7273
    %v7290 = vcvt.s32.f32 %v7274
    %v7291 = vcvt.s32.f32 %v7275
    %v7292 = vcvt.s32.f32 %v7276
    %v7293 = vcvt.s32.f32 %v7277
    %v7294 = vcvt.s32.f32 %v7278
    %v7295 = vcvt.s32.f32 %v7279
    %v7296 = vcvt.s32.f32 %v7280
    %v7297 = vcvt.s32.f32 %v7281
    %v7298 = vcvt.s32.f32 %v7282
    %v7299 = vcvt.s32.f32 %v7283
    %v7300 = vcvt.s32.f32 %v7284
    %v7301 = vcvt.s32.f32 %v7285
    %v7302 = vcvt.s32.f32 %v7286
    %v7303 = vcvt.s32.f32 %v7287
    %v7304 = vadd.f32 %v6728, %v7288
    %v7305 = vadd.f32 %v6729, %v7289
    %v7306 = vadd.f32 %v6730, %v7290
    %v7307 = vadd.f32 %v6731, %v7291
    %v7308 = vadd.f32 %v6732, %v7292
    %v7309 = vadd.f32 %v6733, %v7293
    %v7310 = vadd.f32 %v6734, %v7294
    %v7311 = vadd.f32 %v6735, %v7295
    %v7312 = vadd.f32 %v6736, %v7296
    %v7313 = vadd.f32 %v6737, %v7297
    %v7314 = vadd.f32 %v6738, %v7298
    %v7315 = vadd.f32 %v6739, %v7299
    %v7316 = vadd.f32 %v6740, %v7300
    %v7317 = vadd.f32 %v6741, %v7301
    %v7318 = vadd.f32 %v6742, %v7302
    %v7319 = vadd.f32 %v6743, %v7303
    %v7320 = vmul.f32 %v6872, %v5044
    %v7321 = vmul.f32 %v6873, %v5045
    %v7322 = vmul.f32 %v6874, %v5046
    %v7323 = vmul.f32 %v6875, %v5047
    %v7324 = vmul.f32 %v6876, %v5048
    %v7325 = vmul.f32 %v6877, %v5049
    %v7326 = vmul.f32 %v6878, %v5050
    %v7327 = vmul.f32 %v6879, %v5051
    %v7328 = vmul.f32 %v6880, %v5052
    %v7329 = vmul.f32 %v6881, %v5053
    %v7330 = vmul.f32 %v6882, %v5054
    %v7331 = vmul.f32 %v6883, %v5055
    %v7332 = vmul.f32 %v6884, %v5056
    %v7333 = vmul.f32 %v6885, %v5057
    %v7334 = vmul.f32 %v6886, %v5058
    %v7335 = vmul.f32 %v6887, %v5059
    %v7336 = vmul.f32 %v6968, %v5061
    %v7337 = vmul.f32 %v6969, %v5062
    %v7338 = vmul.f32 %v6970, %v5063
    %v7339 = vmul.f32 %v6971, %v5064
    %v7340 = vmul.f32 %v6972, %v5065
    %v7341 = vmul.f32 %v6973, %v5066
    %v7342 = vmul.f32 %v6974, %v5067
    %v7343 = vmul.f32 %v6975, %v5068
    %v7344 = vmul.f32 %v6976, %v5069
    %v7345 = vmul.f32 %v6977, %v5070
    %v7346 = vmul.f32 %v6978, %v5071
    %v7347 = vmul.f32 %v6979, %v5072
    %v7348 = vmul.f32 %v6980, %v5073
    %v7349 = vmul.f32 %v6981, %v5074
    %v7350 = vmul.f32 %v6982, %v5075
    %v7351 = vmul.f32 %v6983, %v5076
    %v7352 = vadd.f32 %v7320, %v7336
    %v7353 = vadd.f32 %v7321, %v7337
    %v7354 = vadd.f32 %v7322, %v7338
    %v7355 = vadd.f32 %v7323, %v7339
    %v7356 = vadd.f32 %v7324, %v7340
    %v7357 = vadd.f32 %v7325, %v7341
    %v7358 = vadd.f32 %v7326, %v7342
    %v7359 = vadd.f32 %v7327, %v7343
    %v7360 = vadd.f32 %v7328, %v7344
    %v7361 = vadd.f32 %v7329, %v7345
    %v7362 = vadd.f32 %v7330, %v7346
    %v7363 = vadd.f32 %v7331, %v7347
    %v7364 = vadd.f32 %v7332, %v7348
    %v7365 = vadd.f32 %v7333, %v7349
    %v7366 = vadd.f32 %v7334, %v7350
    %v7367 = vadd.f32 %v7335, %v7351
    %v7368 = vmul.f32 %v7080, %v5078
    %v7369 = vmul.f32 %v7081, %v5079
    %v7370 = vmul.f32 %v7082, %v5080
    %v7371 = vmul.f32 %v7083, %v5081
    %v7372 = vmul.f32 %v7084, %v5082
    %v7373 = vmul.f32 %v7085, %v5083
    %v7374 = vmul.f32 %v7086, %v5084
    %v7375 = vmul.f32 %v7087, %v5085
    %v7376 = vmul.f32 %v7088, %v5086
    %v7377 = vmul.f32 %v7089, %v5087
    %v7378 = vmul.f32 %v7090, %v5088
    %v7379 = vmul.f32 %v7091, %v5089
    %v7380 = vmul.f32 %v7092, %v5090
    %v7381 = vmul.f32 %v7093, %v5091
    %v7382 = vmul.f32 %v7094, %v5092
    %v7383 = vmul.f32 %v7095, %v5093
    %v7384 = vadd.f32 %v7352, %v7368
    %v7385 = vadd.f32 %v7353, %v7369
    %v7386 = vadd.f32 %v7354, %v7370
    %v7387 = vadd.f32 %v7355, %v7371
    %v7388 = vadd.f32 %v7356, %v7372
    %v7389 = vadd.f32 %v7357, %v7373
    %v7390 = vadd.f32 %v7358, %v7374
    %v7391 = vadd.f32 %v7359, %v7375
    %v7392 = vadd.f32 %v7360, %v7376
    %v7393 = vadd.f32 %v7361, %v7377
    %v7394 = vadd.f32 %v7362, %v7378
    %v7395 = vadd.f32 %v7363, %v7379
    %v7396 = vadd.f32 %v7364, %v7380
    %v7397 = vadd.f32 %v7365, %v7381
    %v7398 = vadd.f32 %v7366, %v7382
    %v7399 = vadd.f32 %v7367, %v7383
    %v7400 = vmul.f32 %v7192, %v5095
    %v7401 = vmul.f32 %v7193, %v5096
    %v7402 = vmul.f32 %v7194, %v5097
    %v7403 = vmul.f32 %v7195, %v5098
    %v7404 = vmul.f32 %v7196, %v5099
    %v7405 = vmul.f32 %v7197, %v5100
    %v7406 = vmul.f32 %v7198, %v5101
    %v7407 = vmul.f32 %v7199, %v5102
    %v7408 = vmul.f32 %v7200, %v5103
    %v7409 = vmul.f32 %v7201, %v5104
    %v7410 = vmul.f32 %v7202, %v5105
    %v7411 = vmul.f32 %v7203, %v5106
    %v7412 = vmul.f32 %v7204, %v5107
    %v7413 = vmul.f32 %v7205, %v5108
    %v7414 = vmul.f32 %v7206, %v5109
    %v7415 = vmul.f32 %v7207, %v5110
    %v7416 = vadd.f32 %v7384, %v7400
    %v7417 = vadd.f32 %v7385, %v7401
    %v7418 = vadd.f32 %v7386, %v7402
    %v7419 = vadd.f32 %v7387, %v7403
    %v7420 = vadd.f32 %v7388, %v7404
    %v7421 = vadd.f32 %v7389, %v7405
    %v7422 = vadd.f32 %v7390, %v7406
    %v7423 = vadd.f32 %v7391, %v7407
    %v7424 = vadd.f32 %v7392, %v7408
    %v7425 = vadd.f32 %v7393, %v7409
    %v7426 = vadd.f32 %v7394, %v7410
    %v7427 = vadd.f32 %v7395, %v7411
    %v7428 = vadd.f32 %v7396, %v7412
    %v7429 = vadd.f32 %v7397, %v7413
    %v7430 = vadd.f32 %v7398, %v7414
    %v7431 = vadd.f32 %v7399, %v7415
    %v7432 = vmul.f32 %v7304, %v5112
    %v7433 = vmul.f32 %v7305, %v5113
    %v7434 = vmul.f32 %v7306, %v5114
    %v7435 = vmul.f32 %v7307, %v5115
    %v7436 = vmul.f32 %v7308, %v5116
    %v7437 = vmul.f32 %v7309, %v5117
    %v7438 = vmul.f32 %v7310, %v5118
    %v7439 = vmul.f32 %v7311, %v5119
    %v7440 = vmul.f32 %v7312, %v5120
    %v7441 = vmul.f32 %v7313, %v5121
    %v7442 = vmul.f32 %v7314, %v5122
    %v7443 = vmul.f32 %v7315, %v5123
    %v7444 = vmul.f32 %v7316, %v5124
    %v7445 = vmul.f32 %v7317, %v5125
    %v7446 = vmul.f32 %v7318, %v5126
    %v7447 = vmul.f32 %v7319, %v5127
    %v7448 = vadd.f32 %v7416, %v7432
    %v7449 = vadd.f32 %v7417, %v7433
    %v7450 = vadd.f32 %v7418, %v7434
    %v7451 = vadd.f32 %v7419, %v7435
    %v7452 = vadd.f32 %v7420, %v7436
    %v7453 = vadd.f32 %v7421, %v7437
    %v7454 = vadd.f32 %v7422, %v7438
    %v7455 = vadd.f32 %v7423, %v7439
    %v7456 = vadd.f32 %v7424, %v7440
    %v7457 = vadd.f32 %v7425, %v7441
    %v7458 = vadd.f32 %v7426, %v7442
    %v7459 = vadd.f32 %v7427, %v7443
    %v7460 = vadd.f32 %v7428, %v7444
    %v7461 = vadd.f32 %v7429, %v7445
    %v7462 = vadd.f32 %v7430, %v7446
    %v7463 = vadd.f32 %v7431, %v7447
    %v7464 = vmul.f32 %v7448, 0.33333334
    %v7465 = vmul.f32 %v7449, 0.33333334
    %v7466 = vmul.f32 %v7450, 0.33333334
    %v7467 = vmul.f32 %v7451, 0.33333334
    %v7468 = vmul.f32 %v7452, 0.33333334
    %v7469 = vmul.f32 %v7453, 0.33333334
    %v7470 = vmul.f32 %v7454, 0.33333334
    %v7471 = vmul.f32 %v7455, 0.33333334
    %v7472 = vmul.f32 %v7456, 0.33333334
    %v7473 = vmul.f32 %v7457, 0.33333334
    %v7474 = vmul.f32 %v7458, 0.33333334
    %v7475 = vmul.f32 %v7459, 0.33333334
    %v7476 = vmul.f32 %v7460, 0.33333334
    %v7477 = vmul.f32 %v7461, 0.33333334
    %v7478 = vmul.f32 %v7462, 0.33333334
    %v7479 = vmul.f32 %v7463, 0.33333334
    %v7480 = vadd.f32 %v7464, %v5027
    %v7481 = vadd.f32 %v7465, %v5028
    %v7482 = vadd.f32 %v7466, %v5029
    %v7483 = vadd.f32 %v7467, %v5030
    %v7484 = vadd.f32 %v7468, %v5031
    %v7485 = vadd.f32 %v7469, %v5032
    %v7486 = vadd.f32 %v7470, %v5033
    %v7487 = vadd.f32 %v7471, %v5034
    %v7488 = vadd.f32 %v7472, %v5035
    %v7489 = vadd.f32 %v7473, %v5036
    %v7490 = vadd.f32 %v7474, %v5037
    %v7491 = vadd.f32 %v7475, %v5038
    %v7492 = vadd.f32 %v7476, %v5039
    %v7493 = vadd.f32 %v7477, %v5040
    %v7494 = vadd.f32 %v7478, %v5041
    %v7495 = vadd.f32 %v7479, %v5042
    %v7496 = vmul.f32 %v7480, 0.5
    %v7497 = vmul.f32 %v7481, 0.5
    %v7498 = vmul.f32 %v7482, 0.5
    %v7499 = vmul.f32 %v7483, 0.5
    %v7500 = vmul.f32 %v7484, 0.5
    %v7501 = vmul.f32 %v7485, 0.5
    %v7502 = vmul.f32 %v7486, 0.5
    %v7503 = vmul.f32 %v7487, 0.5
    %v7504 = vmul.f32 %v7488, 0.5
    %v7505 = vmul.f32 %v7489, 0.5
    %v7506 = vmul.f32 %v7490, 0.5
    %v7507 = vmul.f32 %v7491, 0.5
    %v7508 = vmul.f32 %v7492, 0.5
    %v7509 = vmul.f32 %v7493, 0.5
    %v7510 = vmul.f32 %v7494, 0.5
    %v7511 = vmul.f32 %v7495, 0.5
    %v7512 = vadd.f32 %v5010, %v7496
    %v7513 = vadd.f32 %v5011, %v7497
    %v7514 = vadd.f32 %v5012, %v7498
    %v7515 = vadd.f32 %v5013, %v7499
    %v7516 = vadd.f32 %v5014, %v7500
    %v7517 = vadd.f32 %v5015, %v7501
    %v7518 = vadd.f32 %v5016, %v7502
    %v7519 = vadd.f32 %v5017, %v7503
    %v7520 = vadd.f32 %v5018, %v7504
    %v7521 = vadd.f32 %v5019, %v7505
    %v7522 = vadd.f32 %v5020, %v7506
    %v7523 = vadd.f32 %v5021, %v7507
    %v7524 = vadd.f32 %v5022, %v7508
    %v7525 = vadd.f32 %v5023, %v7509
    %v7526 = vadd.f32 %v5024, %v7510
    %v7527 = vadd.f32 %v5025, %v7511
    %v7528 = vmul.f32 %v7512, 0.33333334
    %v7529 = vmul.f32 %v7513, 0.33333334
    %v7530 = vmul.f32 %v7514, 0.33333334
    %v7531 = vmul.f32 %v7515, 0.33333334
    %v7532 = vmul.f32 %v7516, 0.33333334
    %v7533 = vmul.f32 %v7517, 0.33333334
    %v7534 = vmul.f32 %v7518, 0.33333334
    %v7535 = vmul.f32 %v7519, 0.33333334
    %v7536 = vmul.f32 %v7520, 0.33333334
    %v7537 = vmul.f32 %v7521, 0.33333334
    %v7538 = vmul.f32 %v7522, 0.33333334
    %v7539 = vmul.f32 %v7523, 0.33333334
    %v7540 = vmul.f32 %v7524, 0.33333334
    %v7541 = vmul.f32 %v7525, 0.33333334
    %v7542 = vmul.f32 %v7526, 0.33333334
    %v7543 = vmul.f32 %v7527, 0.33333334
    %7544 = vst [vmem:[#allocation7] sm:$0xff] %v7528
    %7545 = vst [vmem:[#allocation7 + $0x8] sm:$0xff] %v7529
    %7546 = vst [vmem:[#allocation7 + $0x10] sm:$0xff] %v7530
    %7547 = vst [vmem:[#allocation7 + $0x18] sm:$0xff] %v7531
    %7548 = vst [vmem:[#allocation7 + $0x20] sm:$0xff] %v7532
    %7549 = vst [vmem:[#allocation7 + $0x28] sm:$0xff] %v7533
    %7550 = vst [vmem:[#allocation7 + $0x30] sm:$0xff] %v7534
    %7551 = vst [vmem:[#allocation7 + $0x38] sm:$0xff] %v7535
    %7552 = vst [vmem:[#allocation7 + $0x40] sm:$0xff] %v7536
    %7553 = vst [vmem:[#allocation7 + $0x48] sm:$0xff] %v7537
    %7554 = vst [vmem:[#allocation7 + $0x50] sm:$0xff] %v7538
    %7555 = vst [vmem:[#allocation7 + $0x58] sm:$0xff] %v7539
    %7556 = vst [vmem:[#allocation7 + $0x60] sm:$0xff] %v7540
    %7557 = vst [vmem:[#allocation7 + $0x68] sm:$0xff] %v7541
    %7558 = vst [vmem:[#allocation7 + $0x70] sm:$0xff] %v7542
    %7559 = vst [vmem:[#allocation7 + $0x78] sm:$0xff] %v7543
    // Predicated region
    $region18: #{tpu_custom_call.1} parent=1 // pred_check
      _
    $region19: #{tpu_custom_call.1} parent=1 // pred_check_branch
      %7561 = sbr.rel (0) target = $region21
    $region20: #{tpu_custom_call.1} parent=1 // pred_region
      %s7563 = ssub.s32 2048, 2048
      %7564 = vsyncadd [#allocation4], %s7563
      %s7565 = sshll.u32 [#allocation7], 4
      %s7566 = int_to_ptr.vmem [resolvable:$true] %s7565
      %7571 = dma.vmem_to_hbm [thread:$0]  %s7566, 2048, %s2, [#allocation4], 128, 128, 8
    $region21: #{tpu_custom_call.1} parent=1 // pred_fallthru
      _
    // Predicated region
    $region22: #{tpu_custom_call.1} parent=1 // pred_check
      _
    $region23: #{tpu_custom_call.1} parent=1 // pred_check_branch
      %7573 = sbr.rel (0) target = $region25
    $region24: #{tpu_custom_call.1} parent=1 // pred_region
      %7574 = dma.done [#allocation4], 2048
    $region25: #{tpu_custom_call.1} parent=1 // pred_fallthru
      _
    %7575 = vsyncpa [#allocation3], 1
    %7576 = vsyncpa [#allocation6], 1
    %7577 = vsyncpa [#allocation4], 1

</llo_original>
